<compile_context>
chip_gen: v7x
topology: tpu7x:2x2x1
jax: 0.10.0
libtpu: 0.0.40
codegen_flags: <defaults>
</compile_context>

<pallas_src>
import functools

import jax
import jax.numpy as jnp
from jax.experimental import pallas as pl
from jax.experimental.pallas import tpu as pltpu

_LANE = 128


def _round_up(n, m=_LANE):
    return ((n + m - 1) // m) * m


# ----------------------------------------------------------------------------
# Fused kernel
# ----------------------------------------------------------------------------
def _char_rnn_fused_kernel(num_layers, *refs):
    """Fused multi-layer LSTM + FC forward (everything VMEM-resident).

    refs layout:
      inputs : x (Bb,S,V), h0 (L,Bb,Hp), c0 (L,Bb,Hp),
               then per layer: w_ih (In,4Hp), w_hh (Hp,4Hp), bias (1,4Hp),
               then fc_w (Hp,Vp), fc_b (1,Vp)
      outputs: out (Bb*S,Vp), hN (L,Bb,Hp), cN (L,Bb,Hp)
      scratch: seq (Bb,S,Hp) f32 -- per-layer sequence output buffer
    """
    x_ref, h0_ref, c0_ref = refs[:3]
    layer_refs = refs[3:3 + 3 * num_layers]
    fc_w_ref = refs[3 + 3 * num_layers]
    fc_b_ref = refs[4 + 3 * num_layers]
    out_ref = refs[5 + 3 * num_layers]
    hN_ref = refs[6 + 3 * num_layers]
    cN_ref = refs[7 + 3 * num_layers]
    seq_ref = refs[8 + 3 * num_layers]

    Bb, S, _ = x_ref.shape
    Hp = h0_ref.shape[-1]
    f32 = jnp.float32

    inp = x_ref[...].astype(f32)                       # (Bb, S, In) current layer input
    for layer in range(num_layers):
        w_ih_ref, w_hh_ref, b_ref = layer_refs[3 * layer:3 * layer + 3]
        in_dim = inp.shape[-1]

        # Batched input projection for the WHOLE sequence: one MXU matmul per
        # layer with the pre-transposed (In, 4Hp) weight; bias folded in.
        # TODO(synk): for large B*S / 4Hp, chunk S here (and stream layer l+1
        # weights from HBM via make_async_copy) to respect v7x's 64 MiB VMEM.
        xp = (jnp.dot(inp.reshape(Bb * S, in_dim).astype(w_ih_ref.dtype),
                      w_ih_ref[...], preferred_element_type=f32)
              + b_ref[...]).reshape(Bb, S, 4 * Hp)

        w_hh = w_hh_ref[...]                           # (Hp, 4Hp) single fused matrix
        h = h0_ref[layer].astype(f32)                  # (Bb, Hp)
        c = c0_ref[layer].astype(f32)

        # Fully unrolled time loop; only the (Bb,Hp)x(Hp,4Hp) recurrent dot is
        # serial. Gate columns are Hp(=128)-aligned -> lane-aligned slices.
        # TODO(synk): for long S switch to lax.fori_loop(unroll=4..8) over a
        # time-chunked xp to bound vreg live ranges and the VMEM intermediate.
        # TODO(synk): wavefront schedule (layer l, step t) || (layer l-1, t+1)
        # would shorten the serial chain from L*S to ~(L+S-1).
        for t in range(S):
            pre = xp[:, t, :] + jnp.dot(h.astype(w_hh.dtype), w_hh,
                                        preferred_element_type=f32)   # (Bb, 4Hp)
            sig = jax.nn.sigmoid(pre)                  # one EUP pass covers i, f, o
            g_gate = jnp.tanh(pre[:, 2 * Hp:3 * Hp])   # one EUP pass for g
            i_gate = sig[:, 0 * Hp:1 * Hp]
            f_gate = sig[:, 1 * Hp:2 * Hp]
            o_gate = sig[:, 3 * Hp:4 * Hp]
            c = f_gate * c + i_gate * g_gate
            h = o_gate * jnp.tanh(c)
            seq_ref[:, t, :] = h                       # bound live range to one h

        hN_ref[layer] = h.astype(hN_ref.dtype)
        cN_ref[layer] = c.astype(cN_ref.dtype)

        # (Bb, S, Hp) batch-first output of this layer == next layer's input.
        # TODO(synk): inter-layer dropout (p=0.5) omitted -> PyTorch .eval().
        inp = seq_ref[...]

    # FC head over the whole sequence: (Bb*S, Hp) @ (Hp, Vp) + b.
    # Vp is a multiple of 128 -> unmasked, lane-dense stores.
    flat = inp.reshape(Bb * S, Hp)
    out_ref[...] = (jnp.dot(flat.astype(fc_w_ref.dtype), fc_w_ref[...],
                            preferred_element_type=f32)
                    + fc_b_ref[...]).astype(out_ref.dtype)


# ----------------------------------------------------------------------------
# Wrapper
# ----------------------------------------------------------------------------
@jax.jit
def char_rnn_forward(kparams, x, hidden):
    """Mirrors CharRNN.forward (eval mode).

    x      : (B, S, V) batch_first character features
    hidden : (h0, c0), each (L, B, H)
    returns (output (B*S, V), (hN (L,B,H), cN (L,B,H)))
    """
    h0, c0 = hidden
    num_layers, B, H = h0.shape
    _, S, V = x.shape
    Hp = kparams["lstm"][0][1].shape[0]          # w_hh is (Hp, 4Hp)
    Vp = kparams["fc_w"].shape[1]

    # Zero-pad hidden state to the lane-aligned Hp (numerically inert).
    h0p = jnp.pad(h0, ((0, 0), (0, 0), (0, Hp - H)))
    c0p = jnp.pad(c0, ((0, 0), (0, 0), (0, Hp - H)))

    inputs = [x, h0p, c0p]
    for (w_ih, w_hh, bias) in kparams["lstm"]:
        inputs += [w_ih, w_hh, bias]
    inputs += [kparams["fc_w"], kparams["fc_b"]]

    # Batch grid: 2 blocks only when B is large enough that each block keeps
    # full (8,*) sublane tiles -> uses v7x's 2nd TensorCore, costs nothing on
    # 1-TC chips (collapses to a single grid step at small B).
    nb = 2 if (B >= 16 and B % 16 == 0) else 1
    Bb = B // nb

    vmem_full = pl.BlockSpec(memory_space=pltpu.MemorySpace.VMEM)
    in_specs = [
        pl.BlockSpec((Bb, S, V), lambda b: (b, 0, 0)),
        pl.BlockSpec((num_layers, Bb, Hp), lambda b: (0, b, 0)),
        pl.BlockSpec((num_layers, Bb, Hp), lambda b: (0, b, 0)),
    ] + [vmem_full] * (3 * num_layers + 2)
    out_specs = (
        pl.BlockSpec((Bb * S, Vp), lambda b: (b, 0)),
        pl.BlockSpec((num_layers, Bb, Hp), lambda b: (0, b, 0)),
        pl.BlockSpec((num_layers, Bb, Hp), lambda b: (0, b, 0)),
    )

    # Size the scoped-VMEM limit from the actual resident footprint.
    weight_bytes = sum(int(a.size) * a.dtype.itemsize
                       for trio in kparams["lstm"] for a in trio)
    weight_bytes += int(kparams["fc_w"].size) * kparams["fc_w"].dtype.itemsize
    weight_bytes += int(kparams["fc_b"].size) * kparams["fc_b"].dtype.itemsize
    act_bytes = (Bb * S * V + 2 * num_layers * Bb * Hp) * 4      # blocked inputs
    out_bytes = (Bb * S * Vp + 2 * num_layers * Bb * Hp) * 4     # blocked outputs
    scratch_bytes = Bb * S * Hp * 4
    interm_bytes = Bb * S * (5 * Hp) * 4                         # xp + inp per layer
    total = weight_bytes + act_bytes + out_bytes + scratch_bytes + interm_bytes
    vmem_limit = int(min(max(2 * total + (4 << 20), 16 << 20), 64 << 20))

    out_p, hNp, cNp = pl.pallas_call(
        functools.partial(_char_rnn_fused_kernel, num_layers),
        out_shape=(
            jax.ShapeDtypeStruct((B * S, Vp), x.dtype),
            jax.ShapeDtypeStruct((num_layers, B, Hp), h0.dtype),
            jax.ShapeDtypeStruct((num_layers, B, Hp), c0.dtype),
        ),
        grid=(nb,),
        in_specs=in_specs,
        out_specs=out_specs,
        scratch_shapes=[pltpu.VMEM((Bb, S, Hp), jnp.float32)],
        compiler_params=pltpu.CompilerParams(
            dimension_semantics=("parallel",),
            vmem_limit_bytes=vmem_limit),
    )(*inputs)

    # Strip the lane padding outside the kernel.
    out = out_p[:, :V]
    hN = hNp[..., :H]
    cN = cNp[..., :H]
    return out, (hN, cN)


# ----------------------------------------------------------------------------
# Parameters: PyTorch layout -> kernel layout (done ONCE, outside the hot path)
# ----------------------------------------------------------------------------
def init_params(key, vocab, num_hidden, num_layers, dtype=jnp.float32):
    """PyTorch-layout params: W_ih (4H,In), W_hh (4H,H), b_ih/b_hh (4H,),
    fc W (V,H), fc b (V,).  uniform(-1/sqrt(H), 1/sqrt(H))."""
    H = num_hidden
    bound = float(H) ** -0.5
    params = {"lstm": []}
    for layer in range(num_layers):
        in_size = vocab if layer == 0 else H
        key, k1, k2, k3, k4 = jax.random.split(key, 5)
        w_ih = jax.random.uniform(k1, (4 * H, in_size), dtype, -bound, bound)
        w_hh = jax.random.uniform(k2, (4 * H, H), dtype, -bound, bound)
        b_ih = jax.random.uniform(k3, (4 * H,), dtype, -bound, bound)
        b_hh = jax.random.uniform(k4, (4 * H,), dtype, -bound, bound)
        params["lstm"].append((w_ih, w_hh, b_ih, b_hh))
    key, k5, k6 = jax.random.split(key, 3)
    params["fc_w"] = jax.random.uniform(k5, (vocab, H), dtype, -bound, bound)
    params["fc_b"] = jax.random.uniform(k6, (vocab,), dtype, -bound, bound)
    return params


def prepare_params(params, weights_dtype=jnp.float32):
    """One-time conversion to kernel layout (lane-padded, pre-transposed):
       W_ih -> (In[, padded to Hp for layers>0], 4Hp)
       W_hh -> single fused (Hp, 4Hp)         (columns in gate order [i|f|g|o])
       bias -> (1, 4Hp) = b_ih + b_hh
       fc W -> (Hp, Vp);  fc b -> (1, Vp)
    Zero padding of H/V is numerically inert. Set weights_dtype=jnp.bfloat16 to
    halve weight DMA/VMEM; gate math / h / c stay f32 in the kernel."""
    kp = {"lstm": []}
    for layer, (w_ih, w_hh, b_ih, b_hh) in enumerate(params["lstm"]):
        H = w_hh.shape[1]
        In = w_ih.shape[1]
        Hp = _round_up(H)
        Inp = In if layer == 0 else _round_up(In)   # layers>0 consume padded h
        # PyTorch gate order [i, f, g, o]; per-gate (H, In)/(H, H) blocks.
        w_ih_g = jnp.transpose(w_ih.reshape(4, H, In), (0, 2, 1))   # (4, In, H)
        w_hh_g = jnp.transpose(w_hh.reshape(4, H, H), (0, 2, 1))    # (4, H, H)
        bias_g = (b_ih + b_hh).reshape(4, H)
        w_ih_g = jnp.pad(w_ih_g, ((0, 0), (0, Inp - In), (0, Hp - H)))
        w_hh_g = jnp.pad(w_hh_g, ((0, 0), (0, Hp - H), (0, Hp - H)))
        bias_g = jnp.pad(bias_g, ((0, 0), (0, Hp - H)))
        w_ih_k = jnp.concatenate(list(w_ih_g), axis=1).astype(weights_dtype)
        w_hh_k = jnp.concatenate(list(w_hh_g), axis=1).astype(weights_dtype)
        bias_k = bias_g.reshape(1, 4 * Hp).astype(jnp.float32)
        kp["lstm"].append((w_ih_k, w_hh_k, bias_k))
    V, H = params["fc_w"].shape
    Hp, Vp = _round_up(H), _round_up(V)
    fc_w = jnp.pad(jnp.transpose(params["fc_w"]), ((0, Hp - H), (0, Vp - V)))
    fc_b = jnp.pad(params["fc_b"], (0, Vp - V)).reshape(1, Vp)
    kp["fc_w"] = fc_w.astype(weights_dtype)
    kp["fc_b"] = fc_b.astype(jnp.float32)
    return kp


# ----------------------------------------------------------------------------
# Pure-JAX reference (PyTorch LSTM semantics, eval-mode dropout)
# ----------------------------------------------------------------------------
def _reference_forward(params, x, hidden):
    hp = jax.lax.Precision.HIGHEST
    h0_all, c0_all = hidden
    inp = x
    hN, cN = [], []
    for layer, (w_ih, w_hh, b_ih, b_hh) in enumerate(params["lstm"]):
        H = w_hh.shape[1]
        h, c = h0_all[layer], c0_all[layer]
        ys = []
        for t in range(inp.shape[1]):
            gates = (jnp.dot(inp[:, t, :], w_ih.T, precision=hp) + b_ih
                     + jnp.dot(h, w_hh.T, precision=hp) + b_hh)
            i_g = jax.nn.sigmoid(gates[:, 0 * H:1 * H])
            f_g = jax.nn.sigmoid(gates[:, 1 * H:2 * H])
            g_g = jnp.tanh(gates[:, 2 * H:3 * H])
            o_g = jax.nn.sigmoid(gates[:, 3 * H:4 * H])
            c = f_g * c + i_g * g_g
            h = o_g * jnp.tanh(c)
            ys.append(h)
        hN.append(h)
        cN.append(c)
        inp = jnp.stack(ys, axis=1)
    flat = inp.reshape(-1, inp.shape[-1])
    out = jnp.dot(flat, params["fc_w"].T, precision=hp) + params["fc_b"]
    return out, (jnp.stack(hN, axis=0), jnp.stack(cN, axis=0))


# ----------------------------------------------------------------------------
if __name__ == "__main__":
    batch = 2
    seq = 8
    num_hidden = 32
    num_layers = 3
    all_chars = "abcdefghijklmnop"          # len = 16 -> vocab
    vocab = len(all_chars)

    key = jax.random.PRNGKey(0)
    key, kx = jax.random.split(key)
    torch_params = init_params(key, vocab, num_hidden, num_layers)
    kparams = prepare_params(torch_params)   # f32 weights -> tight check below

    # input: (batch, seq, vocab) float features (e.g. one-hot encoded chars)
    x = jax.random.normal(kx, (batch, seq, vocab), jnp.float32)

    # hidden_state(batch): zeros
    h0 = jnp.zeros((num_layers, batch, num_hidden), jnp.float32)
    c0 = jnp.zeros((num_layers, batch, num_hidden), jnp.float32)

    output, (hN, cN) = char_rnn_forward(kparams, x, (h0, c0))
    jax.block_until_ready((output, hN, cN))

    assert output.shape == (batch * seq, vocab)
    assert hN.shape == (num_layers, batch, num_hidden)
    assert cN.shape == (num_layers, batch, num_hidden)

    # Sanity-check against a pure-JAX reference of the PyTorch forward.
    # Tightened vs. the previous 5e-2; 1e-2 leaves headroom for MXU f32
    # pass-decomposition while still catching gross precision regressions.
    ref_out, (ref_hN, ref_cN) = _reference_forward(torch_params, x, (h0, c0))
    assert float(jnp.max(jnp.abs(output - ref_out))) < 1e-2
    assert float(jnp.max(jnp.abs(hN - ref_hN))) < 1e-2
    assert float(jnp.max(jnp.abs(cN - ref_cN))) < 1e-2

    print("KERNEL_OK")
</pallas_src>

<mosaic_0001>
module attributes {stable_mosaic.version = 11 : i64} {
  func.func @_char_rnn_fused_kernel(%arg0: i32, %arg1: memref<2x8x16xf32, #tpu.memory_space<vmem>>, %arg2: memref<3x2x128xf32, #tpu.memory_space<vmem>>, %arg3: memref<3x2x128xf32, #tpu.memory_space<vmem>>, %arg4: memref<16x512xf32, #tpu.memory_space<vmem>>, %arg5: memref<128x512xf32, #tpu.memory_space<vmem>>, %arg6: memref<1x512xf32, #tpu.memory_space<vmem>>, %arg7: memref<128x512xf32, #tpu.memory_space<vmem>>, %arg8: memref<128x512xf32, #tpu.memory_space<vmem>>, %arg9: memref<1x512xf32, #tpu.memory_space<vmem>>, %arg10: memref<128x512xf32, #tpu.memory_space<vmem>>, %arg11: memref<128x512xf32, #tpu.memory_space<vmem>>, %arg12: memref<1x512xf32, #tpu.memory_space<vmem>>, %arg13: memref<128x128xf32, #tpu.memory_space<vmem>>, %arg14: memref<1x128xf32, #tpu.memory_space<vmem>>, %arg15: memref<16x128xf32, #tpu.memory_space<vmem>>, %arg16: memref<3x2x128xf32, #tpu.memory_space<vmem>>, %arg17: memref<3x2x128xf32, #tpu.memory_space<vmem>>, %arg18: memref<2x8x128xf32, #tpu.memory_space<vmem>>) attributes {dimension_semantics = [#tpu.dimension_semantics<parallel>], iteration_bounds = array<i64: 1>, scalar_prefetch = 0 : i64, scratch_operands = 1 : i64, tpu.core_type = #tpu.core_type<tc>, window_params = [{transform_indices = @transform_0, window_bounds = array<i64: 2, 8, 16>}, {transform_indices = @transform_1, window_bounds = array<i64: 3, 2, 128>}, {transform_indices = @transform_2, window_bounds = array<i64: 3, 2, 128>}, {pipeline_mode = #tpu.pipeline_mode<synchronous>, transform_indices = @transform_3, window_bounds = array<i64: 16, 512>}, {pipeline_mode = #tpu.pipeline_mode<synchronous>, transform_indices = @transform_4, window_bounds = array<i64: 128, 512>}, {pipeline_mode = #tpu.pipeline_mode<synchronous>, transform_indices = @transform_5, window_bounds = array<i64: 1, 512>}, {pipeline_mode = #tpu.pipeline_mode<synchronous>, transform_indices = @transform_6, window_bounds = array<i64: 128, 512>}, {pipeline_mode = #tpu.pipeline_mode<synchronous>, transform_indices = @transform_7, window_bounds = array<i64: 128, 512>}, {pipeline_mode = #tpu.pipeline_mode<synchronous>, transform_indices = @transform_8, window_bounds = array<i64: 1, 512>}, {pipeline_mode = #tpu.pipeline_mode<synchronous>, transform_indices = @transform_9, window_bounds = array<i64: 128, 512>}, {pipeline_mode = #tpu.pipeline_mode<synchronous>, transform_indices = @transform_10, window_bounds = array<i64: 128, 512>}, {pipeline_mode = #tpu.pipeline_mode<synchronous>, transform_indices = @transform_11, window_bounds = array<i64: 1, 512>}, {pipeline_mode = #tpu.pipeline_mode<synchronous>, transform_indices = @transform_12, window_bounds = array<i64: 128, 128>}, {pipeline_mode = #tpu.pipeline_mode<synchronous>, transform_indices = @transform_13, window_bounds = array<i64: 1, 128>}, {transform_indices = @transform_14, window_bounds = array<i64: 16, 128>}, {transform_indices = @transform_15, window_bounds = array<i64: 3, 2, 128>}, {transform_indices = @transform_16, window_bounds = array<i64: 3, 2, 128>}]} {
    %c0 = arith.constant 0 : index
    %c0_0 = arith.constant 0 : index
    %c0_1 = arith.constant 0 : index
    %0 = vector.load %arg1[%c0, %c0_0, %c0_1] : memref<2x8x16xf32, #tpu.memory_space<vmem>>, vector<2x8x16xf32>
    %1 = vector.shape_cast %0 : vector<2x8x16xf32> to vector<16x16xf32>
    %c0_2 = arith.constant 0 : index
    %c0_3 = arith.constant 0 : index
    %2 = vector.load %arg4[%c0_2, %c0_3] : memref<16x512xf32, #tpu.memory_space<vmem>>, vector<16x512xf32>
    %cst = arith.constant dense<0.000000e+00> : vector<16x512xf32>
    %3 = tpu.matmul %1, %2, %cst {dimension_numbers = #tpu.dot_dimension_numbers<[1], [0], [0], [1], [0, 0, 1, 1], [], []>} : vector<16x16xf32>, vector<16x512xf32>, vector<16x512xf32> -> vector<16x512xf32>
    %c0_4 = arith.constant 0 : index
    %c0_5 = arith.constant 0 : index
    %4 = vector.load %arg6[%c0_4, %c0_5] : memref<1x512xf32, #tpu.memory_space<vmem>>, vector<1x512xf32>
    %5 = vector.broadcast %4 : vector<1x512xf32> to vector<16x512xf32>
    %6 = arith.addf %3, %5 : vector<16x512xf32>
    %7 = vector.shape_cast %6 : vector<16x512xf32> to vector<2x8x512xf32>
    %c0_6 = arith.constant 0 : index
    %c0_7 = arith.constant 0 : index
    %8 = vector.load %arg5[%c0_6, %c0_7] : memref<128x512xf32, #tpu.memory_space<vmem>>, vector<128x512xf32>
    %c0_8 = arith.constant 0 : index
    %c0_9 = arith.constant 0 : index
    %c0_10 = arith.constant 0 : index
    %9 = vector.load %arg2[%c0_8, %c0_9, %c0_10] : memref<3x2x128xf32, #tpu.memory_space<vmem>>, vector<1x2x128xf32>
    %10 = vector.shape_cast %9 : vector<1x2x128xf32> to vector<2x128xf32>
    %c0_11 = arith.constant 0 : index
    %c0_12 = arith.constant 0 : index
    %c0_13 = arith.constant 0 : index
    %11 = vector.load %arg3[%c0_11, %c0_12, %c0_13] : memref<3x2x128xf32, #tpu.memory_space<vmem>>, vector<1x2x128xf32>
    %12 = vector.shape_cast %11 : vector<1x2x128xf32> to vector<2x128xf32>
    %13 = vector.extract_strided_slice %7 {offsets = [0, 0, 0], sizes = [2, 1, 512], strides = [1, 1, 1]} : vector<2x8x512xf32> to vector<2x1x512xf32>
    %14 = vector.shape_cast %13 : vector<2x1x512xf32> to vector<2x512xf32>
    %cst_14 = arith.constant dense<0.000000e+00> : vector<2x512xf32>
    %15 = tpu.matmul %10, %8, %cst_14 {dimension_numbers = #tpu.dot_dimension_numbers<[1], [0], [0], [1], [0, 0, 1, 1], [], []>} : vector<2x128xf32>, vector<128x512xf32>, vector<2x512xf32> -> vector<2x512xf32>
    %16 = arith.addf %14, %15 : vector<2x512xf32>
    %17 = arith.negf %16 : vector<2x512xf32>
    %18 = math.exp %17 : vector<2x512xf32>
    %cst_15 = arith.constant 1.000000e+00 : f32
    %19 = vector.broadcast %cst_15 : f32 to vector<2x512xf32>
    %20 = arith.addf %19, %18 : vector<2x512xf32>
    %21 = arith.divf %19, %20 : vector<2x512xf32>
    %22 = vector.extract_strided_slice %16 {offsets = [0, 256], sizes = [2, 128], strides = [1, 1]} : vector<2x512xf32> to vector<2x128xf32>
    %23 = math.tanh %22 : vector<2x128xf32>
    %24 = vector.extract_strided_slice %21 {offsets = [0, 0], sizes = [2, 128], strides = [1, 1]} : vector<2x512xf32> to vector<2x128xf32>
    %25 = vector.extract_strided_slice %21 {offsets = [0, 128], sizes = [2, 128], strides = [1, 1]} : vector<2x512xf32> to vector<2x128xf32>
    %26 = vector.extract_strided_slice %21 {offsets = [0, 384], sizes = [2, 128], strides = [1, 1]} : vector<2x512xf32> to vector<2x128xf32>
    %27 = arith.mulf %25, %12 : vector<2x128xf32>
    %28 = arith.mulf %24, %23 : vector<2x128xf32>
    %29 = arith.addf %27, %28 : vector<2x128xf32>
    %30 = math.tanh %29 : vector<2x128xf32>
    %31 = arith.mulf %26, %30 : vector<2x128xf32>
    %c0_16 = arith.constant 0 : index
    %c0_17 = arith.constant 0 : index
    %c0_18 = arith.constant 0 : index
    %32 = vector.load %arg18[%c0_16, %c0_17, %c0_18] : memref<2x8x128xf32, #tpu.memory_space<vmem>>, vector<2x1x128xf32>
    %33 = vector.shape_cast %32 : vector<2x1x128xf32> to vector<2x128xf32>
    %34 = vector.shape_cast %31 : vector<2x128xf32> to vector<2x1x128xf32>
    tpu.vector_store %arg18[%c0_16, %c0_17, %c0_18], %34 {strides = array<i32>} : memref<2x8x128xf32, #tpu.memory_space<vmem>>, vector<2x1x128xf32>,
    %35 = vector.extract_strided_slice %7 {offsets = [0, 1, 0], sizes = [2, 1, 512], strides = [1, 1, 1]} : vector<2x8x512xf32> to vector<2x1x512xf32>
    %36 = vector.shape_cast %35 : vector<2x1x512xf32> to vector<2x512xf32>
    %cst_19 = arith.constant dense<0.000000e+00> : vector<2x512xf32>
    %37 = tpu.matmul %31, %8, %cst_19 {dimension_numbers = #tpu.dot_dimension_numbers<[1], [0], [0], [1], [0, 0, 1, 1], [], []>} : vector<2x128xf32>, vector<128x512xf32>, vector<2x512xf32> -> vector<2x512xf32>
    %38 = arith.addf %36, %37 : vector<2x512xf32>
    %39 = arith.negf %38 : vector<2x512xf32>
    %40 = math.exp %39 : vector<2x512xf32>
    %cst_20 = arith.constant 1.000000e+00 : f32
    %41 = vector.broadcast %cst_20 : f32 to vector<2x512xf32>
    %42 = arith.addf %41, %40 : vector<2x512xf32>
    %43 = arith.divf %41, %42 : vector<2x512xf32>
    %44 = vector.extract_strided_slice %38 {offsets = [0, 256], sizes = [2, 128], strides = [1, 1]} : vector<2x512xf32> to vector<2x128xf32>
    %45 = math.tanh %44 : vector<2x128xf32>
    %46 = vector.extract_strided_slice %43 {offsets = [0, 0], sizes = [2, 128], strides = [1, 1]} : vector<2x512xf32> to vector<2x128xf32>
    %47 = vector.extract_strided_slice %43 {offsets = [0, 128], sizes = [2, 128], strides = [1, 1]} : vector<2x512xf32> to vector<2x128xf32>
    %48 = vector.extract_strided_slice %43 {offsets = [0, 384], sizes = [2, 128], strides = [1, 1]} : vector<2x512xf32> to vector<2x128xf32>
    %49 = arith.mulf %47, %29 : vector<2x128xf32>
    %50 = arith.mulf %46, %45 : vector<2x128xf32>
    %51 = arith.addf %49, %50 : vector<2x128xf32>
    %52 = math.tanh %51 : vector<2x128xf32>
    %53 = arith.mulf %48, %52 : vector<2x128xf32>
    %c0_21 = arith.constant 0 : index
    %c1 = arith.constant 1 : index
    %c0_22 = arith.constant 0 : index
    %54 = vector.load %arg18[%c0_21, %c1, %c0_22] : memref<2x8x128xf32, #tpu.memory_space<vmem>>, vector<2x1x128xf32>
    %55 = vector.shape_cast %54 : vector<2x1x128xf32> to vector<2x128xf32>
    %56 = vector.shape_cast %53 : vector<2x128xf32> to vector<2x1x128xf32>
    tpu.vector_store %arg18[%c0_21, %c1, %c0_22], %56 {strides = array<i32>} : memref<2x8x128xf32, #tpu.memory_space<vmem>>, vector<2x1x128xf32>,
    %57 = vector.extract_strided_slice %7 {offsets = [0, 2, 0], sizes = [2, 1, 512], strides = [1, 1, 1]} : vector<2x8x512xf32> to vector<2x1x512xf32>
    %58 = vector.shape_cast %57 : vector<2x1x512xf32> to vector<2x512xf32>
    %cst_23 = arith.constant dense<0.000000e+00> : vector<2x512xf32>
    %59 = tpu.matmul %53, %8, %cst_23 {dimension_numbers = #tpu.dot_dimension_numbers<[1], [0], [0], [1], [0, 0, 1, 1], [], []>} : vector<2x128xf32>, vector<128x512xf32>, vector<2x512xf32> -> vector<2x512xf32>
    %60 = arith.addf %58, %59 : vector<2x512xf32>
    %61 = arith.negf %60 : vector<2x512xf32>
    %62 = math.exp %61 : vector<2x512xf32>
    %cst_24 = arith.constant 1.000000e+00 : f32
    %63 = vector.broadcast %cst_24 : f32 to vector<2x512xf32>
    %64 = arith.addf %63, %62 : vector<2x512xf32>
    %65 = arith.divf %63, %64 : vector<2x512xf32>
    %66 = vector.extract_strided_slice %60 {offsets = [0, 256], sizes = [2, 128], strides = [1, 1]} : vector<2x512xf32> to vector<2x128xf32>
    %67 = math.tanh %66 : vector<2x128xf32>
    %68 = vector.extract_strided_slice %65 {offsets = [0, 0], sizes = [2, 128], strides = [1, 1]} : vector<2x512xf32> to vector<2x128xf32>
    %69 = vector.extract_strided_slice %65 {offsets = [0, 128], sizes = [2, 128], strides = [1, 1]} : vector<2x512xf32> to vector<2x128xf32>
    %70 = vector.extract_strided_slice %65 {offsets = [0, 384], sizes = [2, 128], strides = [1, 1]} : vector<2x512xf32> to vector<2x128xf32>
    %71 = arith.mulf %69, %51 : vector<2x128xf32>
    %72 = arith.mulf %68, %67 : vector<2x128xf32>
    %73 = arith.addf %71, %72 : vector<2x128xf32>
    %74 = math.tanh %73 : vector<2x128xf32>
    %75 = arith.mulf %70, %74 : vector<2x128xf32>
    %c0_25 = arith.constant 0 : index
    %c2 = arith.constant 2 : index
    %c0_26 = arith.constant 0 : index
    %76 = vector.load %arg18[%c0_25, %c2, %c0_26] : memref<2x8x128xf32, #tpu.memory_space<vmem>>, vector<2x1x128xf32>
    %77 = vector.shape_cast %76 : vector<2x1x128xf32> to vector<2x128xf32>
    %78 = vector.shape_cast %75 : vector<2x128xf32> to vector<2x1x128xf32>
    tpu.vector_store %arg18[%c0_25, %c2, %c0_26], %78 {strides = array<i32>} : memref<2x8x128xf32, #tpu.memory_space<vmem>>, vector<2x1x128xf32>,
    %79 = vector.extract_strided_slice %7 {offsets = [0, 3, 0], sizes = [2, 1, 512], strides = [1, 1, 1]} : vector<2x8x512xf32> to vector<2x1x512xf32>
    %80 = vector.shape_cast %79 : vector<2x1x512xf32> to vector<2x512xf32>
    %cst_27 = arith.constant dense<0.000000e+00> : vector<2x512xf32>
    %81 = tpu.matmul %75, %8, %cst_27 {dimension_numbers = #tpu.dot_dimension_numbers<[1], [0], [0], [1], [0, 0, 1, 1], [], []>} : vector<2x128xf32>, vector<128x512xf32>, vector<2x512xf32> -> vector<2x512xf32>
    %82 = arith.addf %80, %81 : vector<2x512xf32>
    %83 = arith.negf %82 : vector<2x512xf32>
    %84 = math.exp %83 : vector<2x512xf32>
    %cst_28 = arith.constant 1.000000e+00 : f32
    %85 = vector.broadcast %cst_28 : f32 to vector<2x512xf32>
    %86 = arith.addf %85, %84 : vector<2x512xf32>
    %87 = arith.divf %85, %86 : vector<2x512xf32>
    %88 = vector.extract_strided_slice %82 {offsets = [0, 256], sizes = [2, 128], strides = [1, 1]} : vector<2x512xf32> to vector<2x128xf32>
    %89 = math.tanh %88 : vector<2x128xf32>
    %90 = vector.extract_strided_slice %87 {offsets = [0, 0], sizes = [2, 128], strides = [1, 1]} : vector<2x512xf32> to vector<2x128xf32>
    %91 = vector.extract_strided_slice %87 {offsets = [0, 128], sizes = [2, 128], strides = [1, 1]} : vector<2x512xf32> to vector<2x128xf32>
    %92 = vector.extract_strided_slice %87 {offsets = [0, 384], sizes = [2, 128], strides = [1, 1]} : vector<2x512xf32> to vector<2x128xf32>
    %93 = arith.mulf %91, %73 : vector<2x128xf32>
    %94 = arith.mulf %90, %89 : vector<2x128xf32>
    %95 = arith.addf %93, %94 : vector<2x128xf32>
    %96 = math.tanh %95 : vector<2x128xf32>
    %97 = arith.mulf %92, %96 : vector<2x128xf32>
    %c0_29 = arith.constant 0 : index
    %c3 = arith.constant 3 : index
    %c0_30 = arith.constant 0 : index
    %98 = vector.load %arg18[%c0_29, %c3, %c0_30] : memref<2x8x128xf32, #tpu.memory_space<vmem>>, vector<2x1x128xf32>
    %99 = vector.shape_cast %98 : vector<2x1x128xf32> to vector<2x128xf32>
    %100 = vector.shape_cast %97 : vector<2x128xf32> to vector<2x1x128xf32>
    tpu.vector_store %arg18[%c0_29, %c3, %c0_30], %100 {strides = array<i32>} : memref<2x8x128xf32, #tpu.memory_space<vmem>>, vector<2x1x128xf32>,
    %101 = vector.extract_strided_slice %7 {offsets = [0, 4, 0], sizes = [2, 1, 512], strides = [1, 1, 1]} : vector<2x8x512xf32> to vector<2x1x512xf32>
    %102 = vector.shape_cast %101 : vector<2x1x512xf32> to vector<2x512xf32>
    %cst_31 = arith.constant dense<0.000000e+00> : vector<2x512xf32>
    %103 = tpu.matmul %97, %8, %cst_31 {dimension_numbers = #tpu.dot_dimension_numbers<[1], [0], [0], [1], [0, 0, 1, 1], [], []>} : vector<2x128xf32>, vector<128x512xf32>, vector<2x512xf32> -> vector<2x512xf32>
    %104 = arith.addf %102, %103 : vector<2x512xf32>
    %105 = arith.negf %104 : vector<2x512xf32>
    %106 = math.exp %105 : vector<2x512xf32>
    %cst_32 = arith.constant 1.000000e+00 : f32
    %107 = vector.broadcast %cst_32 : f32 to vector<2x512xf32>
    %108 = arith.addf %107, %106 : vector<2x512xf32>
    %109 = arith.divf %107, %108 : vector<2x512xf32>
    %110 = vector.extract_strided_slice %104 {offsets = [0, 256], sizes = [2, 128], strides = [1, 1]} : vector<2x512xf32> to vector<2x128xf32>
    %111 = math.tanh %110 : vector<2x128xf32>
    %112 = vector.extract_strided_slice %109 {offsets = [0, 0], sizes = [2, 128], strides = [1, 1]} : vector<2x512xf32> to vector<2x128xf32>
    %113 = vector.extract_strided_slice %109 {offsets = [0, 128], sizes = [2, 128], strides = [1, 1]} : vector<2x512xf32> to vector<2x128xf32>
    %114 = vector.extract_strided_slice %109 {offsets = [0, 384], sizes = [2, 128], strides = [1, 1]} : vector<2x512xf32> to vector<2x128xf32>
    %115 = arith.mulf %113, %95 : vector<2x128xf32>
    %116 = arith.mulf %112, %111 : vector<2x128xf32>
    %117 = arith.addf %115, %116 : vector<2x128xf32>
    %118 = math.tanh %117 : vector<2x128xf32>
    %119 = arith.mulf %114, %118 : vector<2x128xf32>
    %c0_33 = arith.constant 0 : index
    %c4 = arith.constant 4 : index
    %c0_34 = arith.constant 0 : index
    %120 = vector.load %arg18[%c0_33, %c4, %c0_34] : memref<2x8x128xf32, #tpu.memory_space<vmem>>, vector<2x1x128xf32>
    %121 = vector.shape_cast %120 : vector<2x1x128xf32> to vector<2x128xf32>
    %122 = vector.shape_cast %119 : vector<2x128xf32> to vector<2x1x128xf32>
    tpu.vector_store %arg18[%c0_33, %c4, %c0_34], %122 {strides = array<i32>} : memref<2x8x128xf32, #tpu.memory_space<vmem>>, vector<2x1x128xf32>,
    %123 = vector.extract_strided_slice %7 {offsets = [0, 5, 0], sizes = [2, 1, 512], strides = [1, 1, 1]} : vector<2x8x512xf32> to vector<2x1x512xf32>
    %124 = vector.shape_cast %123 : vector<2x1x512xf32> to vector<2x512xf32>
    %cst_35 = arith.constant dense<0.000000e+00> : vector<2x512xf32>
    %125 = tpu.matmul %119, %8, %cst_35 {dimension_numbers = #tpu.dot_dimension_numbers<[1], [0], [0], [1], [0, 0, 1, 1], [], []>} : vector<2x128xf32>, vector<128x512xf32>, vector<2x512xf32> -> vector<2x512xf32>
    %126 = arith.addf %124, %125 : vector<2x512xf32>
    %127 = arith.negf %126 : vector<2x512xf32>
    %128 = math.exp %127 : vector<2x512xf32>
    %cst_36 = arith.constant 1.000000e+00 : f32
    %129 = vector.broadcast %cst_36 : f32 to vector<2x512xf32>
    %130 = arith.addf %129, %128 : vector<2x512xf32>
    %131 = arith.divf %129, %130 : vector<2x512xf32>
    %132 = vector.extract_strided_slice %126 {offsets = [0, 256], sizes = [2, 128], strides = [1, 1]} : vector<2x512xf32> to vector<2x128xf32>
    %133 = math.tanh %132 : vector<2x128xf32>
    %134 = vector.extract_strided_slice %131 {offsets = [0, 0], sizes = [2, 128], strides = [1, 1]} : vector<2x512xf32> to vector<2x128xf32>
    %135 = vector.extract_strided_slice %131 {offsets = [0, 128], sizes = [2, 128], strides = [1, 1]} : vector<2x512xf32> to vector<2x128xf32>
    %136 = vector.extract_strided_slice %131 {offsets = [0, 384], sizes = [2, 128], strides = [1, 1]} : vector<2x512xf32> to vector<2x128xf32>
    %137 = arith.mulf %135, %117 : vector<2x128xf32>
    %138 = arith.mulf %134, %133 : vector<2x128xf32>
    %139 = arith.addf %137, %138 : vector<2x128xf32>
    %140 = math.tanh %139 : vector<2x128xf32>
    %141 = arith.mulf %136, %140 : vector<2x128xf32>
    %c0_37 = arith.constant 0 : index
    %c5 = arith.constant 5 : index
    %c0_38 = arith.constant 0 : index
    %142 = vector.load %arg18[%c0_37, %c5, %c0_38] : memref<2x8x128xf32, #tpu.memory_space<vmem>>, vector<2x1x128xf32>
    %143 = vector.shape_cast %142 : vector<2x1x128xf32> to vector<2x128xf32>
    %144 = vector.shape_cast %141 : vector<2x128xf32> to vector<2x1x128xf32>
    tpu.vector_store %arg18[%c0_37, %c5, %c0_38], %144 {strides = array<i32>} : memref<2x8x128xf32, #tpu.memory_space<vmem>>, vector<2x1x128xf32>,
    %145 = vector.extract_strided_slice %7 {offsets = [0, 6, 0], sizes = [2, 1, 512], strides = [1, 1, 1]} : vector<2x8x512xf32> to vector<2x1x512xf32>
    %146 = vector.shape_cast %145 : vector<2x1x512xf32> to vector<2x512xf32>
    %cst_39 = arith.constant dense<0.000000e+00> : vector<2x512xf32>
    %147 = tpu.matmul %141, %8, %cst_39 {dimension_numbers = #tpu.dot_dimension_numbers<[1], [0], [0], [1], [0, 0, 1, 1], [], []>} : vector<2x128xf32>, vector<128x512xf32>, vector<2x512xf32> -> vector<2x512xf32>
    %148 = arith.addf %146, %147 : vector<2x512xf32>
    %149 = arith.negf %148 : vector<2x512xf32>
    %150 = math.exp %149 : vector<2x512xf32>
    %cst_40 = arith.constant 1.000000e+00 : f32
    %151 = vector.broadcast %cst_40 : f32 to vector<2x512xf32>
    %152 = arith.addf %151, %150 : vector<2x512xf32>
    %153 = arith.divf %151, %152 : vector<2x512xf32>
    %154 = vector.extract_strided_slice %148 {offsets = [0, 256], sizes = [2, 128], strides = [1, 1]} : vector<2x512xf32> to vector<2x128xf32>
    %155 = math.tanh %154 : vector<2x128xf32>
    %156 = vector.extract_strided_slice %153 {offsets = [0, 0], sizes = [2, 128], strides = [1, 1]} : vector<2x512xf32> to vector<2x128xf32>
    %157 = vector.extract_strided_slice %153 {offsets = [0, 128], sizes = [2, 128], strides = [1, 1]} : vector<2x512xf32> to vector<2x128xf32>
    %158 = vector.extract_strided_slice %153 {offsets = [0, 384], sizes = [2, 128], strides = [1, 1]} : vector<2x512xf32> to vector<2x128xf32>
    %159 = arith.mulf %157, %139 : vector<2x128xf32>
    %160 = arith.mulf %156, %155 : vector<2x128xf32>
    %161 = arith.addf %159, %160 : vector<2x128xf32>
    %162 = math.tanh %161 : vector<2x128xf32>
    %163 = arith.mulf %158, %162 : vector<2x128xf32>
    %c0_41 = arith.constant 0 : index
    %c6 = arith.constant 6 : index
    %c0_42 = arith.constant 0 : index
    %164 = vector.load %arg18[%c0_41, %c6, %c0_42] : memref<2x8x128xf32, #tpu.memory_space<vmem>>, vector<2x1x128xf32>
    %165 = vector.shape_cast %164 : vector<2x1x128xf32> to vector<2x128xf32>
    %166 = vector.shape_cast %163 : vector<2x128xf32> to vector<2x1x128xf32>
    tpu.vector_store %arg18[%c0_41, %c6, %c0_42], %166 {strides = array<i32>} : memref<2x8x128xf32, #tpu.memory_space<vmem>>, vector<2x1x128xf32>,
    %167 = vector.extract_strided_slice %7 {offsets = [0, 7, 0], sizes = [2, 1, 512], strides = [1, 1, 1]} : vector<2x8x512xf32> to vector<2x1x512xf32>
    %168 = vector.shape_cast %167 : vector<2x1x512xf32> to vector<2x512xf32>
    %cst_43 = arith.constant dense<0.000000e+00> : vector<2x512xf32>
    %169 = tpu.matmul %163, %8, %cst_43 {dimension_numbers = #tpu.dot_dimension_numbers<[1], [0], [0], [1], [0, 0, 1, 1], [], []>} : vector<2x128xf32>, vector<128x512xf32>, vector<2x512xf32> -> vector<2x512xf32>
    %170 = arith.addf %168, %169 : vector<2x512xf32>
    %171 = arith.negf %170 : vector<2x512xf32>
    %172 = math.exp %171 : vector<2x512xf32>
    %cst_44 = arith.constant 1.000000e+00 : f32
    %173 = vector.broadcast %cst_44 : f32 to vector<2x512xf32>
    %174 = arith.addf %173, %172 : vector<2x512xf32>
    %175 = arith.divf %173, %174 : vector<2x512xf32>
    %176 = vector.extract_strided_slice %170 {offsets = [0, 256], sizes = [2, 128], strides = [1, 1]} : vector<2x512xf32> to vector<2x128xf32>
    %177 = math.tanh %176 : vector<2x128xf32>
    %178 = vector.extract_strided_slice %175 {offsets = [0, 0], sizes = [2, 128], strides = [1, 1]} : vector<2x512xf32> to vector<2x128xf32>
    %179 = vector.extract_strided_slice %175 {offsets = [0, 128], sizes = [2, 128], strides = [1, 1]} : vector<2x512xf32> to vector<2x128xf32>
    %180 = vector.extract_strided_slice %175 {offsets = [0, 384], sizes = [2, 128], strides = [1, 1]} : vector<2x512xf32> to vector<2x128xf32>
    %181 = arith.mulf %179, %161 : vector<2x128xf32>
    %182 = arith.mulf %178, %177 : vector<2x128xf32>
    %183 = arith.addf %181, %182 : vector<2x128xf32>
    %184 = math.tanh %183 : vector<2x128xf32>
    %185 = arith.mulf %180, %184 : vector<2x128xf32>
    %c0_45 = arith.constant 0 : index
    %c7 = arith.constant 7 : index
    %c0_46 = arith.constant 0 : index
    %186 = vector.load %arg18[%c0_45, %c7, %c0_46] : memref<2x8x128xf32, #tpu.memory_space<vmem>>, vector<2x1x128xf32>
    %187 = vector.shape_cast %186 : vector<2x1x128xf32> to vector<2x128xf32>
    %188 = vector.shape_cast %185 : vector<2x128xf32> to vector<2x1x128xf32>
    tpu.vector_store %arg18[%c0_45, %c7, %c0_46], %188 {strides = array<i32>} : memref<2x8x128xf32, #tpu.memory_space<vmem>>, vector<2x1x128xf32>,
    %c0_47 = arith.constant 0 : index
    %c0_48 = arith.constant 0 : index
    %c0_49 = arith.constant 0 : index
    %189 = vector.load %arg16[%c0_47, %c0_48, %c0_49] : memref<3x2x128xf32, #tpu.memory_space<vmem>>, vector<1x2x128xf32>
    %190 = vector.shape_cast %189 : vector<1x2x128xf32> to vector<2x128xf32>
    %191 = vector.shape_cast %185 : vector<2x128xf32> to vector<1x2x128xf32>
    tpu.vector_store %arg16[%c0_47, %c0_48, %c0_49], %191 {strides = array<i32>} : memref<3x2x128xf32, #tpu.memory_space<vmem>>, vector<1x2x128xf32>,
    %c0_50 = arith.constant 0 : index
    %c0_51 = arith.constant 0 : index
    %c0_52 = arith.constant 0 : index
    %192 = vector.load %arg17[%c0_50, %c0_51, %c0_52] : memref<3x2x128xf32, #tpu.memory_space<vmem>>, vector<1x2x128xf32>
    %193 = vector.shape_cast %192 : vector<1x2x128xf32> to vector<2x128xf32>
    %194 = vector.shape_cast %183 : vector<2x128xf32> to vector<1x2x128xf32>
    tpu.vector_store %arg17[%c0_50, %c0_51, %c0_52], %194 {strides = array<i32>} : memref<3x2x128xf32, #tpu.memory_space<vmem>>, vector<1x2x128xf32>,
    %c0_53 = arith.constant 0 : index
    %c0_54 = arith.constant 0 : index
    %c0_55 = arith.constant 0 : index
    %195 = vector.load %arg18[%c0_53, %c0_54, %c0_55] : memref<2x8x128xf32, #tpu.memory_space<vmem>>, vector<2x8x128xf32>
    %196 = vector.shape_cast %195 : vector<2x8x128xf32> to vector<16x128xf32>
    %c0_56 = arith.constant 0 : index
    %c0_57 = arith.constant 0 : index
    %197 = vector.load %arg7[%c0_56, %c0_57] : memref<128x512xf32, #tpu.memory_space<vmem>>, vector<128x512xf32>
    %cst_58 = arith.constant dense<0.000000e+00> : vector<16x512xf32>
    %198 = tpu.matmul %196, %197, %cst_58 {dimension_numbers = #tpu.dot_dimension_numbers<[1], [0], [0], [1], [0, 0, 1, 1], [], []>} : vector<16x128xf32>, vector<128x512xf32>, vector<16x512xf32> -> vector<16x512xf32>
    %c0_59 = arith.constant 0 : index
    %c0_60 = arith.constant 0 : index
    %199 = vector.load %arg9[%c0_59, %c0_60] : memref<1x512xf32, #tpu.memory_space<vmem>>, vector<1x512xf32>
    %200 = vector.broadcast %199 : vector<1x512xf32> to vector<16x512xf32>
    %201 = arith.addf %198, %200 : vector<16x512xf32>
    %202 = vector.shape_cast %201 : vector<16x512xf32> to vector<2x8x512xf32>
    %c0_61 = arith.constant 0 : index
    %c0_62 = arith.constant 0 : index
    %203 = vector.load %arg8[%c0_61, %c0_62] : memref<128x512xf32, #tpu.memory_space<vmem>>, vector<128x512xf32>
    %c1_63 = arith.constant 1 : index
    %c0_64 = arith.constant 0 : index
    %c0_65 = arith.constant 0 : index
    %204 = vector.load %arg2[%c1_63, %c0_64, %c0_65] : memref<3x2x128xf32, #tpu.memory_space<vmem>>, vector<1x2x128xf32>
    %205 = vector.shape_cast %204 : vector<1x2x128xf32> to vector<2x128xf32>
    %c1_66 = arith.constant 1 : index
    %c0_67 = arith.constant 0 : index
    %c0_68 = arith.constant 0 : index
    %206 = vector.load %arg3[%c1_66, %c0_67, %c0_68] : memref<3x2x128xf32, #tpu.memory_space<vmem>>, vector<1x2x128xf32>
    %207 = vector.shape_cast %206 : vector<1x2x128xf32> to vector<2x128xf32>
    %208 = vector.extract_strided_slice %202 {offsets = [0, 0, 0], sizes = [2, 1, 512], strides = [1, 1, 1]} : vector<2x8x512xf32> to vector<2x1x512xf32>
    %209 = vector.shape_cast %208 : vector<2x1x512xf32> to vector<2x512xf32>
    %cst_69 = arith.constant dense<0.000000e+00> : vector<2x512xf32>
    %210 = tpu.matmul %205, %203, %cst_69 {dimension_numbers = #tpu.dot_dimension_numbers<[1], [0], [0], [1], [0, 0, 1, 1], [], []>} : vector<2x128xf32>, vector<128x512xf32>, vector<2x512xf32> -> vector<2x512xf32>
    %211 = arith.addf %209, %210 : vector<2x512xf32>
    %212 = arith.negf %211 : vector<2x512xf32>
    %213 = math.exp %212 : vector<2x512xf32>
    %cst_70 = arith.constant 1.000000e+00 : f32
    %214 = vector.broadcast %cst_70 : f32 to vector<2x512xf32>
    %215 = arith.addf %214, %213 : vector<2x512xf32>
    %216 = arith.divf %214, %215 : vector<2x512xf32>
    %217 = vector.extract_strided_slice %211 {offsets = [0, 256], sizes = [2, 128], strides = [1, 1]} : vector<2x512xf32> to vector<2x128xf32>
    %218 = math.tanh %217 : vector<2x128xf32>
    %219 = vector.extract_strided_slice %216 {offsets = [0, 0], sizes = [2, 128], strides = [1, 1]} : vector<2x512xf32> to vector<2x128xf32>
    %220 = vector.extract_strided_slice %216 {offsets = [0, 128], sizes = [2, 128], strides = [1, 1]} : vector<2x512xf32> to vector<2x128xf32>
    %221 = vector.extract_strided_slice %216 {offsets = [0, 384], sizes = [2, 128], strides = [1, 1]} : vector<2x512xf32> to vector<2x128xf32>
    %222 = arith.mulf %220, %207 : vector<2x128xf32>
    %223 = arith.mulf %219, %218 : vector<2x128xf32>
    %224 = arith.addf %222, %223 : vector<2x128xf32>
    %225 = math.tanh %224 : vector<2x128xf32>
    %226 = arith.mulf %221, %225 : vector<2x128xf32>
    %c0_71 = arith.constant 0 : index
    %c0_72 = arith.constant 0 : index
    %c0_73 = arith.constant 0 : index
    %227 = vector.load %arg18[%c0_71, %c0_72, %c0_73] : memref<2x8x128xf32, #tpu.memory_space<vmem>>, vector<2x1x128xf32>
    %228 = vector.shape_cast %227 : vector<2x1x128xf32> to vector<2x128xf32>
    %229 = vector.shape_cast %226 : vector<2x128xf32> to vector<2x1x128xf32>
    tpu.vector_store %arg18[%c0_71, %c0_72, %c0_73], %229 {strides = array<i32>} : memref<2x8x128xf32, #tpu.memory_space<vmem>>, vector<2x1x128xf32>,
    %230 = vector.extract_strided_slice %202 {offsets = [0, 1, 0], sizes = [2, 1, 512], strides = [1, 1, 1]} : vector<2x8x512xf32> to vector<2x1x512xf32>
    %231 = vector.shape_cast %230 : vector<2x1x512xf32> to vector<2x512xf32>
    %cst_74 = arith.constant dense<0.000000e+00> : vector<2x512xf32>
    %232 = tpu.matmul %226, %203, %cst_74 {dimension_numbers = #tpu.dot_dimension_numbers<[1], [0], [0], [1], [0, 0, 1, 1], [], []>} : vector<2x128xf32>, vector<128x512xf32>, vector<2x512xf32> -> vector<2x512xf32>
    %233 = arith.addf %231, %232 : vector<2x512xf32>
    %234 = arith.negf %233 : vector<2x512xf32>
    %235 = math.exp %234 : vector<2x512xf32>
    %cst_75 = arith.constant 1.000000e+00 : f32
    %236 = vector.broadcast %cst_75 : f32 to vector<2x512xf32>
    %237 = arith.addf %236, %235 : vector<2x512xf32>
    %238 = arith.divf %236, %237 : vector<2x512xf32>
    %239 = vector.extract_strided_slice %233 {offsets = [0, 256], sizes = [2, 128], strides = [1, 1]} : vector<2x512xf32> to vector<2x128xf32>
    %240 = math.tanh %239 : vector<2x128xf32>
    %241 = vector.extract_strided_slice %238 {offsets = [0, 0], sizes = [2, 128], strides = [1, 1]} : vector<2x512xf32> to vector<2x128xf32>
    %242 = vector.extract_strided_slice %238 {offsets = [0, 128], sizes = [2, 128], strides = [1, 1]} : vector<2x512xf32> to vector<2x128xf32>
    %243 = vector.extract_strided_slice %238 {offsets = [0, 384], sizes = [2, 128], strides = [1, 1]} : vector<2x512xf32> to vector<2x128xf32>
    %244 = arith.mulf %242, %224 : vector<2x128xf32>
    %245 = arith.mulf %241, %240 : vector<2x128xf32>
    %246 = arith.addf %244, %245 : vector<2x128xf32>
    %247 = math.tanh %246 : vector<2x128xf32>
    %248 = arith.mulf %243, %247 : vector<2x128xf32>
    %c0_76 = arith.constant 0 : index
    %c1_77 = arith.constant 1 : index
    %c0_78 = arith.constant 0 : index
    %249 = vector.load %arg18[%c0_76, %c1_77, %c0_78] : memref<2x8x128xf32, #tpu.memory_space<vmem>>, vector<2x1x128xf32>
    %250 = vector.shape_cast %249 : vector<2x1x128xf32> to vector<2x128xf32>
    %251 = vector.shape_cast %248 : vector<2x128xf32> to vector<2x1x128xf32>
    tpu.vector_store %arg18[%c0_76, %c1_77, %c0_78], %251 {strides = array<i32>} : memref<2x8x128xf32, #tpu.memory_space<vmem>>, vector<2x1x128xf32>,
    %252 = vector.extract_strided_slice %202 {offsets = [0, 2, 0], sizes = [2, 1, 512], strides = [1, 1, 1]} : vector<2x8x512xf32> to vector<2x1x512xf32>
    %253 = vector.shape_cast %252 : vector<2x1x512xf32> to vector<2x512xf32>
    %cst_79 = arith.constant dense<0.000000e+00> : vector<2x512xf32>
    %254 = tpu.matmul %248, %203, %cst_79 {dimension_numbers = #tpu.dot_dimension_numbers<[1], [0], [0], [1], [0, 0, 1, 1], [], []>} : vector<2x128xf32>, vector<128x512xf32>, vector<2x512xf32> -> vector<2x512xf32>
    %255 = arith.addf %253, %254 : vector<2x512xf32>
    %256 = arith.negf %255 : vector<2x512xf32>
    %257 = math.exp %256 : vector<2x512xf32>
    %cst_80 = arith.constant 1.000000e+00 : f32
    %258 = vector.broadcast %cst_80 : f32 to vector<2x512xf32>
    %259 = arith.addf %258, %257 : vector<2x512xf32>
    %260 = arith.divf %258, %259 : vector<2x512xf32>
    %261 = vector.extract_strided_slice %255 {offsets = [0, 256], sizes = [2, 128], strides = [1, 1]} : vector<2x512xf32> to vector<2x128xf32>
    %262 = math.tanh %261 : vector<2x128xf32>
    %263 = vector.extract_strided_slice %260 {offsets = [0, 0], sizes = [2, 128], strides = [1, 1]} : vector<2x512xf32> to vector<2x128xf32>
    %264 = vector.extract_strided_slice %260 {offsets = [0, 128], sizes = [2, 128], strides = [1, 1]} : vector<2x512xf32> to vector<2x128xf32>
    %265 = vector.extract_strided_slice %260 {offsets = [0, 384], sizes = [2, 128], strides = [1, 1]} : vector<2x512xf32> to vector<2x128xf32>
    %266 = arith.mulf %264, %246 : vector<2x128xf32>
    %267 = arith.mulf %263, %262 : vector<2x128xf32>
    %268 = arith.addf %266, %267 : vector<2x128xf32>
    %269 = math.tanh %268 : vector<2x128xf32>
    %270 = arith.mulf %265, %269 : vector<2x128xf32>
    %c0_81 = arith.constant 0 : index
    %c2_82 = arith.constant 2 : index
    %c0_83 = arith.constant 0 : index
    %271 = vector.load %arg18[%c0_81, %c2_82, %c0_83] : memref<2x8x128xf32, #tpu.memory_space<vmem>>, vector<2x1x128xf32>
    %272 = vector.shape_cast %271 : vector<2x1x128xf32> to vector<2x128xf32>
    %273 = vector.shape_cast %270 : vector<2x128xf32> to vector<2x1x128xf32>
    tpu.vector_store %arg18[%c0_81, %c2_82, %c0_83], %273 {strides = array<i32>} : memref<2x8x128xf32, #tpu.memory_space<vmem>>, vector<2x1x128xf32>,
    %274 = vector.extract_strided_slice %202 {offsets = [0, 3, 0], sizes = [2, 1, 512], strides = [1, 1, 1]} : vector<2x8x512xf32> to vector<2x1x512xf32>
    %275 = vector.shape_cast %274 : vector<2x1x512xf32> to vector<2x512xf32>
    %cst_84 = arith.constant dense<0.000000e+00> : vector<2x512xf32>
    %276 = tpu.matmul %270, %203, %cst_84 {dimension_numbers = #tpu.dot_dimension_numbers<[1], [0], [0], [1], [0, 0, 1, 1], [], []>} : vector<2x128xf32>, vector<128x512xf32>, vector<2x512xf32> -> vector<2x512xf32>
    %277 = arith.addf %275, %276 : vector<2x512xf32>
    %278 = arith.negf %277 : vector<2x512xf32>
    %279 = math.exp %278 : vector<2x512xf32>
    %cst_85 = arith.constant 1.000000e+00 : f32
    %280 = vector.broadcast %cst_85 : f32 to vector<2x512xf32>
    %281 = arith.addf %280, %279 : vector<2x512xf32>
    %282 = arith.divf %280, %281 : vector<2x512xf32>
    %283 = vector.extract_strided_slice %277 {offsets = [0, 256], sizes = [2, 128], strides = [1, 1]} : vector<2x512xf32> to vector<2x128xf32>
    %284 = math.tanh %283 : vector<2x128xf32>
    %285 = vector.extract_strided_slice %282 {offsets = [0, 0], sizes = [2, 128], strides = [1, 1]} : vector<2x512xf32> to vector<2x128xf32>
    %286 = vector.extract_strided_slice %282 {offsets = [0, 128], sizes = [2, 128], strides = [1, 1]} : vector<2x512xf32> to vector<2x128xf32>
    %287 = vector.extract_strided_slice %282 {offsets = [0, 384], sizes = [2, 128], strides = [1, 1]} : vector<2x512xf32> to vector<2x128xf32>
    %288 = arith.mulf %286, %268 : vector<2x128xf32>
    %289 = arith.mulf %285, %284 : vector<2x128xf32>
    %290 = arith.addf %288, %289 : vector<2x128xf32>
    %291 = math.tanh %290 : vector<2x128xf32>
    %292 = arith.mulf %287, %291 : vector<2x128xf32>
    %c0_86 = arith.constant 0 : index
    %c3_87 = arith.constant 3 : index
    %c0_88 = arith.constant 0 : index
    %293 = vector.load %arg18[%c0_86, %c3_87, %c0_88] : memref<2x8x128xf32, #tpu.memory_space<vmem>>, vector<2x1x128xf32>
    %294 = vector.shape_cast %293 : vector<2x1x128xf32> to vector<2x128xf32>
    %295 = vector.shape_cast %292 : vector<2x128xf32> to vector<2x1x128xf32>
    tpu.vector_store %arg18[%c0_86, %c3_87, %c0_88], %295 {strides = array<i32>} : memref<2x8x128xf32, #tpu.memory_space<vmem>>, vector<2x1x128xf32>,
    %296 = vector.extract_strided_slice %202 {offsets = [0, 4, 0], sizes = [2, 1, 512], strides = [1, 1, 1]} : vector<2x8x512xf32> to vector<2x1x512xf32>
    %297 = vector.shape_cast %296 : vector<2x1x512xf32> to vector<2x512xf32>
    %cst_89 = arith.constant dense<0.000000e+00> : vector<2x512xf32>
    %298 = tpu.matmul %292, %203, %cst_89 {dimension_numbers = #tpu.dot_dimension_numbers<[1], [0], [0], [1], [0, 0, 1, 1], [], []>} : vector<2x128xf32>, vector<128x512xf32>, vector<2x512xf32> -> vector<2x512xf32>
    %299 = arith.addf %297, %298 : vector<2x512xf32>
    %300 = arith.negf %299 : vector<2x512xf32>
    %301 = math.exp %300 : vector<2x512xf32>
    %cst_90 = arith.constant 1.000000e+00 : f32
    %302 = vector.broadcast %cst_90 : f32 to vector<2x512xf32>
    %303 = arith.addf %302, %301 : vector<2x512xf32>
    %304 = arith.divf %302, %303 : vector<2x512xf32>
    %305 = vector.extract_strided_slice %299 {offsets = [0, 256], sizes = [2, 128], strides = [1, 1]} : vector<2x512xf32> to vector<2x128xf32>
    %306 = math.tanh %305 : vector<2x128xf32>
    %307 = vector.extract_strided_slice %304 {offsets = [0, 0], sizes = [2, 128], strides = [1, 1]} : vector<2x512xf32> to vector<2x128xf32>
    %308 = vector.extract_strided_slice %304 {offsets = [0, 128], sizes = [2, 128], strides = [1, 1]} : vector<2x512xf32> to vector<2x128xf32>
    %309 = vector.extract_strided_slice %304 {offsets = [0, 384], sizes = [2, 128], strides = [1, 1]} : vector<2x512xf32> to vector<2x128xf32>
    %310 = arith.mulf %308, %290 : vector<2x128xf32>
    %311 = arith.mulf %307, %306 : vector<2x128xf32>
    %312 = arith.addf %310, %311 : vector<2x128xf32>
    %313 = math.tanh %312 : vector<2x128xf32>
    %314 = arith.mulf %309, %313 : vector<2x128xf32>
    %c0_91 = arith.constant 0 : index
    %c4_92 = arith.constant 4 : index
    %c0_93 = arith.constant 0 : index
    %315 = vector.load %arg18[%c0_91, %c4_92, %c0_93] : memref<2x8x128xf32, #tpu.memory_space<vmem>>, vector<2x1x128xf32>
    %316 = vector.shape_cast %315 : vector<2x1x128xf32> to vector<2x128xf32>
    %317 = vector.shape_cast %314 : vector<2x128xf32> to vector<2x1x128xf32>
    tpu.vector_store %arg18[%c0_91, %c4_92, %c0_93], %317 {strides = array<i32>} : memref<2x8x128xf32, #tpu.memory_space<vmem>>, vector<2x1x128xf32>,
    %318 = vector.extract_strided_slice %202 {offsets = [0, 5, 0], sizes = [2, 1, 512], strides = [1, 1, 1]} : vector<2x8x512xf32> to vector<2x1x512xf32>
    %319 = vector.shape_cast %318 : vector<2x1x512xf32> to vector<2x512xf32>
    %cst_94 = arith.constant dense<0.000000e+00> : vector<2x512xf32>
    %320 = tpu.matmul %314, %203, %cst_94 {dimension_numbers = #tpu.dot_dimension_numbers<[1], [0], [0], [1], [0, 0, 1, 1], [], []>} : vector<2x128xf32>, vector<128x512xf32>, vector<2x512xf32> -> vector<2x512xf32>
    %321 = arith.addf %319, %320 : vector<2x512xf32>
    %322 = arith.negf %321 : vector<2x512xf32>
    %323 = math.exp %322 : vector<2x512xf32>
    %cst_95 = arith.constant 1.000000e+00 : f32
    %324 = vector.broadcast %cst_95 : f32 to vector<2x512xf32>
    %325 = arith.addf %324, %323 : vector<2x512xf32>
    %326 = arith.divf %324, %325 : vector<2x512xf32>
    %327 = vector.extract_strided_slice %321 {offsets = [0, 256], sizes = [2, 128], strides = [1, 1]} : vector<2x512xf32> to vector<2x128xf32>
    %328 = math.tanh %327 : vector<2x128xf32>
    %329 = vector.extract_strided_slice %326 {offsets = [0, 0], sizes = [2, 128], strides = [1, 1]} : vector<2x512xf32> to vector<2x128xf32>
    %330 = vector.extract_strided_slice %326 {offsets = [0, 128], sizes = [2, 128], strides = [1, 1]} : vector<2x512xf32> to vector<2x128xf32>
    %331 = vector.extract_strided_slice %326 {offsets = [0, 384], sizes = [2, 128], strides = [1, 1]} : vector<2x512xf32> to vector<2x128xf32>
    %332 = arith.mulf %330, %312 : vector<2x128xf32>
    %333 = arith.mulf %329, %328 : vector<2x128xf32>
    %334 = arith.addf %332, %333 : vector<2x128xf32>
    %335 = math.tanh %334 : vector<2x128xf32>
    %336 = arith.mulf %331, %335 : vector<2x128xf32>
    %c0_96 = arith.constant 0 : index
    %c5_97 = arith.constant 5 : index
    %c0_98 = arith.constant 0 : index
    %337 = vector.load %arg18[%c0_96, %c5_97, %c0_98] : memref<2x8x128xf32, #tpu.memory_space<vmem>>, vector<2x1x128xf32>
    %338 = vector.shape_cast %337 : vector<2x1x128xf32> to vector<2x128xf32>
    %339 = vector.shape_cast %336 : vector<2x128xf32> to vector<2x1x128xf32>
    tpu.vector_store %arg18[%c0_96, %c5_97, %c0_98], %339 {strides = array<i32>} : memref<2x8x128xf32, #tpu.memory_space<vmem>>, vector<2x1x128xf32>,
    %340 = vector.extract_strided_slice %202 {offsets = [0, 6, 0], sizes = [2, 1, 512], strides = [1, 1, 1]} : vector<2x8x512xf32> to vector<2x1x512xf32>
    %341 = vector.shape_cast %340 : vector<2x1x512xf32> to vector<2x512xf32>
    %cst_99 = arith.constant dense<0.000000e+00> : vector<2x512xf32>
    %342 = tpu.matmul %336, %203, %cst_99 {dimension_numbers = #tpu.dot_dimension_numbers<[1], [0], [0], [1], [0, 0, 1, 1], [], []>} : vector<2x128xf32>, vector<128x512xf32>, vector<2x512xf32> -> vector<2x512xf32>
    %343 = arith.addf %341, %342 : vector<2x512xf32>
    %344 = arith.negf %343 : vector<2x512xf32>
    %345 = math.exp %344 : vector<2x512xf32>
    %cst_100 = arith.constant 1.000000e+00 : f32
    %346 = vector.broadcast %cst_100 : f32 to vector<2x512xf32>
    %347 = arith.addf %346, %345 : vector<2x512xf32>
    %348 = arith.divf %346, %347 : vector<2x512xf32>
    %349 = vector.extract_strided_slice %343 {offsets = [0, 256], sizes = [2, 128], strides = [1, 1]} : vector<2x512xf32> to vector<2x128xf32>
    %350 = math.tanh %349 : vector<2x128xf32>
    %351 = vector.extract_strided_slice %348 {offsets = [0, 0], sizes = [2, 128], strides = [1, 1]} : vector<2x512xf32> to vector<2x128xf32>
    %352 = vector.extract_strided_slice %348 {offsets = [0, 128], sizes = [2, 128], strides = [1, 1]} : vector<2x512xf32> to vector<2x128xf32>
    %353 = vector.extract_strided_slice %348 {offsets = [0, 384], sizes = [2, 128], strides = [1, 1]} : vector<2x512xf32> to vector<2x128xf32>
    %354 = arith.mulf %352, %334 : vector<2x128xf32>
    %355 = arith.mulf %351, %350 : vector<2x128xf32>
    %356 = arith.addf %354, %355 : vector<2x128xf32>
    %357 = math.tanh %356 : vector<2x128xf32>
    %358 = arith.mulf %353, %357 : vector<2x128xf32>
    %c0_101 = arith.constant 0 : index
    %c6_102 = arith.constant 6 : index
    %c0_103 = arith.constant 0 : index
    %359 = vector.load %arg18[%c0_101, %c6_102, %c0_103] : memref<2x8x128xf32, #tpu.memory_space<vmem>>, vector<2x1x128xf32>
    %360 = vector.shape_cast %359 : vector<2x1x128xf32> to vector<2x128xf32>
    %361 = vector.shape_cast %358 : vector<2x128xf32> to vector<2x1x128xf32>
    tpu.vector_store %arg18[%c0_101, %c6_102, %c0_103], %361 {strides = array<i32>} : memref<2x8x128xf32, #tpu.memory_space<vmem>>, vector<2x1x128xf32>,
    %362 = vector.extract_strided_slice %202 {offsets = [0, 7, 0], sizes = [2, 1, 512], strides = [1, 1, 1]} : vector<2x8x512xf32> to vector<2x1x512xf32>
    %363 = vector.shape_cast %362 : vector<2x1x512xf32> to vector<2x512xf32>
    %cst_104 = arith.constant dense<0.000000e+00> : vector<2x512xf32>
    %364 = tpu.matmul %358, %203, %cst_104 {dimension_numbers = #tpu.dot_dimension_numbers<[1], [0], [0], [1], [0, 0, 1, 1], [], []>} : vector<2x128xf32>, vector<128x512xf32>, vector<2x512xf32> -> vector<2x512xf32>
    %365 = arith.addf %363, %364 : vector<2x512xf32>
    %366 = arith.negf %365 : vector<2x512xf32>
    %367 = math.exp %366 : vector<2x512xf32>
    %cst_105 = arith.constant 1.000000e+00 : f32
    %368 = vector.broadcast %cst_105 : f32 to vector<2x512xf32>
    %369 = arith.addf %368, %367 : vector<2x512xf32>
    %370 = arith.divf %368, %369 : vector<2x512xf32>
    %371 = vector.extract_strided_slice %365 {offsets = [0, 256], sizes = [2, 128], strides = [1, 1]} : vector<2x512xf32> to vector<2x128xf32>
    %372 = math.tanh %371 : vector<2x128xf32>
    %373 = vector.extract_strided_slice %370 {offsets = [0, 0], sizes = [2, 128], strides = [1, 1]} : vector<2x512xf32> to vector<2x128xf32>
    %374 = vector.extract_strided_slice %370 {offsets = [0, 128], sizes = [2, 128], strides = [1, 1]} : vector<2x512xf32> to vector<2x128xf32>
    %375 = vector.extract_strided_slice %370 {offsets = [0, 384], sizes = [2, 128], strides = [1, 1]} : vector<2x512xf32> to vector<2x128xf32>
    %376 = arith.mulf %374, %356 : vector<2x128xf32>
    %377 = arith.mulf %373, %372 : vector<2x128xf32>
    %378 = arith.addf %376, %377 : vector<2x128xf32>
    %379 = math.tanh %378 : vector<2x128xf32>
    %380 = arith.mulf %375, %379 : vector<2x128xf32>
    %c0_106 = arith.constant 0 : index
    %c7_107 = arith.constant 7 : index
    %c0_108 = arith.constant 0 : index
    %381 = vector.load %arg18[%c0_106, %c7_107, %c0_108] : memref<2x8x128xf32, #tpu.memory_space<vmem>>, vector<2x1x128xf32>
    %382 = vector.shape_cast %381 : vector<2x1x128xf32> to vector<2x128xf32>
    %383 = vector.shape_cast %380 : vector<2x128xf32> to vector<2x1x128xf32>
    tpu.vector_store %arg18[%c0_106, %c7_107, %c0_108], %383 {strides = array<i32>} : memref<2x8x128xf32, #tpu.memory_space<vmem>>, vector<2x1x128xf32>,
    %c1_109 = arith.constant 1 : index
    %c0_110 = arith.constant 0 : index
    %c0_111 = arith.constant 0 : index
    %384 = vector.load %arg16[%c1_109, %c0_110, %c0_111] : memref<3x2x128xf32, #tpu.memory_space<vmem>>, vector<1x2x128xf32>
    %385 = vector.shape_cast %384 : vector<1x2x128xf32> to vector<2x128xf32>
    %386 = vector.shape_cast %380 : vector<2x128xf32> to vector<1x2x128xf32>
    tpu.vector_store %arg16[%c1_109, %c0_110, %c0_111], %386 {strides = array<i32>} : memref<3x2x128xf32, #tpu.memory_space<vmem>>, vector<1x2x128xf32>,
    %c1_112 = arith.constant 1 : index
    %c0_113 = arith.constant 0 : index
    %c0_114 = arith.constant 0 : index
    %387 = vector.load %arg17[%c1_112, %c0_113, %c0_114] : memref<3x2x128xf32, #tpu.memory_space<vmem>>, vector<1x2x128xf32>
    %388 = vector.shape_cast %387 : vector<1x2x128xf32> to vector<2x128xf32>
    %389 = vector.shape_cast %378 : vector<2x128xf32> to vector<1x2x128xf32>
    tpu.vector_store %arg17[%c1_112, %c0_113, %c0_114], %389 {strides = array<i32>} : memref<3x2x128xf32, #tpu.memory_space<vmem>>, vector<1x2x128xf32>,
    %c0_115 = arith.constant 0 : index
    %c0_116 = arith.constant 0 : index
    %c0_117 = arith.constant 0 : index
    %390 = vector.load %arg18[%c0_115, %c0_116, %c0_117] : memref<2x8x128xf32, #tpu.memory_space<vmem>>, vector<2x8x128xf32>
    %391 = vector.shape_cast %390 : vector<2x8x128xf32> to vector<16x128xf32>
    %c0_118 = arith.constant 0 : index
    %c0_119 = arith.constant 0 : index
    %392 = vector.load %arg10[%c0_118, %c0_119] : memref<128x512xf32, #tpu.memory_space<vmem>>, vector<128x512xf32>
    %cst_120 = arith.constant dense<0.000000e+00> : vector<16x512xf32>
    %393 = tpu.matmul %391, %392, %cst_120 {dimension_numbers = #tpu.dot_dimension_numbers<[1], [0], [0], [1], [0, 0, 1, 1], [], []>} : vector<16x128xf32>, vector<128x512xf32>, vector<16x512xf32> -> vector<16x512xf32>
    %c0_121 = arith.constant 0 : index
    %c0_122 = arith.constant 0 : index
    %394 = vector.load %arg12[%c0_121, %c0_122] : memref<1x512xf32, #tpu.memory_space<vmem>>, vector<1x512xf32>
    %395 = vector.broadcast %394 : vector<1x512xf32> to vector<16x512xf32>
    %396 = arith.addf %393, %395 : vector<16x512xf32>
    %397 = vector.shape_cast %396 : vector<16x512xf32> to vector<2x8x512xf32>
    %c0_123 = arith.constant 0 : index
    %c0_124 = arith.constant 0 : index
    %398 = vector.load %arg11[%c0_123, %c0_124] : memref<128x512xf32, #tpu.memory_space<vmem>>, vector<128x512xf32>
    %c2_125 = arith.constant 2 : index
    %c0_126 = arith.constant 0 : index
    %c0_127 = arith.constant 0 : index
    %399 = vector.load %arg2[%c2_125, %c0_126, %c0_127] : memref<3x2x128xf32, #tpu.memory_space<vmem>>, vector<1x2x128xf32>
    %400 = vector.shape_cast %399 : vector<1x2x128xf32> to vector<2x128xf32>
    %c2_128 = arith.constant 2 : index
    %c0_129 = arith.constant 0 : index
    %c0_130 = arith.constant 0 : index
    %401 = vector.load %arg3[%c2_128, %c0_129, %c0_130] : memref<3x2x128xf32, #tpu.memory_space<vmem>>, vector<1x2x128xf32>
    %402 = vector.shape_cast %401 : vector<1x2x128xf32> to vector<2x128xf32>
    %403 = vector.extract_strided_slice %397 {offsets = [0, 0, 0], sizes = [2, 1, 512], strides = [1, 1, 1]} : vector<2x8x512xf32> to vector<2x1x512xf32>
    %404 = vector.shape_cast %403 : vector<2x1x512xf32> to vector<2x512xf32>
    %cst_131 = arith.constant dense<0.000000e+00> : vector<2x512xf32>
    %405 = tpu.matmul %400, %398, %cst_131 {dimension_numbers = #tpu.dot_dimension_numbers<[1], [0], [0], [1], [0, 0, 1, 1], [], []>} : vector<2x128xf32>, vector<128x512xf32>, vector<2x512xf32> -> vector<2x512xf32>
    %406 = arith.addf %404, %405 : vector<2x512xf32>
    %407 = arith.negf %406 : vector<2x512xf32>
    %408 = math.exp %407 : vector<2x512xf32>
    %cst_132 = arith.constant 1.000000e+00 : f32
    %409 = vector.broadcast %cst_132 : f32 to vector<2x512xf32>
    %410 = arith.addf %409, %408 : vector<2x512xf32>
    %411 = arith.divf %409, %410 : vector<2x512xf32>
    %412 = vector.extract_strided_slice %406 {offsets = [0, 256], sizes = [2, 128], strides = [1, 1]} : vector<2x512xf32> to vector<2x128xf32>
    %413 = math.tanh %412 : vector<2x128xf32>
    %414 = vector.extract_strided_slice %411 {offsets = [0, 0], sizes = [2, 128], strides = [1, 1]} : vector<2x512xf32> to vector<2x128xf32>
    %415 = vector.extract_strided_slice %411 {offsets = [0, 128], sizes = [2, 128], strides = [1, 1]} : vector<2x512xf32> to vector<2x128xf32>
    %416 = vector.extract_strided_slice %411 {offsets = [0, 384], sizes = [2, 128], strides = [1, 1]} : vector<2x512xf32> to vector<2x128xf32>
    %417 = arith.mulf %415, %402 : vector<2x128xf32>
    %418 = arith.mulf %414, %413 : vector<2x128xf32>
    %419 = arith.addf %417, %418 : vector<2x128xf32>
    %420 = math.tanh %419 : vector<2x128xf32>
    %421 = arith.mulf %416, %420 : vector<2x128xf32>
    %c0_133 = arith.constant 0 : index
    %c0_134 = arith.constant 0 : index
    %c0_135 = arith.constant 0 : index
    %422 = vector.load %arg18[%c0_133, %c0_134, %c0_135] : memref<2x8x128xf32, #tpu.memory_space<vmem>>, vector<2x1x128xf32>
    %423 = vector.shape_cast %422 : vector<2x1x128xf32> to vector<2x128xf32>
    %424 = vector.shape_cast %421 : vector<2x128xf32> to vector<2x1x128xf32>
    tpu.vector_store %arg18[%c0_133, %c0_134, %c0_135], %424 {strides = array<i32>} : memref<2x8x128xf32, #tpu.memory_space<vmem>>, vector<2x1x128xf32>,
    %425 = vector.extract_strided_slice %397 {offsets = [0, 1, 0], sizes = [2, 1, 512], strides = [1, 1, 1]} : vector<2x8x512xf32> to vector<2x1x512xf32>
    %426 = vector.shape_cast %425 : vector<2x1x512xf32> to vector<2x512xf32>
    %cst_136 = arith.constant dense<0.000000e+00> : vector<2x512xf32>
    %427 = tpu.matmul %421, %398, %cst_136 {dimension_numbers = #tpu.dot_dimension_numbers<[1], [0], [0], [1], [0, 0, 1, 1], [], []>} : vector<2x128xf32>, vector<128x512xf32>, vector<2x512xf32> -> vector<2x512xf32>
    %428 = arith.addf %426, %427 : vector<2x512xf32>
    %429 = arith.negf %428 : vector<2x512xf32>
    %430 = math.exp %429 : vector<2x512xf32>
    %cst_137 = arith.constant 1.000000e+00 : f32
    %431 = vector.broadcast %cst_137 : f32 to vector<2x512xf32>
    %432 = arith.addf %431, %430 : vector<2x512xf32>
    %433 = arith.divf %431, %432 : vector<2x512xf32>
    %434 = vector.extract_strided_slice %428 {offsets = [0, 256], sizes = [2, 128], strides = [1, 1]} : vector<2x512xf32> to vector<2x128xf32>
    %435 = math.tanh %434 : vector<2x128xf32>
    %436 = vector.extract_strided_slice %433 {offsets = [0, 0], sizes = [2, 128], strides = [1, 1]} : vector<2x512xf32> to vector<2x128xf32>
    %437 = vector.extract_strided_slice %433 {offsets = [0, 128], sizes = [2, 128], strides = [1, 1]} : vector<2x512xf32> to vector<2x128xf32>
    %438 = vector.extract_strided_slice %433 {offsets = [0, 384], sizes = [2, 128], strides = [1, 1]} : vector<2x512xf32> to vector<2x128xf32>
    %439 = arith.mulf %437, %419 : vector<2x128xf32>
    %440 = arith.mulf %436, %435 : vector<2x128xf32>
    %441 = arith.addf %439, %440 : vector<2x128xf32>
    %442 = math.tanh %441 : vector<2x128xf32>
    %443 = arith.mulf %438, %442 : vector<2x128xf32>
    %c0_138 = arith.constant 0 : index
    %c1_139 = arith.constant 1 : index
    %c0_140 = arith.constant 0 : index
    %444 = vector.load %arg18[%c0_138, %c1_139, %c0_140] : memref<2x8x128xf32, #tpu.memory_space<vmem>>, vector<2x1x128xf32>
    %445 = vector.shape_cast %444 : vector<2x1x128xf32> to vector<2x128xf32>
    %446 = vector.shape_cast %443 : vector<2x128xf32> to vector<2x1x128xf32>
    tpu.vector_store %arg18[%c0_138, %c1_139, %c0_140], %446 {strides = array<i32>} : memref<2x8x128xf32, #tpu.memory_space<vmem>>, vector<2x1x128xf32>,
    %447 = vector.extract_strided_slice %397 {offsets = [0, 2, 0], sizes = [2, 1, 512], strides = [1, 1, 1]} : vector<2x8x512xf32> to vector<2x1x512xf32>
    %448 = vector.shape_cast %447 : vector<2x1x512xf32> to vector<2x512xf32>
    %cst_141 = arith.constant dense<0.000000e+00> : vector<2x512xf32>
    %449 = tpu.matmul %443, %398, %cst_141 {dimension_numbers = #tpu.dot_dimension_numbers<[1], [0], [0], [1], [0, 0, 1, 1], [], []>} : vector<2x128xf32>, vector<128x512xf32>, vector<2x512xf32> -> vector<2x512xf32>
    %450 = arith.addf %448, %449 : vector<2x512xf32>
    %451 = arith.negf %450 : vector<2x512xf32>
    %452 = math.exp %451 : vector<2x512xf32>
    %cst_142 = arith.constant 1.000000e+00 : f32
    %453 = vector.broadcast %cst_142 : f32 to vector<2x512xf32>
    %454 = arith.addf %453, %452 : vector<2x512xf32>
    %455 = arith.divf %453, %454 : vector<2x512xf32>
    %456 = vector.extract_strided_slice %450 {offsets = [0, 256], sizes = [2, 128], strides = [1, 1]} : vector<2x512xf32> to vector<2x128xf32>
    %457 = math.tanh %456 : vector<2x128xf32>
    %458 = vector.extract_strided_slice %455 {offsets = [0, 0], sizes = [2, 128], strides = [1, 1]} : vector<2x512xf32> to vector<2x128xf32>
    %459 = vector.extract_strided_slice %455 {offsets = [0, 128], sizes = [2, 128], strides = [1, 1]} : vector<2x512xf32> to vector<2x128xf32>
    %460 = vector.extract_strided_slice %455 {offsets = [0, 384], sizes = [2, 128], strides = [1, 1]} : vector<2x512xf32> to vector<2x128xf32>
    %461 = arith.mulf %459, %441 : vector<2x128xf32>
    %462 = arith.mulf %458, %457 : vector<2x128xf32>
    %463 = arith.addf %461, %462 : vector<2x128xf32>
    %464 = math.tanh %463 : vector<2x128xf32>
    %465 = arith.mulf %460, %464 : vector<2x128xf32>
    %c0_143 = arith.constant 0 : index
    %c2_144 = arith.constant 2 : index
    %c0_145 = arith.constant 0 : index
    %466 = vector.load %arg18[%c0_143, %c2_144, %c0_145] : memref<2x8x128xf32, #tpu.memory_space<vmem>>, vector<2x1x128xf32>
    %467 = vector.shape_cast %466 : vector<2x1x128xf32> to vector<2x128xf32>
    %468 = vector.shape_cast %465 : vector<2x128xf32> to vector<2x1x128xf32>
    tpu.vector_store %arg18[%c0_143, %c2_144, %c0_145], %468 {strides = array<i32>} : memref<2x8x128xf32, #tpu.memory_space<vmem>>, vector<2x1x128xf32>,
    %469 = vector.extract_strided_slice %397 {offsets = [0, 3, 0], sizes = [2, 1, 512], strides = [1, 1, 1]} : vector<2x8x512xf32> to vector<2x1x512xf32>
    %470 = vector.shape_cast %469 : vector<2x1x512xf32> to vector<2x512xf32>
    %cst_146 = arith.constant dense<0.000000e+00> : vector<2x512xf32>
    %471 = tpu.matmul %465, %398, %cst_146 {dimension_numbers = #tpu.dot_dimension_numbers<[1], [0], [0], [1], [0, 0, 1, 1], [], []>} : vector<2x128xf32>, vector<128x512xf32>, vector<2x512xf32> -> vector<2x512xf32>
    %472 = arith.addf %470, %471 : vector<2x512xf32>
    %473 = arith.negf %472 : vector<2x512xf32>
    %474 = math.exp %473 : vector<2x512xf32>
    %cst_147 = arith.constant 1.000000e+00 : f32
    %475 = vector.broadcast %cst_147 : f32 to vector<2x512xf32>
    %476 = arith.addf %475, %474 : vector<2x512xf32>
    %477 = arith.divf %475, %476 : vector<2x512xf32>
    %478 = vector.extract_strided_slice %472 {offsets = [0, 256], sizes = [2, 128], strides = [1, 1]} : vector<2x512xf32> to vector<2x128xf32>
    %479 = math.tanh %478 : vector<2x128xf32>
    %480 = vector.extract_strided_slice %477 {offsets = [0, 0], sizes = [2, 128], strides = [1, 1]} : vector<2x512xf32> to vector<2x128xf32>
    %481 = vector.extract_strided_slice %477 {offsets = [0, 128], sizes = [2, 128], strides = [1, 1]} : vector<2x512xf32> to vector<2x128xf32>
    %482 = vector.extract_strided_slice %477 {offsets = [0, 384], sizes = [2, 128], strides = [1, 1]} : vector<2x512xf32> to vector<2x128xf32>
    %483 = arith.mulf %481, %463 : vector<2x128xf32>
    %484 = arith.mulf %480, %479 : vector<2x128xf32>
    %485 = arith.addf %483, %484 : vector<2x128xf32>
    %486 = math.tanh %485 : vector<2x128xf32>
    %487 = arith.mulf %482, %486 : vector<2x128xf32>
    %c0_148 = arith.constant 0 : index
    %c3_149 = arith.constant 3 : index
    %c0_150 = arith.constant 0 : index
    %488 = vector.load %arg18[%c0_148, %c3_149, %c0_150] : memref<2x8x128xf32, #tpu.memory_space<vmem>>, vector<2x1x128xf32>
    %489 = vector.shape_cast %488 : vector<2x1x128xf32> to vector<2x128xf32>
    %490 = vector.shape_cast %487 : vector<2x128xf32> to vector<2x1x128xf32>
    tpu.vector_store %arg18[%c0_148, %c3_149, %c0_150], %490 {strides = array<i32>} : memref<2x8x128xf32, #tpu.memory_space<vmem>>, vector<2x1x128xf32>,
    %491 = vector.extract_strided_slice %397 {offsets = [0, 4, 0], sizes = [2, 1, 512], strides = [1, 1, 1]} : vector<2x8x512xf32> to vector<2x1x512xf32>
    %492 = vector.shape_cast %491 : vector<2x1x512xf32> to vector<2x512xf32>
    %cst_151 = arith.constant dense<0.000000e+00> : vector<2x512xf32>
    %493 = tpu.matmul %487, %398, %cst_151 {dimension_numbers = #tpu.dot_dimension_numbers<[1], [0], [0], [1], [0, 0, 1, 1], [], []>} : vector<2x128xf32>, vector<128x512xf32>, vector<2x512xf32> -> vector<2x512xf32>
    %494 = arith.addf %492, %493 : vector<2x512xf32>
    %495 = arith.negf %494 : vector<2x512xf32>
    %496 = math.exp %495 : vector<2x512xf32>
    %cst_152 = arith.constant 1.000000e+00 : f32
    %497 = vector.broadcast %cst_152 : f32 to vector<2x512xf32>
    %498 = arith.addf %497, %496 : vector<2x512xf32>
    %499 = arith.divf %497, %498 : vector<2x512xf32>
    %500 = vector.extract_strided_slice %494 {offsets = [0, 256], sizes = [2, 128], strides = [1, 1]} : vector<2x512xf32> to vector<2x128xf32>
    %501 = math.tanh %500 : vector<2x128xf32>
    %502 = vector.extract_strided_slice %499 {offsets = [0, 0], sizes = [2, 128], strides = [1, 1]} : vector<2x512xf32> to vector<2x128xf32>
    %503 = vector.extract_strided_slice %499 {offsets = [0, 128], sizes = [2, 128], strides = [1, 1]} : vector<2x512xf32> to vector<2x128xf32>
    %504 = vector.extract_strided_slice %499 {offsets = [0, 384], sizes = [2, 128], strides = [1, 1]} : vector<2x512xf32> to vector<2x128xf32>
    %505 = arith.mulf %503, %485 : vector<2x128xf32>
    %506 = arith.mulf %502, %501 : vector<2x128xf32>
    %507 = arith.addf %505, %506 : vector<2x128xf32>
    %508 = math.tanh %507 : vector<2x128xf32>
    %509 = arith.mulf %504, %508 : vector<2x128xf32>
    %c0_153 = arith.constant 0 : index
    %c4_154 = arith.constant 4 : index
    %c0_155 = arith.constant 0 : index
    %510 = vector.load %arg18[%c0_153, %c4_154, %c0_155] : memref<2x8x128xf32, #tpu.memory_space<vmem>>, vector<2x1x128xf32>
    %511 = vector.shape_cast %510 : vector<2x1x128xf32> to vector<2x128xf32>
    %512 = vector.shape_cast %509 : vector<2x128xf32> to vector<2x1x128xf32>
    tpu.vector_store %arg18[%c0_153, %c4_154, %c0_155], %512 {strides = array<i32>} : memref<2x8x128xf32, #tpu.memory_space<vmem>>, vector<2x1x128xf32>,
    %513 = vector.extract_strided_slice %397 {offsets = [0, 5, 0], sizes = [2, 1, 512], strides = [1, 1, 1]} : vector<2x8x512xf32> to vector<2x1x512xf32>
    %514 = vector.shape_cast %513 : vector<2x1x512xf32> to vector<2x512xf32>
    %cst_156 = arith.constant dense<0.000000e+00> : vector<2x512xf32>
    %515 = tpu.matmul %509, %398, %cst_156 {dimension_numbers = #tpu.dot_dimension_numbers<[1], [0], [0], [1], [0, 0, 1, 1], [], []>} : vector<2x128xf32>, vector<128x512xf32>, vector<2x512xf32> -> vector<2x512xf32>
    %516 = arith.addf %514, %515 : vector<2x512xf32>
    %517 = arith.negf %516 : vector<2x512xf32>
    %518 = math.exp %517 : vector<2x512xf32>
    %cst_157 = arith.constant 1.000000e+00 : f32
    %519 = vector.broadcast %cst_157 : f32 to vector<2x512xf32>
    %520 = arith.addf %519, %518 : vector<2x512xf32>
    %521 = arith.divf %519, %520 : vector<2x512xf32>
    %522 = vector.extract_strided_slice %516 {offsets = [0, 256], sizes = [2, 128], strides = [1, 1]} : vector<2x512xf32> to vector<2x128xf32>
    %523 = math.tanh %522 : vector<2x128xf32>
    %524 = vector.extract_strided_slice %521 {offsets = [0, 0], sizes = [2, 128], strides = [1, 1]} : vector<2x512xf32> to vector<2x128xf32>
    %525 = vector.extract_strided_slice %521 {offsets = [0, 128], sizes = [2, 128], strides = [1, 1]} : vector<2x512xf32> to vector<2x128xf32>
    %526 = vector.extract_strided_slice %521 {offsets = [0, 384], sizes = [2, 128], strides = [1, 1]} : vector<2x512xf32> to vector<2x128xf32>
    %527 = arith.mulf %525, %507 : vector<2x128xf32>
    %528 = arith.mulf %524, %523 : vector<2x128xf32>
    %529 = arith.addf %527, %528 : vector<2x128xf32>
    %530 = math.tanh %529 : vector<2x128xf32>
    %531 = arith.mulf %526, %530 : vector<2x128xf32>
    %c0_158 = arith.constant 0 : index
    %c5_159 = arith.constant 5 : index
    %c0_160 = arith.constant 0 : index
    %532 = vector.load %arg18[%c0_158, %c5_159, %c0_160] : memref<2x8x128xf32, #tpu.memory_space<vmem>>, vector<2x1x128xf32>
    %533 = vector.shape_cast %532 : vector<2x1x128xf32> to vector<2x128xf32>
    %534 = vector.shape_cast %531 : vector<2x128xf32> to vector<2x1x128xf32>
    tpu.vector_store %arg18[%c0_158, %c5_159, %c0_160], %534 {strides = array<i32>} : memref<2x8x128xf32, #tpu.memory_space<vmem>>, vector<2x1x128xf32>,
    %535 = vector.extract_strided_slice %397 {offsets = [0, 6, 0], sizes = [2, 1, 512], strides = [1, 1, 1]} : vector<2x8x512xf32> to vector<2x1x512xf32>
    %536 = vector.shape_cast %535 : vector<2x1x512xf32> to vector<2x512xf32>
    %cst_161 = arith.constant dense<0.000000e+00> : vector<2x512xf32>
    %537 = tpu.matmul %531, %398, %cst_161 {dimension_numbers = #tpu.dot_dimension_numbers<[1], [0], [0], [1], [0, 0, 1, 1], [], []>} : vector<2x128xf32>, vector<128x512xf32>, vector<2x512xf32> -> vector<2x512xf32>
    %538 = arith.addf %536, %537 : vector<2x512xf32>
    %539 = arith.negf %538 : vector<2x512xf32>
    %540 = math.exp %539 : vector<2x512xf32>
    %cst_162 = arith.constant 1.000000e+00 : f32
    %541 = vector.broadcast %cst_162 : f32 to vector<2x512xf32>
    %542 = arith.addf %541, %540 : vector<2x512xf32>
    %543 = arith.divf %541, %542 : vector<2x512xf32>
    %544 = vector.extract_strided_slice %538 {offsets = [0, 256], sizes = [2, 128], strides = [1, 1]} : vector<2x512xf32> to vector<2x128xf32>
    %545 = math.tanh %544 : vector<2x128xf32>
    %546 = vector.extract_strided_slice %543 {offsets = [0, 0], sizes = [2, 128], strides = [1, 1]} : vector<2x512xf32> to vector<2x128xf32>
    %547 = vector.extract_strided_slice %543 {offsets = [0, 128], sizes = [2, 128], strides = [1, 1]} : vector<2x512xf32> to vector<2x128xf32>
    %548 = vector.extract_strided_slice %543 {offsets = [0, 384], sizes = [2, 128], strides = [1, 1]} : vector<2x512xf32> to vector<2x128xf32>
    %549 = arith.mulf %547, %529 : vector<2x128xf32>
    %550 = arith.mulf %546, %545 : vector<2x128xf32>
    %551 = arith.addf %549, %550 : vector<2x128xf32>
    %552 = math.tanh %551 : vector<2x128xf32>
    %553 = arith.mulf %548, %552 : vector<2x128xf32>
    %c0_163 = arith.constant 0 : index
    %c6_164 = arith.constant 6 : index
    %c0_165 = arith.constant 0 : index
    %554 = vector.load %arg18[%c0_163, %c6_164, %c0_165] : memref<2x8x128xf32, #tpu.memory_space<vmem>>, vector<2x1x128xf32>
    %555 = vector.shape_cast %554 : vector<2x1x128xf32> to vector<2x128xf32>
    %556 = vector.shape_cast %553 : vector<2x128xf32> to vector<2x1x128xf32>
    tpu.vector_store %arg18[%c0_163, %c6_164, %c0_165], %556 {strides = array<i32>} : memref<2x8x128xf32, #tpu.memory_space<vmem>>, vector<2x1x128xf32>,
    %557 = vector.extract_strided_slice %397 {offsets = [0, 7, 0], sizes = [2, 1, 512], strides = [1, 1, 1]} : vector<2x8x512xf32> to vector<2x1x512xf32>
    %558 = vector.shape_cast %557 : vector<2x1x512xf32> to vector<2x512xf32>
    %cst_166 = arith.constant dense<0.000000e+00> : vector<2x512xf32>
    %559 = tpu.matmul %553, %398, %cst_166 {dimension_numbers = #tpu.dot_dimension_numbers<[1], [0], [0], [1], [0, 0, 1, 1], [], []>} : vector<2x128xf32>, vector<128x512xf32>, vector<2x512xf32> -> vector<2x512xf32>
    %560 = arith.addf %558, %559 : vector<2x512xf32>
    %561 = arith.negf %560 : vector<2x512xf32>
    %562 = math.exp %561 : vector<2x512xf32>
    %cst_167 = arith.constant 1.000000e+00 : f32
    %563 = vector.broadcast %cst_167 : f32 to vector<2x512xf32>
    %564 = arith.addf %563, %562 : vector<2x512xf32>
    %565 = arith.divf %563, %564 : vector<2x512xf32>
    %566 = vector.extract_strided_slice %560 {offsets = [0, 256], sizes = [2, 128], strides = [1, 1]} : vector<2x512xf32> to vector<2x128xf32>
    %567 = math.tanh %566 : vector<2x128xf32>
    %568 = vector.extract_strided_slice %565 {offsets = [0, 0], sizes = [2, 128], strides = [1, 1]} : vector<2x512xf32> to vector<2x128xf32>
    %569 = vector.extract_strided_slice %565 {offsets = [0, 128], sizes = [2, 128], strides = [1, 1]} : vector<2x512xf32> to vector<2x128xf32>
    %570 = vector.extract_strided_slice %565 {offsets = [0, 384], sizes = [2, 128], strides = [1, 1]} : vector<2x512xf32> to vector<2x128xf32>
    %571 = arith.mulf %569, %551 : vector<2x128xf32>
    %572 = arith.mulf %568, %567 : vector<2x128xf32>
    %573 = arith.addf %571, %572 : vector<2x128xf32>
    %574 = math.tanh %573 : vector<2x128xf32>
    %575 = arith.mulf %570, %574 : vector<2x128xf32>
    %c0_168 = arith.constant 0 : index
    %c7_169 = arith.constant 7 : index
    %c0_170 = arith.constant 0 : index
    %576 = vector.load %arg18[%c0_168, %c7_169, %c0_170] : memref<2x8x128xf32, #tpu.memory_space<vmem>>, vector<2x1x128xf32>
    %577 = vector.shape_cast %576 : vector<2x1x128xf32> to vector<2x128xf32>
    %578 = vector.shape_cast %575 : vector<2x128xf32> to vector<2x1x128xf32>
    tpu.vector_store %arg18[%c0_168, %c7_169, %c0_170], %578 {strides = array<i32>} : memref<2x8x128xf32, #tpu.memory_space<vmem>>, vector<2x1x128xf32>,
    %c2_171 = arith.constant 2 : index
    %c0_172 = arith.constant 0 : index
    %c0_173 = arith.constant 0 : index
    %579 = vector.load %arg16[%c2_171, %c0_172, %c0_173] : memref<3x2x128xf32, #tpu.memory_space<vmem>>, vector<1x2x128xf32>
    %580 = vector.shape_cast %579 : vector<1x2x128xf32> to vector<2x128xf32>
    %581 = vector.shape_cast %575 : vector<2x128xf32> to vector<1x2x128xf32>
    tpu.vector_store %arg16[%c2_171, %c0_172, %c0_173], %581 {strides = array<i32>} : memref<3x2x128xf32, #tpu.memory_space<vmem>>, vector<1x2x128xf32>,
    %c2_174 = arith.constant 2 : index
    %c0_175 = arith.constant 0 : index
    %c0_176 = arith.constant 0 : index
    %582 = vector.load %arg17[%c2_174, %c0_175, %c0_176] : memref<3x2x128xf32, #tpu.memory_space<vmem>>, vector<1x2x128xf32>
    %583 = vector.shape_cast %582 : vector<1x2x128xf32> to vector<2x128xf32>
    %584 = vector.shape_cast %573 : vector<2x128xf32> to vector<1x2x128xf32>
    tpu.vector_store %arg17[%c2_174, %c0_175, %c0_176], %584 {strides = array<i32>} : memref<3x2x128xf32, #tpu.memory_space<vmem>>, vector<1x2x128xf32>,
    %c0_177 = arith.constant 0 : index
    %c0_178 = arith.constant 0 : index
    %c0_179 = arith.constant 0 : index
    %585 = vector.load %arg18[%c0_177, %c0_178, %c0_179] : memref<2x8x128xf32, #tpu.memory_space<vmem>>, vector<2x8x128xf32>
    %586 = vector.shape_cast %585 : vector<2x8x128xf32> to vector<16x128xf32>
    %c0_180 = arith.constant 0 : index
    %c0_181 = arith.constant 0 : index
    %587 = vector.load %arg13[%c0_180, %c0_181] : memref<128x128xf32, #tpu.memory_space<vmem>>, vector<128x128xf32>
    %cst_182 = arith.constant dense<0.000000e+00> : vector<16x128xf32>
    %588 = tpu.matmul %586, %587, %cst_182 {dimension_numbers = #tpu.dot_dimension_numbers<[1], [0], [0], [1], [0, 0, 1, 1], [], []>} : vector<16x128xf32>, vector<128x128xf32>, vector<16x128xf32> -> vector<16x128xf32>
    %c0_183 = arith.constant 0 : index
    %c0_184 = arith.constant 0 : index
    %589 = vector.load %arg14[%c0_183, %c0_184] : memref<1x128xf32, #tpu.memory_space<vmem>>, vector<1x128xf32>
    %590 = vector.broadcast %589 : vector<1x128xf32> to vector<16x128xf32>
    %591 = arith.addf %588, %590 : vector<16x128xf32>
    %c0_185 = arith.constant 0 : index
    %c0_186 = arith.constant 0 : index
    %592 = vector.load %arg15[%c0_185, %c0_186] : memref<16x128xf32, #tpu.memory_space<vmem>>, vector<16x128xf32>
    tpu.vector_store %arg15[%c0_185, %c0_186], %591 {strides = array<i32>} : memref<16x128xf32, #tpu.memory_space<vmem>>, vector<16x128xf32>,
    return
  }
  func.func @transform_0(%arg0: i32) -> (i32, i32, i32) {
    %c0_i32 = arith.constant 0 : i32
    %c0_i32_0 = arith.constant 0 : i32
    %c0_i32_1 = arith.constant 0 : i32
    return %arg0, %c0_i32, %c0_i32_0 : i32, i32, i32
  }
  func.func @transform_1(%arg0: i32) -> (i32, i32, i32) {
    %c0_i32 = arith.constant 0 : i32
    %c0_i32_0 = arith.constant 0 : i32
    %c0_i32_1 = arith.constant 0 : i32
    return %c0_i32, %arg0, %c0_i32_0 : i32, i32, i32
  }
  func.func @transform_2(%arg0: i32) -> (i32, i32, i32) {
    %c0_i32 = arith.constant 0 : i32
    %c0_i32_0 = arith.constant 0 : i32
    %c0_i32_1 = arith.constant 0 : i32
    return %c0_i32, %arg0, %c0_i32_0 : i32, i32, i32
  }
  func.func @transform_3(%arg0: i32) -> (i32, i32) {
    %c0_i32 = arith.constant 0 : i32
    %c0_i32_0 = arith.constant 0 : i32
    %c0_i32_1 = arith.constant 0 : i32
    return %c0_i32, %c0_i32_0 : i32, i32
  }
  func.func @transform_4(%arg0: i32) -> (i32, i32) {
    %c0_i32 = arith.constant 0 : i32
    %c0_i32_0 = arith.constant 0 : i32
    %c0_i32_1 = arith.constant 0 : i32
    return %c0_i32, %c0_i32_0 : i32, i32
  }
  func.func @transform_5(%arg0: i32) -> (i32, i32) {
    %c0_i32 = arith.constant 0 : i32
    %c0_i32_0 = arith.constant 0 : i32
    %c0_i32_1 = arith.constant 0 : i32
    return %c0_i32, %c0_i32_0 : i32, i32
  }
  func.func @transform_6(%arg0: i32) -> (i32, i32) {
    %c0_i32 = arith.constant 0 : i32
    %c0_i32_0 = arith.constant 0 : i32
    %c0_i32_1 = arith.constant 0 : i32
    return %c0_i32, %c0_i32_0 : i32, i32
  }
  func.func @transform_7(%arg0: i32) -> (i32, i32) {
    %c0_i32 = arith.constant 0 : i32
    %c0_i32_0 = arith.constant 0 : i32
    %c0_i32_1 = arith.constant 0 : i32
    return %c0_i32, %c0_i32_0 : i32, i32
  }
  func.func @transform_8(%arg0: i32) -> (i32, i32) {
    %c0_i32 = arith.constant 0 : i32
    %c0_i32_0 = arith.constant 0 : i32
    %c0_i32_1 = arith.constant 0 : i32
    return %c0_i32, %c0_i32_0 : i32, i32
  }
  func.func @transform_9(%arg0: i32) -> (i32, i32) {
    %c0_i32 = arith.constant 0 : i32
    %c0_i32_0 = arith.constant 0 : i32
    %c0_i32_1 = arith.constant 0 : i32
    return %c0_i32, %c0_i32_0 : i32, i32
  }
  func.func @transform_10(%arg0: i32) -> (i32, i32) {
    %c0_i32 = arith.constant 0 : i32
    %c0_i32_0 = arith.constant 0 : i32
    %c0_i32_1 = arith.constant 0 : i32
    return %c0_i32, %c0_i32_0 : i32, i32
  }
  func.func @transform_11(%arg0: i32) -> (i32, i32) {
    %c0_i32 = arith.constant 0 : i32
    %c0_i32_0 = arith.constant 0 : i32
    %c0_i32_1 = arith.constant 0 : i32
    return %c0_i32, %c0_i32_0 : i32, i32
  }
  func.func @transform_12(%arg0: i32) -> (i32, i32) {
    %c0_i32 = arith.constant 0 : i32
    %c0_i32_0 = arith.constant 0 : i32
    %c0_i32_1 = arith.constant 0 : i32
    return %c0_i32, %c0_i32_0 : i32, i32
  }
  func.func @transform_13(%arg0: i32) -> (i32, i32) {
    %c0_i32 = arith.constant 0 : i32
    %c0_i32_0 = arith.constant 0 : i32
    %c0_i32_1 = arith.constant 0 : i32
    return %c0_i32, %c0_i32_0 : i32, i32
  }
  func.func @transform_14(%arg0: i32) -> (i32, i32) {
    %c0_i32 = arith.constant 0 : i32
    %c0_i32_0 = arith.constant 0 : i32
    return %arg0, %c0_i32 : i32, i32
  }
  func.func @transform_15(%arg0: i32) -> (i32, i32, i32) {
    %c0_i32 = arith.constant 0 : i32
    %c0_i32_0 = arith.constant 0 : i32
    %c0_i32_1 = arith.constant 0 : i32
    return %c0_i32, %arg0, %c0_i32_0 : i32, i32, i32
  }
  func.func @transform_16(%arg0: i32) -> (i32, i32, i32) {
    %c0_i32 = arith.constant 0 : i32
    %c0_i32_0 = arith.constant 0 : i32
    %c0_i32_1 = arith.constant 0 : i32
    return %c0_i32, %arg0, %c0_i32_0 : i32, i32, i32
  }
}

</mosaic_0001>

<llo_original>
// kernel: char_rnn_forward.1
$region0: #{char_rnn_forward.1}
  #allocation0 [shape = 'u32[]', space=smem, size = 0x4, offset = 0x4, fixed_abs, tag = 'smem constant byte address 0x4 - core index']
  #allocation1 [shape = 'u32[144,128]{1,0:T(1,128)}', space=vmem, size = 0x12000, scoped, tag = 'internal scratch']
  #allocation2 [shape = 'f32[2,8,128]{2,1,0:T(8,128)}', space=vmem, size = 0x2000, scoped, tag = 'scratch operand']
  %s0 = inlined_call_operand.vmem [shape: f32[2,8,16], index: 0, kind: input, shape index: {}]
  %s1 = inlined_call_operand.vmem [shape: f32[3,2,128], index: 1, kind: input, shape index: {}]
  %s2 = inlined_call_operand.vmem [shape: f32[3,2,128], index: 2, kind: input, shape index: {}]
  %s3 = inlined_call_operand.hbm [shape: f32[16,512], index: 3, kind: input, shape index: {}]
  %s4 = inlined_call_operand.hbm [shape: f32[128,512], index: 4, kind: input, shape index: {}]
  %s5 = inlined_call_operand.vmem [shape: f32[1,512], index: 5, kind: input, shape index: {}]
  %s6 = inlined_call_operand.hbm [shape: f32[128,512], index: 6, kind: input, shape index: {}]
  %s7 = inlined_call_operand.hbm [shape: f32[128,512], index: 7, kind: input, shape index: {}]
  %s8 = inlined_call_operand.vmem [shape: f32[1,512], index: 8, kind: input, shape index: {}]
  %s9 = inlined_call_operand.hbm [shape: f32[128,512], index: 9, kind: input, shape index: {}]
  %s10 = inlined_call_operand.hbm [shape: f32[128,512], index: 10, kind: input, shape index: {}]
  %s11 = inlined_call_operand.vmem [shape: f32[1,512], index: 11, kind: input, shape index: {}]
  %s12 = inlined_call_operand.hbm [shape: f32[128,128], index: 12, kind: input, shape index: {}]
  %s13 = inlined_call_operand.vmem [shape: f32[1,128], index: 13, kind: input, shape index: {}]
  %s14 = inlined_call_operand.hbm [shape: f32[16,128], index: 14, kind: output, shape index: {0}]
  %s15 = inlined_call_operand.hbm [shape: f32[3,2,128], index: 15, kind: output, shape index: {1}]
  %s16 = inlined_call_operand.hbm [shape: f32[3,2,128], index: 16, kind: output, shape index: {2}]
  %17 = xla_tuple %s14, %s15, %s16
  %s18 = sld [smem:[#allocation0]]
  $region110: #{char_rnn_forward.1} parent=0
    _
  %s20 = ssub.s32 1, %s18
  %s21 = scalar_select 0, %s20, %s18
  $region1: #{char_rnn_forward.1} parent=0
    #allocation3 [shape = 'u8[32768]{0}', space=vmem, size = 0x8000, scoped, tag = 'input window, operand 3, single buffered']
    #allocation4 [shape = 's32[1]{0}', space=sflag, size = 0x4, scoped, tag = 'scoped memory for char_rnn_forward.1']
    #allocation5 [shape = 's32[1]{0}', space=sflag, size = 0x4, scoped, tag = 'scoped memory for char_rnn_forward.1']
    #allocation6 [shape = 'u8[262144]{0}', space=vmem, size = 0x40000, scoped, tag = 'input window, operand 4, single buffered']
    #allocation7 [shape = 's32[1]{0}', space=sflag, size = 0x4, scoped, tag = 'scoped memory for char_rnn_forward.1']
    #allocation8 [shape = 'u8[262144]{0}', space=vmem, size = 0x40000, scoped, tag = 'input window, operand 6, single buffered']
    #allocation9 [shape = 'u8[262144]{0}', space=vmem, size = 0x40000, scoped, tag = 'input window, operand 7, single buffered']
    #allocation10 [shape = 's32[1]{0}', space=sflag, size = 0x4, scoped, tag = 'scoped memory for char_rnn_forward.1']
    #allocation11 [shape = 'u8[262144]{0}', space=vmem, size = 0x40000, scoped, tag = 'input window, operand 9, single buffered']
    #allocation12 [shape = 'u8[262144]{0}', space=vmem, size = 0x40000, scoped, tag = 'input window, operand 10, single buffered']
    #allocation13 [shape = 's32[1]{0}', space=sflag, size = 0x4, scoped, tag = 'scoped memory for char_rnn_forward.1']
    #allocation14 [shape = 'u8[65536]{0}', space=vmem, size = 0x10000, scoped, tag = 'input window, operand 12, single buffered']
    #allocation15 [shape = 'u8[8192]{0}', space=vmem, size = 0x2000, scoped, tag = 'output window, operand 0, single buffered']
    #allocation16 [shape = 'u8[3072]{0}', space=vmem, size = 0xc00, scoped, tag = 'output window, operand 1, single buffered']
    #allocation17 [shape = 's32[1]{0}', space=sflag, size = 0x4, scoped, tag = 'scoped memory for char_rnn_forward.1']
    #allocation18 [shape = 'u8[3072]{0}', space=vmem, size = 0xc00, scoped, tag = 'output window, operand 2, single buffered']
    %22 = vsyncpa [#allocation4], 0
    %23 = vsyncpa [#allocation7], 0
    %24 = vsyncpa [#allocation10], 0
    %25 = vsyncpa [#allocation13], 0
    %26 = vsyncpa [#allocation5], 0
    %27 = vsyncpa [#allocation17], 0
    // Predicated region
    $region2: #{char_rnn_forward.1} parent=1 // pred_check
      _
    $region3: #{char_rnn_forward.1} parent=1 // pred_check_branch
      %29 = sbr.rel (0) target = $region5
    $region4: #{char_rnn_forward.1} parent=1 // pred_region
      _
    $region5: #{char_rnn_forward.1} parent=1 // pred_fallthru
      _
    // Predicated region
    $region6: #{char_rnn_forward.1} parent=1 // pred_check
      _
    $region7: #{char_rnn_forward.1} parent=1 // pred_check_branch
      %31 = sbr.rel (0) target = $region9
    $region8: #{char_rnn_forward.1} parent=1 // pred_region
      _
    $region9: #{char_rnn_forward.1} parent=1 // pred_fallthru
      _
    // Predicated region
    $region10: #{char_rnn_forward.1} parent=1 // pred_check
      _
    $region11: #{char_rnn_forward.1} parent=1 // pred_check_branch
      %33 = sbr.rel (0) target = $region13
    $region12: #{char_rnn_forward.1} parent=1 // pred_region
      _
    $region13: #{char_rnn_forward.1} parent=1 // pred_fallthru
      _
    // Predicated region
    $region14: #{char_rnn_forward.1} parent=1 // pred_check
      _
    $region15: #{char_rnn_forward.1} parent=1 // pred_check_branch
      %35 = sbr.rel (0) target = $region17
    $region16: #{char_rnn_forward.1} parent=1 // pred_region
      %s37 = ssub.s32 1024, 1024
      %38 = vsyncadd [#allocation4], %s37
      %s39 = sshll.u32 [#allocation3], 4
      %s40 = int_to_ptr.vmem [resolvable:$true] %s39
      %45 = dma.hbm_to_vmem [thread:$0]  %s3, 1024, %s40, [#allocation4], 512, 512, 32
    $region17: #{char_rnn_forward.1} parent=1 // pred_fallthru
      _
    // Predicated region
    $region18: #{char_rnn_forward.1} parent=1 // pred_check
      _
    $region19: #{char_rnn_forward.1} parent=1 // pred_check_branch
      %47 = sbr.rel (0) target = $region21
    $region20: #{char_rnn_forward.1} parent=1 // pred_region
      %s49 = ssub.s32 8192, 8192
      %50 = vsyncadd [#allocation7], %s49
      %s51 = sshll.u32 [#allocation6], 4
      %s52 = int_to_ptr.vmem [resolvable:$true] %s51
      %57 = dma.hbm_to_vmem [thread:$0]  %s4, 8192, %s52, [#allocation7], 512, 512, 32
    $region21: #{char_rnn_forward.1} parent=1 // pred_fallthru
      _
    // Predicated region
    $region22: #{char_rnn_forward.1} parent=1 // pred_check
      _
    $region23: #{char_rnn_forward.1} parent=1 // pred_check_branch
      %59 = sbr.rel (0) target = $region25
    $region24: #{char_rnn_forward.1} parent=1 // pred_region
      _
    $region25: #{char_rnn_forward.1} parent=1 // pred_fallthru
      _
    // Predicated region
    $region26: #{char_rnn_forward.1} parent=1 // pred_check
      _
    $region27: #{char_rnn_forward.1} parent=1 // pred_check_branch
      %61 = sbr.rel (0) target = $region29
    $region28: #{char_rnn_forward.1} parent=1 // pred_region
      %s63 = ssub.s32 8192, 8192
      %64 = vsyncadd [#allocation7], %s63
      %s65 = sshll.u32 [#allocation8], 4
      %s66 = int_to_ptr.vmem [resolvable:$true] %s65
      %71 = dma.hbm_to_vmem [thread:$0]  %s6, 8192, %s66, [#allocation7], 512, 512, 32
    $region29: #{char_rnn_forward.1} parent=1 // pred_fallthru
      _
    // Predicated region
    $region30: #{char_rnn_forward.1} parent=1 // pred_check
      _
    $region31: #{char_rnn_forward.1} parent=1 // pred_check_branch
      %73 = sbr.rel (0) target = $region33
    $region32: #{char_rnn_forward.1} parent=1 // pred_region
      %s75 = ssub.s32 8192, 8192
      %76 = vsyncadd [#allocation10], %s75
      %s77 = sshll.u32 [#allocation9], 4
      %s78 = int_to_ptr.vmem [resolvable:$true] %s77
      %83 = dma.hbm_to_vmem [thread:$0]  %s7, 8192, %s78, [#allocation10], 512, 512, 32
    $region33: #{char_rnn_forward.1} parent=1 // pred_fallthru
      _
    // Predicated region
    $region34: #{char_rnn_forward.1} parent=1 // pred_check
      _
    $region35: #{char_rnn_forward.1} parent=1 // pred_check_branch
      %85 = sbr.rel (0) target = $region37
    $region36: #{char_rnn_forward.1} parent=1 // pred_region
      _
    $region37: #{char_rnn_forward.1} parent=1 // pred_fallthru
      _
    // Predicated region
    $region38: #{char_rnn_forward.1} parent=1 // pred_check
      _
    $region39: #{char_rnn_forward.1} parent=1 // pred_check_branch
      %87 = sbr.rel (0) target = $region41
    $region40: #{char_rnn_forward.1} parent=1 // pred_region
      %s89 = ssub.s32 8192, 8192
      %90 = vsyncadd [#allocation10], %s89
      %s91 = sshll.u32 [#allocation11], 4
      %s92 = int_to_ptr.vmem [resolvable:$true] %s91
      %97 = dma.hbm_to_vmem [thread:$0]  %s9, 8192, %s92, [#allocation10], 512, 512, 32
    $region41: #{char_rnn_forward.1} parent=1 // pred_fallthru
      _
    // Predicated region
    $region42: #{char_rnn_forward.1} parent=1 // pred_check
      _
    $region43: #{char_rnn_forward.1} parent=1 // pred_check_branch
      %99 = sbr.rel (0) target = $region45
    $region44: #{char_rnn_forward.1} parent=1 // pred_region
      %s101 = ssub.s32 8192, 8192
      %102 = vsyncadd [#allocation13], %s101
      %s103 = sshll.u32 [#allocation12], 4
      %s104 = int_to_ptr.vmem [resolvable:$true] %s103
      %109 = dma.hbm_to_vmem [thread:$0]  %s10, 8192, %s104, [#allocation13], 512, 512, 32
    $region45: #{char_rnn_forward.1} parent=1 // pred_fallthru
      _
    // Predicated region
    $region46: #{char_rnn_forward.1} parent=1 // pred_check
      _
    $region47: #{char_rnn_forward.1} parent=1 // pred_check_branch
      %111 = sbr.rel (0) target = $region49
    $region48: #{char_rnn_forward.1} parent=1 // pred_region
      _
    $region49: #{char_rnn_forward.1} parent=1 // pred_fallthru
      _
    // Predicated region
    $region50: #{char_rnn_forward.1} parent=1 // pred_check
      _
    $region51: #{char_rnn_forward.1} parent=1 // pred_check_branch
      %113 = sbr.rel (0) target = $region53
    $region52: #{char_rnn_forward.1} parent=1 // pred_region
      %s115 = ssub.s32 2048, 2048
      %116 = vsyncadd [#allocation13], %s115
      %s117 = sshll.u32 [#allocation14], 4
      %s118 = int_to_ptr.vmem [resolvable:$true] %s117
      %123 = dma.hbm_to_vmem [thread:$0]  %s12, 2048, %s118, [#allocation13], 128, 128, 8
    $region53: #{char_rnn_forward.1} parent=1 // pred_fallthru
      _
    // Predicated region
    $region54: #{char_rnn_forward.1} parent=1 // pred_check
      _
    $region55: #{char_rnn_forward.1} parent=1 // pred_check_branch
      %125 = sbr.rel (0) target = $region57
    $region56: #{char_rnn_forward.1} parent=1 // pred_region
      _
    $region57: #{char_rnn_forward.1} parent=1 // pred_fallthru
      _
    // Predicated region
    $region58: #{char_rnn_forward.1} parent=1 // pred_check
      _
    $region59: #{char_rnn_forward.1} parent=1 // pred_check_branch
      %127 = sbr.rel (0) target = $region61
    $region60: #{char_rnn_forward.1} parent=1 // pred_region
      %128 = dma.done [#allocation4], 1024
    $region61: #{char_rnn_forward.1} parent=1 // pred_fallthru
      _
    // Predicated region
    $region62: #{char_rnn_forward.1} parent=1 // pred_check
      _
    $region63: #{char_rnn_forward.1} parent=1 // pred_check_branch
      %130 = sbr.rel (0) target = $region65
    $region64: #{char_rnn_forward.1} parent=1 // pred_region
      %131 = dma.done [#allocation7], 8192
    $region65: #{char_rnn_forward.1} parent=1 // pred_fallthru
      _
    // Predicated region
    $region66: #{char_rnn_forward.1} parent=1 // pred_check
      _
    $region67: #{char_rnn_forward.1} parent=1 // pred_check_branch
      %133 = sbr.rel (0) target = $region69
    $region68: #{char_rnn_forward.1} parent=1 // pred_region
      %134 = dma.done [#allocation7], 8192
    $region69: #{char_rnn_forward.1} parent=1 // pred_fallthru
      _
    // Predicated region
    $region70: #{char_rnn_forward.1} parent=1 // pred_check
      _
    $region71: #{char_rnn_forward.1} parent=1 // pred_check_branch
      %136 = sbr.rel (0) target = $region73
    $region72: #{char_rnn_forward.1} parent=1 // pred_region
      %137 = dma.done [#allocation10], 8192
    $region73: #{char_rnn_forward.1} parent=1 // pred_fallthru
      _
    // Predicated region
    $region74: #{char_rnn_forward.1} parent=1 // pred_check
      _
    $region75: #{char_rnn_forward.1} parent=1 // pred_check_branch
      %139 = sbr.rel (0) target = $region77
    $region76: #{char_rnn_forward.1} parent=1 // pred_region
      %140 = dma.done [#allocation10], 8192
    $region77: #{char_rnn_forward.1} parent=1 // pred_fallthru
      _
    // Predicated region
    $region78: #{char_rnn_forward.1} parent=1 // pred_check
      _
    $region79: #{char_rnn_forward.1} parent=1 // pred_check_branch
      %142 = sbr.rel (0) target = $region81
    $region80: #{char_rnn_forward.1} parent=1 // pred_region
      %143 = dma.done [#allocation13], 8192
    $region81: #{char_rnn_forward.1} parent=1 // pred_fallthru
      _
    // Predicated region
    $region82: #{char_rnn_forward.1} parent=1 // pred_check
      _
    $region83: #{char_rnn_forward.1} parent=1 // pred_check_branch
      %145 = sbr.rel (0) target = $region85
    $region84: #{char_rnn_forward.1} parent=1 // pred_region
      %146 = dma.done [#allocation13], 2048
    $region85: #{char_rnn_forward.1} parent=1 // pred_fallthru
      _
    %v147 = vld [vmem:[%s0] sm:$0xff]
    %v148 = vld [vmem:[%s0 + $0x8] sm:$0xff]
    %v149 = vld [vmem:[#allocation3] sm:$0xff]
    %v150 = vld [vmem:[#allocation3 + $0x8] sm:$0xff]
    %v151 = vld [vmem:[#allocation3 + $0x10] sm:$0xff]
    %v152 = vld [vmem:[#allocation3 + $0x18] sm:$0xff]
    %v153 = vld [vmem:[#allocation3 + $0x20] sm:$0xff]
    %v154 = vld [vmem:[#allocation3 + $0x28] sm:$0xff]
    %v155 = vld [vmem:[#allocation3 + $0x30] sm:$0xff]
    %v156 = vld [vmem:[#allocation3 + $0x38] sm:$0xff]
    %v157 = vld [vmem:[%s5] sm:$0xf]
    %v159 = vlaneseq
    %v160 = vshrl.u32 %v159, 7
    %v161 = vsub.s32 0, %v160
    %v162 = vrot.slane %v157, %v161
    %v163 = vlaneseq
    %v164 = vshrl.u32 %v163, 7
    %v165 = vsub.s32 1, %v164
    %v166 = vrot.slane %v157, %v165
    %v167 = vlaneseq
    %v168 = vshrl.u32 %v167, 7
    %v169 = vsub.s32 2, %v168
    %v170 = vrot.slane %v157, %v169
    %v171 = vlaneseq
    %v172 = vshrl.u32 %v171, 7
    %v173 = vsub.s32 3, %v172
    %v174 = vrot.slane %v157, %v173
    %vm179 = vcmask 130048
    %v181 = vsel %vm179, %v147, 0
    %v184 = vsel %vm179, %v148, 0
    %186 = vmatprep.subr.mxu0 %v150
    %187 = vmatpush1.msra.mxu0 %v149
    %188 = vmatprep.subr.mxu0 %v154
    %189 = vmatpush1.msra.mxu0 %v153
    %190 = vmatprep.subr.mxu0 0.0
    %191 = vmatpush1.msra.mxu0 0.0
    %192 = vmatprep.subr.mxu0 0.0
    %193 = vmatpush1.msra.mxu0 0.0
    %194 = vmatprep.subr.mxu0 0.0
    %195 = vmatpush1.msra.mxu0 0.0
    %196 = vmatprep.subr.mxu0 0.0
    %197 = vmatpush1.msra.mxu0 0.0
    %198 = vmatprep.subr.mxu0 0.0
    %199 = vmatpush1.msra.mxu0 0.0
    %200 = vmatprep.subr.mxu0 0.0
    %201 = vmatpush1.msra.mxu0 0.0
    %202 = vmatprep.subr.mxu0 0.0
    %203 = vmatpush1.msra.mxu0 0.0
    %204 = vmatprep.subr.mxu0 0.0
    %205 = vmatpush1.msra.mxu0 0.0
    %206 = vmatprep.subr.mxu0 0.0
    %207 = vmatpush1.msra.mxu0 0.0
    %208 = vmatprep.subr.mxu0 0.0
    %209 = vmatpush1.msra.mxu0 0.0
    %210 = vmatprep.subr.mxu0 0.0
    %211 = vmatpush1.msra.mxu0 0.0
    %212 = vmatprep.subr.mxu0 0.0
    %213 = vmatpush1.msra.mxu0 0.0
    %214 = vmatprep.subr.mxu0 0.0
    %215 = vmatpush1.msra.mxu0 0.0
    %216 = vmatprep.subr.mxu0 0.0
    %217 = vmatpush1.msra.mxu0 0.0
    %218 = vmatprep.subr.mxu0 0.0
    %219 = vmatpush1.msra.mxu0 0.0
    %220 = vmatprep.subr.mxu0 0.0
    %221 = vmatpush1.msra.mxu0 0.0
    %222 = vmatprep.subr.mxu0 0.0
    %223 = vmatpush1.msra.mxu0 0.0
    %224 = vmatprep.subr.mxu0 0.0
    %225 = vmatpush1.msra.mxu0 0.0
    %226 = vmatprep.subr.mxu0 0.0
    %227 = vmatpush1.msra.mxu0 0.0
    %228 = vmatprep.subr.mxu0 0.0
    %229 = vmatpush1.msra.mxu0 0.0
    %230 = vmatprep.subr.mxu0 0.0
    %231 = vmatpush1.msra.mxu0 0.0
    %232 = vmatprep.subr.mxu0 0.0
    %233 = vmatpush1.msra.mxu0 0.0
    %234 = vmatprep.subr.mxu0 0.0
    %235 = vmatpush1.msra.mxu0 0.0
    %236 = vmatprep.subr.mxu0 0.0
    %237 = vmatpush1.msra.mxu0 0.0
    %238 = vmatprep.subr.mxu0 0.0
    %239 = vmatpush1.msra.mxu0 0.0
    %240 = vmatprep.subr.mxu0 0.0
    %241 = vmatpush1.msra.mxu0 0.0
    %242 = vmatprep.subr.mxu0 0.0
    %243 = vmatpush1.msra.mxu0 0.0
    %244 = vmatprep.subr.mxu0 0.0
    %245 = vmatpush1.msra.mxu0 0.0
    %246 = vmatprep.subr.mxu0 0.0
    %247 = vmatpush1.msra.mxu0 0.0
    %248 = vmatprep.subr.mxu0 0.0
    %249 = vmatpush1.msra.mxu0 0.0
    %250 = vmatprep.mubr.f32.mxu0 0.0
    %251 = vmatmul.mubr.f32.gmra.mrb[0].mxu0 %v181
    %v252 = vpop.f32.mrb[0].mxu0
    %v253 = vadd.f32 %v162, %v252
    %v254 = vpop.f32.mrb[0].mxu0
    %v255 = vadd.f32 %v166, %v254
    %256 = vmatprep.mubr.f32.mxu0 0.0
    %257 = vmatmul.mubr.f32.gmra.mrb[0].mxu0 %v184
    %v258 = vpop.f32.mrb[0].mxu0
    %v259 = vadd.f32 %v162, %v258
    %v260 = vpop.f32.mrb[0].mxu0
    %v261 = vadd.f32 %v166, %v260
    %262 = vdwg.mxu0
    %263 = vmatprep.subr.mxu0 %v152
    %264 = vmatpush1.msra.mxu0 %v151
    %265 = vmatprep.subr.mxu0 %v156
    %266 = vmatpush1.msra.mxu0 %v155
    %267 = vmatprep.subr.mxu0 0.0
    %268 = vmatpush1.msra.mxu0 0.0
    %269 = vmatprep.subr.mxu0 0.0
    %270 = vmatpush1.msra.mxu0 0.0
    %271 = vmatprep.subr.mxu0 0.0
    %272 = vmatpush1.msra.mxu0 0.0
    %273 = vmatprep.subr.mxu0 0.0
    %274 = vmatpush1.msra.mxu0 0.0
    %275 = vmatprep.subr.mxu0 0.0
    %276 = vmatpush1.msra.mxu0 0.0
    %277 = vmatprep.subr.mxu0 0.0
    %278 = vmatpush1.msra.mxu0 0.0
    %279 = vmatprep.subr.mxu0 0.0
    %280 = vmatpush1.msra.mxu0 0.0
    %281 = vmatprep.subr.mxu0 0.0
    %282 = vmatpush1.msra.mxu0 0.0
    %283 = vmatprep.subr.mxu0 0.0
    %284 = vmatpush1.msra.mxu0 0.0
    %285 = vmatprep.subr.mxu0 0.0
    %286 = vmatpush1.msra.mxu0 0.0
    %287 = vmatprep.subr.mxu0 0.0
    %288 = vmatpush1.msra.mxu0 0.0
    %289 = vmatprep.subr.mxu0 0.0
    %290 = vmatpush1.msra.mxu0 0.0
    %291 = vmatprep.subr.mxu0 0.0
    %292 = vmatpush1.msra.mxu0 0.0
    %293 = vmatprep.subr.mxu0 0.0
    %294 = vmatpush1.msra.mxu0 0.0
    %295 = vmatprep.subr.mxu0 0.0
    %296 = vmatpush1.msra.mxu0 0.0
    %297 = vmatprep.subr.mxu0 0.0
    %298 = vmatpush1.msra.mxu0 0.0
    %299 = vmatprep.subr.mxu0 0.0
    %300 = vmatpush1.msra.mxu0 0.0
    %301 = vmatprep.subr.mxu0 0.0
    %302 = vmatpush1.msra.mxu0 0.0
    %303 = vmatprep.subr.mxu0 0.0
    %304 = vmatpush1.msra.mxu0 0.0
    %305 = vmatprep.subr.mxu0 0.0
    %306 = vmatpush1.msra.mxu0 0.0
    %307 = vmatprep.subr.mxu0 0.0
    %308 = vmatpush1.msra.mxu0 0.0
    %309 = vmatprep.subr.mxu0 0.0
    %310 = vmatpush1.msra.mxu0 0.0
    %311 = vmatprep.subr.mxu0 0.0
    %312 = vmatpush1.msra.mxu0 0.0
    %313 = vmatprep.subr.mxu0 0.0
    %314 = vmatpush1.msra.mxu0 0.0
    %315 = vmatprep.subr.mxu0 0.0
    %316 = vmatpush1.msra.mxu0 0.0
    %317 = vmatprep.subr.mxu0 0.0
    %318 = vmatpush1.msra.mxu0 0.0
    %319 = vmatprep.subr.mxu0 0.0
    %320 = vmatpush1.msra.mxu0 0.0
    %321 = vmatprep.subr.mxu0 0.0
    %322 = vmatpush1.msra.mxu0 0.0
    %323 = vmatprep.subr.mxu0 0.0
    %324 = vmatpush1.msra.mxu0 0.0
    %325 = vmatprep.subr.mxu0 0.0
    %326 = vmatpush1.msra.mxu0 0.0
    %327 = vmatprep.mubr.f32.mxu0 0.0
    %328 = vmatmul.mubr.f32.gmra.mrb[0].mxu0 %v181
    %v329 = vpop.f32.mrb[0].mxu0
    %v330 = vadd.f32 %v170, %v329
    %v331 = vpop.f32.mrb[0].mxu0
    %v332 = vadd.f32 %v174, %v331
    %333 = vmatprep.mubr.f32.mxu0 0.0
    %334 = vmatmul.mubr.f32.gmra.mrb[0].mxu0 %v184
    %v335 = vpop.f32.mrb[0].mxu0
    %v336 = vadd.f32 %v170, %v335
    %v337 = vpop.f32.mrb[0].mxu0
    %v338 = vadd.f32 %v174, %v337
    %339 = vdwg.mxu0
    %v340 = vld [vmem:[#allocation6] sm:$0xff]
    %v341 = vld [vmem:[#allocation6 + $0x8] sm:$0xff]
    %v342 = vld [vmem:[#allocation6 + $0x10] sm:$0xff]
    %v343 = vld [vmem:[#allocation6 + $0x18] sm:$0xff]
    %v344 = vld [vmem:[#allocation6 + $0x20] sm:$0xff]
    %v345 = vld [vmem:[#allocation6 + $0x28] sm:$0xff]
    %v346 = vld [vmem:[#allocation6 + $0x30] sm:$0xff]
    %v347 = vld [vmem:[#allocation6 + $0x38] sm:$0xff]
    %v348 = vld [vmem:[#allocation6 + $0x40] sm:$0xff]
    %v349 = vld [vmem:[#allocation6 + $0x48] sm:$0xff]
    %v350 = vld [vmem:[#allocation6 + $0x50] sm:$0xff]
    %v351 = vld [vmem:[#allocation6 + $0x58] sm:$0xff]
    %v352 = vld [vmem:[#allocation6 + $0x60] sm:$0xff]
    %v353 = vld [vmem:[#allocation6 + $0x68] sm:$0xff]
    %v354 = vld [vmem:[#allocation6 + $0x70] sm:$0xff]
    %v355 = vld [vmem:[#allocation6 + $0x78] sm:$0xff]
    %v356 = vld [vmem:[#allocation6 + $0x80] sm:$0xff]
    %v357 = vld [vmem:[#allocation6 + $0x88] sm:$0xff]
    %v358 = vld [vmem:[#allocation6 + $0x90] sm:$0xff]
    %v359 = vld [vmem:[#allocation6 + $0x98] sm:$0xff]
    %v360 = vld [vmem:[#allocation6 + $0xa0] sm:$0xff]
    %v361 = vld [vmem:[#allocation6 + $0xa8] sm:$0xff]
    %v362 = vld [vmem:[#allocation6 + $0xb0] sm:$0xff]
    %v363 = vld [vmem:[#allocation6 + $0xb8] sm:$0xff]
    %v364 = vld [vmem:[#allocation6 + $0xc0] sm:$0xff]
    %v365 = vld [vmem:[#allocation6 + $0xc8] sm:$0xff]
    %v366 = vld [vmem:[#allocation6 + $0xd0] sm:$0xff]
    %v367 = vld [vmem:[#allocation6 + $0xd8] sm:$0xff]
    %v368 = vld [vmem:[#allocation6 + $0xe0] sm:$0xff]
    %v369 = vld [vmem:[#allocation6 + $0xe8] sm:$0xff]
    %v370 = vld [vmem:[#allocation6 + $0xf0] sm:$0xff]
    %v371 = vld [vmem:[#allocation6 + $0xf8] sm:$0xff]
    %v372 = vld [vmem:[#allocation6 + $0x100] sm:$0xff]
    %v373 = vld [vmem:[#allocation6 + $0x108] sm:$0xff]
    %v374 = vld [vmem:[#allocation6 + $0x110] sm:$0xff]
    %v375 = vld [vmem:[#allocation6 + $0x118] sm:$0xff]
    %v376 = vld [vmem:[#allocation6 + $0x120] sm:$0xff]
    %v377 = vld [vmem:[#allocation6 + $0x128] sm:$0xff]
    %v378 = vld [vmem:[#allocation6 + $0x130] sm:$0xff]
    %v379 = vld [vmem:[#allocation6 + $0x138] sm:$0xff]
    %v380 = vld [vmem:[#allocation6 + $0x140] sm:$0xff]
    %v381 = vld [vmem:[#allocation6 + $0x148] sm:$0xff]
    %v382 = vld [vmem:[#allocation6 + $0x150] sm:$0xff]
    %v383 = vld [vmem:[#allocation6 + $0x158] sm:$0xff]
    %v384 = vld [vmem:[#allocation6 + $0x160] sm:$0xff]
    %v385 = vld [vmem:[#allocation6 + $0x168] sm:$0xff]
    %v386 = vld [vmem:[#allocation6 + $0x170] sm:$0xff]
    %v387 = vld [vmem:[#allocation6 + $0x178] sm:$0xff]
    %v388 = vld [vmem:[#allocation6 + $0x180] sm:$0xff]
    %v389 = vld [vmem:[#allocation6 + $0x188] sm:$0xff]
    %v390 = vld [vmem:[#allocation6 + $0x190] sm:$0xff]
    %v391 = vld [vmem:[#allocation6 + $0x198] sm:$0xff]
    %v392 = vld [vmem:[#allocation6 + $0x1a0] sm:$0xff]
    %v393 = vld [vmem:[#allocation6 + $0x1a8] sm:$0xff]
    %v394 = vld [vmem:[#allocation6 + $0x1b0] sm:$0xff]
    %v395 = vld [vmem:[#allocation6 + $0x1b8] sm:$0xff]
    %v396 = vld [vmem:[#allocation6 + $0x1c0] sm:$0xff]
    %v397 = vld [vmem:[#allocation6 + $0x1c8] sm:$0xff]
    %v398 = vld [vmem:[#allocation6 + $0x1d0] sm:$0xff]
    %v399 = vld [vmem:[#allocation6 + $0x1d8] sm:$0xff]
    %v400 = vld [vmem:[#allocation6 + $0x1e0] sm:$0xff]
    %v401 = vld [vmem:[#allocation6 + $0x1e8] sm:$0xff]
    %v402 = vld [vmem:[#allocation6 + $0x1f0] sm:$0xff]
    %v403 = vld [vmem:[#allocation6 + $0x1f8] sm:$0xff]
    %v404 = vld [vmem:[%s1] sm:$0x3]
    %v405 = vld [vmem:[%s2] sm:$0x3]
    %406 = vmatprep.subr.mxu0 %v341
    %407 = vmatpush1.msra.mxu0 %v340
    %408 = vmatprep.subr.mxu0 %v345
    %409 = vmatpush1.msra.mxu0 %v344
    %410 = vmatprep.subr.mxu0 %v349
    %411 = vmatpush1.msra.mxu0 %v348
    %412 = vmatprep.subr.mxu0 %v353
    %413 = vmatpush1.msra.mxu0 %v352
    %414 = vmatprep.subr.mxu0 %v357
    %415 = vmatpush1.msra.mxu0 %v356
    %416 = vmatprep.subr.mxu0 %v361
    %417 = vmatpush1.msra.mxu0 %v360
    %418 = vmatprep.subr.mxu0 %v365
    %419 = vmatpush1.msra.mxu0 %v364
    %420 = vmatprep.subr.mxu0 %v369
    %421 = vmatpush1.msra.mxu0 %v368
    %422 = vmatprep.subr.mxu0 %v373
    %423 = vmatpush1.msra.mxu0 %v372
    %424 = vmatprep.subr.mxu0 %v377
    %425 = vmatpush1.msra.mxu0 %v376
    %426 = vmatprep.subr.mxu0 %v381
    %427 = vmatpush1.msra.mxu0 %v380
    %428 = vmatprep.subr.mxu0 %v385
    %429 = vmatpush1.msra.mxu0 %v384
    %430 = vmatprep.subr.mxu0 %v389
    %431 = vmatpush1.msra.mxu0 %v388
    %432 = vmatprep.subr.mxu0 %v393
    %433 = vmatpush1.msra.mxu0 %v392
    %434 = vmatprep.subr.mxu0 %v397
    %435 = vmatpush1.msra.mxu0 %v396
    %436 = vmatprep.subr.mxu0 %v401
    %437 = vmatpush1.msra.mxu0 %v400
    %438 = vmatprep.subr.mxu0 0.0
    %439 = vmatpush1.msra.mxu0 0.0
    %440 = vmatprep.subr.mxu0 0.0
    %441 = vmatpush1.msra.mxu0 0.0
    %442 = vmatprep.subr.mxu0 0.0
    %443 = vmatpush1.msra.mxu0 0.0
    %444 = vmatprep.subr.mxu0 0.0
    %445 = vmatpush1.msra.mxu0 0.0
    %446 = vmatprep.subr.mxu0 0.0
    %447 = vmatpush1.msra.mxu0 0.0
    %448 = vmatprep.subr.mxu0 0.0
    %449 = vmatpush1.msra.mxu0 0.0
    %450 = vmatprep.subr.mxu0 0.0
    %451 = vmatpush1.msra.mxu0 0.0
    %452 = vmatprep.subr.mxu0 0.0
    %453 = vmatpush1.msra.mxu0 0.0
    %454 = vmatprep.subr.mxu0 0.0
    %455 = vmatpush1.msra.mxu0 0.0
    %456 = vmatprep.subr.mxu0 0.0
    %457 = vmatpush1.msra.mxu0 0.0
    %458 = vmatprep.subr.mxu0 0.0
    %459 = vmatpush1.msra.mxu0 0.0
    %460 = vmatprep.subr.mxu0 0.0
    %461 = vmatpush1.msra.mxu0 0.0
    %462 = vmatprep.subr.mxu0 0.0
    %463 = vmatpush1.msra.mxu0 0.0
    %464 = vmatprep.subr.mxu0 0.0
    %465 = vmatpush1.msra.mxu0 0.0
    %466 = vmatprep.subr.mxu0 0.0
    %467 = vmatpush1.msra.mxu0 0.0
    %468 = vmatprep.subr.mxu0 0.0
    %469 = vmatpush1.msra.mxu0 0.0
    %470 = vmatprep.mubr.f32.mxu0 0.0
    %471 = vmatmul.mubr.f32.gmra.mrb[0].mxu0 %v404
    %v472 = vpop.f32.mrb[0].mxu0
    %v473 = vadd.f32 0.0, %v472
    %v474 = vpop.f32.mrb[0].mxu0
    %v475 = vadd.f32 0.0, %v474
    %476 = vdwg.mxu0
    %477 = vmatprep.subr.mxu0 %v343
    %478 = vmatpush1.msra.mxu0 %v342
    %479 = vmatprep.subr.mxu0 %v347
    %480 = vmatpush1.msra.mxu0 %v346
    %481 = vmatprep.subr.mxu0 %v351
    %482 = vmatpush1.msra.mxu0 %v350
    %483 = vmatprep.subr.mxu0 %v355
    %484 = vmatpush1.msra.mxu0 %v354
    %485 = vmatprep.subr.mxu0 %v359
    %486 = vmatpush1.msra.mxu0 %v358
    %487 = vmatprep.subr.mxu0 %v363
    %488 = vmatpush1.msra.mxu0 %v362
    %489 = vmatprep.subr.mxu0 %v367
    %490 = vmatpush1.msra.mxu0 %v366
    %491 = vmatprep.subr.mxu0 %v371
    %492 = vmatpush1.msra.mxu0 %v370
    %493 = vmatprep.subr.mxu0 %v375
    %494 = vmatpush1.msra.mxu0 %v374
    %495 = vmatprep.subr.mxu0 %v379
    %496 = vmatpush1.msra.mxu0 %v378
    %497 = vmatprep.subr.mxu0 %v383
    %498 = vmatpush1.msra.mxu0 %v382
    %499 = vmatprep.subr.mxu0 %v387
    %500 = vmatpush1.msra.mxu0 %v386
    %501 = vmatprep.subr.mxu0 %v391
    %502 = vmatpush1.msra.mxu0 %v390
    %503 = vmatprep.subr.mxu0 %v395
    %504 = vmatpush1.msra.mxu0 %v394
    %505 = vmatprep.subr.mxu0 %v399
    %506 = vmatpush1.msra.mxu0 %v398
    %507 = vmatprep.subr.mxu0 %v403
    %508 = vmatpush1.msra.mxu0 %v402
    %509 = vmatprep.subr.mxu0 0.0
    %510 = vmatpush1.msra.mxu0 0.0
    %511 = vmatprep.subr.mxu0 0.0
    %512 = vmatpush1.msra.mxu0 0.0
    %513 = vmatprep.subr.mxu0 0.0
    %514 = vmatpush1.msra.mxu0 0.0
    %515 = vmatprep.subr.mxu0 0.0
    %516 = vmatpush1.msra.mxu0 0.0
    %517 = vmatprep.subr.mxu0 0.0
    %518 = vmatpush1.msra.mxu0 0.0
    %519 = vmatprep.subr.mxu0 0.0
    %520 = vmatpush1.msra.mxu0 0.0
    %521 = vmatprep.subr.mxu0 0.0
    %522 = vmatpush1.msra.mxu0 0.0
    %523 = vmatprep.subr.mxu0 0.0
    %524 = vmatpush1.msra.mxu0 0.0
    %525 = vmatprep.subr.mxu0 0.0
    %526 = vmatpush1.msra.mxu0 0.0
    %527 = vmatprep.subr.mxu0 0.0
    %528 = vmatpush1.msra.mxu0 0.0
    %529 = vmatprep.subr.mxu0 0.0
    %530 = vmatpush1.msra.mxu0 0.0
    %531 = vmatprep.subr.mxu0 0.0
    %532 = vmatpush1.msra.mxu0 0.0
    %533 = vmatprep.subr.mxu0 0.0
    %534 = vmatpush1.msra.mxu0 0.0
    %535 = vmatprep.subr.mxu0 0.0
    %536 = vmatpush1.msra.mxu0 0.0
    %537 = vmatprep.subr.mxu0 0.0
    %538 = vmatpush1.msra.mxu0 0.0
    %539 = vmatprep.subr.mxu0 0.0
    %540 = vmatpush1.msra.mxu0 0.0
    %541 = vmatprep.mubr.f32.mxu0 0.0
    %542 = vmatmul.mubr.f32.gmra.mrb[0].mxu0 %v404
    %v543 = vpop.f32.mrb[0].mxu0
    %v544 = vadd.f32 0.0, %v543
    %v545 = vpop.f32.mrb[0].mxu0
    %v546 = vadd.f32 0.0, %v545
    %547 = vdwg.mxu0
    %v552 = vrot.slane %v473, 1
    %v553 = vrot.slane %v475, 1
    %v554 = vrot.slane %v544, 1
    %v555 = vrot.slane %v546, 1
    %v564 = vadd.f32 %v253, %v473
    %v565 = vadd.f32 %v255, %v475
    %v566 = vadd.f32 %v330, %v544
    %v567 = vadd.f32 %v332, %v546
    %v568 = vadd.f32 %v259, %v552
    %v569 = vadd.f32 %v261, %v553
    %v570 = vadd.f32 %v336, %v554
    %v571 = vadd.f32 %v338, %v555
    %v572 = vxor.u32 %v564, 2147483648
    %v573 = vxor.u32 %v565, 2147483648
    %v574 = vxor.u32 %v567, 2147483648
    %v575 = vxor.u32 %v568, 2147483648
    %v576 = vxor.u32 %v569, 2147483648
    %v577 = vxor.u32 %v571, 2147483648
    %v578 = vmul.f32 %v572, 1.442695
    %v579 = vpow.pop %v578
    %v580 = vmul.f32 %v573, 1.442695
    %v581 = vpow.pop %v580
    %v582 = vmul.f32 %v574, 1.442695
    %v583 = vpow.pop %v582
    %v584 = vmul.f32 %v575, 1.442695
    %v585 = vpow.pop %v584
    %v586 = vmul.f32 %v576, 1.442695
    %v587 = vpow.pop %v586
    %v588 = vmul.f32 %v577, 1.442695
    %v589 = vpow.pop %v588
    %v590 = vadd.f32 %v579, 1.0
    %v591 = vadd.f32 %v581, 1.0
    %v592 = vadd.f32 %v583, 1.0
    %v593 = vadd.f32 %v585, 1.0
    %v594 = vadd.f32 %v587, 1.0
    %v595 = vadd.f32 %v589, 1.0
    %v596 = vrcp.pop %v590
    %v597 = vmul.f32 1.0, %v596
    %v598 = vrcp.pop %v591
    %v599 = vmul.f32 1.0, %v598
    %v600 = vrcp.pop %v592
    %v601 = vmul.f32 1.0, %v600
    %v602 = vrcp.pop %v593
    %v603 = vmul.f32 1.0, %v602
    %v604 = vrcp.pop %v594
    %v605 = vmul.f32 1.0, %v604
    %v606 = vrcp.pop %v595
    %v607 = vmul.f32 1.0, %v606
    %v608 = vtanh.pop %v566
    %v609 = vtanh.pop %v570
    %v611 = vrot.slane %v405, 1
    %v614 = vmul.f32 %v599, %v405
    %v615 = vmul.f32 %v605, %v611
    %v616 = vmul.f32 %v597, %v608
    %v617 = vmul.f32 %v603, %v609
    %v618 = vadd.f32 %v614, %v616
    %v619 = vadd.f32 %v615, %v617
    %v620 = vtanh.pop %v618
    %v621 = vtanh.pop %v619
    %v622 = vmul.f32 %v601, %v620
    %v623 = vmul.f32 %v607, %v621
    %624 = vst [vmem:[#allocation2] sm:$0x1] %v622
    %625 = vst [vmem:[#allocation2 + $0x8] sm:$0x1] %v623
    %v628 = vrot.slane %v623, 7
    %vm629 = vcmask 1041409
    %v630 = vsel %vm629, %v628, %v622
    %632 = vmatprep.subr.mxu0 %v341
    %633 = vmatpush1.msra.mxu0 %v340
    %634 = vmatprep.subr.mxu0 %v345
    %635 = vmatpush1.msra.mxu0 %v344
    %636 = vmatprep.subr.mxu0 %v349
    %637 = vmatpush1.msra.mxu0 %v348
    %638 = vmatprep.subr.mxu0 %v353
    %639 = vmatpush1.msra.mxu0 %v352
    %640 = vmatprep.subr.mxu0 %v357
    %641 = vmatpush1.msra.mxu0 %v356
    %642 = vmatprep.subr.mxu0 %v361
    %643 = vmatpush1.msra.mxu0 %v360
    %644 = vmatprep.subr.mxu0 %v365
    %645 = vmatpush1.msra.mxu0 %v364
    %646 = vmatprep.subr.mxu0 %v369
    %647 = vmatpush1.msra.mxu0 %v368
    %648 = vmatprep.subr.mxu0 %v373
    %649 = vmatpush1.msra.mxu0 %v372
    %650 = vmatprep.subr.mxu0 %v377
    %651 = vmatpush1.msra.mxu0 %v376
    %652 = vmatprep.subr.mxu0 %v381
    %653 = vmatpush1.msra.mxu0 %v380
    %654 = vmatprep.subr.mxu0 %v385
    %655 = vmatpush1.msra.mxu0 %v384
    %656 = vmatprep.subr.mxu0 %v389
    %657 = vmatpush1.msra.mxu0 %v388
    %658 = vmatprep.subr.mxu0 %v393
    %659 = vmatpush1.msra.mxu0 %v392
    %660 = vmatprep.subr.mxu0 %v397
    %661 = vmatpush1.msra.mxu0 %v396
    %662 = vmatprep.subr.mxu0 %v401
    %663 = vmatpush1.msra.mxu0 %v400
    %664 = vmatprep.subr.mxu0 0.0
    %665 = vmatpush1.msra.mxu0 0.0
    %666 = vmatprep.subr.mxu0 0.0
    %667 = vmatpush1.msra.mxu0 0.0
    %668 = vmatprep.subr.mxu0 0.0
    %669 = vmatpush1.msra.mxu0 0.0
    %670 = vmatprep.subr.mxu0 0.0
    %671 = vmatpush1.msra.mxu0 0.0
    %672 = vmatprep.subr.mxu0 0.0
    %673 = vmatpush1.msra.mxu0 0.0
    %674 = vmatprep.subr.mxu0 0.0
    %675 = vmatpush1.msra.mxu0 0.0
    %676 = vmatprep.subr.mxu0 0.0
    %677 = vmatpush1.msra.mxu0 0.0
    %678 = vmatprep.subr.mxu0 0.0
    %679 = vmatpush1.msra.mxu0 0.0
    %680 = vmatprep.subr.mxu0 0.0
    %681 = vmatpush1.msra.mxu0 0.0
    %682 = vmatprep.subr.mxu0 0.0
    %683 = vmatpush1.msra.mxu0 0.0
    %684 = vmatprep.subr.mxu0 0.0
    %685 = vmatpush1.msra.mxu0 0.0
    %686 = vmatprep.subr.mxu0 0.0
    %687 = vmatpush1.msra.mxu0 0.0
    %688 = vmatprep.subr.mxu0 0.0
    %689 = vmatpush1.msra.mxu0 0.0
    %690 = vmatprep.subr.mxu0 0.0
    %691 = vmatpush1.msra.mxu0 0.0
    %692 = vmatprep.subr.mxu0 0.0
    %693 = vmatpush1.msra.mxu0 0.0
    %694 = vmatprep.subr.mxu0 0.0
    %695 = vmatpush1.msra.mxu0 0.0
    %696 = vmatprep.mubr.f32.mxu0 0.0
    %697 = vmatmul.mubr.f32.gmra.mrb[0].mxu0 %v630
    %v698 = vpop.f32.mrb[0].mxu0
    %v699 = vadd.f32 0.0, %v698
    %v700 = vpop.f32.mrb[0].mxu0
    %v701 = vadd.f32 0.0, %v700
    %702 = vdwg.mxu0
    %703 = vmatprep.subr.mxu0 %v343
    %704 = vmatpush1.msra.mxu0 %v342
    %705 = vmatprep.subr.mxu0 %v347
    %706 = vmatpush1.msra.mxu0 %v346
    %707 = vmatprep.subr.mxu0 %v351
    %708 = vmatpush1.msra.mxu0 %v350
    %709 = vmatprep.subr.mxu0 %v355
    %710 = vmatpush1.msra.mxu0 %v354
    %711 = vmatprep.subr.mxu0 %v359
    %712 = vmatpush1.msra.mxu0 %v358
    %713 = vmatprep.subr.mxu0 %v363
    %714 = vmatpush1.msra.mxu0 %v362
    %715 = vmatprep.subr.mxu0 %v367
    %716 = vmatpush1.msra.mxu0 %v366
    %717 = vmatprep.subr.mxu0 %v371
    %718 = vmatpush1.msra.mxu0 %v370
    %719 = vmatprep.subr.mxu0 %v375
    %720 = vmatpush1.msra.mxu0 %v374
    %721 = vmatprep.subr.mxu0 %v379
    %722 = vmatpush1.msra.mxu0 %v378
    %723 = vmatprep.subr.mxu0 %v383
    %724 = vmatpush1.msra.mxu0 %v382
    %725 = vmatprep.subr.mxu0 %v387
    %726 = vmatpush1.msra.mxu0 %v386
    %727 = vmatprep.subr.mxu0 %v391
    %728 = vmatpush1.msra.mxu0 %v390
    %729 = vmatprep.subr.mxu0 %v395
    %730 = vmatpush1.msra.mxu0 %v394
    %731 = vmatprep.subr.mxu0 %v399
    %732 = vmatpush1.msra.mxu0 %v398
    %733 = vmatprep.subr.mxu0 %v403
    %734 = vmatpush1.msra.mxu0 %v402
    %735 = vmatprep.subr.mxu0 0.0
    %736 = vmatpush1.msra.mxu0 0.0
    %737 = vmatprep.subr.mxu0 0.0
    %738 = vmatpush1.msra.mxu0 0.0
    %739 = vmatprep.subr.mxu0 0.0
    %740 = vmatpush1.msra.mxu0 0.0
    %741 = vmatprep.subr.mxu0 0.0
    %742 = vmatpush1.msra.mxu0 0.0
    %743 = vmatprep.subr.mxu0 0.0
    %744 = vmatpush1.msra.mxu0 0.0
    %745 = vmatprep.subr.mxu0 0.0
    %746 = vmatpush1.msra.mxu0 0.0
    %747 = vmatprep.subr.mxu0 0.0
    %748 = vmatpush1.msra.mxu0 0.0
    %749 = vmatprep.subr.mxu0 0.0
    %750 = vmatpush1.msra.mxu0 0.0
    %751 = vmatprep.subr.mxu0 0.0
    %752 = vmatpush1.msra.mxu0 0.0
    %753 = vmatprep.subr.mxu0 0.0
    %754 = vmatpush1.msra.mxu0 0.0
    %755 = vmatprep.subr.mxu0 0.0
    %756 = vmatpush1.msra.mxu0 0.0
    %757 = vmatprep.subr.mxu0 0.0
    %758 = vmatpush1.msra.mxu0 0.0
    %759 = vmatprep.subr.mxu0 0.0
    %760 = vmatpush1.msra.mxu0 0.0
    %761 = vmatprep.subr.mxu0 0.0
    %762 = vmatpush1.msra.mxu0 0.0
    %763 = vmatprep.subr.mxu0 0.0
    %764 = vmatpush1.msra.mxu0 0.0
    %765 = vmatprep.subr.mxu0 0.0
    %766 = vmatpush1.msra.mxu0 0.0
    %767 = vmatprep.mubr.f32.mxu0 0.0
    %768 = vmatmul.mubr.f32.gmra.mrb[0].mxu0 %v630
    %v769 = vpop.f32.mrb[0].mxu0
    %v770 = vadd.f32 0.0, %v769
    %v771 = vpop.f32.mrb[0].mxu0
    %v772 = vadd.f32 0.0, %v771
    %773 = vdwg.mxu0
    %v778 = vrot.slane %v699, 7
    %v779 = vrot.slane %v701, 7
    %v780 = vrot.slane %v770, 7
    %v781 = vrot.slane %v772, 7
    %v790 = vadd.f32 %v253, %v778
    %v791 = vadd.f32 %v255, %v779
    %v792 = vadd.f32 %v330, %v780
    %v793 = vadd.f32 %v332, %v781
    %v794 = vadd.f32 %v259, %v699
    %v795 = vadd.f32 %v261, %v701
    %v796 = vadd.f32 %v336, %v770
    %v797 = vadd.f32 %v338, %v772
    %v798 = vxor.u32 %v790, 2147483648
    %v799 = vxor.u32 %v791, 2147483648
    %v800 = vxor.u32 %v793, 2147483648
    %v801 = vxor.u32 %v794, 2147483648
    %v802 = vxor.u32 %v795, 2147483648
    %v803 = vxor.u32 %v797, 2147483648
    %v804 = vmul.f32 %v798, 1.442695
    %v805 = vpow.pop %v804
    %v806 = vmul.f32 %v799, 1.442695
    %v807 = vpow.pop %v806
    %v808 = vmul.f32 %v800, 1.442695
    %v809 = vpow.pop %v808
    %v810 = vmul.f32 %v801, 1.442695
    %v811 = vpow.pop %v810
    %v812 = vmul.f32 %v802, 1.442695
    %v813 = vpow.pop %v812
    %v814 = vmul.f32 %v803, 1.442695
    %v815 = vpow.pop %v814
    %v816 = vadd.f32 %v805, 1.0
    %v817 = vadd.f32 %v807, 1.0
    %v818 = vadd.f32 %v809, 1.0
    %v819 = vadd.f32 %v811, 1.0
    %v820 = vadd.f32 %v813, 1.0
    %v821 = vadd.f32 %v815, 1.0
    %v822 = vrcp.pop %v816
    %v823 = vmul.f32 1.0, %v822
    %v824 = vrcp.pop %v817
    %v825 = vmul.f32 1.0, %v824
    %v826 = vrcp.pop %v818
    %v827 = vmul.f32 1.0, %v826
    %v828 = vrcp.pop %v819
    %v829 = vmul.f32 1.0, %v828
    %v830 = vrcp.pop %v820
    %v831 = vmul.f32 1.0, %v830
    %v832 = vrcp.pop %v821
    %v833 = vmul.f32 1.0, %v832
    %v834 = vtanh.pop %v792
    %v835 = vtanh.pop %v796
    %v838 = vrot.slane %v618, 7
    %v839 = vrot.slane %v619, 7
    %v842 = vmul.f32 %v825, %v838
    %v843 = vmul.f32 %v831, %v839
    %v844 = vmul.f32 %v823, %v834
    %v845 = vmul.f32 %v829, %v835
    %v846 = vadd.f32 %v842, %v844
    %v847 = vadd.f32 %v843, %v845
    %v848 = vtanh.pop %v846
    %v849 = vtanh.pop %v847
    %v850 = vmul.f32 %v827, %v848
    %v851 = vmul.f32 %v833, %v849
    %852 = vst [vmem:[#allocation2] sm:$0x2] %v850
    %853 = vst [vmem:[#allocation2 + $0x8] sm:$0x2] %v851
    %v856 = vrot.slane %v850, 1
    %v857 = vsel %vm629, %v851, %v856
    %859 = vmatprep.subr.mxu0 %v341
    %860 = vmatpush1.msra.mxu0 %v340
    %861 = vmatprep.subr.mxu0 %v345
    %862 = vmatpush1.msra.mxu0 %v344
    %863 = vmatprep.subr.mxu0 %v349
    %864 = vmatpush1.msra.mxu0 %v348
    %865 = vmatprep.subr.mxu0 %v353
    %866 = vmatpush1.msra.mxu0 %v352
    %867 = vmatprep.subr.mxu0 %v357
    %868 = vmatpush1.msra.mxu0 %v356
    %869 = vmatprep.subr.mxu0 %v361
    %870 = vmatpush1.msra.mxu0 %v360
    %871 = vmatprep.subr.mxu0 %v365
    %872 = vmatpush1.msra.mxu0 %v364
    %873 = vmatprep.subr.mxu0 %v369
    %874 = vmatpush1.msra.mxu0 %v368
    %875 = vmatprep.subr.mxu0 %v373
    %876 = vmatpush1.msra.mxu0 %v372
    %877 = vmatprep.subr.mxu0 %v377
    %878 = vmatpush1.msra.mxu0 %v376
    %879 = vmatprep.subr.mxu0 %v381
    %880 = vmatpush1.msra.mxu0 %v380
    %881 = vmatprep.subr.mxu0 %v385
    %882 = vmatpush1.msra.mxu0 %v384
    %883 = vmatprep.subr.mxu0 %v389
    %884 = vmatpush1.msra.mxu0 %v388
    %885 = vmatprep.subr.mxu0 %v393
    %886 = vmatpush1.msra.mxu0 %v392
    %887 = vmatprep.subr.mxu0 %v397
    %888 = vmatpush1.msra.mxu0 %v396
    %889 = vmatprep.subr.mxu0 %v401
    %890 = vmatpush1.msra.mxu0 %v400
    %891 = vmatprep.subr.mxu0 0.0
    %892 = vmatpush1.msra.mxu0 0.0
    %893 = vmatprep.subr.mxu0 0.0
    %894 = vmatpush1.msra.mxu0 0.0
    %895 = vmatprep.subr.mxu0 0.0
    %896 = vmatpush1.msra.mxu0 0.0
    %897 = vmatprep.subr.mxu0 0.0
    %898 = vmatpush1.msra.mxu0 0.0
    %899 = vmatprep.subr.mxu0 0.0
    %900 = vmatpush1.msra.mxu0 0.0
    %901 = vmatprep.subr.mxu0 0.0
    %902 = vmatpush1.msra.mxu0 0.0
    %903 = vmatprep.subr.mxu0 0.0
    %904 = vmatpush1.msra.mxu0 0.0
    %905 = vmatprep.subr.mxu0 0.0
    %906 = vmatpush1.msra.mxu0 0.0
    %907 = vmatprep.subr.mxu0 0.0
    %908 = vmatpush1.msra.mxu0 0.0
    %909 = vmatprep.subr.mxu0 0.0
    %910 = vmatpush1.msra.mxu0 0.0
    %911 = vmatprep.subr.mxu0 0.0
    %912 = vmatpush1.msra.mxu0 0.0
    %913 = vmatprep.subr.mxu0 0.0
    %914 = vmatpush1.msra.mxu0 0.0
    %915 = vmatprep.subr.mxu0 0.0
    %916 = vmatpush1.msra.mxu0 0.0
    %917 = vmatprep.subr.mxu0 0.0
    %918 = vmatpush1.msra.mxu0 0.0
    %919 = vmatprep.subr.mxu0 0.0
    %920 = vmatpush1.msra.mxu0 0.0
    %921 = vmatprep.subr.mxu0 0.0
    %922 = vmatpush1.msra.mxu0 0.0
    %923 = vmatprep.mubr.f32.mxu0 0.0
    %924 = vmatmul.mubr.f32.gmra.mrb[0].mxu0 %v857
    %v925 = vpop.f32.mrb[0].mxu0
    %v926 = vadd.f32 0.0, %v925
    %v927 = vpop.f32.mrb[0].mxu0
    %v928 = vadd.f32 0.0, %v927
    %929 = vdwg.mxu0
    %930 = vmatprep.subr.mxu0 %v343
    %931 = vmatpush1.msra.mxu0 %v342
    %932 = vmatprep.subr.mxu0 %v347
    %933 = vmatpush1.msra.mxu0 %v346
    %934 = vmatprep.subr.mxu0 %v351
    %935 = vmatpush1.msra.mxu0 %v350
    %936 = vmatprep.subr.mxu0 %v355
    %937 = vmatpush1.msra.mxu0 %v354
    %938 = vmatprep.subr.mxu0 %v359
    %939 = vmatpush1.msra.mxu0 %v358
    %940 = vmatprep.subr.mxu0 %v363
    %941 = vmatpush1.msra.mxu0 %v362
    %942 = vmatprep.subr.mxu0 %v367
    %943 = vmatpush1.msra.mxu0 %v366
    %944 = vmatprep.subr.mxu0 %v371
    %945 = vmatpush1.msra.mxu0 %v370
    %946 = vmatprep.subr.mxu0 %v375
    %947 = vmatpush1.msra.mxu0 %v374
    %948 = vmatprep.subr.mxu0 %v379
    %949 = vmatpush1.msra.mxu0 %v378
    %950 = vmatprep.subr.mxu0 %v383
    %951 = vmatpush1.msra.mxu0 %v382
    %952 = vmatprep.subr.mxu0 %v387
    %953 = vmatpush1.msra.mxu0 %v386
    %954 = vmatprep.subr.mxu0 %v391
    %955 = vmatpush1.msra.mxu0 %v390
    %956 = vmatprep.subr.mxu0 %v395
    %957 = vmatpush1.msra.mxu0 %v394
    %958 = vmatprep.subr.mxu0 %v399
    %959 = vmatpush1.msra.mxu0 %v398
    %960 = vmatprep.subr.mxu0 %v403
    %961 = vmatpush1.msra.mxu0 %v402
    %962 = vmatprep.subr.mxu0 0.0
    %963 = vmatpush1.msra.mxu0 0.0
    %964 = vmatprep.subr.mxu0 0.0
    %965 = vmatpush1.msra.mxu0 0.0
    %966 = vmatprep.subr.mxu0 0.0
    %967 = vmatpush1.msra.mxu0 0.0
    %968 = vmatprep.subr.mxu0 0.0
    %969 = vmatpush1.msra.mxu0 0.0
    %970 = vmatprep.subr.mxu0 0.0
    %971 = vmatpush1.msra.mxu0 0.0
    %972 = vmatprep.subr.mxu0 0.0
    %973 = vmatpush1.msra.mxu0 0.0
    %974 = vmatprep.subr.mxu0 0.0
    %975 = vmatpush1.msra.mxu0 0.0
    %976 = vmatprep.subr.mxu0 0.0
    %977 = vmatpush1.msra.mxu0 0.0
    %978 = vmatprep.subr.mxu0 0.0
    %979 = vmatpush1.msra.mxu0 0.0
    %980 = vmatprep.subr.mxu0 0.0
    %981 = vmatpush1.msra.mxu0 0.0
    %982 = vmatprep.subr.mxu0 0.0
    %983 = vmatpush1.msra.mxu0 0.0
    %984 = vmatprep.subr.mxu0 0.0
    %985 = vmatpush1.msra.mxu0 0.0
    %986 = vmatprep.subr.mxu0 0.0
    %987 = vmatpush1.msra.mxu0 0.0
    %988 = vmatprep.subr.mxu0 0.0
    %989 = vmatpush1.msra.mxu0 0.0
    %990 = vmatprep.subr.mxu0 0.0
    %991 = vmatpush1.msra.mxu0 0.0
    %992 = vmatprep.subr.mxu0 0.0
    %993 = vmatpush1.msra.mxu0 0.0
    %994 = vmatprep.mubr.f32.mxu0 0.0
    %995 = vmatmul.mubr.f32.gmra.mrb[0].mxu0 %v857
    %v996 = vpop.f32.mrb[0].mxu0
    %v997 = vadd.f32 0.0, %v996
    %v998 = vpop.f32.mrb[0].mxu0
    %v999 = vadd.f32 0.0, %v998
    %1000 = vdwg.mxu0
    %v1005 = vrot.slane %v926, 6
    %v1006 = vrot.slane %v928, 6
    %v1007 = vrot.slane %v997, 6
    %v1008 = vrot.slane %v999, 6
    %v1009 = vrot.slane %v926, 7
    %v1010 = vrot.slane %v928, 7
    %v1011 = vrot.slane %v997, 7
    %v1012 = vrot.slane %v999, 7
    %v1021 = vadd.f32 %v253, %v1005
    %v1022 = vadd.f32 %v255, %v1006
    %v1023 = vadd.f32 %v330, %v1007
    %v1024 = vadd.f32 %v332, %v1008
    %v1025 = vadd.f32 %v259, %v1009
    %v1026 = vadd.f32 %v261, %v1010
    %v1027 = vadd.f32 %v336, %v1011
    %v1028 = vadd.f32 %v338, %v1012
    %v1029 = vxor.u32 %v1021, 2147483648
    %v1030 = vxor.u32 %v1022, 2147483648
    %v1031 = vxor.u32 %v1024, 2147483648
    %v1032 = vxor.u32 %v1025, 2147483648
    %v1033 = vxor.u32 %v1026, 2147483648
    %v1034 = vxor.u32 %v1028, 2147483648
    %v1035 = vmul.f32 %v1029, 1.442695
    %v1036 = vpow.pop %v1035
    %v1037 = vmul.f32 %v1030, 1.442695
    %v1038 = vpow.pop %v1037
    %v1039 = vmul.f32 %v1031, 1.442695
    %v1040 = vpow.pop %v1039
    %v1041 = vmul.f32 %v1032, 1.442695
    %v1042 = vpow.pop %v1041
    %v1043 = vmul.f32 %v1033, 1.442695
    %v1044 = vpow.pop %v1043
    %v1045 = vmul.f32 %v1034, 1.442695
    %v1046 = vpow.pop %v1045
    %v1047 = vadd.f32 %v1036, 1.0
    %v1048 = vadd.f32 %v1038, 1.0
    %v1049 = vadd.f32 %v1040, 1.0
    %v1050 = vadd.f32 %v1042, 1.0
    %v1051 = vadd.f32 %v1044, 1.0
    %v1052 = vadd.f32 %v1046, 1.0
    %v1053 = vrcp.pop %v1047
    %v1054 = vmul.f32 1.0, %v1053
    %v1055 = vrcp.pop %v1048
    %v1056 = vmul.f32 1.0, %v1055
    %v1057 = vrcp.pop %v1049
    %v1058 = vmul.f32 1.0, %v1057
    %v1059 = vrcp.pop %v1050
    %v1060 = vmul.f32 1.0, %v1059
    %v1061 = vrcp.pop %v1051
    %v1062 = vmul.f32 1.0, %v1061
    %v1063 = vrcp.pop %v1052
    %v1064 = vmul.f32 1.0, %v1063
    %v1065 = vtanh.pop %v1023
    %v1066 = vtanh.pop %v1027
    %v1069 = vrot.slane %v846, 7
    %v1070 = vrot.slane %v847, 7
    %v1073 = vmul.f32 %v1056, %v1069
    %v1074 = vmul.f32 %v1062, %v1070
    %v1075 = vmul.f32 %v1054, %v1065
    %v1076 = vmul.f32 %v1060, %v1066
    %v1077 = vadd.f32 %v1073, %v1075
    %v1078 = vadd.f32 %v1074, %v1076
    %v1079 = vtanh.pop %v1077
    %v1080 = vtanh.pop %v1078
    %v1081 = vmul.f32 %v1058, %v1079
    %v1082 = vmul.f32 %v1064, %v1080
    %1083 = vst [vmem:[#allocation2] sm:$0x4] %v1081
    %1084 = vst [vmem:[#allocation2 + $0x8] sm:$0x4] %v1082
    %v1087 = vrot.slane %v1081, 2
    %v1088 = vrot.slane %v1082, 1
    %v1089 = vsel %vm629, %v1088, %v1087
    %1091 = vmatprep.subr.mxu0 %v341
    %1092 = vmatpush1.msra.mxu0 %v340
    %1093 = vmatprep.subr.mxu0 %v345
    %1094 = vmatpush1.msra.mxu0 %v344
    %1095 = vmatprep.subr.mxu0 %v349
    %1096 = vmatpush1.msra.mxu0 %v348
    %1097 = vmatprep.subr.mxu0 %v353
    %1098 = vmatpush1.msra.mxu0 %v352
    %1099 = vmatprep.subr.mxu0 %v357
    %1100 = vmatpush1.msra.mxu0 %v356
    %1101 = vmatprep.subr.mxu0 %v361
    %1102 = vmatpush1.msra.mxu0 %v360
    %1103 = vmatprep.subr.mxu0 %v365
    %1104 = vmatpush1.msra.mxu0 %v364
    %1105 = vmatprep.subr.mxu0 %v369
    %1106 = vmatpush1.msra.mxu0 %v368
    %1107 = vmatprep.subr.mxu0 %v373
    %1108 = vmatpush1.msra.mxu0 %v372
    %1109 = vmatprep.subr.mxu0 %v377
    %1110 = vmatpush1.msra.mxu0 %v376
    %1111 = vmatprep.subr.mxu0 %v381
    %1112 = vmatpush1.msra.mxu0 %v380
    %1113 = vmatprep.subr.mxu0 %v385
    %1114 = vmatpush1.msra.mxu0 %v384
    %1115 = vmatprep.subr.mxu0 %v389
    %1116 = vmatpush1.msra.mxu0 %v388
    %1117 = vmatprep.subr.mxu0 %v393
    %1118 = vmatpush1.msra.mxu0 %v392
    %1119 = vmatprep.subr.mxu0 %v397
    %1120 = vmatpush1.msra.mxu0 %v396
    %1121 = vmatprep.subr.mxu0 %v401
    %1122 = vmatpush1.msra.mxu0 %v400
    %1123 = vmatprep.subr.mxu0 0.0
    %1124 = vmatpush1.msra.mxu0 0.0
    %1125 = vmatprep.subr.mxu0 0.0
    %1126 = vmatpush1.msra.mxu0 0.0
    %1127 = vmatprep.subr.mxu0 0.0
    %1128 = vmatpush1.msra.mxu0 0.0
    %1129 = vmatprep.subr.mxu0 0.0
    %1130 = vmatpush1.msra.mxu0 0.0
    %1131 = vmatprep.subr.mxu0 0.0
    %1132 = vmatpush1.msra.mxu0 0.0
    %1133 = vmatprep.subr.mxu0 0.0
    %1134 = vmatpush1.msra.mxu0 0.0
    %1135 = vmatprep.subr.mxu0 0.0
    %1136 = vmatpush1.msra.mxu0 0.0
    %1137 = vmatprep.subr.mxu0 0.0
    %1138 = vmatpush1.msra.mxu0 0.0
    %1139 = vmatprep.subr.mxu0 0.0
    %1140 = vmatpush1.msra.mxu0 0.0
    %1141 = vmatprep.subr.mxu0 0.0
    %1142 = vmatpush1.msra.mxu0 0.0
    %1143 = vmatprep.subr.mxu0 0.0
    %1144 = vmatpush1.msra.mxu0 0.0
    %1145 = vmatprep.subr.mxu0 0.0
    %1146 = vmatpush1.msra.mxu0 0.0
    %1147 = vmatprep.subr.mxu0 0.0
    %1148 = vmatpush1.msra.mxu0 0.0
    %1149 = vmatprep.subr.mxu0 0.0
    %1150 = vmatpush1.msra.mxu0 0.0
    %1151 = vmatprep.subr.mxu0 0.0
    %1152 = vmatpush1.msra.mxu0 0.0
    %1153 = vmatprep.subr.mxu0 0.0
    %1154 = vmatpush1.msra.mxu0 0.0
    %1155 = vmatprep.mubr.f32.mxu0 0.0
    %1156 = vmatmul.mubr.f32.gmra.mrb[0].mxu0 %v1089
    %v1157 = vpop.f32.mrb[0].mxu0
    %v1158 = vadd.f32 0.0, %v1157
    %v1159 = vpop.f32.mrb[0].mxu0
    %v1160 = vadd.f32 0.0, %v1159
    %1161 = vdwg.mxu0
    %1162 = vmatprep.subr.mxu0 %v343
    %1163 = vmatpush1.msra.mxu0 %v342
    %1164 = vmatprep.subr.mxu0 %v347
    %1165 = vmatpush1.msra.mxu0 %v346
    %1166 = vmatprep.subr.mxu0 %v351
    %1167 = vmatpush1.msra.mxu0 %v350
    %1168 = vmatprep.subr.mxu0 %v355
    %1169 = vmatpush1.msra.mxu0 %v354
    %1170 = vmatprep.subr.mxu0 %v359
    %1171 = vmatpush1.msra.mxu0 %v358
    %1172 = vmatprep.subr.mxu0 %v363
    %1173 = vmatpush1.msra.mxu0 %v362
    %1174 = vmatprep.subr.mxu0 %v367
    %1175 = vmatpush1.msra.mxu0 %v366
    %1176 = vmatprep.subr.mxu0 %v371
    %1177 = vmatpush1.msra.mxu0 %v370
    %1178 = vmatprep.subr.mxu0 %v375
    %1179 = vmatpush1.msra.mxu0 %v374
    %1180 = vmatprep.subr.mxu0 %v379
    %1181 = vmatpush1.msra.mxu0 %v378
    %1182 = vmatprep.subr.mxu0 %v383
    %1183 = vmatpush1.msra.mxu0 %v382
    %1184 = vmatprep.subr.mxu0 %v387
    %1185 = vmatpush1.msra.mxu0 %v386
    %1186 = vmatprep.subr.mxu0 %v391
    %1187 = vmatpush1.msra.mxu0 %v390
    %1188 = vmatprep.subr.mxu0 %v395
    %1189 = vmatpush1.msra.mxu0 %v394
    %1190 = vmatprep.subr.mxu0 %v399
    %1191 = vmatpush1.msra.mxu0 %v398
    %1192 = vmatprep.subr.mxu0 %v403
    %1193 = vmatpush1.msra.mxu0 %v402
    %1194 = vmatprep.subr.mxu0 0.0
    %1195 = vmatpush1.msra.mxu0 0.0
    %1196 = vmatprep.subr.mxu0 0.0
    %1197 = vmatpush1.msra.mxu0 0.0
    %1198 = vmatprep.subr.mxu0 0.0
    %1199 = vmatpush1.msra.mxu0 0.0
    %1200 = vmatprep.subr.mxu0 0.0
    %1201 = vmatpush1.msra.mxu0 0.0
    %1202 = vmatprep.subr.mxu0 0.0
    %1203 = vmatpush1.msra.mxu0 0.0
    %1204 = vmatprep.subr.mxu0 0.0
    %1205 = vmatpush1.msra.mxu0 0.0
    %1206 = vmatprep.subr.mxu0 0.0
    %1207 = vmatpush1.msra.mxu0 0.0
    %1208 = vmatprep.subr.mxu0 0.0
    %1209 = vmatpush1.msra.mxu0 0.0
    %1210 = vmatprep.subr.mxu0 0.0
    %1211 = vmatpush1.msra.mxu0 0.0
    %1212 = vmatprep.subr.mxu0 0.0
    %1213 = vmatpush1.msra.mxu0 0.0
    %1214 = vmatprep.subr.mxu0 0.0
    %1215 = vmatpush1.msra.mxu0 0.0
    %1216 = vmatprep.subr.mxu0 0.0
    %1217 = vmatpush1.msra.mxu0 0.0
    %1218 = vmatprep.subr.mxu0 0.0
    %1219 = vmatpush1.msra.mxu0 0.0
    %1220 = vmatprep.subr.mxu0 0.0
    %1221 = vmatpush1.msra.mxu0 0.0
    %1222 = vmatprep.subr.mxu0 0.0
    %1223 = vmatpush1.msra.mxu0 0.0
    %1224 = vmatprep.subr.mxu0 0.0
    %1225 = vmatpush1.msra.mxu0 0.0
    %1226 = vmatprep.mubr.f32.mxu0 0.0
    %1227 = vmatmul.mubr.f32.gmra.mrb[0].mxu0 %v1089
    %v1228 = vpop.f32.mrb[0].mxu0
    %v1229 = vadd.f32 0.0, %v1228
    %v1230 = vpop.f32.mrb[0].mxu0
    %v1231 = vadd.f32 0.0, %v1230
    %1232 = vdwg.mxu0
    %v1237 = vrot.slane %v1158, 5
    %v1238 = vrot.slane %v1160, 5
    %v1239 = vrot.slane %v1229, 5
    %v1240 = vrot.slane %v1231, 5
    %v1241 = vrot.slane %v1158, 6
    %v1242 = vrot.slane %v1160, 6
    %v1243 = vrot.slane %v1229, 6
    %v1244 = vrot.slane %v1231, 6
    %v1253 = vadd.f32 %v253, %v1237
    %v1254 = vadd.f32 %v255, %v1238
    %v1255 = vadd.f32 %v330, %v1239
    %v1256 = vadd.f32 %v332, %v1240
    %v1257 = vadd.f32 %v259, %v1241
    %v1258 = vadd.f32 %v261, %v1242
    %v1259 = vadd.f32 %v336, %v1243
    %v1260 = vadd.f32 %v338, %v1244
    %v1261 = vxor.u32 %v1253, 2147483648
    %v1262 = vxor.u32 %v1254, 2147483648
    %v1263 = vxor.u32 %v1256, 2147483648
    %v1264 = vxor.u32 %v1257, 2147483648
    %v1265 = vxor.u32 %v1258, 2147483648
    %v1266 = vxor.u32 %v1260, 2147483648
    %v1267 = vmul.f32 %v1261, 1.442695
    %v1268 = vpow.pop %v1267
    %v1269 = vmul.f32 %v1262, 1.442695
    %v1270 = vpow.pop %v1269
    %v1271 = vmul.f32 %v1263, 1.442695
    %v1272 = vpow.pop %v1271
    %v1273 = vmul.f32 %v1264, 1.442695
    %v1274 = vpow.pop %v1273
    %v1275 = vmul.f32 %v1265, 1.442695
    %v1276 = vpow.pop %v1275
    %v1277 = vmul.f32 %v1266, 1.442695
    %v1278 = vpow.pop %v1277
    %v1279 = vadd.f32 %v1268, 1.0
    %v1280 = vadd.f32 %v1270, 1.0
    %v1281 = vadd.f32 %v1272, 1.0
    %v1282 = vadd.f32 %v1274, 1.0
    %v1283 = vadd.f32 %v1276, 1.0
    %v1284 = vadd.f32 %v1278, 1.0
    %v1285 = vrcp.pop %v1279
    %v1286 = vmul.f32 1.0, %v1285
    %v1287 = vrcp.pop %v1280
    %v1288 = vmul.f32 1.0, %v1287
    %v1289 = vrcp.pop %v1281
    %v1290 = vmul.f32 1.0, %v1289
    %v1291 = vrcp.pop %v1282
    %v1292 = vmul.f32 1.0, %v1291
    %v1293 = vrcp.pop %v1283
    %v1294 = vmul.f32 1.0, %v1293
    %v1295 = vrcp.pop %v1284
    %v1296 = vmul.f32 1.0, %v1295
    %v1297 = vtanh.pop %v1255
    %v1298 = vtanh.pop %v1259
    %v1301 = vrot.slane %v1077, 7
    %v1302 = vrot.slane %v1078, 7
    %v1305 = vmul.f32 %v1288, %v1301
    %v1306 = vmul.f32 %v1294, %v1302
    %v1307 = vmul.f32 %v1286, %v1297
    %v1308 = vmul.f32 %v1292, %v1298
    %v1309 = vadd.f32 %v1305, %v1307
    %v1310 = vadd.f32 %v1306, %v1308
    %v1311 = vtanh.pop %v1309
    %v1312 = vtanh.pop %v1310
    %v1313 = vmul.f32 %v1290, %v1311
    %v1314 = vmul.f32 %v1296, %v1312
    %1315 = vst [vmem:[#allocation2] sm:$0x8] %v1313
    %1316 = vst [vmem:[#allocation2 + $0x8] sm:$0x8] %v1314
    %v1319 = vrot.slane %v1313, 3
    %v1320 = vrot.slane %v1314, 2
    %v1321 = vsel %vm629, %v1320, %v1319
    %1323 = vmatprep.subr.mxu0 %v341
    %1324 = vmatpush1.msra.mxu0 %v340
    %1325 = vmatprep.subr.mxu0 %v345
    %1326 = vmatpush1.msra.mxu0 %v344
    %1327 = vmatprep.subr.mxu0 %v349
    %1328 = vmatpush1.msra.mxu0 %v348
    %1329 = vmatprep.subr.mxu0 %v353
    %1330 = vmatpush1.msra.mxu0 %v352
    %1331 = vmatprep.subr.mxu0 %v357
    %1332 = vmatpush1.msra.mxu0 %v356
    %1333 = vmatprep.subr.mxu0 %v361
    %1334 = vmatpush1.msra.mxu0 %v360
    %1335 = vmatprep.subr.mxu0 %v365
    %1336 = vmatpush1.msra.mxu0 %v364
    %1337 = vmatprep.subr.mxu0 %v369
    %1338 = vmatpush1.msra.mxu0 %v368
    %1339 = vmatprep.subr.mxu0 %v373
    %1340 = vmatpush1.msra.mxu0 %v372
    %1341 = vmatprep.subr.mxu0 %v377
    %1342 = vmatpush1.msra.mxu0 %v376
    %1343 = vmatprep.subr.mxu0 %v381
    %1344 = vmatpush1.msra.mxu0 %v380
    %1345 = vmatprep.subr.mxu0 %v385
    %1346 = vmatpush1.msra.mxu0 %v384
    %1347 = vmatprep.subr.mxu0 %v389
    %1348 = vmatpush1.msra.mxu0 %v388
    %1349 = vmatprep.subr.mxu0 %v393
    %1350 = vmatpush1.msra.mxu0 %v392
    %1351 = vmatprep.subr.mxu0 %v397
    %1352 = vmatpush1.msra.mxu0 %v396
    %1353 = vmatprep.subr.mxu0 %v401
    %1354 = vmatpush1.msra.mxu0 %v400
    %1355 = vmatprep.subr.mxu0 0.0
    %1356 = vmatpush1.msra.mxu0 0.0
    %1357 = vmatprep.subr.mxu0 0.0
    %1358 = vmatpush1.msra.mxu0 0.0
    %1359 = vmatprep.subr.mxu0 0.0
    %1360 = vmatpush1.msra.mxu0 0.0
    %1361 = vmatprep.subr.mxu0 0.0
    %1362 = vmatpush1.msra.mxu0 0.0
    %1363 = vmatprep.subr.mxu0 0.0
    %1364 = vmatpush1.msra.mxu0 0.0
    %1365 = vmatprep.subr.mxu0 0.0
    %1366 = vmatpush1.msra.mxu0 0.0
    %1367 = vmatprep.subr.mxu0 0.0
    %1368 = vmatpush1.msra.mxu0 0.0
    %1369 = vmatprep.subr.mxu0 0.0
    %1370 = vmatpush1.msra.mxu0 0.0
    %1371 = vmatprep.subr.mxu0 0.0
    %1372 = vmatpush1.msra.mxu0 0.0
    %1373 = vmatprep.subr.mxu0 0.0
    %1374 = vmatpush1.msra.mxu0 0.0
    %1375 = vmatprep.subr.mxu0 0.0
    %1376 = vmatpush1.msra.mxu0 0.0
    %1377 = vmatprep.subr.mxu0 0.0
    %1378 = vmatpush1.msra.mxu0 0.0
    %1379 = vmatprep.subr.mxu0 0.0
    %1380 = vmatpush1.msra.mxu0 0.0
    %1381 = vmatprep.subr.mxu0 0.0
    %1382 = vmatpush1.msra.mxu0 0.0
    %1383 = vmatprep.subr.mxu0 0.0
    %1384 = vmatpush1.msra.mxu0 0.0
    %1385 = vmatprep.subr.mxu0 0.0
    %1386 = vmatpush1.msra.mxu0 0.0
    %1387 = vmatprep.mubr.f32.mxu0 0.0
    %1388 = vmatmul.mubr.f32.gmra.mrb[0].mxu0 %v1321
    %v1389 = vpop.f32.mrb[0].mxu0
    %v1390 = vadd.f32 0.0, %v1389
    %v1391 = vpop.f32.mrb[0].mxu0
    %v1392 = vadd.f32 0.0, %v1391
    %1393 = vdwg.mxu0
    %1394 = vmatprep.subr.mxu0 %v343
    %1395 = vmatpush1.msra.mxu0 %v342
    %1396 = vmatprep.subr.mxu0 %v347
    %1397 = vmatpush1.msra.mxu0 %v346
    %1398 = vmatprep.subr.mxu0 %v351
    %1399 = vmatpush1.msra.mxu0 %v350
    %1400 = vmatprep.subr.mxu0 %v355
    %1401 = vmatpush1.msra.mxu0 %v354
    %1402 = vmatprep.subr.mxu0 %v359
    %1403 = vmatpush1.msra.mxu0 %v358
    %1404 = vmatprep.subr.mxu0 %v363
    %1405 = vmatpush1.msra.mxu0 %v362
    %1406 = vmatprep.subr.mxu0 %v367
    %1407 = vmatpush1.msra.mxu0 %v366
    %1408 = vmatprep.subr.mxu0 %v371
    %1409 = vmatpush1.msra.mxu0 %v370
    %1410 = vmatprep.subr.mxu0 %v375
    %1411 = vmatpush1.msra.mxu0 %v374
    %1412 = vmatprep.subr.mxu0 %v379
    %1413 = vmatpush1.msra.mxu0 %v378
    %1414 = vmatprep.subr.mxu0 %v383
    %1415 = vmatpush1.msra.mxu0 %v382
    %1416 = vmatprep.subr.mxu0 %v387
    %1417 = vmatpush1.msra.mxu0 %v386
    %1418 = vmatprep.subr.mxu0 %v391
    %1419 = vmatpush1.msra.mxu0 %v390
    %1420 = vmatprep.subr.mxu0 %v395
    %1421 = vmatpush1.msra.mxu0 %v394
    %1422 = vmatprep.subr.mxu0 %v399
    %1423 = vmatpush1.msra.mxu0 %v398
    %1424 = vmatprep.subr.mxu0 %v403
    %1425 = vmatpush1.msra.mxu0 %v402
    %1426 = vmatprep.subr.mxu0 0.0
    %1427 = vmatpush1.msra.mxu0 0.0
    %1428 = vmatprep.subr.mxu0 0.0
    %1429 = vmatpush1.msra.mxu0 0.0
    %1430 = vmatprep.subr.mxu0 0.0
    %1431 = vmatpush1.msra.mxu0 0.0
    %1432 = vmatprep.subr.mxu0 0.0
    %1433 = vmatpush1.msra.mxu0 0.0
    %1434 = vmatprep.subr.mxu0 0.0
    %1435 = vmatpush1.msra.mxu0 0.0
    %1436 = vmatprep.subr.mxu0 0.0
    %1437 = vmatpush1.msra.mxu0 0.0
    %1438 = vmatprep.subr.mxu0 0.0
    %1439 = vmatpush1.msra.mxu0 0.0
    %1440 = vmatprep.subr.mxu0 0.0
    %1441 = vmatpush1.msra.mxu0 0.0
    %1442 = vmatprep.subr.mxu0 0.0
    %1443 = vmatpush1.msra.mxu0 0.0
    %1444 = vmatprep.subr.mxu0 0.0
    %1445 = vmatpush1.msra.mxu0 0.0
    %1446 = vmatprep.subr.mxu0 0.0
    %1447 = vmatpush1.msra.mxu0 0.0
    %1448 = vmatprep.subr.mxu0 0.0
    %1449 = vmatpush1.msra.mxu0 0.0
    %1450 = vmatprep.subr.mxu0 0.0
    %1451 = vmatpush1.msra.mxu0 0.0
    %1452 = vmatprep.subr.mxu0 0.0
    %1453 = vmatpush1.msra.mxu0 0.0
    %1454 = vmatprep.subr.mxu0 0.0
    %1455 = vmatpush1.msra.mxu0 0.0
    %1456 = vmatprep.subr.mxu0 0.0
    %1457 = vmatpush1.msra.mxu0 0.0
    %1458 = vmatprep.mubr.f32.mxu0 0.0
    %1459 = vmatmul.mubr.f32.gmra.mrb[0].mxu0 %v1321
    %v1460 = vpop.f32.mrb[0].mxu0
    %v1461 = vadd.f32 0.0, %v1460
    %v1462 = vpop.f32.mrb[0].mxu0
    %v1463 = vadd.f32 0.0, %v1462
    %1464 = vdwg.mxu0
    %v1469 = vrot.slane %v1390, 4
    %v1470 = vrot.slane %v1392, 4
    %v1471 = vrot.slane %v1461, 4
    %v1472 = vrot.slane %v1463, 4
    %v1473 = vrot.slane %v1390, 5
    %v1474 = vrot.slane %v1392, 5
    %v1475 = vrot.slane %v1461, 5
    %v1476 = vrot.slane %v1463, 5
    %v1485 = vadd.f32 %v253, %v1469
    %v1486 = vadd.f32 %v255, %v1470
    %v1487 = vadd.f32 %v330, %v1471
    %v1488 = vadd.f32 %v332, %v1472
    %v1489 = vadd.f32 %v259, %v1473
    %v1490 = vadd.f32 %v261, %v1474
    %v1491 = vadd.f32 %v336, %v1475
    %v1492 = vadd.f32 %v338, %v1476
    %v1493 = vxor.u32 %v1485, 2147483648
    %v1494 = vxor.u32 %v1486, 2147483648
    %v1495 = vxor.u32 %v1488, 2147483648
    %v1496 = vxor.u32 %v1489, 2147483648
    %v1497 = vxor.u32 %v1490, 2147483648
    %v1498 = vxor.u32 %v1492, 2147483648
    %v1499 = vmul.f32 %v1493, 1.442695
    %v1500 = vpow.pop %v1499
    %v1501 = vmul.f32 %v1494, 1.442695
    %v1502 = vpow.pop %v1501
    %v1503 = vmul.f32 %v1495, 1.442695
    %v1504 = vpow.pop %v1503
    %v1505 = vmul.f32 %v1496, 1.442695
    %v1506 = vpow.pop %v1505
    %v1507 = vmul.f32 %v1497, 1.442695
    %v1508 = vpow.pop %v1507
    %v1509 = vmul.f32 %v1498, 1.442695
    %v1510 = vpow.pop %v1509
    %v1511 = vadd.f32 %v1500, 1.0
    %v1512 = vadd.f32 %v1502, 1.0
    %v1513 = vadd.f32 %v1504, 1.0
    %v1514 = vadd.f32 %v1506, 1.0
    %v1515 = vadd.f32 %v1508, 1.0
    %v1516 = vadd.f32 %v1510, 1.0
    %v1517 = vrcp.pop %v1511
    %v1518 = vmul.f32 1.0, %v1517
    %v1519 = vrcp.pop %v1512
    %v1520 = vmul.f32 1.0, %v1519
    %v1521 = vrcp.pop %v1513
    %v1522 = vmul.f32 1.0, %v1521
    %v1523 = vrcp.pop %v1514
    %v1524 = vmul.f32 1.0, %v1523
    %v1525 = vrcp.pop %v1515
    %v1526 = vmul.f32 1.0, %v1525
    %v1527 = vrcp.pop %v1516
    %v1528 = vmul.f32 1.0, %v1527
    %v1529 = vtanh.pop %v1487
    %v1530 = vtanh.pop %v1491
    %v1533 = vrot.slane %v1309, 7
    %v1534 = vrot.slane %v1310, 7
    %v1537 = vmul.f32 %v1520, %v1533
    %v1538 = vmul.f32 %v1526, %v1534
    %v1539 = vmul.f32 %v1518, %v1529
    %v1540 = vmul.f32 %v1524, %v1530
    %v1541 = vadd.f32 %v1537, %v1539
    %v1542 = vadd.f32 %v1538, %v1540
    %v1543 = vtanh.pop %v1541
    %v1544 = vtanh.pop %v1542
    %v1545 = vmul.f32 %v1522, %v1543
    %v1546 = vmul.f32 %v1528, %v1544
    %1547 = vst [vmem:[#allocation2] sm:$0x10] %v1545
    %1548 = vst [vmem:[#allocation2 + $0x8] sm:$0x10] %v1546
    %v1551 = vrot.slane %v1545, 4
    %v1552 = vrot.slane %v1546, 3
    %v1553 = vsel %vm629, %v1552, %v1551
    %1555 = vmatprep.subr.mxu0 %v341
    %1556 = vmatpush1.msra.mxu0 %v340
    %1557 = vmatprep.subr.mxu0 %v345
    %1558 = vmatpush1.msra.mxu0 %v344
    %1559 = vmatprep.subr.mxu0 %v349
    %1560 = vmatpush1.msra.mxu0 %v348
    %1561 = vmatprep.subr.mxu0 %v353
    %1562 = vmatpush1.msra.mxu0 %v352
    %1563 = vmatprep.subr.mxu0 %v357
    %1564 = vmatpush1.msra.mxu0 %v356
    %1565 = vmatprep.subr.mxu0 %v361
    %1566 = vmatpush1.msra.mxu0 %v360
    %1567 = vmatprep.subr.mxu0 %v365
    %1568 = vmatpush1.msra.mxu0 %v364
    %1569 = vmatprep.subr.mxu0 %v369
    %1570 = vmatpush1.msra.mxu0 %v368
    %1571 = vmatprep.subr.mxu0 %v373
    %1572 = vmatpush1.msra.mxu0 %v372
    %1573 = vmatprep.subr.mxu0 %v377
    %1574 = vmatpush1.msra.mxu0 %v376
    %1575 = vmatprep.subr.mxu0 %v381
    %1576 = vmatpush1.msra.mxu0 %v380
    %1577 = vmatprep.subr.mxu0 %v385
    %1578 = vmatpush1.msra.mxu0 %v384
    %1579 = vmatprep.subr.mxu0 %v389
    %1580 = vmatpush1.msra.mxu0 %v388
    %1581 = vmatprep.subr.mxu0 %v393
    %1582 = vmatpush1.msra.mxu0 %v392
    %1583 = vmatprep.subr.mxu0 %v397
    %1584 = vmatpush1.msra.mxu0 %v396
    %1585 = vmatprep.subr.mxu0 %v401
    %1586 = vmatpush1.msra.mxu0 %v400
    %1587 = vmatprep.subr.mxu0 0.0
    %1588 = vmatpush1.msra.mxu0 0.0
    %1589 = vmatprep.subr.mxu0 0.0
    %1590 = vmatpush1.msra.mxu0 0.0
    %1591 = vmatprep.subr.mxu0 0.0
    %1592 = vmatpush1.msra.mxu0 0.0
    %1593 = vmatprep.subr.mxu0 0.0
    %1594 = vmatpush1.msra.mxu0 0.0
    %1595 = vmatprep.subr.mxu0 0.0
    %1596 = vmatpush1.msra.mxu0 0.0
    %1597 = vmatprep.subr.mxu0 0.0
    %1598 = vmatpush1.msra.mxu0 0.0
    %1599 = vmatprep.subr.mxu0 0.0
    %1600 = vmatpush1.msra.mxu0 0.0
    %1601 = vmatprep.subr.mxu0 0.0
    %1602 = vmatpush1.msra.mxu0 0.0
    %1603 = vmatprep.subr.mxu0 0.0
    %1604 = vmatpush1.msra.mxu0 0.0
    %1605 = vmatprep.subr.mxu0 0.0
    %1606 = vmatpush1.msra.mxu0 0.0
    %1607 = vmatprep.subr.mxu0 0.0
    %1608 = vmatpush1.msra.mxu0 0.0
    %1609 = vmatprep.subr.mxu0 0.0
    %1610 = vmatpush1.msra.mxu0 0.0
    %1611 = vmatprep.subr.mxu0 0.0
    %1612 = vmatpush1.msra.mxu0 0.0
    %1613 = vmatprep.subr.mxu0 0.0
    %1614 = vmatpush1.msra.mxu0 0.0
    %1615 = vmatprep.subr.mxu0 0.0
    %1616 = vmatpush1.msra.mxu0 0.0
    %1617 = vmatprep.subr.mxu0 0.0
    %1618 = vmatpush1.msra.mxu0 0.0
    %1619 = vmatprep.mubr.f32.mxu0 0.0
    %1620 = vmatmul.mubr.f32.gmra.mrb[0].mxu0 %v1553
    %v1621 = vpop.f32.mrb[0].mxu0
    %v1622 = vadd.f32 0.0, %v1621
    %v1623 = vpop.f32.mrb[0].mxu0
    %v1624 = vadd.f32 0.0, %v1623
    %1625 = vdwg.mxu0
    %1626 = vmatprep.subr.mxu0 %v343
    %1627 = vmatpush1.msra.mxu0 %v342
    %1628 = vmatprep.subr.mxu0 %v347
    %1629 = vmatpush1.msra.mxu0 %v346
    %1630 = vmatprep.subr.mxu0 %v351
    %1631 = vmatpush1.msra.mxu0 %v350
    %1632 = vmatprep.subr.mxu0 %v355
    %1633 = vmatpush1.msra.mxu0 %v354
    %1634 = vmatprep.subr.mxu0 %v359
    %1635 = vmatpush1.msra.mxu0 %v358
    %1636 = vmatprep.subr.mxu0 %v363
    %1637 = vmatpush1.msra.mxu0 %v362
    %1638 = vmatprep.subr.mxu0 %v367
    %1639 = vmatpush1.msra.mxu0 %v366
    %1640 = vmatprep.subr.mxu0 %v371
    %1641 = vmatpush1.msra.mxu0 %v370
    %1642 = vmatprep.subr.mxu0 %v375
    %1643 = vmatpush1.msra.mxu0 %v374
    %1644 = vmatprep.subr.mxu0 %v379
    %1645 = vmatpush1.msra.mxu0 %v378
    %1646 = vmatprep.subr.mxu0 %v383
    %1647 = vmatpush1.msra.mxu0 %v382
    %1648 = vmatprep.subr.mxu0 %v387
    %1649 = vmatpush1.msra.mxu0 %v386
    %1650 = vmatprep.subr.mxu0 %v391
    %1651 = vmatpush1.msra.mxu0 %v390
    %1652 = vmatprep.subr.mxu0 %v395
    %1653 = vmatpush1.msra.mxu0 %v394
    %1654 = vmatprep.subr.mxu0 %v399
    %1655 = vmatpush1.msra.mxu0 %v398
    %1656 = vmatprep.subr.mxu0 %v403
    %1657 = vmatpush1.msra.mxu0 %v402
    %1658 = vmatprep.subr.mxu0 0.0
    %1659 = vmatpush1.msra.mxu0 0.0
    %1660 = vmatprep.subr.mxu0 0.0
    %1661 = vmatpush1.msra.mxu0 0.0
    %1662 = vmatprep.subr.mxu0 0.0
    %1663 = vmatpush1.msra.mxu0 0.0
    %1664 = vmatprep.subr.mxu0 0.0
    %1665 = vmatpush1.msra.mxu0 0.0
    %1666 = vmatprep.subr.mxu0 0.0
    %1667 = vmatpush1.msra.mxu0 0.0
    %1668 = vmatprep.subr.mxu0 0.0
    %1669 = vmatpush1.msra.mxu0 0.0
    %1670 = vmatprep.subr.mxu0 0.0
    %1671 = vmatpush1.msra.mxu0 0.0
    %1672 = vmatprep.subr.mxu0 0.0
    %1673 = vmatpush1.msra.mxu0 0.0
    %1674 = vmatprep.subr.mxu0 0.0
    %1675 = vmatpush1.msra.mxu0 0.0
    %1676 = vmatprep.subr.mxu0 0.0
    %1677 = vmatpush1.msra.mxu0 0.0
    %1678 = vmatprep.subr.mxu0 0.0
    %1679 = vmatpush1.msra.mxu0 0.0
    %1680 = vmatprep.subr.mxu0 0.0
    %1681 = vmatpush1.msra.mxu0 0.0
    %1682 = vmatprep.subr.mxu0 0.0
    %1683 = vmatpush1.msra.mxu0 0.0
    %1684 = vmatprep.subr.mxu0 0.0
    %1685 = vmatpush1.msra.mxu0 0.0
    %1686 = vmatprep.subr.mxu0 0.0
    %1687 = vmatpush1.msra.mxu0 0.0
    %1688 = vmatprep.subr.mxu0 0.0
    %1689 = vmatpush1.msra.mxu0 0.0
    %1690 = vmatprep.mubr.f32.mxu0 0.0
    %1691 = vmatmul.mubr.f32.gmra.mrb[0].mxu0 %v1553
    %v1692 = vpop.f32.mrb[0].mxu0
    %v1693 = vadd.f32 0.0, %v1692
    %v1694 = vpop.f32.mrb[0].mxu0
    %v1695 = vadd.f32 0.0, %v1694
    %1696 = vdwg.mxu0
    %v1701 = vrot.slane %v1622, 3
    %v1702 = vrot.slane %v1624, 3
    %v1703 = vrot.slane %v1693, 3
    %v1704 = vrot.slane %v1695, 3
    %v1705 = vrot.slane %v1622, 4
    %v1706 = vrot.slane %v1624, 4
    %v1707 = vrot.slane %v1693, 4
    %v1708 = vrot.slane %v1695, 4
    %v1717 = vadd.f32 %v253, %v1701
    %v1718 = vadd.f32 %v255, %v1702
    %v1719 = vadd.f32 %v330, %v1703
    %v1720 = vadd.f32 %v332, %v1704
    %v1721 = vadd.f32 %v259, %v1705
    %v1722 = vadd.f32 %v261, %v1706
    %v1723 = vadd.f32 %v336, %v1707
    %v1724 = vadd.f32 %v338, %v1708
    %v1725 = vxor.u32 %v1717, 2147483648
    %v1726 = vxor.u32 %v1718, 2147483648
    %v1727 = vxor.u32 %v1720, 2147483648
    %v1728 = vxor.u32 %v1721, 2147483648
    %v1729 = vxor.u32 %v1722, 2147483648
    %v1730 = vxor.u32 %v1724, 2147483648
    %v1731 = vmul.f32 %v1725, 1.442695
    %v1732 = vpow.pop %v1731
    %v1733 = vmul.f32 %v1726, 1.442695
    %v1734 = vpow.pop %v1733
    %v1735 = vmul.f32 %v1727, 1.442695
    %v1736 = vpow.pop %v1735
    %v1737 = vmul.f32 %v1728, 1.442695
    %v1738 = vpow.pop %v1737
    %v1739 = vmul.f32 %v1729, 1.442695
    %v1740 = vpow.pop %v1739
    %v1741 = vmul.f32 %v1730, 1.442695
    %v1742 = vpow.pop %v1741
    %v1743 = vadd.f32 %v1732, 1.0
    %v1744 = vadd.f32 %v1734, 1.0
    %v1745 = vadd.f32 %v1736, 1.0
    %v1746 = vadd.f32 %v1738, 1.0
    %v1747 = vadd.f32 %v1740, 1.0
    %v1748 = vadd.f32 %v1742, 1.0
    %v1749 = vrcp.pop %v1743
    %v1750 = vmul.f32 1.0, %v1749
    %v1751 = vrcp.pop %v1744
    %v1752 = vmul.f32 1.0, %v1751
    %v1753 = vrcp.pop %v1745
    %v1754 = vmul.f32 1.0, %v1753
    %v1755 = vrcp.pop %v1746
    %v1756 = vmul.f32 1.0, %v1755
    %v1757 = vrcp.pop %v1747
    %v1758 = vmul.f32 1.0, %v1757
    %v1759 = vrcp.pop %v1748
    %v1760 = vmul.f32 1.0, %v1759
    %v1761 = vtanh.pop %v1719
    %v1762 = vtanh.pop %v1723
    %v1765 = vrot.slane %v1541, 7
    %v1766 = vrot.slane %v1542, 7
    %v1769 = vmul.f32 %v1752, %v1765
    %v1770 = vmul.f32 %v1758, %v1766
    %v1771 = vmul.f32 %v1750, %v1761
    %v1772 = vmul.f32 %v1756, %v1762
    %v1773 = vadd.f32 %v1769, %v1771
    %v1774 = vadd.f32 %v1770, %v1772
    %v1775 = vtanh.pop %v1773
    %v1776 = vtanh.pop %v1774
    %v1777 = vmul.f32 %v1754, %v1775
    %v1778 = vmul.f32 %v1760, %v1776
    %1779 = vst [vmem:[#allocation2] sm:$0x20] %v1777
    %1780 = vst [vmem:[#allocation2 + $0x8] sm:$0x20] %v1778
    %v1783 = vrot.slane %v1777, 5
    %v1784 = vrot.slane %v1778, 4
    %v1785 = vsel %vm629, %v1784, %v1783
    %1787 = vmatprep.subr.mxu0 %v341
    %1788 = vmatpush1.msra.mxu0 %v340
    %1789 = vmatprep.subr.mxu0 %v345
    %1790 = vmatpush1.msra.mxu0 %v344
    %1791 = vmatprep.subr.mxu0 %v349
    %1792 = vmatpush1.msra.mxu0 %v348
    %1793 = vmatprep.subr.mxu0 %v353
    %1794 = vmatpush1.msra.mxu0 %v352
    %1795 = vmatprep.subr.mxu0 %v357
    %1796 = vmatpush1.msra.mxu0 %v356
    %1797 = vmatprep.subr.mxu0 %v361
    %1798 = vmatpush1.msra.mxu0 %v360
    %1799 = vmatprep.subr.mxu0 %v365
    %1800 = vmatpush1.msra.mxu0 %v364
    %1801 = vmatprep.subr.mxu0 %v369
    %1802 = vmatpush1.msra.mxu0 %v368
    %1803 = vmatprep.subr.mxu0 %v373
    %1804 = vmatpush1.msra.mxu0 %v372
    %1805 = vmatprep.subr.mxu0 %v377
    %1806 = vmatpush1.msra.mxu0 %v376
    %1807 = vmatprep.subr.mxu0 %v381
    %1808 = vmatpush1.msra.mxu0 %v380
    %1809 = vmatprep.subr.mxu0 %v385
    %1810 = vmatpush1.msra.mxu0 %v384
    %1811 = vmatprep.subr.mxu0 %v389
    %1812 = vmatpush1.msra.mxu0 %v388
    %1813 = vmatprep.subr.mxu0 %v393
    %1814 = vmatpush1.msra.mxu0 %v392
    %1815 = vmatprep.subr.mxu0 %v397
    %1816 = vmatpush1.msra.mxu0 %v396
    %1817 = vmatprep.subr.mxu0 %v401
    %1818 = vmatpush1.msra.mxu0 %v400
    %1819 = vmatprep.subr.mxu0 0.0
    %1820 = vmatpush1.msra.mxu0 0.0
    %1821 = vmatprep.subr.mxu0 0.0
    %1822 = vmatpush1.msra.mxu0 0.0
    %1823 = vmatprep.subr.mxu0 0.0
    %1824 = vmatpush1.msra.mxu0 0.0
    %1825 = vmatprep.subr.mxu0 0.0
    %1826 = vmatpush1.msra.mxu0 0.0
    %1827 = vmatprep.subr.mxu0 0.0
    %1828 = vmatpush1.msra.mxu0 0.0
    %1829 = vmatprep.subr.mxu0 0.0
    %1830 = vmatpush1.msra.mxu0 0.0
    %1831 = vmatprep.subr.mxu0 0.0
    %1832 = vmatpush1.msra.mxu0 0.0
    %1833 = vmatprep.subr.mxu0 0.0
    %1834 = vmatpush1.msra.mxu0 0.0
    %1835 = vmatprep.subr.mxu0 0.0
    %1836 = vmatpush1.msra.mxu0 0.0
    %1837 = vmatprep.subr.mxu0 0.0
    %1838 = vmatpush1.msra.mxu0 0.0
    %1839 = vmatprep.subr.mxu0 0.0
    %1840 = vmatpush1.msra.mxu0 0.0
    %1841 = vmatprep.subr.mxu0 0.0
    %1842 = vmatpush1.msra.mxu0 0.0
    %1843 = vmatprep.subr.mxu0 0.0
    %1844 = vmatpush1.msra.mxu0 0.0
    %1845 = vmatprep.subr.mxu0 0.0
    %1846 = vmatpush1.msra.mxu0 0.0
    %1847 = vmatprep.subr.mxu0 0.0
    %1848 = vmatpush1.msra.mxu0 0.0
    %1849 = vmatprep.subr.mxu0 0.0
    %1850 = vmatpush1.msra.mxu0 0.0
    %1851 = vmatprep.mubr.f32.mxu0 0.0
    %1852 = vmatmul.mubr.f32.gmra.mrb[0].mxu0 %v1785
    %v1853 = vpop.f32.mrb[0].mxu0
    %v1854 = vadd.f32 0.0, %v1853
    %v1855 = vpop.f32.mrb[0].mxu0
    %v1856 = vadd.f32 0.0, %v1855
    %1857 = vdwg.mxu0
    %1858 = vmatprep.subr.mxu0 %v343
    %1859 = vmatpush1.msra.mxu0 %v342
    %1860 = vmatprep.subr.mxu0 %v347
    %1861 = vmatpush1.msra.mxu0 %v346
    %1862 = vmatprep.subr.mxu0 %v351
    %1863 = vmatpush1.msra.mxu0 %v350
    %1864 = vmatprep.subr.mxu0 %v355
    %1865 = vmatpush1.msra.mxu0 %v354
    %1866 = vmatprep.subr.mxu0 %v359
    %1867 = vmatpush1.msra.mxu0 %v358
    %1868 = vmatprep.subr.mxu0 %v363
    %1869 = vmatpush1.msra.mxu0 %v362
    %1870 = vmatprep.subr.mxu0 %v367
    %1871 = vmatpush1.msra.mxu0 %v366
    %1872 = vmatprep.subr.mxu0 %v371
    %1873 = vmatpush1.msra.mxu0 %v370
    %1874 = vmatprep.subr.mxu0 %v375
    %1875 = vmatpush1.msra.mxu0 %v374
    %1876 = vmatprep.subr.mxu0 %v379
    %1877 = vmatpush1.msra.mxu0 %v378
    %1878 = vmatprep.subr.mxu0 %v383
    %1879 = vmatpush1.msra.mxu0 %v382
    %1880 = vmatprep.subr.mxu0 %v387
    %1881 = vmatpush1.msra.mxu0 %v386
    %1882 = vmatprep.subr.mxu0 %v391
    %1883 = vmatpush1.msra.mxu0 %v390
    %1884 = vmatprep.subr.mxu0 %v395
    %1885 = vmatpush1.msra.mxu0 %v394
    %1886 = vmatprep.subr.mxu0 %v399
    %1887 = vmatpush1.msra.mxu0 %v398
    %1888 = vmatprep.subr.mxu0 %v403
    %1889 = vmatpush1.msra.mxu0 %v402
    %1890 = vmatprep.subr.mxu0 0.0
    %1891 = vmatpush1.msra.mxu0 0.0
    %1892 = vmatprep.subr.mxu0 0.0
    %1893 = vmatpush1.msra.mxu0 0.0
    %1894 = vmatprep.subr.mxu0 0.0
    %1895 = vmatpush1.msra.mxu0 0.0
    %1896 = vmatprep.subr.mxu0 0.0
    %1897 = vmatpush1.msra.mxu0 0.0
    %1898 = vmatprep.subr.mxu0 0.0
    %1899 = vmatpush1.msra.mxu0 0.0
    %1900 = vmatprep.subr.mxu0 0.0
    %1901 = vmatpush1.msra.mxu0 0.0
    %1902 = vmatprep.subr.mxu0 0.0
    %1903 = vmatpush1.msra.mxu0 0.0
    %1904 = vmatprep.subr.mxu0 0.0
    %1905 = vmatpush1.msra.mxu0 0.0
    %1906 = vmatprep.subr.mxu0 0.0
    %1907 = vmatpush1.msra.mxu0 0.0
    %1908 = vmatprep.subr.mxu0 0.0
    %1909 = vmatpush1.msra.mxu0 0.0
    %1910 = vmatprep.subr.mxu0 0.0
    %1911 = vmatpush1.msra.mxu0 0.0
    %1912 = vmatprep.subr.mxu0 0.0
    %1913 = vmatpush1.msra.mxu0 0.0
    %1914 = vmatprep.subr.mxu0 0.0
    %1915 = vmatpush1.msra.mxu0 0.0
    %1916 = vmatprep.subr.mxu0 0.0
    %1917 = vmatpush1.msra.mxu0 0.0
    %1918 = vmatprep.subr.mxu0 0.0
    %1919 = vmatpush1.msra.mxu0 0.0
    %1920 = vmatprep.subr.mxu0 0.0
    %1921 = vmatpush1.msra.mxu0 0.0
    %1922 = vmatprep.mubr.f32.mxu0 0.0
    %1923 = vmatmul.mubr.f32.gmra.mrb[0].mxu0 %v1785
    %v1924 = vpop.f32.mrb[0].mxu0
    %v1925 = vadd.f32 0.0, %v1924
    %v1926 = vpop.f32.mrb[0].mxu0
    %v1927 = vadd.f32 0.0, %v1926
    %1928 = vdwg.mxu0
    %v1933 = vrot.slane %v1854, 2
    %v1934 = vrot.slane %v1856, 2
    %v1935 = vrot.slane %v1925, 2
    %v1936 = vrot.slane %v1927, 2
    %v1937 = vrot.slane %v1854, 3
    %v1938 = vrot.slane %v1856, 3
    %v1939 = vrot.slane %v1925, 3
    %v1940 = vrot.slane %v1927, 3
    %v1949 = vadd.f32 %v253, %v1933
    %v1950 = vadd.f32 %v255, %v1934
    %v1951 = vadd.f32 %v330, %v1935
    %v1952 = vadd.f32 %v332, %v1936
    %v1953 = vadd.f32 %v259, %v1937
    %v1954 = vadd.f32 %v261, %v1938
    %v1955 = vadd.f32 %v336, %v1939
    %v1956 = vadd.f32 %v338, %v1940
    %v1957 = vxor.u32 %v1949, 2147483648
    %v1958 = vxor.u32 %v1950, 2147483648
    %v1959 = vxor.u32 %v1952, 2147483648
    %v1960 = vxor.u32 %v1953, 2147483648
    %v1961 = vxor.u32 %v1954, 2147483648
    %v1962 = vxor.u32 %v1956, 2147483648
    %v1963 = vmul.f32 %v1957, 1.442695
    %v1964 = vpow.pop %v1963
    %v1965 = vmul.f32 %v1958, 1.442695
    %v1966 = vpow.pop %v1965
    %v1967 = vmul.f32 %v1959, 1.442695
    %v1968 = vpow.pop %v1967
    %v1969 = vmul.f32 %v1960, 1.442695
    %v1970 = vpow.pop %v1969
    %v1971 = vmul.f32 %v1961, 1.442695
    %v1972 = vpow.pop %v1971
    %v1973 = vmul.f32 %v1962, 1.442695
    %v1974 = vpow.pop %v1973
    %v1975 = vadd.f32 %v1964, 1.0
    %v1976 = vadd.f32 %v1966, 1.0
    %v1977 = vadd.f32 %v1968, 1.0
    %v1978 = vadd.f32 %v1970, 1.0
    %v1979 = vadd.f32 %v1972, 1.0
    %v1980 = vadd.f32 %v1974, 1.0
    %v1981 = vrcp.pop %v1975
    %v1982 = vmul.f32 1.0, %v1981
    %v1983 = vrcp.pop %v1976
    %v1984 = vmul.f32 1.0, %v1983
    %v1985 = vrcp.pop %v1977
    %v1986 = vmul.f32 1.0, %v1985
    %v1987 = vrcp.pop %v1978
    %v1988 = vmul.f32 1.0, %v1987
    %v1989 = vrcp.pop %v1979
    %v1990 = vmul.f32 1.0, %v1989
    %v1991 = vrcp.pop %v1980
    %v1992 = vmul.f32 1.0, %v1991
    %v1993 = vtanh.pop %v1951
    %v1994 = vtanh.pop %v1955
    %v1997 = vrot.slane %v1773, 7
    %v1998 = vrot.slane %v1774, 7
    %v2001 = vmul.f32 %v1984, %v1997
    %v2002 = vmul.f32 %v1990, %v1998
    %v2003 = vmul.f32 %v1982, %v1993
    %v2004 = vmul.f32 %v1988, %v1994
    %v2005 = vadd.f32 %v2001, %v2003
    %v2006 = vadd.f32 %v2002, %v2004
    %v2007 = vtanh.pop %v2005
    %v2008 = vtanh.pop %v2006
    %v2009 = vmul.f32 %v1986, %v2007
    %v2010 = vmul.f32 %v1992, %v2008
    %2011 = vst [vmem:[#allocation2] sm:$0x40] %v2009
    %2012 = vst [vmem:[#allocation2 + $0x8] sm:$0x40] %v2010
    %v2015 = vrot.slane %v2009, 6
    %v2016 = vrot.slane %v2010, 5
    %v2017 = vsel %vm629, %v2016, %v2015
    %2019 = vmatprep.subr.mxu0 %v341
    %2020 = vmatpush1.msra.mxu0 %v340
    %2021 = vmatprep.subr.mxu0 %v345
    %2022 = vmatpush1.msra.mxu0 %v344
    %2023 = vmatprep.subr.mxu0 %v349
    %2024 = vmatpush1.msra.mxu0 %v348
    %2025 = vmatprep.subr.mxu0 %v353
    %2026 = vmatpush1.msra.mxu0 %v352
    %2027 = vmatprep.subr.mxu0 %v357
    %2028 = vmatpush1.msra.mxu0 %v356
    %2029 = vmatprep.subr.mxu0 %v361
    %2030 = vmatpush1.msra.mxu0 %v360
    %2031 = vmatprep.subr.mxu0 %v365
    %2032 = vmatpush1.msra.mxu0 %v364
    %2033 = vmatprep.subr.mxu0 %v369
    %2034 = vmatpush1.msra.mxu0 %v368
    %2035 = vmatprep.subr.mxu0 %v373
    %2036 = vmatpush1.msra.mxu0 %v372
    %2037 = vmatprep.subr.mxu0 %v377
    %2038 = vmatpush1.msra.mxu0 %v376
    %2039 = vmatprep.subr.mxu0 %v381
    %2040 = vmatpush1.msra.mxu0 %v380
    %2041 = vmatprep.subr.mxu0 %v385
    %2042 = vmatpush1.msra.mxu0 %v384
    %2043 = vmatprep.subr.mxu0 %v389
    %2044 = vmatpush1.msra.mxu0 %v388
    %2045 = vmatprep.subr.mxu0 %v393
    %2046 = vmatpush1.msra.mxu0 %v392
    %2047 = vmatprep.subr.mxu0 %v397
    %2048 = vmatpush1.msra.mxu0 %v396
    %2049 = vmatprep.subr.mxu0 %v401
    %2050 = vmatpush1.msra.mxu0 %v400
    %2051 = vmatprep.subr.mxu0 0.0
    %2052 = vmatpush1.msra.mxu0 0.0
    %2053 = vmatprep.subr.mxu0 0.0
    %2054 = vmatpush1.msra.mxu0 0.0
    %2055 = vmatprep.subr.mxu0 0.0
    %2056 = vmatpush1.msra.mxu0 0.0
    %2057 = vmatprep.subr.mxu0 0.0
    %2058 = vmatpush1.msra.mxu0 0.0
    %2059 = vmatprep.subr.mxu0 0.0
    %2060 = vmatpush1.msra.mxu0 0.0
    %2061 = vmatprep.subr.mxu0 0.0
    %2062 = vmatpush1.msra.mxu0 0.0
    %2063 = vmatprep.subr.mxu0 0.0
    %2064 = vmatpush1.msra.mxu0 0.0
    %2065 = vmatprep.subr.mxu0 0.0
    %2066 = vmatpush1.msra.mxu0 0.0
    %2067 = vmatprep.subr.mxu0 0.0
    %2068 = vmatpush1.msra.mxu0 0.0
    %2069 = vmatprep.subr.mxu0 0.0
    %2070 = vmatpush1.msra.mxu0 0.0
    %2071 = vmatprep.subr.mxu0 0.0
    %2072 = vmatpush1.msra.mxu0 0.0
    %2073 = vmatprep.subr.mxu0 0.0
    %2074 = vmatpush1.msra.mxu0 0.0
    %2075 = vmatprep.subr.mxu0 0.0
    %2076 = vmatpush1.msra.mxu0 0.0
    %2077 = vmatprep.subr.mxu0 0.0
    %2078 = vmatpush1.msra.mxu0 0.0
    %2079 = vmatprep.subr.mxu0 0.0
    %2080 = vmatpush1.msra.mxu0 0.0
    %2081 = vmatprep.subr.mxu0 0.0
    %2082 = vmatpush1.msra.mxu0 0.0
    %2083 = vmatprep.mubr.f32.mxu0 0.0
    %2084 = vmatmul.mubr.f32.gmra.mrb[0].mxu0 %v2017
    %v2085 = vpop.f32.mrb[0].mxu0
    %v2086 = vadd.f32 0.0, %v2085
    %v2087 = vpop.f32.mrb[0].mxu0
    %v2088 = vadd.f32 0.0, %v2087
    %2089 = vdwg.mxu0
    %2090 = vmatprep.subr.mxu0 %v343
    %2091 = vmatpush1.msra.mxu0 %v342
    %2092 = vmatprep.subr.mxu0 %v347
    %2093 = vmatpush1.msra.mxu0 %v346
    %2094 = vmatprep.subr.mxu0 %v351
    %2095 = vmatpush1.msra.mxu0 %v350
    %2096 = vmatprep.subr.mxu0 %v355
    %2097 = vmatpush1.msra.mxu0 %v354
    %2098 = vmatprep.subr.mxu0 %v359
    %2099 = vmatpush1.msra.mxu0 %v358
    %2100 = vmatprep.subr.mxu0 %v363
    %2101 = vmatpush1.msra.mxu0 %v362
    %2102 = vmatprep.subr.mxu0 %v367
    %2103 = vmatpush1.msra.mxu0 %v366
    %2104 = vmatprep.subr.mxu0 %v371
    %2105 = vmatpush1.msra.mxu0 %v370
    %2106 = vmatprep.subr.mxu0 %v375
    %2107 = vmatpush1.msra.mxu0 %v374
    %2108 = vmatprep.subr.mxu0 %v379
    %2109 = vmatpush1.msra.mxu0 %v378
    %2110 = vmatprep.subr.mxu0 %v383
    %2111 = vmatpush1.msra.mxu0 %v382
    %2112 = vmatprep.subr.mxu0 %v387
    %2113 = vmatpush1.msra.mxu0 %v386
    %2114 = vmatprep.subr.mxu0 %v391
    %2115 = vmatpush1.msra.mxu0 %v390
    %2116 = vmatprep.subr.mxu0 %v395
    %2117 = vmatpush1.msra.mxu0 %v394
    %2118 = vmatprep.subr.mxu0 %v399
    %2119 = vmatpush1.msra.mxu0 %v398
    %2120 = vmatprep.subr.mxu0 %v403
    %2121 = vmatpush1.msra.mxu0 %v402
    %2122 = vmatprep.subr.mxu0 0.0
    %2123 = vmatpush1.msra.mxu0 0.0
    %2124 = vmatprep.subr.mxu0 0.0
    %2125 = vmatpush1.msra.mxu0 0.0
    %2126 = vmatprep.subr.mxu0 0.0
    %2127 = vmatpush1.msra.mxu0 0.0
    %2128 = vmatprep.subr.mxu0 0.0
    %2129 = vmatpush1.msra.mxu0 0.0
    %2130 = vmatprep.subr.mxu0 0.0
    %2131 = vmatpush1.msra.mxu0 0.0
    %2132 = vmatprep.subr.mxu0 0.0
    %2133 = vmatpush1.msra.mxu0 0.0
    %2134 = vmatprep.subr.mxu0 0.0
    %2135 = vmatpush1.msra.mxu0 0.0
    %2136 = vmatprep.subr.mxu0 0.0
    %2137 = vmatpush1.msra.mxu0 0.0
    %2138 = vmatprep.subr.mxu0 0.0
    %2139 = vmatpush1.msra.mxu0 0.0
    %2140 = vmatprep.subr.mxu0 0.0
    %2141 = vmatpush1.msra.mxu0 0.0
    %2142 = vmatprep.subr.mxu0 0.0
    %2143 = vmatpush1.msra.mxu0 0.0
    %2144 = vmatprep.subr.mxu0 0.0
    %2145 = vmatpush1.msra.mxu0 0.0
    %2146 = vmatprep.subr.mxu0 0.0
    %2147 = vmatpush1.msra.mxu0 0.0
    %2148 = vmatprep.subr.mxu0 0.0
    %2149 = vmatpush1.msra.mxu0 0.0
    %2150 = vmatprep.subr.mxu0 0.0
    %2151 = vmatpush1.msra.mxu0 0.0
    %2152 = vmatprep.subr.mxu0 0.0
    %2153 = vmatpush1.msra.mxu0 0.0
    %2154 = vmatprep.mubr.f32.mxu0 0.0
    %2155 = vmatmul.mubr.f32.gmra.mrb[0].mxu0 %v2017
    %v2156 = vpop.f32.mrb[0].mxu0
    %v2157 = vadd.f32 0.0, %v2156
    %v2158 = vpop.f32.mrb[0].mxu0
    %v2159 = vadd.f32 0.0, %v2158
    %2160 = vdwg.mxu0
    %v2165 = vrot.slane %v2086, 1
    %v2166 = vrot.slane %v2088, 1
    %v2167 = vrot.slane %v2157, 1
    %v2168 = vrot.slane %v2159, 1
    %v2169 = vrot.slane %v2086, 2
    %v2170 = vrot.slane %v2088, 2
    %v2171 = vrot.slane %v2157, 2
    %v2172 = vrot.slane %v2159, 2
    %v2181 = vadd.f32 %v253, %v2165
    %v2182 = vadd.f32 %v255, %v2166
    %v2183 = vadd.f32 %v330, %v2167
    %v2184 = vadd.f32 %v332, %v2168
    %v2185 = vadd.f32 %v259, %v2169
    %v2186 = vadd.f32 %v261, %v2170
    %v2187 = vadd.f32 %v336, %v2171
    %v2188 = vadd.f32 %v338, %v2172
    %v2189 = vxor.u32 %v2181, 2147483648
    %v2190 = vxor.u32 %v2182, 2147483648
    %v2191 = vxor.u32 %v2184, 2147483648
    %v2192 = vxor.u32 %v2185, 2147483648
    %v2193 = vxor.u32 %v2186, 2147483648
    %v2194 = vxor.u32 %v2188, 2147483648
    %v2195 = vmul.f32 %v2189, 1.442695
    %v2196 = vpow.pop %v2195
    %v2197 = vmul.f32 %v2190, 1.442695
    %v2198 = vpow.pop %v2197
    %v2199 = vmul.f32 %v2191, 1.442695
    %v2200 = vpow.pop %v2199
    %v2201 = vmul.f32 %v2192, 1.442695
    %v2202 = vpow.pop %v2201
    %v2203 = vmul.f32 %v2193, 1.442695
    %v2204 = vpow.pop %v2203
    %v2205 = vmul.f32 %v2194, 1.442695
    %v2206 = vpow.pop %v2205
    %v2207 = vadd.f32 %v2196, 1.0
    %v2208 = vadd.f32 %v2198, 1.0
    %v2209 = vadd.f32 %v2200, 1.0
    %v2210 = vadd.f32 %v2202, 1.0
    %v2211 = vadd.f32 %v2204, 1.0
    %v2212 = vadd.f32 %v2206, 1.0
    %v2213 = vrcp.pop %v2207
    %v2214 = vmul.f32 1.0, %v2213
    %v2215 = vrcp.pop %v2208
    %v2216 = vmul.f32 1.0, %v2215
    %v2217 = vrcp.pop %v2209
    %v2218 = vmul.f32 1.0, %v2217
    %v2219 = vrcp.pop %v2210
    %v2220 = vmul.f32 1.0, %v2219
    %v2221 = vrcp.pop %v2211
    %v2222 = vmul.f32 1.0, %v2221
    %v2223 = vrcp.pop %v2212
    %v2224 = vmul.f32 1.0, %v2223
    %v2225 = vtanh.pop %v2183
    %v2226 = vtanh.pop %v2187
    %v2229 = vrot.slane %v2005, 7
    %v2230 = vrot.slane %v2006, 7
    %v2233 = vmul.f32 %v2216, %v2229
    %v2234 = vmul.f32 %v2222, %v2230
    %v2235 = vmul.f32 %v2214, %v2225
    %v2236 = vmul.f32 %v2220, %v2226
    %v2237 = vadd.f32 %v2233, %v2235
    %v2238 = vadd.f32 %v2234, %v2236
    %v2239 = vtanh.pop %v2237
    %v2240 = vtanh.pop %v2238
    %v2241 = vmul.f32 %v2218, %v2239
    %v2242 = vmul.f32 %v2224, %v2240
    %2243 = vst [vmem:[#allocation2] sm:$0x80] %v2241
    %2244 = vst [vmem:[#allocation2 + $0x8] sm:$0x80] %v2242
    %v2247 = vrot.slane %v2242, 7
    %2250 = vst [vmem:[#allocation16 - $0x7] sm:$0x80] %v2241
    %2251 = vst [vmem:[#allocation16 + $0x1] sm:$0x1] %v2247
    %v2254 = vrot.slane %v2238, 7
    %2257 = vst [vmem:[#allocation18 - $0x7] sm:$0x80] %v2237
    %2258 = vst [vmem:[#allocation18 + $0x1] sm:$0x1] %v2254
    %v2259 = vld [vmem:[#allocation2] sm:$0xff]
    %v2260 = vld [vmem:[#allocation2 + $0x8] sm:$0xff]
    %v2261 = vld [vmem:[#allocation8] sm:$0xff]
    %v2262 = vld [vmem:[#allocation8 + $0x8] sm:$0xff]
    %v2263 = vld [vmem:[#allocation8 + $0x10] sm:$0xff]
    %v2264 = vld [vmem:[#allocation8 + $0x18] sm:$0xff]
    %v2265 = vld [vmem:[#allocation8 + $0x20] sm:$0xff]
    %v2266 = vld [vmem:[#allocation8 + $0x28] sm:$0xff]
    %v2267 = vld [vmem:[#allocation8 + $0x30] sm:$0xff]
    %v2268 = vld [vmem:[#allocation8 + $0x38] sm:$0xff]
    %v2269 = vld [vmem:[#allocation8 + $0x40] sm:$0xff]
    %v2270 = vld [vmem:[#allocation8 + $0x48] sm:$0xff]
    %v2271 = vld [vmem:[#allocation8 + $0x50] sm:$0xff]
    %v2272 = vld [vmem:[#allocation8 + $0x58] sm:$0xff]
    %v2273 = vld [vmem:[#allocation8 + $0x60] sm:$0xff]
    %v2274 = vld [vmem:[#allocation8 + $0x68] sm:$0xff]
    %v2275 = vld [vmem:[#allocation8 + $0x70] sm:$0xff]
    %v2276 = vld [vmem:[#allocation8 + $0x78] sm:$0xff]
    %v2277 = vld [vmem:[#allocation8 + $0x80] sm:$0xff]
    %v2278 = vld [vmem:[#allocation8 + $0x88] sm:$0xff]
    %v2279 = vld [vmem:[#allocation8 + $0x90] sm:$0xff]
    %v2280 = vld [vmem:[#allocation8 + $0x98] sm:$0xff]
    %v2281 = vld [vmem:[#allocation8 + $0xa0] sm:$0xff]
    %v2282 = vld [vmem:[#allocation8 + $0xa8] sm:$0xff]
    %v2283 = vld [vmem:[#allocation8 + $0xb0] sm:$0xff]
    %v2284 = vld [vmem:[#allocation8 + $0xb8] sm:$0xff]
    %v2285 = vld [vmem:[#allocation8 + $0xc0] sm:$0xff]
    %v2286 = vld [vmem:[#allocation8 + $0xc8] sm:$0xff]
    %v2287 = vld [vmem:[#allocation8 + $0xd0] sm:$0xff]
    %v2288 = vld [vmem:[#allocation8 + $0xd8] sm:$0xff]
    %v2289 = vld [vmem:[#allocation8 + $0xe0] sm:$0xff]
    %v2290 = vld [vmem:[#allocation8 + $0xe8] sm:$0xff]
    %v2291 = vld [vmem:[#allocation8 + $0xf0] sm:$0xff]
    %v2292 = vld [vmem:[#allocation8 + $0xf8] sm:$0xff]
    %v2293 = vld [vmem:[#allocation8 + $0x100] sm:$0xff]
    %v2294 = vld [vmem:[#allocation8 + $0x108] sm:$0xff]
    %v2295 = vld [vmem:[#allocation8 + $0x110] sm:$0xff]
    %v2296 = vld [vmem:[#allocation8 + $0x118] sm:$0xff]
    %v2297 = vld [vmem:[#allocation8 + $0x120] sm:$0xff]
    %v2298 = vld [vmem:[#allocation8 + $0x128] sm:$0xff]
    %v2299 = vld [vmem:[#allocation8 + $0x130] sm:$0xff]
    %v2300 = vld [vmem:[#allocation8 + $0x138] sm:$0xff]
    %v2301 = vld [vmem:[#allocation8 + $0x140] sm:$0xff]
    %v2302 = vld [vmem:[#allocation8 + $0x148] sm:$0xff]
    %v2303 = vld [vmem:[#allocation8 + $0x150] sm:$0xff]
    %v2304 = vld [vmem:[#allocation8 + $0x158] sm:$0xff]
    %v2305 = vld [vmem:[#allocation8 + $0x160] sm:$0xff]
    %v2306 = vld [vmem:[#allocation8 + $0x168] sm:$0xff]
    %v2307 = vld [vmem:[#allocation8 + $0x170] sm:$0xff]
    %v2308 = vld [vmem:[#allocation8 + $0x178] sm:$0xff]
    %v2309 = vld [vmem:[#allocation8 + $0x180] sm:$0xff]
    %v2310 = vld [vmem:[#allocation8 + $0x188] sm:$0xff]
    %v2311 = vld [vmem:[#allocation8 + $0x190] sm:$0xff]
    %v2312 = vld [vmem:[#allocation8 + $0x198] sm:$0xff]
    %v2313 = vld [vmem:[#allocation8 + $0x1a0] sm:$0xff]
    %v2314 = vld [vmem:[#allocation8 + $0x1a8] sm:$0xff]
    %v2315 = vld [vmem:[#allocation8 + $0x1b0] sm:$0xff]
    %v2316 = vld [vmem:[#allocation8 + $0x1b8] sm:$0xff]
    %v2317 = vld [vmem:[#allocation8 + $0x1c0] sm:$0xff]
    %v2318 = vld [vmem:[#allocation8 + $0x1c8] sm:$0xff]
    %v2319 = vld [vmem:[#allocation8 + $0x1d0] sm:$0xff]
    %v2320 = vld [vmem:[#allocation8 + $0x1d8] sm:$0xff]
    %v2321 = vld [vmem:[#allocation8 + $0x1e0] sm:$0xff]
    %v2322 = vld [vmem:[#allocation8 + $0x1e8] sm:$0xff]
    %v2323 = vld [vmem:[#allocation8 + $0x1f0] sm:$0xff]
    %v2324 = vld [vmem:[#allocation8 + $0x1f8] sm:$0xff]
    %v2325 = vld [vmem:[%s8] sm:$0xf]
    %v2327 = vlaneseq
    %v2328 = vshrl.u32 %v2327, 7
    %v2329 = vsub.s32 0, %v2328
    %v2330 = vrot.slane %v2325, %v2329
    %v2331 = vlaneseq
    %v2332 = vshrl.u32 %v2331, 7
    %v2333 = vsub.s32 1, %v2332
    %v2334 = vrot.slane %v2325, %v2333
    %v2335 = vlaneseq
    %v2336 = vshrl.u32 %v2335, 7
    %v2337 = vsub.s32 2, %v2336
    %v2338 = vrot.slane %v2325, %v2337
    %v2339 = vlaneseq
    %v2340 = vshrl.u32 %v2339, 7
    %v2341 = vsub.s32 3, %v2340
    %v2342 = vrot.slane %v2325, %v2341
    %2347 = vmatprep.subr.mxu0 %v2262
    %2348 = vmatpush1.msra.mxu0 %v2261
    %2349 = vmatprep.subr.mxu0 %v2266
    %2350 = vmatpush1.msra.mxu0 %v2265
    %2351 = vmatprep.subr.mxu0 %v2270
    %2352 = vmatpush1.msra.mxu0 %v2269
    %2353 = vmatprep.subr.mxu0 %v2274
    %2354 = vmatpush1.msra.mxu0 %v2273
    %2355 = vmatprep.subr.mxu0 %v2278
    %2356 = vmatpush1.msra.mxu0 %v2277
    %2357 = vmatprep.subr.mxu0 %v2282
    %2358 = vmatpush1.msra.mxu0 %v2281
    %2359 = vmatprep.subr.mxu0 %v2286
    %2360 = vmatpush1.msra.mxu0 %v2285
    %2361 = vmatprep.subr.mxu0 %v2290
    %2362 = vmatpush1.msra.mxu0 %v2289
    %2363 = vmatprep.subr.mxu0 %v2294
    %2364 = vmatpush1.msra.mxu0 %v2293
    %2365 = vmatprep.subr.mxu0 %v2298
    %2366 = vmatpush1.msra.mxu0 %v2297
    %2367 = vmatprep.subr.mxu0 %v2302
    %2368 = vmatpush1.msra.mxu0 %v2301
    %2369 = vmatprep.subr.mxu0 %v2306
    %2370 = vmatpush1.msra.mxu0 %v2305
    %2371 = vmatprep.subr.mxu0 %v2310
    %2372 = vmatpush1.msra.mxu0 %v2309
    %2373 = vmatprep.subr.mxu0 %v2314
    %2374 = vmatpush1.msra.mxu0 %v2313
    %2375 = vmatprep.subr.mxu0 %v2318
    %2376 = vmatpush1.msra.mxu0 %v2317
    %2377 = vmatprep.subr.mxu0 %v2322
    %2378 = vmatpush1.msra.mxu0 %v2321
    %2379 = vmatprep.subr.mxu0 0.0
    %2380 = vmatpush1.msra.mxu0 0.0
    %2381 = vmatprep.subr.mxu0 0.0
    %2382 = vmatpush1.msra.mxu0 0.0
    %2383 = vmatprep.subr.mxu0 0.0
    %2384 = vmatpush1.msra.mxu0 0.0
    %2385 = vmatprep.subr.mxu0 0.0
    %2386 = vmatpush1.msra.mxu0 0.0
    %2387 = vmatprep.subr.mxu0 0.0
    %2388 = vmatpush1.msra.mxu0 0.0
    %2389 = vmatprep.subr.mxu0 0.0
    %2390 = vmatpush1.msra.mxu0 0.0
    %2391 = vmatprep.subr.mxu0 0.0
    %2392 = vmatpush1.msra.mxu0 0.0
    %2393 = vmatprep.subr.mxu0 0.0
    %2394 = vmatpush1.msra.mxu0 0.0
    %2395 = vmatprep.subr.mxu0 0.0
    %2396 = vmatpush1.msra.mxu0 0.0
    %2397 = vmatprep.subr.mxu0 0.0
    %2398 = vmatpush1.msra.mxu0 0.0
    %2399 = vmatprep.subr.mxu0 0.0
    %2400 = vmatpush1.msra.mxu0 0.0
    %2401 = vmatprep.subr.mxu0 0.0
    %2402 = vmatpush1.msra.mxu0 0.0
    %2403 = vmatprep.subr.mxu0 0.0
    %2404 = vmatpush1.msra.mxu0 0.0
    %2405 = vmatprep.subr.mxu0 0.0
    %2406 = vmatpush1.msra.mxu0 0.0
    %2407 = vmatprep.subr.mxu0 0.0
    %2408 = vmatpush1.msra.mxu0 0.0
    %2409 = vmatprep.subr.mxu0 0.0
    %2410 = vmatpush1.msra.mxu0 0.0
    %2411 = vmatprep.mubr.f32.mxu0 0.0
    %2412 = vmatmul.mubr.f32.gmra.mrb[0].mxu0 %v2259
    %v2413 = vpop.f32.mrb[0].mxu0
    %v2414 = vadd.f32 %v2330, %v2413
    %v2415 = vpop.f32.mrb[0].mxu0
    %v2416 = vadd.f32 %v2334, %v2415
    %2417 = vmatprep.mubr.f32.mxu0 0.0
    %2418 = vmatmul.mubr.f32.gmra.mrb[0].mxu0 %v2260
    %v2419 = vpop.f32.mrb[0].mxu0
    %v2420 = vadd.f32 %v2330, %v2419
    %v2421 = vpop.f32.mrb[0].mxu0
    %v2422 = vadd.f32 %v2334, %v2421
    %2423 = vdwg.mxu0
    %2424 = vmatprep.subr.mxu0 %v2264
    %2425 = vmatpush1.msra.mxu0 %v2263
    %2426 = vmatprep.subr.mxu0 %v2268
    %2427 = vmatpush1.msra.mxu0 %v2267
    %2428 = vmatprep.subr.mxu0 %v2272
    %2429 = vmatpush1.msra.mxu0 %v2271
    %2430 = vmatprep.subr.mxu0 %v2276
    %2431 = vmatpush1.msra.mxu0 %v2275
    %2432 = vmatprep.subr.mxu0 %v2280
    %2433 = vmatpush1.msra.mxu0 %v2279
    %2434 = vmatprep.subr.mxu0 %v2284
    %2435 = vmatpush1.msra.mxu0 %v2283
    %2436 = vmatprep.subr.mxu0 %v2288
    %2437 = vmatpush1.msra.mxu0 %v2287
    %2438 = vmatprep.subr.mxu0 %v2292
    %2439 = vmatpush1.msra.mxu0 %v2291
    %2440 = vmatprep.subr.mxu0 %v2296
    %2441 = vmatpush1.msra.mxu0 %v2295
    %2442 = vmatprep.subr.mxu0 %v2300
    %2443 = vmatpush1.msra.mxu0 %v2299
    %2444 = vmatprep.subr.mxu0 %v2304
    %2445 = vmatpush1.msra.mxu0 %v2303
    %2446 = vmatprep.subr.mxu0 %v2308
    %2447 = vmatpush1.msra.mxu0 %v2307
    %2448 = vmatprep.subr.mxu0 %v2312
    %2449 = vmatpush1.msra.mxu0 %v2311
    %2450 = vmatprep.subr.mxu0 %v2316
    %2451 = vmatpush1.msra.mxu0 %v2315
    %2452 = vmatprep.subr.mxu0 %v2320
    %2453 = vmatpush1.msra.mxu0 %v2319
    %2454 = vmatprep.subr.mxu0 %v2324
    %2455 = vmatpush1.msra.mxu0 %v2323
    %2456 = vmatprep.subr.mxu0 0.0
    %2457 = vmatpush1.msra.mxu0 0.0
    %2458 = vmatprep.subr.mxu0 0.0
    %2459 = vmatpush1.msra.mxu0 0.0
    %2460 = vmatprep.subr.mxu0 0.0
    %2461 = vmatpush1.msra.mxu0 0.0
    %2462 = vmatprep.subr.mxu0 0.0
    %2463 = vmatpush1.msra.mxu0 0.0
    %2464 = vmatprep.subr.mxu0 0.0
    %2465 = vmatpush1.msra.mxu0 0.0
    %2466 = vmatprep.subr.mxu0 0.0
    %2467 = vmatpush1.msra.mxu0 0.0
    %2468 = vmatprep.subr.mxu0 0.0
    %2469 = vmatpush1.msra.mxu0 0.0
    %2470 = vmatprep.subr.mxu0 0.0
    %2471 = vmatpush1.msra.mxu0 0.0
    %2472 = vmatprep.subr.mxu0 0.0
    %2473 = vmatpush1.msra.mxu0 0.0
    %2474 = vmatprep.subr.mxu0 0.0
    %2475 = vmatpush1.msra.mxu0 0.0
    %2476 = vmatprep.subr.mxu0 0.0
    %2477 = vmatpush1.msra.mxu0 0.0
    %2478 = vmatprep.subr.mxu0 0.0
    %2479 = vmatpush1.msra.mxu0 0.0
    %2480 = vmatprep.subr.mxu0 0.0
    %2481 = vmatpush1.msra.mxu0 0.0
    %2482 = vmatprep.subr.mxu0 0.0
    %2483 = vmatpush1.msra.mxu0 0.0
    %2484 = vmatprep.subr.mxu0 0.0
    %2485 = vmatpush1.msra.mxu0 0.0
    %2486 = vmatprep.subr.mxu0 0.0
    %2487 = vmatpush1.msra.mxu0 0.0
    %2488 = vmatprep.mubr.f32.mxu0 0.0
    %2489 = vmatmul.mubr.f32.gmra.mrb[0].mxu0 %v2259
    %v2490 = vpop.f32.mrb[0].mxu0
    %v2491 = vadd.f32 %v2338, %v2490
    %v2492 = vpop.f32.mrb[0].mxu0
    %v2493 = vadd.f32 %v2342, %v2492
    %2494 = vmatprep.mubr.f32.mxu0 0.0
    %2495 = vmatmul.mubr.f32.gmra.mrb[0].mxu0 %v2260
    %v2496 = vpop.f32.mrb[0].mxu0
    %v2497 = vadd.f32 %v2338, %v2496
    %v2498 = vpop.f32.mrb[0].mxu0
    %v2499 = vadd.f32 %v2342, %v2498
    %2500 = vdwg.mxu0
    %v2501 = vld [vmem:[#allocation9] sm:$0xff]
    %v2502 = vld [vmem:[#allocation9 + $0x8] sm:$0xff]
    %v2503 = vld [vmem:[#allocation9 + $0x10] sm:$0xff]
    %v2504 = vld [vmem:[#allocation9 + $0x18] sm:$0xff]
    %v2505 = vld [vmem:[#allocation9 + $0x20] sm:$0xff]
    %v2506 = vld [vmem:[#allocation9 + $0x28] sm:$0xff]
    %v2507 = vld [vmem:[#allocation9 + $0x30] sm:$0xff]
    %v2508 = vld [vmem:[#allocation9 + $0x38] sm:$0xff]
    %v2509 = vld [vmem:[#allocation9 + $0x40] sm:$0xff]
    %v2510 = vld [vmem:[#allocation9 + $0x48] sm:$0xff]
    %v2511 = vld [vmem:[#allocation9 + $0x50] sm:$0xff]
    %v2512 = vld [vmem:[#allocation9 + $0x58] sm:$0xff]
    %v2513 = vld [vmem:[#allocation9 + $0x60] sm:$0xff]
    %v2514 = vld [vmem:[#allocation9 + $0x68] sm:$0xff]
    %v2515 = vld [vmem:[#allocation9 + $0x70] sm:$0xff]
    %v2516 = vld [vmem:[#allocation9 + $0x78] sm:$0xff]
    %v2517 = vld [vmem:[#allocation9 + $0x80] sm:$0xff]
    %v2518 = vld [vmem:[#allocation9 + $0x88] sm:$0xff]
    %v2519 = vld [vmem:[#allocation9 + $0x90] sm:$0xff]
    %v2520 = vld [vmem:[#allocation9 + $0x98] sm:$0xff]
    %v2521 = vld [vmem:[#allocation9 + $0xa0] sm:$0xff]
    %v2522 = vld [vmem:[#allocation9 + $0xa8] sm:$0xff]
    %v2523 = vld [vmem:[#allocation9 + $0xb0] sm:$0xff]
    %v2524 = vld [vmem:[#allocation9 + $0xb8] sm:$0xff]
    %v2525 = vld [vmem:[#allocation9 + $0xc0] sm:$0xff]
    %v2526 = vld [vmem:[#allocation9 + $0xc8] sm:$0xff]
    %v2527 = vld [vmem:[#allocation9 + $0xd0] sm:$0xff]
    %v2528 = vld [vmem:[#allocation9 + $0xd8] sm:$0xff]
    %v2529 = vld [vmem:[#allocation9 + $0xe0] sm:$0xff]
    %v2530 = vld [vmem:[#allocation9 + $0xe8] sm:$0xff]
    %v2531 = vld [vmem:[#allocation9 + $0xf0] sm:$0xff]
    %v2532 = vld [vmem:[#allocation9 + $0xf8] sm:$0xff]
    %v2533 = vld [vmem:[#allocation9 + $0x100] sm:$0xff]
    %v2534 = vld [vmem:[#allocation9 + $0x108] sm:$0xff]
    %v2535 = vld [vmem:[#allocation9 + $0x110] sm:$0xff]
    %v2536 = vld [vmem:[#allocation9 + $0x118] sm:$0xff]
    %v2537 = vld [vmem:[#allocation9 + $0x120] sm:$0xff]
    %v2538 = vld [vmem:[#allocation9 + $0x128] sm:$0xff]
    %v2539 = vld [vmem:[#allocation9 + $0x130] sm:$0xff]
    %v2540 = vld [vmem:[#allocation9 + $0x138] sm:$0xff]
    %v2541 = vld [vmem:[#allocation9 + $0x140] sm:$0xff]
    %v2542 = vld [vmem:[#allocation9 + $0x148] sm:$0xff]
    %v2543 = vld [vmem:[#allocation9 + $0x150] sm:$0xff]
    %v2544 = vld [vmem:[#allocation9 + $0x158] sm:$0xff]
    %v2545 = vld [vmem:[#allocation9 + $0x160] sm:$0xff]
    %v2546 = vld [vmem:[#allocation9 + $0x168] sm:$0xff]
    %v2547 = vld [vmem:[#allocation9 + $0x170] sm:$0xff]
    %v2548 = vld [vmem:[#allocation9 + $0x178] sm:$0xff]
    %v2549 = vld [vmem:[#allocation9 + $0x180] sm:$0xff]
    %v2550 = vld [vmem:[#allocation9 + $0x188] sm:$0xff]
    %v2551 = vld [vmem:[#allocation9 + $0x190] sm:$0xff]
    %v2552 = vld [vmem:[#allocation9 + $0x198] sm:$0xff]
    %v2553 = vld [vmem:[#allocation9 + $0x1a0] sm:$0xff]
    %v2554 = vld [vmem:[#allocation9 + $0x1a8] sm:$0xff]
    %v2555 = vld [vmem:[#allocation9 + $0x1b0] sm:$0xff]
    %v2556 = vld [vmem:[#allocation9 + $0x1b8] sm:$0xff]
    %v2557 = vld [vmem:[#allocation9 + $0x1c0] sm:$0xff]
    %v2558 = vld [vmem:[#allocation9 + $0x1c8] sm:$0xff]
    %v2559 = vld [vmem:[#allocation9 + $0x1d0] sm:$0xff]
    %v2560 = vld [vmem:[#allocation9 + $0x1d8] sm:$0xff]
    %v2561 = vld [vmem:[#allocation9 + $0x1e0] sm:$0xff]
    %v2562 = vld [vmem:[#allocation9 + $0x1e8] sm:$0xff]
    %v2563 = vld [vmem:[#allocation9 + $0x1f0] sm:$0xff]
    %v2564 = vld [vmem:[#allocation9 + $0x1f8] sm:$0xff]
    %s2565 = scalar_lea.vmem %s1, 2
    %v2566 = vld [vmem:[%s2565] sm:$0x3]
    %s2567 = scalar_lea.vmem %s2, 2
    %v2568 = vld [vmem:[%s2567] sm:$0x3]
    %2569 = vmatprep.subr.mxu0 %v2502
    %2570 = vmatpush1.msra.mxu0 %v2501
    %2571 = vmatprep.subr.mxu0 %v2506
    %2572 = vmatpush1.msra.mxu0 %v2505
    %2573 = vmatprep.subr.mxu0 %v2510
    %2574 = vmatpush1.msra.mxu0 %v2509
    %2575 = vmatprep.subr.mxu0 %v2514
    %2576 = vmatpush1.msra.mxu0 %v2513
    %2577 = vmatprep.subr.mxu0 %v2518
    %2578 = vmatpush1.msra.mxu0 %v2517
    %2579 = vmatprep.subr.mxu0 %v2522
    %2580 = vmatpush1.msra.mxu0 %v2521
    %2581 = vmatprep.subr.mxu0 %v2526
    %2582 = vmatpush1.msra.mxu0 %v2525
    %2583 = vmatprep.subr.mxu0 %v2530
    %2584 = vmatpush1.msra.mxu0 %v2529
    %2585 = vmatprep.subr.mxu0 %v2534
    %2586 = vmatpush1.msra.mxu0 %v2533
    %2587 = vmatprep.subr.mxu0 %v2538
    %2588 = vmatpush1.msra.mxu0 %v2537
    %2589 = vmatprep.subr.mxu0 %v2542
    %2590 = vmatpush1.msra.mxu0 %v2541
    %2591 = vmatprep.subr.mxu0 %v2546
    %2592 = vmatpush1.msra.mxu0 %v2545
    %2593 = vmatprep.subr.mxu0 %v2550
    %2594 = vmatpush1.msra.mxu0 %v2549
    %2595 = vmatprep.subr.mxu0 %v2554
    %2596 = vmatpush1.msra.mxu0 %v2553
    %2597 = vmatprep.subr.mxu0 %v2558
    %2598 = vmatpush1.msra.mxu0 %v2557
    %2599 = vmatprep.subr.mxu0 %v2562
    %2600 = vmatpush1.msra.mxu0 %v2561
    %2601 = vmatprep.subr.mxu0 0.0
    %2602 = vmatpush1.msra.mxu0 0.0
    %2603 = vmatprep.subr.mxu0 0.0
    %2604 = vmatpush1.msra.mxu0 0.0
    %2605 = vmatprep.subr.mxu0 0.0
    %2606 = vmatpush1.msra.mxu0 0.0
    %2607 = vmatprep.subr.mxu0 0.0
    %2608 = vmatpush1.msra.mxu0 0.0
    %2609 = vmatprep.subr.mxu0 0.0
    %2610 = vmatpush1.msra.mxu0 0.0
    %2611 = vmatprep.subr.mxu0 0.0
    %2612 = vmatpush1.msra.mxu0 0.0
    %2613 = vmatprep.subr.mxu0 0.0
    %2614 = vmatpush1.msra.mxu0 0.0
    %2615 = vmatprep.subr.mxu0 0.0
    %2616 = vmatpush1.msra.mxu0 0.0
    %2617 = vmatprep.subr.mxu0 0.0
    %2618 = vmatpush1.msra.mxu0 0.0
    %2619 = vmatprep.subr.mxu0 0.0
    %2620 = vmatpush1.msra.mxu0 0.0
    %2621 = vmatprep.subr.mxu0 0.0
    %2622 = vmatpush1.msra.mxu0 0.0
    %2623 = vmatprep.subr.mxu0 0.0
    %2624 = vmatpush1.msra.mxu0 0.0
    %2625 = vmatprep.subr.mxu0 0.0
    %2626 = vmatpush1.msra.mxu0 0.0
    %2627 = vmatprep.subr.mxu0 0.0
    %2628 = vmatpush1.msra.mxu0 0.0
    %2629 = vmatprep.subr.mxu0 0.0
    %2630 = vmatpush1.msra.mxu0 0.0
    %2631 = vmatprep.subr.mxu0 0.0
    %2632 = vmatpush1.msra.mxu0 0.0
    %2633 = vmatprep.mubr.f32.mxu0 0.0
    %2634 = vmatmul.mubr.f32.gmra.mrb[0].mxu0 %v2566
    %v2635 = vpop.f32.mrb[0].mxu0
    %v2636 = vadd.f32 0.0, %v2635
    %v2637 = vpop.f32.mrb[0].mxu0
    %v2638 = vadd.f32 0.0, %v2637
    %2639 = vdwg.mxu0
    %2640 = vmatprep.subr.mxu0 %v2504
    %2641 = vmatpush1.msra.mxu0 %v2503
    %2642 = vmatprep.subr.mxu0 %v2508
    %2643 = vmatpush1.msra.mxu0 %v2507
    %2644 = vmatprep.subr.mxu0 %v2512
    %2645 = vmatpush1.msra.mxu0 %v2511
    %2646 = vmatprep.subr.mxu0 %v2516
    %2647 = vmatpush1.msra.mxu0 %v2515
    %2648 = vmatprep.subr.mxu0 %v2520
    %2649 = vmatpush1.msra.mxu0 %v2519
    %2650 = vmatprep.subr.mxu0 %v2524
    %2651 = vmatpush1.msra.mxu0 %v2523
    %2652 = vmatprep.subr.mxu0 %v2528
    %2653 = vmatpush1.msra.mxu0 %v2527
    %2654 = vmatprep.subr.mxu0 %v2532
    %2655 = vmatpush1.msra.mxu0 %v2531
    %2656 = vmatprep.subr.mxu0 %v2536
    %2657 = vmatpush1.msra.mxu0 %v2535
    %2658 = vmatprep.subr.mxu0 %v2540
    %2659 = vmatpush1.msra.mxu0 %v2539
    %2660 = vmatprep.subr.mxu0 %v2544
    %2661 = vmatpush1.msra.mxu0 %v2543
    %2662 = vmatprep.subr.mxu0 %v2548
    %2663 = vmatpush1.msra.mxu0 %v2547
    %2664 = vmatprep.subr.mxu0 %v2552
    %2665 = vmatpush1.msra.mxu0 %v2551
    %2666 = vmatprep.subr.mxu0 %v2556
    %2667 = vmatpush1.msra.mxu0 %v2555
    %2668 = vmatprep.subr.mxu0 %v2560
    %2669 = vmatpush1.msra.mxu0 %v2559
    %2670 = vmatprep.subr.mxu0 %v2564
    %2671 = vmatpush1.msra.mxu0 %v2563
    %2672 = vmatprep.subr.mxu0 0.0
    %2673 = vmatpush1.msra.mxu0 0.0
    %2674 = vmatprep.subr.mxu0 0.0
    %2675 = vmatpush1.msra.mxu0 0.0
    %2676 = vmatprep.subr.mxu0 0.0
    %2677 = vmatpush1.msra.mxu0 0.0
    %2678 = vmatprep.subr.mxu0 0.0
    %2679 = vmatpush1.msra.mxu0 0.0
    %2680 = vmatprep.subr.mxu0 0.0
    %2681 = vmatpush1.msra.mxu0 0.0
    %2682 = vmatprep.subr.mxu0 0.0
    %2683 = vmatpush1.msra.mxu0 0.0
    %2684 = vmatprep.subr.mxu0 0.0
    %2685 = vmatpush1.msra.mxu0 0.0
    %2686 = vmatprep.subr.mxu0 0.0
    %2687 = vmatpush1.msra.mxu0 0.0
    %2688 = vmatprep.subr.mxu0 0.0
    %2689 = vmatpush1.msra.mxu0 0.0
    %2690 = vmatprep.subr.mxu0 0.0
    %2691 = vmatpush1.msra.mxu0 0.0
    %2692 = vmatprep.subr.mxu0 0.0
    %2693 = vmatpush1.msra.mxu0 0.0
    %2694 = vmatprep.subr.mxu0 0.0
    %2695 = vmatpush1.msra.mxu0 0.0
    %2696 = vmatprep.subr.mxu0 0.0
    %2697 = vmatpush1.msra.mxu0 0.0
    %2698 = vmatprep.subr.mxu0 0.0
    %2699 = vmatpush1.msra.mxu0 0.0
    %2700 = vmatprep.subr.mxu0 0.0
    %2701 = vmatpush1.msra.mxu0 0.0
    %2702 = vmatprep.subr.mxu0 0.0
    %2703 = vmatpush1.msra.mxu0 0.0
    %2704 = vmatprep.mubr.f32.mxu0 0.0
    %2705 = vmatmul.mubr.f32.gmra.mrb[0].mxu0 %v2566
    %v2706 = vpop.f32.mrb[0].mxu0
    %v2707 = vadd.f32 0.0, %v2706
    %v2708 = vpop.f32.mrb[0].mxu0
    %v2709 = vadd.f32 0.0, %v2708
    %2710 = vdwg.mxu0
    %v2715 = vrot.slane %v2636, 1
    %v2716 = vrot.slane %v2638, 1
    %v2717 = vrot.slane %v2707, 1
    %v2718 = vrot.slane %v2709, 1
    %v2727 = vadd.f32 %v2414, %v2636
    %v2728 = vadd.f32 %v2416, %v2638
    %v2729 = vadd.f32 %v2491, %v2707
    %v2730 = vadd.f32 %v2493, %v2709
    %v2731 = vadd.f32 %v2420, %v2715
    %v2732 = vadd.f32 %v2422, %v2716
    %v2733 = vadd.f32 %v2497, %v2717
    %v2734 = vadd.f32 %v2499, %v2718
    %v2735 = vxor.u32 %v2727, 2147483648
    %v2736 = vxor.u32 %v2728, 2147483648
    %v2737 = vxor.u32 %v2730, 2147483648
    %v2738 = vxor.u32 %v2731, 2147483648
    %v2739 = vxor.u32 %v2732, 2147483648
    %v2740 = vxor.u32 %v2734, 2147483648
    %v2741 = vmul.f32 %v2735, 1.442695
    %v2742 = vpow.pop %v2741
    %v2743 = vmul.f32 %v2736, 1.442695
    %v2744 = vpow.pop %v2743
    %v2745 = vmul.f32 %v2737, 1.442695
    %v2746 = vpow.pop %v2745
    %v2747 = vmul.f32 %v2738, 1.442695
    %v2748 = vpow.pop %v2747
    %v2749 = vmul.f32 %v2739, 1.442695
    %v2750 = vpow.pop %v2749
    %v2751 = vmul.f32 %v2740, 1.442695
    %v2752 = vpow.pop %v2751
    %v2753 = vadd.f32 %v2742, 1.0
    %v2754 = vadd.f32 %v2744, 1.0
    %v2755 = vadd.f32 %v2746, 1.0
    %v2756 = vadd.f32 %v2748, 1.0
    %v2757 = vadd.f32 %v2750, 1.0
    %v2758 = vadd.f32 %v2752, 1.0
    %v2759 = vrcp.pop %v2753
    %v2760 = vmul.f32 1.0, %v2759
    %v2761 = vrcp.pop %v2754
    %v2762 = vmul.f32 1.0, %v2761
    %v2763 = vrcp.pop %v2755
    %v2764 = vmul.f32 1.0, %v2763
    %v2765 = vrcp.pop %v2756
    %v2766 = vmul.f32 1.0, %v2765
    %v2767 = vrcp.pop %v2757
    %v2768 = vmul.f32 1.0, %v2767
    %v2769 = vrcp.pop %v2758
    %v2770 = vmul.f32 1.0, %v2769
    %v2771 = vtanh.pop %v2729
    %v2772 = vtanh.pop %v2733
    %v2774 = vrot.slane %v2568, 1
    %v2777 = vmul.f32 %v2762, %v2568
    %v2778 = vmul.f32 %v2768, %v2774
    %v2779 = vmul.f32 %v2760, %v2771
    %v2780 = vmul.f32 %v2766, %v2772
    %v2781 = vadd.f32 %v2777, %v2779
    %v2782 = vadd.f32 %v2778, %v2780
    %v2783 = vtanh.pop %v2781
    %v2784 = vtanh.pop %v2782
    %v2785 = vmul.f32 %v2764, %v2783
    %v2786 = vmul.f32 %v2770, %v2784
    %2787 = vst [vmem:[#allocation2] sm:$0x1] %v2785
    %2788 = vst [vmem:[#allocation2 + $0x8] sm:$0x1] %v2786
    %v2791 = vrot.slane %v2786, 7
    %v2792 = vsel %vm629, %v2791, %v2785
    %2794 = vmatprep.subr.mxu0 %v2502
    %2795 = vmatpush1.msra.mxu0 %v2501
    %2796 = vmatprep.subr.mxu0 %v2506
    %2797 = vmatpush1.msra.mxu0 %v2505
    %2798 = vmatprep.subr.mxu0 %v2510
    %2799 = vmatpush1.msra.mxu0 %v2509
    %2800 = vmatprep.subr.mxu0 %v2514
    %2801 = vmatpush1.msra.mxu0 %v2513
    %2802 = vmatprep.subr.mxu0 %v2518
    %2803 = vmatpush1.msra.mxu0 %v2517
    %2804 = vmatprep.subr.mxu0 %v2522
    %2805 = vmatpush1.msra.mxu0 %v2521
    %2806 = vmatprep.subr.mxu0 %v2526
    %2807 = vmatpush1.msra.mxu0 %v2525
    %2808 = vmatprep.subr.mxu0 %v2530
    %2809 = vmatpush1.msra.mxu0 %v2529
    %2810 = vmatprep.subr.mxu0 %v2534
    %2811 = vmatpush1.msra.mxu0 %v2533
    %2812 = vmatprep.subr.mxu0 %v2538
    %2813 = vmatpush1.msra.mxu0 %v2537
    %2814 = vmatprep.subr.mxu0 %v2542
    %2815 = vmatpush1.msra.mxu0 %v2541
    %2816 = vmatprep.subr.mxu0 %v2546
    %2817 = vmatpush1.msra.mxu0 %v2545
    %2818 = vmatprep.subr.mxu0 %v2550
    %2819 = vmatpush1.msra.mxu0 %v2549
    %2820 = vmatprep.subr.mxu0 %v2554
    %2821 = vmatpush1.msra.mxu0 %v2553
    %2822 = vmatprep.subr.mxu0 %v2558
    %2823 = vmatpush1.msra.mxu0 %v2557
    %2824 = vmatprep.subr.mxu0 %v2562
    %2825 = vmatpush1.msra.mxu0 %v2561
    %2826 = vmatprep.subr.mxu0 0.0
    %2827 = vmatpush1.msra.mxu0 0.0
    %2828 = vmatprep.subr.mxu0 0.0
    %2829 = vmatpush1.msra.mxu0 0.0
    %2830 = vmatprep.subr.mxu0 0.0
    %2831 = vmatpush1.msra.mxu0 0.0
    %2832 = vmatprep.subr.mxu0 0.0
    %2833 = vmatpush1.msra.mxu0 0.0
    %2834 = vmatprep.subr.mxu0 0.0
    %2835 = vmatpush1.msra.mxu0 0.0
    %2836 = vmatprep.subr.mxu0 0.0
    %2837 = vmatpush1.msra.mxu0 0.0
    %2838 = vmatprep.subr.mxu0 0.0
    %2839 = vmatpush1.msra.mxu0 0.0
    %2840 = vmatprep.subr.mxu0 0.0
    %2841 = vmatpush1.msra.mxu0 0.0
    %2842 = vmatprep.subr.mxu0 0.0
    %2843 = vmatpush1.msra.mxu0 0.0
    %2844 = vmatprep.subr.mxu0 0.0
    %2845 = vmatpush1.msra.mxu0 0.0
    %2846 = vmatprep.subr.mxu0 0.0
    %2847 = vmatpush1.msra.mxu0 0.0
    %2848 = vmatprep.subr.mxu0 0.0
    %2849 = vmatpush1.msra.mxu0 0.0
    %2850 = vmatprep.subr.mxu0 0.0
    %2851 = vmatpush1.msra.mxu0 0.0
    %2852 = vmatprep.subr.mxu0 0.0
    %2853 = vmatpush1.msra.mxu0 0.0
    %2854 = vmatprep.subr.mxu0 0.0
    %2855 = vmatpush1.msra.mxu0 0.0
    %2856 = vmatprep.subr.mxu0 0.0
    %2857 = vmatpush1.msra.mxu0 0.0
    %2858 = vmatprep.mubr.f32.mxu0 0.0
    %2859 = vmatmul.mubr.f32.gmra.mrb[0].mxu0 %v2792
    %v2860 = vpop.f32.mrb[0].mxu0
    %v2861 = vadd.f32 0.0, %v2860
    %v2862 = vpop.f32.mrb[0].mxu0
    %v2863 = vadd.f32 0.0, %v2862
    %2864 = vdwg.mxu0
    %2865 = vmatprep.subr.mxu0 %v2504
    %2866 = vmatpush1.msra.mxu0 %v2503
    %2867 = vmatprep.subr.mxu0 %v2508
    %2868 = vmatpush1.msra.mxu0 %v2507
    %2869 = vmatprep.subr.mxu0 %v2512
    %2870 = vmatpush1.msra.mxu0 %v2511
    %2871 = vmatprep.subr.mxu0 %v2516
    %2872 = vmatpush1.msra.mxu0 %v2515
    %2873 = vmatprep.subr.mxu0 %v2520
    %2874 = vmatpush1.msra.mxu0 %v2519
    %2875 = vmatprep.subr.mxu0 %v2524
    %2876 = vmatpush1.msra.mxu0 %v2523
    %2877 = vmatprep.subr.mxu0 %v2528
    %2878 = vmatpush1.msra.mxu0 %v2527
    %2879 = vmatprep.subr.mxu0 %v2532
    %2880 = vmatpush1.msra.mxu0 %v2531
    %2881 = vmatprep.subr.mxu0 %v2536
    %2882 = vmatpush1.msra.mxu0 %v2535
    %2883 = vmatprep.subr.mxu0 %v2540
    %2884 = vmatpush1.msra.mxu0 %v2539
    %2885 = vmatprep.subr.mxu0 %v2544
    %2886 = vmatpush1.msra.mxu0 %v2543
    %2887 = vmatprep.subr.mxu0 %v2548
    %2888 = vmatpush1.msra.mxu0 %v2547
    %2889 = vmatprep.subr.mxu0 %v2552
    %2890 = vmatpush1.msra.mxu0 %v2551
    %2891 = vmatprep.subr.mxu0 %v2556
    %2892 = vmatpush1.msra.mxu0 %v2555
    %2893 = vmatprep.subr.mxu0 %v2560
    %2894 = vmatpush1.msra.mxu0 %v2559
    %2895 = vmatprep.subr.mxu0 %v2564
    %2896 = vmatpush1.msra.mxu0 %v2563
    %2897 = vmatprep.subr.mxu0 0.0
    %2898 = vmatpush1.msra.mxu0 0.0
    %2899 = vmatprep.subr.mxu0 0.0
    %2900 = vmatpush1.msra.mxu0 0.0
    %2901 = vmatprep.subr.mxu0 0.0
    %2902 = vmatpush1.msra.mxu0 0.0
    %2903 = vmatprep.subr.mxu0 0.0
    %2904 = vmatpush1.msra.mxu0 0.0
    %2905 = vmatprep.subr.mxu0 0.0
    %2906 = vmatpush1.msra.mxu0 0.0
    %2907 = vmatprep.subr.mxu0 0.0
    %2908 = vmatpush1.msra.mxu0 0.0
    %2909 = vmatprep.subr.mxu0 0.0
    %2910 = vmatpush1.msra.mxu0 0.0
    %2911 = vmatprep.subr.mxu0 0.0
    %2912 = vmatpush1.msra.mxu0 0.0
    %2913 = vmatprep.subr.mxu0 0.0
    %2914 = vmatpush1.msra.mxu0 0.0
    %2915 = vmatprep.subr.mxu0 0.0
    %2916 = vmatpush1.msra.mxu0 0.0
    %2917 = vmatprep.subr.mxu0 0.0
    %2918 = vmatpush1.msra.mxu0 0.0
    %2919 = vmatprep.subr.mxu0 0.0
    %2920 = vmatpush1.msra.mxu0 0.0
    %2921 = vmatprep.subr.mxu0 0.0
    %2922 = vmatpush1.msra.mxu0 0.0
    %2923 = vmatprep.subr.mxu0 0.0
    %2924 = vmatpush1.msra.mxu0 0.0
    %2925 = vmatprep.subr.mxu0 0.0
    %2926 = vmatpush1.msra.mxu0 0.0
    %2927 = vmatprep.subr.mxu0 0.0
    %2928 = vmatpush1.msra.mxu0 0.0
    %2929 = vmatprep.mubr.f32.mxu0 0.0
    %2930 = vmatmul.mubr.f32.gmra.mrb[0].mxu0 %v2792
    %v2931 = vpop.f32.mrb[0].mxu0
    %v2932 = vadd.f32 0.0, %v2931
    %v2933 = vpop.f32.mrb[0].mxu0
    %v2934 = vadd.f32 0.0, %v2933
    %2935 = vdwg.mxu0
    %v2940 = vrot.slane %v2861, 7
    %v2941 = vrot.slane %v2863, 7
    %v2942 = vrot.slane %v2932, 7
    %v2943 = vrot.slane %v2934, 7
    %v2952 = vadd.f32 %v2414, %v2940
    %v2953 = vadd.f32 %v2416, %v2941
    %v2954 = vadd.f32 %v2491, %v2942
    %v2955 = vadd.f32 %v2493, %v2943
    %v2956 = vadd.f32 %v2420, %v2861
    %v2957 = vadd.f32 %v2422, %v2863
    %v2958 = vadd.f32 %v2497, %v2932
    %v2959 = vadd.f32 %v2499, %v2934
    %v2960 = vxor.u32 %v2952, 2147483648
    %v2961 = vxor.u32 %v2953, 2147483648
    %v2962 = vxor.u32 %v2955, 2147483648
    %v2963 = vxor.u32 %v2956, 2147483648
    %v2964 = vxor.u32 %v2957, 2147483648
    %v2965 = vxor.u32 %v2959, 2147483648
    %v2966 = vmul.f32 %v2960, 1.442695
    %v2967 = vpow.pop %v2966
    %v2968 = vmul.f32 %v2961, 1.442695
    %v2969 = vpow.pop %v2968
    %v2970 = vmul.f32 %v2962, 1.442695
    %v2971 = vpow.pop %v2970
    %v2972 = vmul.f32 %v2963, 1.442695
    %v2973 = vpow.pop %v2972
    %v2974 = vmul.f32 %v2964, 1.442695
    %v2975 = vpow.pop %v2974
    %v2976 = vmul.f32 %v2965, 1.442695
    %v2977 = vpow.pop %v2976
    %v2978 = vadd.f32 %v2967, 1.0
    %v2979 = vadd.f32 %v2969, 1.0
    %v2980 = vadd.f32 %v2971, 1.0
    %v2981 = vadd.f32 %v2973, 1.0
    %v2982 = vadd.f32 %v2975, 1.0
    %v2983 = vadd.f32 %v2977, 1.0
    %v2984 = vrcp.pop %v2978
    %v2985 = vmul.f32 1.0, %v2984
    %v2986 = vrcp.pop %v2979
    %v2987 = vmul.f32 1.0, %v2986
    %v2988 = vrcp.pop %v2980
    %v2989 = vmul.f32 1.0, %v2988
    %v2990 = vrcp.pop %v2981
    %v2991 = vmul.f32 1.0, %v2990
    %v2992 = vrcp.pop %v2982
    %v2993 = vmul.f32 1.0, %v2992
    %v2994 = vrcp.pop %v2983
    %v2995 = vmul.f32 1.0, %v2994
    %v2996 = vtanh.pop %v2954
    %v2997 = vtanh.pop %v2958
    %v3000 = vrot.slane %v2781, 7
    %v3001 = vrot.slane %v2782, 7
    %v3004 = vmul.f32 %v2987, %v3000
    %v3005 = vmul.f32 %v2993, %v3001
    %v3006 = vmul.f32 %v2985, %v2996
    %v3007 = vmul.f32 %v2991, %v2997
    %v3008 = vadd.f32 %v3004, %v3006
    %v3009 = vadd.f32 %v3005, %v3007
    %v3010 = vtanh.pop %v3008
    %v3011 = vtanh.pop %v3009
    %v3012 = vmul.f32 %v2989, %v3010
    %v3013 = vmul.f32 %v2995, %v3011
    %3014 = vst [vmem:[#allocation2] sm:$0x2] %v3012
    %3015 = vst [vmem:[#allocation2 + $0x8] sm:$0x2] %v3013
    %v3018 = vrot.slane %v3012, 1
    %v3019 = vsel %vm629, %v3013, %v3018
    %3021 = vmatprep.subr.mxu0 %v2502
    %3022 = vmatpush1.msra.mxu0 %v2501
    %3023 = vmatprep.subr.mxu0 %v2506
    %3024 = vmatpush1.msra.mxu0 %v2505
    %3025 = vmatprep.subr.mxu0 %v2510
    %3026 = vmatpush1.msra.mxu0 %v2509
    %3027 = vmatprep.subr.mxu0 %v2514
    %3028 = vmatpush1.msra.mxu0 %v2513
    %3029 = vmatprep.subr.mxu0 %v2518
    %3030 = vmatpush1.msra.mxu0 %v2517
    %3031 = vmatprep.subr.mxu0 %v2522
    %3032 = vmatpush1.msra.mxu0 %v2521
    %3033 = vmatprep.subr.mxu0 %v2526
    %3034 = vmatpush1.msra.mxu0 %v2525
    %3035 = vmatprep.subr.mxu0 %v2530
    %3036 = vmatpush1.msra.mxu0 %v2529
    %3037 = vmatprep.subr.mxu0 %v2534
    %3038 = vmatpush1.msra.mxu0 %v2533
    %3039 = vmatprep.subr.mxu0 %v2538
    %3040 = vmatpush1.msra.mxu0 %v2537
    %3041 = vmatprep.subr.mxu0 %v2542
    %3042 = vmatpush1.msra.mxu0 %v2541
    %3043 = vmatprep.subr.mxu0 %v2546
    %3044 = vmatpush1.msra.mxu0 %v2545
    %3045 = vmatprep.subr.mxu0 %v2550
    %3046 = vmatpush1.msra.mxu0 %v2549
    %3047 = vmatprep.subr.mxu0 %v2554
    %3048 = vmatpush1.msra.mxu0 %v2553
    %3049 = vmatprep.subr.mxu0 %v2558
    %3050 = vmatpush1.msra.mxu0 %v2557
    %3051 = vmatprep.subr.mxu0 %v2562
    %3052 = vmatpush1.msra.mxu0 %v2561
    %3053 = vmatprep.subr.mxu0 0.0
    %3054 = vmatpush1.msra.mxu0 0.0
    %3055 = vmatprep.subr.mxu0 0.0
    %3056 = vmatpush1.msra.mxu0 0.0
    %3057 = vmatprep.subr.mxu0 0.0
    %3058 = vmatpush1.msra.mxu0 0.0
    %3059 = vmatprep.subr.mxu0 0.0
    %3060 = vmatpush1.msra.mxu0 0.0
    %3061 = vmatprep.subr.mxu0 0.0
    %3062 = vmatpush1.msra.mxu0 0.0
    %3063 = vmatprep.subr.mxu0 0.0
    %3064 = vmatpush1.msra.mxu0 0.0
    %3065 = vmatprep.subr.mxu0 0.0
    %3066 = vmatpush1.msra.mxu0 0.0
    %3067 = vmatprep.subr.mxu0 0.0
    %3068 = vmatpush1.msra.mxu0 0.0
    %3069 = vmatprep.subr.mxu0 0.0
    %3070 = vmatpush1.msra.mxu0 0.0
    %3071 = vmatprep.subr.mxu0 0.0
    %3072 = vmatpush1.msra.mxu0 0.0
    %3073 = vmatprep.subr.mxu0 0.0
    %3074 = vmatpush1.msra.mxu0 0.0
    %3075 = vmatprep.subr.mxu0 0.0
    %3076 = vmatpush1.msra.mxu0 0.0
    %3077 = vmatprep.subr.mxu0 0.0
    %3078 = vmatpush1.msra.mxu0 0.0
    %3079 = vmatprep.subr.mxu0 0.0
    %3080 = vmatpush1.msra.mxu0 0.0
    %3081 = vmatprep.subr.mxu0 0.0
    %3082 = vmatpush1.msra.mxu0 0.0
    %3083 = vmatprep.subr.mxu0 0.0
    %3084 = vmatpush1.msra.mxu0 0.0
    %3085 = vmatprep.mubr.f32.mxu0 0.0
    %3086 = vmatmul.mubr.f32.gmra.mrb[0].mxu0 %v3019
    %v3087 = vpop.f32.mrb[0].mxu0
    %v3088 = vadd.f32 0.0, %v3087
    %v3089 = vpop.f32.mrb[0].mxu0
    %v3090 = vadd.f32 0.0, %v3089
    %3091 = vdwg.mxu0
    %3092 = vmatprep.subr.mxu0 %v2504
    %3093 = vmatpush1.msra.mxu0 %v2503
    %3094 = vmatprep.subr.mxu0 %v2508
    %3095 = vmatpush1.msra.mxu0 %v2507
    %3096 = vmatprep.subr.mxu0 %v2512
    %3097 = vmatpush1.msra.mxu0 %v2511
    %3098 = vmatprep.subr.mxu0 %v2516
    %3099 = vmatpush1.msra.mxu0 %v2515
    %3100 = vmatprep.subr.mxu0 %v2520
    %3101 = vmatpush1.msra.mxu0 %v2519
    %3102 = vmatprep.subr.mxu0 %v2524
    %3103 = vmatpush1.msra.mxu0 %v2523
    %3104 = vmatprep.subr.mxu0 %v2528
    %3105 = vmatpush1.msra.mxu0 %v2527
    %3106 = vmatprep.subr.mxu0 %v2532
    %3107 = vmatpush1.msra.mxu0 %v2531
    %3108 = vmatprep.subr.mxu0 %v2536
    %3109 = vmatpush1.msra.mxu0 %v2535
    %3110 = vmatprep.subr.mxu0 %v2540
    %3111 = vmatpush1.msra.mxu0 %v2539
    %3112 = vmatprep.subr.mxu0 %v2544
    %3113 = vmatpush1.msra.mxu0 %v2543
    %3114 = vmatprep.subr.mxu0 %v2548
    %3115 = vmatpush1.msra.mxu0 %v2547
    %3116 = vmatprep.subr.mxu0 %v2552
    %3117 = vmatpush1.msra.mxu0 %v2551
    %3118 = vmatprep.subr.mxu0 %v2556
    %3119 = vmatpush1.msra.mxu0 %v2555
    %3120 = vmatprep.subr.mxu0 %v2560
    %3121 = vmatpush1.msra.mxu0 %v2559
    %3122 = vmatprep.subr.mxu0 %v2564
    %3123 = vmatpush1.msra.mxu0 %v2563
    %3124 = vmatprep.subr.mxu0 0.0
    %3125 = vmatpush1.msra.mxu0 0.0
    %3126 = vmatprep.subr.mxu0 0.0
    %3127 = vmatpush1.msra.mxu0 0.0
    %3128 = vmatprep.subr.mxu0 0.0
    %3129 = vmatpush1.msra.mxu0 0.0
    %3130 = vmatprep.subr.mxu0 0.0
    %3131 = vmatpush1.msra.mxu0 0.0
    %3132 = vmatprep.subr.mxu0 0.0
    %3133 = vmatpush1.msra.mxu0 0.0
    %3134 = vmatprep.subr.mxu0 0.0
    %3135 = vmatpush1.msra.mxu0 0.0
    %3136 = vmatprep.subr.mxu0 0.0
    %3137 = vmatpush1.msra.mxu0 0.0
    %3138 = vmatprep.subr.mxu0 0.0
    %3139 = vmatpush1.msra.mxu0 0.0
    %3140 = vmatprep.subr.mxu0 0.0
    %3141 = vmatpush1.msra.mxu0 0.0
    %3142 = vmatprep.subr.mxu0 0.0
    %3143 = vmatpush1.msra.mxu0 0.0
    %3144 = vmatprep.subr.mxu0 0.0
    %3145 = vmatpush1.msra.mxu0 0.0
    %3146 = vmatprep.subr.mxu0 0.0
    %3147 = vmatpush1.msra.mxu0 0.0
    %3148 = vmatprep.subr.mxu0 0.0
    %3149 = vmatpush1.msra.mxu0 0.0
    %3150 = vmatprep.subr.mxu0 0.0
    %3151 = vmatpush1.msra.mxu0 0.0
    %3152 = vmatprep.subr.mxu0 0.0
    %3153 = vmatpush1.msra.mxu0 0.0
    %3154 = vmatprep.subr.mxu0 0.0
    %3155 = vmatpush1.msra.mxu0 0.0
    %3156 = vmatprep.mubr.f32.mxu0 0.0
    %3157 = vmatmul.mubr.f32.gmra.mrb[0].mxu0 %v3019
    %v3158 = vpop.f32.mrb[0].mxu0
    %v3159 = vadd.f32 0.0, %v3158
    %v3160 = vpop.f32.mrb[0].mxu0
    %v3161 = vadd.f32 0.0, %v3160
    %3162 = vdwg.mxu0
    %v3167 = vrot.slane %v3088, 6
    %v3168 = vrot.slane %v3090, 6
    %v3169 = vrot.slane %v3159, 6
    %v3170 = vrot.slane %v3161, 6
    %v3171 = vrot.slane %v3088, 7
    %v3172 = vrot.slane %v3090, 7
    %v3173 = vrot.slane %v3159, 7
    %v3174 = vrot.slane %v3161, 7
    %v3183 = vadd.f32 %v2414, %v3167
    %v3184 = vadd.f32 %v2416, %v3168
    %v3185 = vadd.f32 %v2491, %v3169
    %v3186 = vadd.f32 %v2493, %v3170
    %v3187 = vadd.f32 %v2420, %v3171
    %v3188 = vadd.f32 %v2422, %v3172
    %v3189 = vadd.f32 %v2497, %v3173
    %v3190 = vadd.f32 %v2499, %v3174
    %v3191 = vxor.u32 %v3183, 2147483648
    %v3192 = vxor.u32 %v3184, 2147483648
    %v3193 = vxor.u32 %v3186, 2147483648
    %v3194 = vxor.u32 %v3187, 2147483648
    %v3195 = vxor.u32 %v3188, 2147483648
    %v3196 = vxor.u32 %v3190, 2147483648
    %v3197 = vmul.f32 %v3191, 1.442695
    %v3198 = vpow.pop %v3197
    %v3199 = vmul.f32 %v3192, 1.442695
    %v3200 = vpow.pop %v3199
    %v3201 = vmul.f32 %v3193, 1.442695
    %v3202 = vpow.pop %v3201
    %v3203 = vmul.f32 %v3194, 1.442695
    %v3204 = vpow.pop %v3203
    %v3205 = vmul.f32 %v3195, 1.442695
    %v3206 = vpow.pop %v3205
    %v3207 = vmul.f32 %v3196, 1.442695
    %v3208 = vpow.pop %v3207
    %v3209 = vadd.f32 %v3198, 1.0
    %v3210 = vadd.f32 %v3200, 1.0
    %v3211 = vadd.f32 %v3202, 1.0
    %v3212 = vadd.f32 %v3204, 1.0
    %v3213 = vadd.f32 %v3206, 1.0
    %v3214 = vadd.f32 %v3208, 1.0
    %v3215 = vrcp.pop %v3209
    %v3216 = vmul.f32 1.0, %v3215
    %v3217 = vrcp.pop %v3210
    %v3218 = vmul.f32 1.0, %v3217
    %v3219 = vrcp.pop %v3211
    %v3220 = vmul.f32 1.0, %v3219
    %v3221 = vrcp.pop %v3212
    %v3222 = vmul.f32 1.0, %v3221
    %v3223 = vrcp.pop %v3213
    %v3224 = vmul.f32 1.0, %v3223
    %v3225 = vrcp.pop %v3214
    %v3226 = vmul.f32 1.0, %v3225
    %v3227 = vtanh.pop %v3185
    %v3228 = vtanh.pop %v3189
    %v3231 = vrot.slane %v3008, 7
    %v3232 = vrot.slane %v3009, 7
    %v3235 = vmul.f32 %v3218, %v3231
    %v3236 = vmul.f32 %v3224, %v3232
    %v3237 = vmul.f32 %v3216, %v3227
    %v3238 = vmul.f32 %v3222, %v3228
    %v3239 = vadd.f32 %v3235, %v3237
    %v3240 = vadd.f32 %v3236, %v3238
    %v3241 = vtanh.pop %v3239
    %v3242 = vtanh.pop %v3240
    %v3243 = vmul.f32 %v3220, %v3241
    %v3244 = vmul.f32 %v3226, %v3242
    %3245 = vst [vmem:[#allocation2] sm:$0x4] %v3243
    %3246 = vst [vmem:[#allocation2 + $0x8] sm:$0x4] %v3244
    %v3249 = vrot.slane %v3243, 2
    %v3250 = vrot.slane %v3244, 1
    %v3251 = vsel %vm629, %v3250, %v3249
    %3253 = vmatprep.subr.mxu0 %v2502
    %3254 = vmatpush1.msra.mxu0 %v2501
    %3255 = vmatprep.subr.mxu0 %v2506
    %3256 = vmatpush1.msra.mxu0 %v2505
    %3257 = vmatprep.subr.mxu0 %v2510
    %3258 = vmatpush1.msra.mxu0 %v2509
    %3259 = vmatprep.subr.mxu0 %v2514
    %3260 = vmatpush1.msra.mxu0 %v2513
    %3261 = vmatprep.subr.mxu0 %v2518
    %3262 = vmatpush1.msra.mxu0 %v2517
    %3263 = vmatprep.subr.mxu0 %v2522
    %3264 = vmatpush1.msra.mxu0 %v2521
    %3265 = vmatprep.subr.mxu0 %v2526
    %3266 = vmatpush1.msra.mxu0 %v2525
    %3267 = vmatprep.subr.mxu0 %v2530
    %3268 = vmatpush1.msra.mxu0 %v2529
    %3269 = vmatprep.subr.mxu0 %v2534
    %3270 = vmatpush1.msra.mxu0 %v2533
    %3271 = vmatprep.subr.mxu0 %v2538
    %3272 = vmatpush1.msra.mxu0 %v2537
    %3273 = vmatprep.subr.mxu0 %v2542
    %3274 = vmatpush1.msra.mxu0 %v2541
    %3275 = vmatprep.subr.mxu0 %v2546
    %3276 = vmatpush1.msra.mxu0 %v2545
    %3277 = vmatprep.subr.mxu0 %v2550
    %3278 = vmatpush1.msra.mxu0 %v2549
    %3279 = vmatprep.subr.mxu0 %v2554
    %3280 = vmatpush1.msra.mxu0 %v2553
    %3281 = vmatprep.subr.mxu0 %v2558
    %3282 = vmatpush1.msra.mxu0 %v2557
    %3283 = vmatprep.subr.mxu0 %v2562
    %3284 = vmatpush1.msra.mxu0 %v2561
    %3285 = vmatprep.subr.mxu0 0.0
    %3286 = vmatpush1.msra.mxu0 0.0
    %3287 = vmatprep.subr.mxu0 0.0
    %3288 = vmatpush1.msra.mxu0 0.0
    %3289 = vmatprep.subr.mxu0 0.0
    %3290 = vmatpush1.msra.mxu0 0.0
    %3291 = vmatprep.subr.mxu0 0.0
    %3292 = vmatpush1.msra.mxu0 0.0
    %3293 = vmatprep.subr.mxu0 0.0
    %3294 = vmatpush1.msra.mxu0 0.0
    %3295 = vmatprep.subr.mxu0 0.0
    %3296 = vmatpush1.msra.mxu0 0.0
    %3297 = vmatprep.subr.mxu0 0.0
    %3298 = vmatpush1.msra.mxu0 0.0
    %3299 = vmatprep.subr.mxu0 0.0
    %3300 = vmatpush1.msra.mxu0 0.0
    %3301 = vmatprep.subr.mxu0 0.0
    %3302 = vmatpush1.msra.mxu0 0.0
    %3303 = vmatprep.subr.mxu0 0.0
    %3304 = vmatpush1.msra.mxu0 0.0
    %3305 = vmatprep.subr.mxu0 0.0
    %3306 = vmatpush1.msra.mxu0 0.0
    %3307 = vmatprep.subr.mxu0 0.0
    %3308 = vmatpush1.msra.mxu0 0.0
    %3309 = vmatprep.subr.mxu0 0.0
    %3310 = vmatpush1.msra.mxu0 0.0
    %3311 = vmatprep.subr.mxu0 0.0
    %3312 = vmatpush1.msra.mxu0 0.0
    %3313 = vmatprep.subr.mxu0 0.0
    %3314 = vmatpush1.msra.mxu0 0.0
    %3315 = vmatprep.subr.mxu0 0.0
    %3316 = vmatpush1.msra.mxu0 0.0
    %3317 = vmatprep.mubr.f32.mxu0 0.0
    %3318 = vmatmul.mubr.f32.gmra.mrb[0].mxu0 %v3251
    %v3319 = vpop.f32.mrb[0].mxu0
    %v3320 = vadd.f32 0.0, %v3319
    %v3321 = vpop.f32.mrb[0].mxu0
    %v3322 = vadd.f32 0.0, %v3321
    %3323 = vdwg.mxu0
    %3324 = vmatprep.subr.mxu0 %v2504
    %3325 = vmatpush1.msra.mxu0 %v2503
    %3326 = vmatprep.subr.mxu0 %v2508
    %3327 = vmatpush1.msra.mxu0 %v2507
    %3328 = vmatprep.subr.mxu0 %v2512
    %3329 = vmatpush1.msra.mxu0 %v2511
    %3330 = vmatprep.subr.mxu0 %v2516
    %3331 = vmatpush1.msra.mxu0 %v2515
    %3332 = vmatprep.subr.mxu0 %v2520
    %3333 = vmatpush1.msra.mxu0 %v2519
    %3334 = vmatprep.subr.mxu0 %v2524
    %3335 = vmatpush1.msra.mxu0 %v2523
    %3336 = vmatprep.subr.mxu0 %v2528
    %3337 = vmatpush1.msra.mxu0 %v2527
    %3338 = vmatprep.subr.mxu0 %v2532
    %3339 = vmatpush1.msra.mxu0 %v2531
    %3340 = vmatprep.subr.mxu0 %v2536
    %3341 = vmatpush1.msra.mxu0 %v2535
    %3342 = vmatprep.subr.mxu0 %v2540
    %3343 = vmatpush1.msra.mxu0 %v2539
    %3344 = vmatprep.subr.mxu0 %v2544
    %3345 = vmatpush1.msra.mxu0 %v2543
    %3346 = vmatprep.subr.mxu0 %v2548
    %3347 = vmatpush1.msra.mxu0 %v2547
    %3348 = vmatprep.subr.mxu0 %v2552
    %3349 = vmatpush1.msra.mxu0 %v2551
    %3350 = vmatprep.subr.mxu0 %v2556
    %3351 = vmatpush1.msra.mxu0 %v2555
    %3352 = vmatprep.subr.mxu0 %v2560
    %3353 = vmatpush1.msra.mxu0 %v2559
    %3354 = vmatprep.subr.mxu0 %v2564
    %3355 = vmatpush1.msra.mxu0 %v2563
    %3356 = vmatprep.subr.mxu0 0.0
    %3357 = vmatpush1.msra.mxu0 0.0
    %3358 = vmatprep.subr.mxu0 0.0
    %3359 = vmatpush1.msra.mxu0 0.0
    %3360 = vmatprep.subr.mxu0 0.0
    %3361 = vmatpush1.msra.mxu0 0.0
    %3362 = vmatprep.subr.mxu0 0.0
    %3363 = vmatpush1.msra.mxu0 0.0
    %3364 = vmatprep.subr.mxu0 0.0
    %3365 = vmatpush1.msra.mxu0 0.0
    %3366 = vmatprep.subr.mxu0 0.0
    %3367 = vmatpush1.msra.mxu0 0.0
    %3368 = vmatprep.subr.mxu0 0.0
    %3369 = vmatpush1.msra.mxu0 0.0
    %3370 = vmatprep.subr.mxu0 0.0
    %3371 = vmatpush1.msra.mxu0 0.0
    %3372 = vmatprep.subr.mxu0 0.0
    %3373 = vmatpush1.msra.mxu0 0.0
    %3374 = vmatprep.subr.mxu0 0.0
    %3375 = vmatpush1.msra.mxu0 0.0
    %3376 = vmatprep.subr.mxu0 0.0
    %3377 = vmatpush1.msra.mxu0 0.0
    %3378 = vmatprep.subr.mxu0 0.0
    %3379 = vmatpush1.msra.mxu0 0.0
    %3380 = vmatprep.subr.mxu0 0.0
    %3381 = vmatpush1.msra.mxu0 0.0
    %3382 = vmatprep.subr.mxu0 0.0
    %3383 = vmatpush1.msra.mxu0 0.0
    %3384 = vmatprep.subr.mxu0 0.0
    %3385 = vmatpush1.msra.mxu0 0.0
    %3386 = vmatprep.subr.mxu0 0.0
    %3387 = vmatpush1.msra.mxu0 0.0
    %3388 = vmatprep.mubr.f32.mxu0 0.0
    %3389 = vmatmul.mubr.f32.gmra.mrb[0].mxu0 %v3251
    %v3390 = vpop.f32.mrb[0].mxu0
    %v3391 = vadd.f32 0.0, %v3390
    %v3392 = vpop.f32.mrb[0].mxu0
    %v3393 = vadd.f32 0.0, %v3392
    %3394 = vdwg.mxu0
    %v3399 = vrot.slane %v3320, 5
    %v3400 = vrot.slane %v3322, 5
    %v3401 = vrot.slane %v3391, 5
    %v3402 = vrot.slane %v3393, 5
    %v3403 = vrot.slane %v3320, 6
    %v3404 = vrot.slane %v3322, 6
    %v3405 = vrot.slane %v3391, 6
    %v3406 = vrot.slane %v3393, 6
    %v3415 = vadd.f32 %v2414, %v3399
    %v3416 = vadd.f32 %v2416, %v3400
    %v3417 = vadd.f32 %v2491, %v3401
    %v3418 = vadd.f32 %v2493, %v3402
    %v3419 = vadd.f32 %v2420, %v3403
    %v3420 = vadd.f32 %v2422, %v3404
    %v3421 = vadd.f32 %v2497, %v3405
    %v3422 = vadd.f32 %v2499, %v3406
    %v3423 = vxor.u32 %v3415, 2147483648
    %v3424 = vxor.u32 %v3416, 2147483648
    %v3425 = vxor.u32 %v3418, 2147483648
    %v3426 = vxor.u32 %v3419, 2147483648
    %v3427 = vxor.u32 %v3420, 2147483648
    %v3428 = vxor.u32 %v3422, 2147483648
    %v3429 = vmul.f32 %v3423, 1.442695
    %v3430 = vpow.pop %v3429
    %v3431 = vmul.f32 %v3424, 1.442695
    %v3432 = vpow.pop %v3431
    %v3433 = vmul.f32 %v3425, 1.442695
    %v3434 = vpow.pop %v3433
    %v3435 = vmul.f32 %v3426, 1.442695
    %v3436 = vpow.pop %v3435
    %v3437 = vmul.f32 %v3427, 1.442695
    %v3438 = vpow.pop %v3437
    %v3439 = vmul.f32 %v3428, 1.442695
    %v3440 = vpow.pop %v3439
    %v3441 = vadd.f32 %v3430, 1.0
    %v3442 = vadd.f32 %v3432, 1.0
    %v3443 = vadd.f32 %v3434, 1.0
    %v3444 = vadd.f32 %v3436, 1.0
    %v3445 = vadd.f32 %v3438, 1.0
    %v3446 = vadd.f32 %v3440, 1.0
    %v3447 = vrcp.pop %v3441
    %v3448 = vmul.f32 1.0, %v3447
    %v3449 = vrcp.pop %v3442
    %v3450 = vmul.f32 1.0, %v3449
    %v3451 = vrcp.pop %v3443
    %v3452 = vmul.f32 1.0, %v3451
    %v3453 = vrcp.pop %v3444
    %v3454 = vmul.f32 1.0, %v3453
    %v3455 = vrcp.pop %v3445
    %v3456 = vmul.f32 1.0, %v3455
    %v3457 = vrcp.pop %v3446
    %v3458 = vmul.f32 1.0, %v3457
    %v3459 = vtanh.pop %v3417
    %v3460 = vtanh.pop %v3421
    %v3463 = vrot.slane %v3239, 7
    %v3464 = vrot.slane %v3240, 7
    %v3467 = vmul.f32 %v3450, %v3463
    %v3468 = vmul.f32 %v3456, %v3464
    %v3469 = vmul.f32 %v3448, %v3459
    %v3470 = vmul.f32 %v3454, %v3460
    %v3471 = vadd.f32 %v3467, %v3469
    %v3472 = vadd.f32 %v3468, %v3470
    %v3473 = vtanh.pop %v3471
    %v3474 = vtanh.pop %v3472
    %v3475 = vmul.f32 %v3452, %v3473
    %v3476 = vmul.f32 %v3458, %v3474
    %3477 = vst [vmem:[#allocation2] sm:$0x8] %v3475
    %3478 = vst [vmem:[#allocation2 + $0x8] sm:$0x8] %v3476
    %v3481 = vrot.slane %v3475, 3
    %v3482 = vrot.slane %v3476, 2
    %v3483 = vsel %vm629, %v3482, %v3481
    %3485 = vmatprep.subr.mxu0 %v2502
    %3486 = vmatpush1.msra.mxu0 %v2501
    %3487 = vmatprep.subr.mxu0 %v2506
    %3488 = vmatpush1.msra.mxu0 %v2505
    %3489 = vmatprep.subr.mxu0 %v2510
    %3490 = vmatpush1.msra.mxu0 %v2509
    %3491 = vmatprep.subr.mxu0 %v2514
    %3492 = vmatpush1.msra.mxu0 %v2513
    %3493 = vmatprep.subr.mxu0 %v2518
    %3494 = vmatpush1.msra.mxu0 %v2517
    %3495 = vmatprep.subr.mxu0 %v2522
    %3496 = vmatpush1.msra.mxu0 %v2521
    %3497 = vmatprep.subr.mxu0 %v2526
    %3498 = vmatpush1.msra.mxu0 %v2525
    %3499 = vmatprep.subr.mxu0 %v2530
    %3500 = vmatpush1.msra.mxu0 %v2529
    %3501 = vmatprep.subr.mxu0 %v2534
    %3502 = vmatpush1.msra.mxu0 %v2533
    %3503 = vmatprep.subr.mxu0 %v2538
    %3504 = vmatpush1.msra.mxu0 %v2537
    %3505 = vmatprep.subr.mxu0 %v2542
    %3506 = vmatpush1.msra.mxu0 %v2541
    %3507 = vmatprep.subr.mxu0 %v2546
    %3508 = vmatpush1.msra.mxu0 %v2545
    %3509 = vmatprep.subr.mxu0 %v2550
    %3510 = vmatpush1.msra.mxu0 %v2549
    %3511 = vmatprep.subr.mxu0 %v2554
    %3512 = vmatpush1.msra.mxu0 %v2553
    %3513 = vmatprep.subr.mxu0 %v2558
    %3514 = vmatpush1.msra.mxu0 %v2557
    %3515 = vmatprep.subr.mxu0 %v2562
    %3516 = vmatpush1.msra.mxu0 %v2561
    %3517 = vmatprep.subr.mxu0 0.0
    %3518 = vmatpush1.msra.mxu0 0.0
    %3519 = vmatprep.subr.mxu0 0.0
    %3520 = vmatpush1.msra.mxu0 0.0
    %3521 = vmatprep.subr.mxu0 0.0
    %3522 = vmatpush1.msra.mxu0 0.0
    %3523 = vmatprep.subr.mxu0 0.0
    %3524 = vmatpush1.msra.mxu0 0.0
    %3525 = vmatprep.subr.mxu0 0.0
    %3526 = vmatpush1.msra.mxu0 0.0
    %3527 = vmatprep.subr.mxu0 0.0
    %3528 = vmatpush1.msra.mxu0 0.0
    %3529 = vmatprep.subr.mxu0 0.0
    %3530 = vmatpush1.msra.mxu0 0.0
    %3531 = vmatprep.subr.mxu0 0.0
    %3532 = vmatpush1.msra.mxu0 0.0
    %3533 = vmatprep.subr.mxu0 0.0
    %3534 = vmatpush1.msra.mxu0 0.0
    %3535 = vmatprep.subr.mxu0 0.0
    %3536 = vmatpush1.msra.mxu0 0.0
    %3537 = vmatprep.subr.mxu0 0.0
    %3538 = vmatpush1.msra.mxu0 0.0
    %3539 = vmatprep.subr.mxu0 0.0
    %3540 = vmatpush1.msra.mxu0 0.0
    %3541 = vmatprep.subr.mxu0 0.0
    %3542 = vmatpush1.msra.mxu0 0.0
    %3543 = vmatprep.subr.mxu0 0.0
    %3544 = vmatpush1.msra.mxu0 0.0
    %3545 = vmatprep.subr.mxu0 0.0
    %3546 = vmatpush1.msra.mxu0 0.0
    %3547 = vmatprep.subr.mxu0 0.0
    %3548 = vmatpush1.msra.mxu0 0.0
    %3549 = vmatprep.mubr.f32.mxu0 0.0
    %3550 = vmatmul.mubr.f32.gmra.mrb[0].mxu0 %v3483
    %v3551 = vpop.f32.mrb[0].mxu0
    %v3552 = vadd.f32 0.0, %v3551
    %v3553 = vpop.f32.mrb[0].mxu0
    %v3554 = vadd.f32 0.0, %v3553
    %3555 = vdwg.mxu0
    %3556 = vmatprep.subr.mxu0 %v2504
    %3557 = vmatpush1.msra.mxu0 %v2503
    %3558 = vmatprep.subr.mxu0 %v2508
    %3559 = vmatpush1.msra.mxu0 %v2507
    %3560 = vmatprep.subr.mxu0 %v2512
    %3561 = vmatpush1.msra.mxu0 %v2511
    %3562 = vmatprep.subr.mxu0 %v2516
    %3563 = vmatpush1.msra.mxu0 %v2515
    %3564 = vmatprep.subr.mxu0 %v2520
    %3565 = vmatpush1.msra.mxu0 %v2519
    %3566 = vmatprep.subr.mxu0 %v2524
    %3567 = vmatpush1.msra.mxu0 %v2523
    %3568 = vmatprep.subr.mxu0 %v2528
    %3569 = vmatpush1.msra.mxu0 %v2527
    %3570 = vmatprep.subr.mxu0 %v2532
    %3571 = vmatpush1.msra.mxu0 %v2531
    %3572 = vmatprep.subr.mxu0 %v2536
    %3573 = vmatpush1.msra.mxu0 %v2535
    %3574 = vmatprep.subr.mxu0 %v2540
    %3575 = vmatpush1.msra.mxu0 %v2539
    %3576 = vmatprep.subr.mxu0 %v2544
    %3577 = vmatpush1.msra.mxu0 %v2543
    %3578 = vmatprep.subr.mxu0 %v2548
    %3579 = vmatpush1.msra.mxu0 %v2547
    %3580 = vmatprep.subr.mxu0 %v2552
    %3581 = vmatpush1.msra.mxu0 %v2551
    %3582 = vmatprep.subr.mxu0 %v2556
    %3583 = vmatpush1.msra.mxu0 %v2555
    %3584 = vmatprep.subr.mxu0 %v2560
    %3585 = vmatpush1.msra.mxu0 %v2559
    %3586 = vmatprep.subr.mxu0 %v2564
    %3587 = vmatpush1.msra.mxu0 %v2563
    %3588 = vmatprep.subr.mxu0 0.0
    %3589 = vmatpush1.msra.mxu0 0.0
    %3590 = vmatprep.subr.mxu0 0.0
    %3591 = vmatpush1.msra.mxu0 0.0
    %3592 = vmatprep.subr.mxu0 0.0
    %3593 = vmatpush1.msra.mxu0 0.0
    %3594 = vmatprep.subr.mxu0 0.0
    %3595 = vmatpush1.msra.mxu0 0.0
    %3596 = vmatprep.subr.mxu0 0.0
    %3597 = vmatpush1.msra.mxu0 0.0
    %3598 = vmatprep.subr.mxu0 0.0
    %3599 = vmatpush1.msra.mxu0 0.0
    %3600 = vmatprep.subr.mxu0 0.0
    %3601 = vmatpush1.msra.mxu0 0.0
    %3602 = vmatprep.subr.mxu0 0.0
    %3603 = vmatpush1.msra.mxu0 0.0
    %3604 = vmatprep.subr.mxu0 0.0
    %3605 = vmatpush1.msra.mxu0 0.0
    %3606 = vmatprep.subr.mxu0 0.0
    %3607 = vmatpush1.msra.mxu0 0.0
    %3608 = vmatprep.subr.mxu0 0.0
    %3609 = vmatpush1.msra.mxu0 0.0
    %3610 = vmatprep.subr.mxu0 0.0
    %3611 = vmatpush1.msra.mxu0 0.0
    %3612 = vmatprep.subr.mxu0 0.0
    %3613 = vmatpush1.msra.mxu0 0.0
    %3614 = vmatprep.subr.mxu0 0.0
    %3615 = vmatpush1.msra.mxu0 0.0
    %3616 = vmatprep.subr.mxu0 0.0
    %3617 = vmatpush1.msra.mxu0 0.0
    %3618 = vmatprep.subr.mxu0 0.0
    %3619 = vmatpush1.msra.mxu0 0.0
    %3620 = vmatprep.mubr.f32.mxu0 0.0
    %3621 = vmatmul.mubr.f32.gmra.mrb[0].mxu0 %v3483
    %v3622 = vpop.f32.mrb[0].mxu0
    %v3623 = vadd.f32 0.0, %v3622
    %v3624 = vpop.f32.mrb[0].mxu0
    %v3625 = vadd.f32 0.0, %v3624
    %3626 = vdwg.mxu0
    %v3631 = vrot.slane %v3552, 4
    %v3632 = vrot.slane %v3554, 4
    %v3633 = vrot.slane %v3623, 4
    %v3634 = vrot.slane %v3625, 4
    %v3635 = vrot.slane %v3552, 5
    %v3636 = vrot.slane %v3554, 5
    %v3637 = vrot.slane %v3623, 5
    %v3638 = vrot.slane %v3625, 5
    %v3647 = vadd.f32 %v2414, %v3631
    %v3648 = vadd.f32 %v2416, %v3632
    %v3649 = vadd.f32 %v2491, %v3633
    %v3650 = vadd.f32 %v2493, %v3634
    %v3651 = vadd.f32 %v2420, %v3635
    %v3652 = vadd.f32 %v2422, %v3636
    %v3653 = vadd.f32 %v2497, %v3637
    %v3654 = vadd.f32 %v2499, %v3638
    %v3655 = vxor.u32 %v3647, 2147483648
    %v3656 = vxor.u32 %v3648, 2147483648
    %v3657 = vxor.u32 %v3650, 2147483648
    %v3658 = vxor.u32 %v3651, 2147483648
    %v3659 = vxor.u32 %v3652, 2147483648
    %v3660 = vxor.u32 %v3654, 2147483648
    %v3661 = vmul.f32 %v3655, 1.442695
    %v3662 = vpow.pop %v3661
    %v3663 = vmul.f32 %v3656, 1.442695
    %v3664 = vpow.pop %v3663
    %v3665 = vmul.f32 %v3657, 1.442695
    %v3666 = vpow.pop %v3665
    %v3667 = vmul.f32 %v3658, 1.442695
    %v3668 = vpow.pop %v3667
    %v3669 = vmul.f32 %v3659, 1.442695
    %v3670 = vpow.pop %v3669
    %v3671 = vmul.f32 %v3660, 1.442695
    %v3672 = vpow.pop %v3671
    %v3673 = vadd.f32 %v3662, 1.0
    %v3674 = vadd.f32 %v3664, 1.0
    %v3675 = vadd.f32 %v3666, 1.0
    %v3676 = vadd.f32 %v3668, 1.0
    %v3677 = vadd.f32 %v3670, 1.0
    %v3678 = vadd.f32 %v3672, 1.0
    %v3679 = vrcp.pop %v3673
    %v3680 = vmul.f32 1.0, %v3679
    %v3681 = vrcp.pop %v3674
    %v3682 = vmul.f32 1.0, %v3681
    %v3683 = vrcp.pop %v3675
    %v3684 = vmul.f32 1.0, %v3683
    %v3685 = vrcp.pop %v3676
    %v3686 = vmul.f32 1.0, %v3685
    %v3687 = vrcp.pop %v3677
    %v3688 = vmul.f32 1.0, %v3687
    %v3689 = vrcp.pop %v3678
    %v3690 = vmul.f32 1.0, %v3689
    %v3691 = vtanh.pop %v3649
    %v3692 = vtanh.pop %v3653
    %v3695 = vrot.slane %v3471, 7
    %v3696 = vrot.slane %v3472, 7
    %v3699 = vmul.f32 %v3682, %v3695
    %v3700 = vmul.f32 %v3688, %v3696
    %v3701 = vmul.f32 %v3680, %v3691
    %v3702 = vmul.f32 %v3686, %v3692
    %v3703 = vadd.f32 %v3699, %v3701
    %v3704 = vadd.f32 %v3700, %v3702
    %v3705 = vtanh.pop %v3703
    %v3706 = vtanh.pop %v3704
    %v3707 = vmul.f32 %v3684, %v3705
    %v3708 = vmul.f32 %v3690, %v3706
    %3709 = vst [vmem:[#allocation2] sm:$0x10] %v3707
    %3710 = vst [vmem:[#allocation2 + $0x8] sm:$0x10] %v3708
    %v3713 = vrot.slane %v3707, 4
    %v3714 = vrot.slane %v3708, 3
    %v3715 = vsel %vm629, %v3714, %v3713
    %3717 = vmatprep.subr.mxu0 %v2502
    %3718 = vmatpush1.msra.mxu0 %v2501
    %3719 = vmatprep.subr.mxu0 %v2506
    %3720 = vmatpush1.msra.mxu0 %v2505
    %3721 = vmatprep.subr.mxu0 %v2510
    %3722 = vmatpush1.msra.mxu0 %v2509
    %3723 = vmatprep.subr.mxu0 %v2514
    %3724 = vmatpush1.msra.mxu0 %v2513
    %3725 = vmatprep.subr.mxu0 %v2518
    %3726 = vmatpush1.msra.mxu0 %v2517
    %3727 = vmatprep.subr.mxu0 %v2522
    %3728 = vmatpush1.msra.mxu0 %v2521
    %3729 = vmatprep.subr.mxu0 %v2526
    %3730 = vmatpush1.msra.mxu0 %v2525
    %3731 = vmatprep.subr.mxu0 %v2530
    %3732 = vmatpush1.msra.mxu0 %v2529
    %3733 = vmatprep.subr.mxu0 %v2534
    %3734 = vmatpush1.msra.mxu0 %v2533
    %3735 = vmatprep.subr.mxu0 %v2538
    %3736 = vmatpush1.msra.mxu0 %v2537
    %3737 = vmatprep.subr.mxu0 %v2542
    %3738 = vmatpush1.msra.mxu0 %v2541
    %3739 = vmatprep.subr.mxu0 %v2546
    %3740 = vmatpush1.msra.mxu0 %v2545
    %3741 = vmatprep.subr.mxu0 %v2550
    %3742 = vmatpush1.msra.mxu0 %v2549
    %3743 = vmatprep.subr.mxu0 %v2554
    %3744 = vmatpush1.msra.mxu0 %v2553
    %3745 = vmatprep.subr.mxu0 %v2558
    %3746 = vmatpush1.msra.mxu0 %v2557
    %3747 = vmatprep.subr.mxu0 %v2562
    %3748 = vmatpush1.msra.mxu0 %v2561
    %3749 = vmatprep.subr.mxu0 0.0
    %3750 = vmatpush1.msra.mxu0 0.0
    %3751 = vmatprep.subr.mxu0 0.0
    %3752 = vmatpush1.msra.mxu0 0.0
    %3753 = vmatprep.subr.mxu0 0.0
    %3754 = vmatpush1.msra.mxu0 0.0
    %3755 = vmatprep.subr.mxu0 0.0
    %3756 = vmatpush1.msra.mxu0 0.0
    %3757 = vmatprep.subr.mxu0 0.0
    %3758 = vmatpush1.msra.mxu0 0.0
    %3759 = vmatprep.subr.mxu0 0.0
    %3760 = vmatpush1.msra.mxu0 0.0
    %3761 = vmatprep.subr.mxu0 0.0
    %3762 = vmatpush1.msra.mxu0 0.0
    %3763 = vmatprep.subr.mxu0 0.0
    %3764 = vmatpush1.msra.mxu0 0.0
    %3765 = vmatprep.subr.mxu0 0.0
    %3766 = vmatpush1.msra.mxu0 0.0
    %3767 = vmatprep.subr.mxu0 0.0
    %3768 = vmatpush1.msra.mxu0 0.0
    %3769 = vmatprep.subr.mxu0 0.0
    %3770 = vmatpush1.msra.mxu0 0.0
    %3771 = vmatprep.subr.mxu0 0.0
    %3772 = vmatpush1.msra.mxu0 0.0
    %3773 = vmatprep.subr.mxu0 0.0
    %3774 = vmatpush1.msra.mxu0 0.0
    %3775 = vmatprep.subr.mxu0 0.0
    %3776 = vmatpush1.msra.mxu0 0.0
    %3777 = vmatprep.subr.mxu0 0.0
    %3778 = vmatpush1.msra.mxu0 0.0
    %3779 = vmatprep.subr.mxu0 0.0
    %3780 = vmatpush1.msra.mxu0 0.0
    %3781 = vmatprep.mubr.f32.mxu0 0.0
    %3782 = vmatmul.mubr.f32.gmra.mrb[0].mxu0 %v3715
    %v3783 = vpop.f32.mrb[0].mxu0
    %v3784 = vadd.f32 0.0, %v3783
    %v3785 = vpop.f32.mrb[0].mxu0
    %v3786 = vadd.f32 0.0, %v3785
    %3787 = vdwg.mxu0
    %3788 = vmatprep.subr.mxu0 %v2504
    %3789 = vmatpush1.msra.mxu0 %v2503
    %3790 = vmatprep.subr.mxu0 %v2508
    %3791 = vmatpush1.msra.mxu0 %v2507
    %3792 = vmatprep.subr.mxu0 %v2512
    %3793 = vmatpush1.msra.mxu0 %v2511
    %3794 = vmatprep.subr.mxu0 %v2516
    %3795 = vmatpush1.msra.mxu0 %v2515
    %3796 = vmatprep.subr.mxu0 %v2520
    %3797 = vmatpush1.msra.mxu0 %v2519
    %3798 = vmatprep.subr.mxu0 %v2524
    %3799 = vmatpush1.msra.mxu0 %v2523
    %3800 = vmatprep.subr.mxu0 %v2528
    %3801 = vmatpush1.msra.mxu0 %v2527
    %3802 = vmatprep.subr.mxu0 %v2532
    %3803 = vmatpush1.msra.mxu0 %v2531
    %3804 = vmatprep.subr.mxu0 %v2536
    %3805 = vmatpush1.msra.mxu0 %v2535
    %3806 = vmatprep.subr.mxu0 %v2540
    %3807 = vmatpush1.msra.mxu0 %v2539
    %3808 = vmatprep.subr.mxu0 %v2544
    %3809 = vmatpush1.msra.mxu0 %v2543
    %3810 = vmatprep.subr.mxu0 %v2548
    %3811 = vmatpush1.msra.mxu0 %v2547
    %3812 = vmatprep.subr.mxu0 %v2552
    %3813 = vmatpush1.msra.mxu0 %v2551
    %3814 = vmatprep.subr.mxu0 %v2556
    %3815 = vmatpush1.msra.mxu0 %v2555
    %3816 = vmatprep.subr.mxu0 %v2560
    %3817 = vmatpush1.msra.mxu0 %v2559
    %3818 = vmatprep.subr.mxu0 %v2564
    %3819 = vmatpush1.msra.mxu0 %v2563
    %3820 = vmatprep.subr.mxu0 0.0
    %3821 = vmatpush1.msra.mxu0 0.0
    %3822 = vmatprep.subr.mxu0 0.0
    %3823 = vmatpush1.msra.mxu0 0.0
    %3824 = vmatprep.subr.mxu0 0.0
    %3825 = vmatpush1.msra.mxu0 0.0
    %3826 = vmatprep.subr.mxu0 0.0
    %3827 = vmatpush1.msra.mxu0 0.0
    %3828 = vmatprep.subr.mxu0 0.0
    %3829 = vmatpush1.msra.mxu0 0.0
    %3830 = vmatprep.subr.mxu0 0.0
    %3831 = vmatpush1.msra.mxu0 0.0
    %3832 = vmatprep.subr.mxu0 0.0
    %3833 = vmatpush1.msra.mxu0 0.0
    %3834 = vmatprep.subr.mxu0 0.0
    %3835 = vmatpush1.msra.mxu0 0.0
    %3836 = vmatprep.subr.mxu0 0.0
    %3837 = vmatpush1.msra.mxu0 0.0
    %3838 = vmatprep.subr.mxu0 0.0
    %3839 = vmatpush1.msra.mxu0 0.0
    %3840 = vmatprep.subr.mxu0 0.0
    %3841 = vmatpush1.msra.mxu0 0.0
    %3842 = vmatprep.subr.mxu0 0.0
    %3843 = vmatpush1.msra.mxu0 0.0
    %3844 = vmatprep.subr.mxu0 0.0
    %3845 = vmatpush1.msra.mxu0 0.0
    %3846 = vmatprep.subr.mxu0 0.0
    %3847 = vmatpush1.msra.mxu0 0.0
    %3848 = vmatprep.subr.mxu0 0.0
    %3849 = vmatpush1.msra.mxu0 0.0
    %3850 = vmatprep.subr.mxu0 0.0
    %3851 = vmatpush1.msra.mxu0 0.0
    %3852 = vmatprep.mubr.f32.mxu0 0.0
    %3853 = vmatmul.mubr.f32.gmra.mrb[0].mxu0 %v3715
    %v3854 = vpop.f32.mrb[0].mxu0
    %v3855 = vadd.f32 0.0, %v3854
    %v3856 = vpop.f32.mrb[0].mxu0
    %v3857 = vadd.f32 0.0, %v3856
    %3858 = vdwg.mxu0
    %v3863 = vrot.slane %v3784, 3
    %v3864 = vrot.slane %v3786, 3
    %v3865 = vrot.slane %v3855, 3
    %v3866 = vrot.slane %v3857, 3
    %v3867 = vrot.slane %v3784, 4
    %v3868 = vrot.slane %v3786, 4
    %v3869 = vrot.slane %v3855, 4
    %v3870 = vrot.slane %v3857, 4
    %v3879 = vadd.f32 %v2414, %v3863
    %v3880 = vadd.f32 %v2416, %v3864
    %v3881 = vadd.f32 %v2491, %v3865
    %v3882 = vadd.f32 %v2493, %v3866
    %v3883 = vadd.f32 %v2420, %v3867
    %v3884 = vadd.f32 %v2422, %v3868
    %v3885 = vadd.f32 %v2497, %v3869
    %v3886 = vadd.f32 %v2499, %v3870
    %v3887 = vxor.u32 %v3879, 2147483648
    %v3888 = vxor.u32 %v3880, 2147483648
    %v3889 = vxor.u32 %v3882, 2147483648
    %v3890 = vxor.u32 %v3883, 2147483648
    %v3891 = vxor.u32 %v3884, 2147483648
    %v3892 = vxor.u32 %v3886, 2147483648
    %v3893 = vmul.f32 %v3887, 1.442695
    %v3894 = vpow.pop %v3893
    %v3895 = vmul.f32 %v3888, 1.442695
    %v3896 = vpow.pop %v3895
    %v3897 = vmul.f32 %v3889, 1.442695
    %v3898 = vpow.pop %v3897
    %v3899 = vmul.f32 %v3890, 1.442695
    %v3900 = vpow.pop %v3899
    %v3901 = vmul.f32 %v3891, 1.442695
    %v3902 = vpow.pop %v3901
    %v3903 = vmul.f32 %v3892, 1.442695
    %v3904 = vpow.pop %v3903
    %v3905 = vadd.f32 %v3894, 1.0
    %v3906 = vadd.f32 %v3896, 1.0
    %v3907 = vadd.f32 %v3898, 1.0
    %v3908 = vadd.f32 %v3900, 1.0
    %v3909 = vadd.f32 %v3902, 1.0
    %v3910 = vadd.f32 %v3904, 1.0
    %v3911 = vrcp.pop %v3905
    %v3912 = vmul.f32 1.0, %v3911
    %v3913 = vrcp.pop %v3906
    %v3914 = vmul.f32 1.0, %v3913
    %v3915 = vrcp.pop %v3907
    %v3916 = vmul.f32 1.0, %v3915
    %v3917 = vrcp.pop %v3908
    %v3918 = vmul.f32 1.0, %v3917
    %v3919 = vrcp.pop %v3909
    %v3920 = vmul.f32 1.0, %v3919
    %v3921 = vrcp.pop %v3910
    %v3922 = vmul.f32 1.0, %v3921
    %v3923 = vtanh.pop %v3881
    %v3924 = vtanh.pop %v3885
    %v3927 = vrot.slane %v3703, 7
    %v3928 = vrot.slane %v3704, 7
    %v3931 = vmul.f32 %v3914, %v3927
    %v3932 = vmul.f32 %v3920, %v3928
    %v3933 = vmul.f32 %v3912, %v3923
    %v3934 = vmul.f32 %v3918, %v3924
    %v3935 = vadd.f32 %v3931, %v3933
    %v3936 = vadd.f32 %v3932, %v3934
    %v3937 = vtanh.pop %v3935
    %v3938 = vtanh.pop %v3936
    %v3939 = vmul.f32 %v3916, %v3937
    %v3940 = vmul.f32 %v3922, %v3938
    %3941 = vst [vmem:[#allocation2] sm:$0x20] %v3939
    %3942 = vst [vmem:[#allocation2 + $0x8] sm:$0x20] %v3940
    %v3945 = vrot.slane %v3939, 5
    %v3946 = vrot.slane %v3940, 4
    %v3947 = vsel %vm629, %v3946, %v3945
    %3949 = vmatprep.subr.mxu0 %v2502
    %3950 = vmatpush1.msra.mxu0 %v2501
    %3951 = vmatprep.subr.mxu0 %v2506
    %3952 = vmatpush1.msra.mxu0 %v2505
    %3953 = vmatprep.subr.mxu0 %v2510
    %3954 = vmatpush1.msra.mxu0 %v2509
    %3955 = vmatprep.subr.mxu0 %v2514
    %3956 = vmatpush1.msra.mxu0 %v2513
    %3957 = vmatprep.subr.mxu0 %v2518
    %3958 = vmatpush1.msra.mxu0 %v2517
    %3959 = vmatprep.subr.mxu0 %v2522
    %3960 = vmatpush1.msra.mxu0 %v2521
    %3961 = vmatprep.subr.mxu0 %v2526
    %3962 = vmatpush1.msra.mxu0 %v2525
    %3963 = vmatprep.subr.mxu0 %v2530
    %3964 = vmatpush1.msra.mxu0 %v2529
    %3965 = vmatprep.subr.mxu0 %v2534
    %3966 = vmatpush1.msra.mxu0 %v2533
    %3967 = vmatprep.subr.mxu0 %v2538
    %3968 = vmatpush1.msra.mxu0 %v2537
    %3969 = vmatprep.subr.mxu0 %v2542
    %3970 = vmatpush1.msra.mxu0 %v2541
    %3971 = vmatprep.subr.mxu0 %v2546
    %3972 = vmatpush1.msra.mxu0 %v2545
    %3973 = vmatprep.subr.mxu0 %v2550
    %3974 = vmatpush1.msra.mxu0 %v2549
    %3975 = vmatprep.subr.mxu0 %v2554
    %3976 = vmatpush1.msra.mxu0 %v2553
    %3977 = vmatprep.subr.mxu0 %v2558
    %3978 = vmatpush1.msra.mxu0 %v2557
    %3979 = vmatprep.subr.mxu0 %v2562
    %3980 = vmatpush1.msra.mxu0 %v2561
    %3981 = vmatprep.subr.mxu0 0.0
    %3982 = vmatpush1.msra.mxu0 0.0
    %3983 = vmatprep.subr.mxu0 0.0
    %3984 = vmatpush1.msra.mxu0 0.0
    %3985 = vmatprep.subr.mxu0 0.0
    %3986 = vmatpush1.msra.mxu0 0.0
    %3987 = vmatprep.subr.mxu0 0.0
    %3988 = vmatpush1.msra.mxu0 0.0
    %3989 = vmatprep.subr.mxu0 0.0
    %3990 = vmatpush1.msra.mxu0 0.0
    %3991 = vmatprep.subr.mxu0 0.0
    %3992 = vmatpush1.msra.mxu0 0.0
    %3993 = vmatprep.subr.mxu0 0.0
    %3994 = vmatpush1.msra.mxu0 0.0
    %3995 = vmatprep.subr.mxu0 0.0
    %3996 = vmatpush1.msra.mxu0 0.0
    %3997 = vmatprep.subr.mxu0 0.0
    %3998 = vmatpush1.msra.mxu0 0.0
    %3999 = vmatprep.subr.mxu0 0.0
    %4000 = vmatpush1.msra.mxu0 0.0
    %4001 = vmatprep.subr.mxu0 0.0
    %4002 = vmatpush1.msra.mxu0 0.0
    %4003 = vmatprep.subr.mxu0 0.0
    %4004 = vmatpush1.msra.mxu0 0.0
    %4005 = vmatprep.subr.mxu0 0.0
    %4006 = vmatpush1.msra.mxu0 0.0
    %4007 = vmatprep.subr.mxu0 0.0
    %4008 = vmatpush1.msra.mxu0 0.0
    %4009 = vmatprep.subr.mxu0 0.0
    %4010 = vmatpush1.msra.mxu0 0.0
    %4011 = vmatprep.subr.mxu0 0.0
    %4012 = vmatpush1.msra.mxu0 0.0
    %4013 = vmatprep.mubr.f32.mxu0 0.0
    %4014 = vmatmul.mubr.f32.gmra.mrb[0].mxu0 %v3947
    %v4015 = vpop.f32.mrb[0].mxu0
    %v4016 = vadd.f32 0.0, %v4015
    %v4017 = vpop.f32.mrb[0].mxu0
    %v4018 = vadd.f32 0.0, %v4017
    %4019 = vdwg.mxu0
    %4020 = vmatprep.subr.mxu0 %v2504
    %4021 = vmatpush1.msra.mxu0 %v2503
    %4022 = vmatprep.subr.mxu0 %v2508
    %4023 = vmatpush1.msra.mxu0 %v2507
    %4024 = vmatprep.subr.mxu0 %v2512
    %4025 = vmatpush1.msra.mxu0 %v2511
    %4026 = vmatprep.subr.mxu0 %v2516
    %4027 = vmatpush1.msra.mxu0 %v2515
    %4028 = vmatprep.subr.mxu0 %v2520
    %4029 = vmatpush1.msra.mxu0 %v2519
    %4030 = vmatprep.subr.mxu0 %v2524
    %4031 = vmatpush1.msra.mxu0 %v2523
    %4032 = vmatprep.subr.mxu0 %v2528
    %4033 = vmatpush1.msra.mxu0 %v2527
    %4034 = vmatprep.subr.mxu0 %v2532
    %4035 = vmatpush1.msra.mxu0 %v2531
    %4036 = vmatprep.subr.mxu0 %v2536
    %4037 = vmatpush1.msra.mxu0 %v2535
    %4038 = vmatprep.subr.mxu0 %v2540
    %4039 = vmatpush1.msra.mxu0 %v2539
    %4040 = vmatprep.subr.mxu0 %v2544
    %4041 = vmatpush1.msra.mxu0 %v2543
    %4042 = vmatprep.subr.mxu0 %v2548
    %4043 = vmatpush1.msra.mxu0 %v2547
    %4044 = vmatprep.subr.mxu0 %v2552
    %4045 = vmatpush1.msra.mxu0 %v2551
    %4046 = vmatprep.subr.mxu0 %v2556
    %4047 = vmatpush1.msra.mxu0 %v2555
    %4048 = vmatprep.subr.mxu0 %v2560
    %4049 = vmatpush1.msra.mxu0 %v2559
    %4050 = vmatprep.subr.mxu0 %v2564
    %4051 = vmatpush1.msra.mxu0 %v2563
    %4052 = vmatprep.subr.mxu0 0.0
    %4053 = vmatpush1.msra.mxu0 0.0
    %4054 = vmatprep.subr.mxu0 0.0
    %4055 = vmatpush1.msra.mxu0 0.0
    %4056 = vmatprep.subr.mxu0 0.0
    %4057 = vmatpush1.msra.mxu0 0.0
    %4058 = vmatprep.subr.mxu0 0.0
    %4059 = vmatpush1.msra.mxu0 0.0
    %4060 = vmatprep.subr.mxu0 0.0
    %4061 = vmatpush1.msra.mxu0 0.0
    %4062 = vmatprep.subr.mxu0 0.0
    %4063 = vmatpush1.msra.mxu0 0.0
    %4064 = vmatprep.subr.mxu0 0.0
    %4065 = vmatpush1.msra.mxu0 0.0
    %4066 = vmatprep.subr.mxu0 0.0
    %4067 = vmatpush1.msra.mxu0 0.0
    %4068 = vmatprep.subr.mxu0 0.0
    %4069 = vmatpush1.msra.mxu0 0.0
    %4070 = vmatprep.subr.mxu0 0.0
    %4071 = vmatpush1.msra.mxu0 0.0
    %4072 = vmatprep.subr.mxu0 0.0
    %4073 = vmatpush1.msra.mxu0 0.0
    %4074 = vmatprep.subr.mxu0 0.0
    %4075 = vmatpush1.msra.mxu0 0.0
    %4076 = vmatprep.subr.mxu0 0.0
    %4077 = vmatpush1.msra.mxu0 0.0
    %4078 = vmatprep.subr.mxu0 0.0
    %4079 = vmatpush1.msra.mxu0 0.0
    %4080 = vmatprep.subr.mxu0 0.0
    %4081 = vmatpush1.msra.mxu0 0.0
    %4082 = vmatprep.subr.mxu0 0.0
    %4083 = vmatpush1.msra.mxu0 0.0
    %4084 = vmatprep.mubr.f32.mxu0 0.0
    %4085 = vmatmul.mubr.f32.gmra.mrb[0].mxu0 %v3947
    %v4086 = vpop.f32.mrb[0].mxu0
    %v4087 = vadd.f32 0.0, %v4086
    %v4088 = vpop.f32.mrb[0].mxu0
    %v4089 = vadd.f32 0.0, %v4088
    %4090 = vdwg.mxu0
    %v4095 = vrot.slane %v4016, 2
    %v4096 = vrot.slane %v4018, 2
    %v4097 = vrot.slane %v4087, 2
    %v4098 = vrot.slane %v4089, 2
    %v4099 = vrot.slane %v4016, 3
    %v4100 = vrot.slane %v4018, 3
    %v4101 = vrot.slane %v4087, 3
    %v4102 = vrot.slane %v4089, 3
    %v4111 = vadd.f32 %v2414, %v4095
    %v4112 = vadd.f32 %v2416, %v4096
    %v4113 = vadd.f32 %v2491, %v4097
    %v4114 = vadd.f32 %v2493, %v4098
    %v4115 = vadd.f32 %v2420, %v4099
    %v4116 = vadd.f32 %v2422, %v4100
    %v4117 = vadd.f32 %v2497, %v4101
    %v4118 = vadd.f32 %v2499, %v4102
    %v4119 = vxor.u32 %v4111, 2147483648
    %v4120 = vxor.u32 %v4112, 2147483648
    %v4121 = vxor.u32 %v4114, 2147483648
    %v4122 = vxor.u32 %v4115, 2147483648
    %v4123 = vxor.u32 %v4116, 2147483648
    %v4124 = vxor.u32 %v4118, 2147483648
    %v4125 = vmul.f32 %v4119, 1.442695
    %v4126 = vpow.pop %v4125
    %v4127 = vmul.f32 %v4120, 1.442695
    %v4128 = vpow.pop %v4127
    %v4129 = vmul.f32 %v4121, 1.442695
    %v4130 = vpow.pop %v4129
    %v4131 = vmul.f32 %v4122, 1.442695
    %v4132 = vpow.pop %v4131
    %v4133 = vmul.f32 %v4123, 1.442695
    %v4134 = vpow.pop %v4133
    %v4135 = vmul.f32 %v4124, 1.442695
    %v4136 = vpow.pop %v4135
    %v4137 = vadd.f32 %v4126, 1.0
    %v4138 = vadd.f32 %v4128, 1.0
    %v4139 = vadd.f32 %v4130, 1.0
    %v4140 = vadd.f32 %v4132, 1.0
    %v4141 = vadd.f32 %v4134, 1.0
    %v4142 = vadd.f32 %v4136, 1.0
    %v4143 = vrcp.pop %v4137
    %v4144 = vmul.f32 1.0, %v4143
    %v4145 = vrcp.pop %v4138
    %v4146 = vmul.f32 1.0, %v4145
    %v4147 = vrcp.pop %v4139
    %v4148 = vmul.f32 1.0, %v4147
    %v4149 = vrcp.pop %v4140
    %v4150 = vmul.f32 1.0, %v4149
    %v4151 = vrcp.pop %v4141
    %v4152 = vmul.f32 1.0, %v4151
    %v4153 = vrcp.pop %v4142
    %v4154 = vmul.f32 1.0, %v4153
    %v4155 = vtanh.pop %v4113
    %v4156 = vtanh.pop %v4117
    %v4159 = vrot.slane %v3935, 7
    %v4160 = vrot.slane %v3936, 7
    %v4163 = vmul.f32 %v4146, %v4159
    %v4164 = vmul.f32 %v4152, %v4160
    %v4165 = vmul.f32 %v4144, %v4155
    %v4166 = vmul.f32 %v4150, %v4156
    %v4167 = vadd.f32 %v4163, %v4165
    %v4168 = vadd.f32 %v4164, %v4166
    %v4169 = vtanh.pop %v4167
    %v4170 = vtanh.pop %v4168
    %v4171 = vmul.f32 %v4148, %v4169
    %v4172 = vmul.f32 %v4154, %v4170
    %4173 = vst [vmem:[#allocation2] sm:$0x40] %v4171
    %4174 = vst [vmem:[#allocation2 + $0x8] sm:$0x40] %v4172
    %v4177 = vrot.slane %v4171, 6
    %v4178 = vrot.slane %v4172, 5
    %v4179 = vsel %vm629, %v4178, %v4177
    %4181 = vmatprep.subr.mxu0 %v2502
    %4182 = vmatpush1.msra.mxu0 %v2501
    %4183 = vmatprep.subr.mxu0 %v2506
    %4184 = vmatpush1.msra.mxu0 %v2505
    %4185 = vmatprep.subr.mxu0 %v2510
    %4186 = vmatpush1.msra.mxu0 %v2509
    %4187 = vmatprep.subr.mxu0 %v2514
    %4188 = vmatpush1.msra.mxu0 %v2513
    %4189 = vmatprep.subr.mxu0 %v2518
    %4190 = vmatpush1.msra.mxu0 %v2517
    %4191 = vmatprep.subr.mxu0 %v2522
    %4192 = vmatpush1.msra.mxu0 %v2521
    %4193 = vmatprep.subr.mxu0 %v2526
    %4194 = vmatpush1.msra.mxu0 %v2525
    %4195 = vmatprep.subr.mxu0 %v2530
    %4196 = vmatpush1.msra.mxu0 %v2529
    %4197 = vmatprep.subr.mxu0 %v2534
    %4198 = vmatpush1.msra.mxu0 %v2533
    %4199 = vmatprep.subr.mxu0 %v2538
    %4200 = vmatpush1.msra.mxu0 %v2537
    %4201 = vmatprep.subr.mxu0 %v2542
    %4202 = vmatpush1.msra.mxu0 %v2541
    %4203 = vmatprep.subr.mxu0 %v2546
    %4204 = vmatpush1.msra.mxu0 %v2545
    %4205 = vmatprep.subr.mxu0 %v2550
    %4206 = vmatpush1.msra.mxu0 %v2549
    %4207 = vmatprep.subr.mxu0 %v2554
    %4208 = vmatpush1.msra.mxu0 %v2553
    %4209 = vmatprep.subr.mxu0 %v2558
    %4210 = vmatpush1.msra.mxu0 %v2557
    %4211 = vmatprep.subr.mxu0 %v2562
    %4212 = vmatpush1.msra.mxu0 %v2561
    %4213 = vmatprep.subr.mxu0 0.0
    %4214 = vmatpush1.msra.mxu0 0.0
    %4215 = vmatprep.subr.mxu0 0.0
    %4216 = vmatpush1.msra.mxu0 0.0
    %4217 = vmatprep.subr.mxu0 0.0
    %4218 = vmatpush1.msra.mxu0 0.0
    %4219 = vmatprep.subr.mxu0 0.0
    %4220 = vmatpush1.msra.mxu0 0.0
    %4221 = vmatprep.subr.mxu0 0.0
    %4222 = vmatpush1.msra.mxu0 0.0
    %4223 = vmatprep.subr.mxu0 0.0
    %4224 = vmatpush1.msra.mxu0 0.0
    %4225 = vmatprep.subr.mxu0 0.0
    %4226 = vmatpush1.msra.mxu0 0.0
    %4227 = vmatprep.subr.mxu0 0.0
    %4228 = vmatpush1.msra.mxu0 0.0
    %4229 = vmatprep.subr.mxu0 0.0
    %4230 = vmatpush1.msra.mxu0 0.0
    %4231 = vmatprep.subr.mxu0 0.0
    %4232 = vmatpush1.msra.mxu0 0.0
    %4233 = vmatprep.subr.mxu0 0.0
    %4234 = vmatpush1.msra.mxu0 0.0
    %4235 = vmatprep.subr.mxu0 0.0
    %4236 = vmatpush1.msra.mxu0 0.0
    %4237 = vmatprep.subr.mxu0 0.0
    %4238 = vmatpush1.msra.mxu0 0.0
    %4239 = vmatprep.subr.mxu0 0.0
    %4240 = vmatpush1.msra.mxu0 0.0
    %4241 = vmatprep.subr.mxu0 0.0
    %4242 = vmatpush1.msra.mxu0 0.0
    %4243 = vmatprep.subr.mxu0 0.0
    %4244 = vmatpush1.msra.mxu0 0.0
    %4245 = vmatprep.mubr.f32.mxu0 0.0
    %4246 = vmatmul.mubr.f32.gmra.mrb[0].mxu0 %v4179
    %v4247 = vpop.f32.mrb[0].mxu0
    %v4248 = vadd.f32 0.0, %v4247
    %v4249 = vpop.f32.mrb[0].mxu0
    %v4250 = vadd.f32 0.0, %v4249
    %4251 = vdwg.mxu0
    %4252 = vmatprep.subr.mxu0 %v2504
    %4253 = vmatpush1.msra.mxu0 %v2503
    %4254 = vmatprep.subr.mxu0 %v2508
    %4255 = vmatpush1.msra.mxu0 %v2507
    %4256 = vmatprep.subr.mxu0 %v2512
    %4257 = vmatpush1.msra.mxu0 %v2511
    %4258 = vmatprep.subr.mxu0 %v2516
    %4259 = vmatpush1.msra.mxu0 %v2515
    %4260 = vmatprep.subr.mxu0 %v2520
    %4261 = vmatpush1.msra.mxu0 %v2519
    %4262 = vmatprep.subr.mxu0 %v2524
    %4263 = vmatpush1.msra.mxu0 %v2523
    %4264 = vmatprep.subr.mxu0 %v2528
    %4265 = vmatpush1.msra.mxu0 %v2527
    %4266 = vmatprep.subr.mxu0 %v2532
    %4267 = vmatpush1.msra.mxu0 %v2531
    %4268 = vmatprep.subr.mxu0 %v2536
    %4269 = vmatpush1.msra.mxu0 %v2535
    %4270 = vmatprep.subr.mxu0 %v2540
    %4271 = vmatpush1.msra.mxu0 %v2539
    %4272 = vmatprep.subr.mxu0 %v2544
    %4273 = vmatpush1.msra.mxu0 %v2543
    %4274 = vmatprep.subr.mxu0 %v2548
    %4275 = vmatpush1.msra.mxu0 %v2547
    %4276 = vmatprep.subr.mxu0 %v2552
    %4277 = vmatpush1.msra.mxu0 %v2551
    %4278 = vmatprep.subr.mxu0 %v2556
    %4279 = vmatpush1.msra.mxu0 %v2555
    %4280 = vmatprep.subr.mxu0 %v2560
    %4281 = vmatpush1.msra.mxu0 %v2559
    %4282 = vmatprep.subr.mxu0 %v2564
    %4283 = vmatpush1.msra.mxu0 %v2563
    %4284 = vmatprep.subr.mxu0 0.0
    %4285 = vmatpush1.msra.mxu0 0.0
    %4286 = vmatprep.subr.mxu0 0.0
    %4287 = vmatpush1.msra.mxu0 0.0
    %4288 = vmatprep.subr.mxu0 0.0
    %4289 = vmatpush1.msra.mxu0 0.0
    %4290 = vmatprep.subr.mxu0 0.0
    %4291 = vmatpush1.msra.mxu0 0.0
    %4292 = vmatprep.subr.mxu0 0.0
    %4293 = vmatpush1.msra.mxu0 0.0
    %4294 = vmatprep.subr.mxu0 0.0
    %4295 = vmatpush1.msra.mxu0 0.0
    %4296 = vmatprep.subr.mxu0 0.0
    %4297 = vmatpush1.msra.mxu0 0.0
    %4298 = vmatprep.subr.mxu0 0.0
    %4299 = vmatpush1.msra.mxu0 0.0
    %4300 = vmatprep.subr.mxu0 0.0
    %4301 = vmatpush1.msra.mxu0 0.0
    %4302 = vmatprep.subr.mxu0 0.0
    %4303 = vmatpush1.msra.mxu0 0.0
    %4304 = vmatprep.subr.mxu0 0.0
    %4305 = vmatpush1.msra.mxu0 0.0
    %4306 = vmatprep.subr.mxu0 0.0
    %4307 = vmatpush1.msra.mxu0 0.0
    %4308 = vmatprep.subr.mxu0 0.0
    %4309 = vmatpush1.msra.mxu0 0.0
    %4310 = vmatprep.subr.mxu0 0.0
    %4311 = vmatpush1.msra.mxu0 0.0
    %4312 = vmatprep.subr.mxu0 0.0
    %4313 = vmatpush1.msra.mxu0 0.0
    %4314 = vmatprep.subr.mxu0 0.0
    %4315 = vmatpush1.msra.mxu0 0.0
    %4316 = vmatprep.mubr.f32.mxu0 0.0
    %4317 = vmatmul.mubr.f32.gmra.mrb[0].mxu0 %v4179
    %v4318 = vpop.f32.mrb[0].mxu0
    %v4319 = vadd.f32 0.0, %v4318
    %v4320 = vpop.f32.mrb[0].mxu0
    %v4321 = vadd.f32 0.0, %v4320
    %4322 = vdwg.mxu0
    %v4327 = vrot.slane %v4248, 1
    %v4328 = vrot.slane %v4250, 1
    %v4329 = vrot.slane %v4319, 1
    %v4330 = vrot.slane %v4321, 1
    %v4331 = vrot.slane %v4248, 2
    %v4332 = vrot.slane %v4250, 2
    %v4333 = vrot.slane %v4319, 2
    %v4334 = vrot.slane %v4321, 2
    %v4343 = vadd.f32 %v2414, %v4327
    %v4344 = vadd.f32 %v2416, %v4328
    %v4345 = vadd.f32 %v2491, %v4329
    %v4346 = vadd.f32 %v2493, %v4330
    %v4347 = vadd.f32 %v2420, %v4331
    %v4348 = vadd.f32 %v2422, %v4332
    %v4349 = vadd.f32 %v2497, %v4333
    %v4350 = vadd.f32 %v2499, %v4334
    %v4351 = vxor.u32 %v4343, 2147483648
    %v4352 = vxor.u32 %v4344, 2147483648
    %v4353 = vxor.u32 %v4346, 2147483648
    %v4354 = vxor.u32 %v4347, 2147483648
    %v4355 = vxor.u32 %v4348, 2147483648
    %v4356 = vxor.u32 %v4350, 2147483648
    %v4357 = vmul.f32 %v4351, 1.442695
    %v4358 = vpow.pop %v4357
    %v4359 = vmul.f32 %v4352, 1.442695
    %v4360 = vpow.pop %v4359
    %v4361 = vmul.f32 %v4353, 1.442695
    %v4362 = vpow.pop %v4361
    %v4363 = vmul.f32 %v4354, 1.442695
    %v4364 = vpow.pop %v4363
    %v4365 = vmul.f32 %v4355, 1.442695
    %v4366 = vpow.pop %v4365
    %v4367 = vmul.f32 %v4356, 1.442695
    %v4368 = vpow.pop %v4367
    %v4369 = vadd.f32 %v4358, 1.0
    %v4370 = vadd.f32 %v4360, 1.0
    %v4371 = vadd.f32 %v4362, 1.0
    %v4372 = vadd.f32 %v4364, 1.0
    %v4373 = vadd.f32 %v4366, 1.0
    %v4374 = vadd.f32 %v4368, 1.0
    %v4375 = vrcp.pop %v4369
    %v4376 = vmul.f32 1.0, %v4375
    %v4377 = vrcp.pop %v4370
    %v4378 = vmul.f32 1.0, %v4377
    %v4379 = vrcp.pop %v4371
    %v4380 = vmul.f32 1.0, %v4379
    %v4381 = vrcp.pop %v4372
    %v4382 = vmul.f32 1.0, %v4381
    %v4383 = vrcp.pop %v4373
    %v4384 = vmul.f32 1.0, %v4383
    %v4385 = vrcp.pop %v4374
    %v4386 = vmul.f32 1.0, %v4385
    %v4387 = vtanh.pop %v4345
    %v4388 = vtanh.pop %v4349
    %v4391 = vrot.slane %v4167, 7
    %v4392 = vrot.slane %v4168, 7
    %v4395 = vmul.f32 %v4378, %v4391
    %v4396 = vmul.f32 %v4384, %v4392
    %v4397 = vmul.f32 %v4376, %v4387
    %v4398 = vmul.f32 %v4382, %v4388
    %v4399 = vadd.f32 %v4395, %v4397
    %v4400 = vadd.f32 %v4396, %v4398
    %v4401 = vtanh.pop %v4399
    %v4402 = vtanh.pop %v4400
    %v4403 = vmul.f32 %v4380, %v4401
    %v4404 = vmul.f32 %v4386, %v4402
    %4405 = vst [vmem:[#allocation2] sm:$0x80] %v4403
    %4406 = vst [vmem:[#allocation2 + $0x8] sm:$0x80] %v4404
    %v4409 = vrot.slane %v4404, 7
    %s4412 = scalar_lea.vmem [#allocation16], 2
    %4413 = vst [vmem:[%s4412 - $0x7] sm:$0x80] %v4403
    %4414 = vst [vmem:[%s4412 + $0x1] sm:$0x1] %v4409
    %v4417 = vrot.slane %v4400, 7
    %s4420 = scalar_lea.vmem [#allocation18], 2
    %4421 = vst [vmem:[%s4420 - $0x7] sm:$0x80] %v4399
    %4422 = vst [vmem:[%s4420 + $0x1] sm:$0x1] %v4417
    %v4423 = vld [vmem:[#allocation2] sm:$0xff]
    %v4424 = vld [vmem:[#allocation2 + $0x8] sm:$0xff]
    %v4425 = vld [vmem:[#allocation11] sm:$0xff]
    %v4426 = vld [vmem:[#allocation11 + $0x8] sm:$0xff]
    %v4427 = vld [vmem:[#allocation11 + $0x10] sm:$0xff]
    %v4428 = vld [vmem:[#allocation11 + $0x18] sm:$0xff]
    %v4429 = vld [vmem:[#allocation11 + $0x20] sm:$0xff]
    %v4430 = vld [vmem:[#allocation11 + $0x28] sm:$0xff]
    %v4431 = vld [vmem:[#allocation11 + $0x30] sm:$0xff]
    %v4432 = vld [vmem:[#allocation11 + $0x38] sm:$0xff]
    %v4433 = vld [vmem:[#allocation11 + $0x40] sm:$0xff]
    %v4434 = vld [vmem:[#allocation11 + $0x48] sm:$0xff]
    %v4435 = vld [vmem:[#allocation11 + $0x50] sm:$0xff]
    %v4436 = vld [vmem:[#allocation11 + $0x58] sm:$0xff]
    %v4437 = vld [vmem:[#allocation11 + $0x60] sm:$0xff]
    %v4438 = vld [vmem:[#allocation11 + $0x68] sm:$0xff]
    %v4439 = vld [vmem:[#allocation11 + $0x70] sm:$0xff]
    %v4440 = vld [vmem:[#allocation11 + $0x78] sm:$0xff]
    %v4441 = vld [vmem:[#allocation11 + $0x80] sm:$0xff]
    %v4442 = vld [vmem:[#allocation11 + $0x88] sm:$0xff]
    %v4443 = vld [vmem:[#allocation11 + $0x90] sm:$0xff]
    %v4444 = vld [vmem:[#allocation11 + $0x98] sm:$0xff]
    %v4445 = vld [vmem:[#allocation11 + $0xa0] sm:$0xff]
    %v4446 = vld [vmem:[#allocation11 + $0xa8] sm:$0xff]
    %v4447 = vld [vmem:[#allocation11 + $0xb0] sm:$0xff]
    %v4448 = vld [vmem:[#allocation11 + $0xb8] sm:$0xff]
    %v4449 = vld [vmem:[#allocation11 + $0xc0] sm:$0xff]
    %v4450 = vld [vmem:[#allocation11 + $0xc8] sm:$0xff]
    %v4451 = vld [vmem:[#allocation11 + $0xd0] sm:$0xff]
    %v4452 = vld [vmem:[#allocation11 + $0xd8] sm:$0xff]
    %v4453 = vld [vmem:[#allocation11 + $0xe0] sm:$0xff]
    %v4454 = vld [vmem:[#allocation11 + $0xe8] sm:$0xff]
    %v4455 = vld [vmem:[#allocation11 + $0xf0] sm:$0xff]
    %v4456 = vld [vmem:[#allocation11 + $0xf8] sm:$0xff]
    %v4457 = vld [vmem:[#allocation11 + $0x100] sm:$0xff]
    %v4458 = vld [vmem:[#allocation11 + $0x108] sm:$0xff]
    %v4459 = vld [vmem:[#allocation11 + $0x110] sm:$0xff]
    %v4460 = vld [vmem:[#allocation11 + $0x118] sm:$0xff]
    %v4461 = vld [vmem:[#allocation11 + $0x120] sm:$0xff]
    %v4462 = vld [vmem:[#allocation11 + $0x128] sm:$0xff]
    %v4463 = vld [vmem:[#allocation11 + $0x130] sm:$0xff]
    %v4464 = vld [vmem:[#allocation11 + $0x138] sm:$0xff]
    %v4465 = vld [vmem:[#allocation11 + $0x140] sm:$0xff]
    %v4466 = vld [vmem:[#allocation11 + $0x148] sm:$0xff]
    %v4467 = vld [vmem:[#allocation11 + $0x150] sm:$0xff]
    %v4468 = vld [vmem:[#allocation11 + $0x158] sm:$0xff]
    %v4469 = vld [vmem:[#allocation11 + $0x160] sm:$0xff]
    %v4470 = vld [vmem:[#allocation11 + $0x168] sm:$0xff]
    %v4471 = vld [vmem:[#allocation11 + $0x170] sm:$0xff]
    %v4472 = vld [vmem:[#allocation11 + $0x178] sm:$0xff]
    %v4473 = vld [vmem:[#allocation11 + $0x180] sm:$0xff]
    %v4474 = vld [vmem:[#allocation11 + $0x188] sm:$0xff]
    %v4475 = vld [vmem:[#allocation11 + $0x190] sm:$0xff]
    %v4476 = vld [vmem:[#allocation11 + $0x198] sm:$0xff]
    %v4477 = vld [vmem:[#allocation11 + $0x1a0] sm:$0xff]
    %v4478 = vld [vmem:[#allocation11 + $0x1a8] sm:$0xff]
    %v4479 = vld [vmem:[#allocation11 + $0x1b0] sm:$0xff]
    %v4480 = vld [vmem:[#allocation11 + $0x1b8] sm:$0xff]
    %v4481 = vld [vmem:[#allocation11 + $0x1c0] sm:$0xff]
    %v4482 = vld [vmem:[#allocation11 + $0x1c8] sm:$0xff]
    %v4483 = vld [vmem:[#allocation11 + $0x1d0] sm:$0xff]
    %v4484 = vld [vmem:[#allocation11 + $0x1d8] sm:$0xff]
    %v4485 = vld [vmem:[#allocation11 + $0x1e0] sm:$0xff]
    %v4486 = vld [vmem:[#allocation11 + $0x1e8] sm:$0xff]
    %v4487 = vld [vmem:[#allocation11 + $0x1f0] sm:$0xff]
    %v4488 = vld [vmem:[#allocation11 + $0x1f8] sm:$0xff]
    %v4489 = vld [vmem:[%s11] sm:$0xf]
    %v4491 = vlaneseq
    %v4492 = vshrl.u32 %v4491, 7
    %v4493 = vsub.s32 0, %v4492
    %v4494 = vrot.slane %v4489, %v4493
    %v4495 = vlaneseq
    %v4496 = vshrl.u32 %v4495, 7
    %v4497 = vsub.s32 1, %v4496
    %v4498 = vrot.slane %v4489, %v4497
    %v4499 = vlaneseq
    %v4500 = vshrl.u32 %v4499, 7
    %v4501 = vsub.s32 2, %v4500
    %v4502 = vrot.slane %v4489, %v4501
    %v4503 = vlaneseq
    %v4504 = vshrl.u32 %v4503, 7
    %v4505 = vsub.s32 3, %v4504
    %v4506 = vrot.slane %v4489, %v4505
    %4511 = vmatprep.subr.mxu0 %v4426
    %4512 = vmatpush1.msra.mxu0 %v4425
    %4513 = vmatprep.subr.mxu0 %v4430
    %4514 = vmatpush1.msra.mxu0 %v4429
    %4515 = vmatprep.subr.mxu0 %v4434
    %4516 = vmatpush1.msra.mxu0 %v4433
    %4517 = vmatprep.subr.mxu0 %v4438
    %4518 = vmatpush1.msra.mxu0 %v4437
    %4519 = vmatprep.subr.mxu0 %v4442
    %4520 = vmatpush1.msra.mxu0 %v4441
    %4521 = vmatprep.subr.mxu0 %v4446
    %4522 = vmatpush1.msra.mxu0 %v4445
    %4523 = vmatprep.subr.mxu0 %v4450
    %4524 = vmatpush1.msra.mxu0 %v4449
    %4525 = vmatprep.subr.mxu0 %v4454
    %4526 = vmatpush1.msra.mxu0 %v4453
    %4527 = vmatprep.subr.mxu0 %v4458
    %4528 = vmatpush1.msra.mxu0 %v4457
    %4529 = vmatprep.subr.mxu0 %v4462
    %4530 = vmatpush1.msra.mxu0 %v4461
    %4531 = vmatprep.subr.mxu0 %v4466
    %4532 = vmatpush1.msra.mxu0 %v4465
    %4533 = vmatprep.subr.mxu0 %v4470
    %4534 = vmatpush1.msra.mxu0 %v4469
    %4535 = vmatprep.subr.mxu0 %v4474
    %4536 = vmatpush1.msra.mxu0 %v4473
    %4537 = vmatprep.subr.mxu0 %v4478
    %4538 = vmatpush1.msra.mxu0 %v4477
    %4539 = vmatprep.subr.mxu0 %v4482
    %4540 = vmatpush1.msra.mxu0 %v4481
    %4541 = vmatprep.subr.mxu0 %v4486
    %4542 = vmatpush1.msra.mxu0 %v4485
    %4543 = vmatprep.subr.mxu0 0.0
    %4544 = vmatpush1.msra.mxu0 0.0
    %4545 = vmatprep.subr.mxu0 0.0
    %4546 = vmatpush1.msra.mxu0 0.0
    %4547 = vmatprep.subr.mxu0 0.0
    %4548 = vmatpush1.msra.mxu0 0.0
    %4549 = vmatprep.subr.mxu0 0.0
    %4550 = vmatpush1.msra.mxu0 0.0
    %4551 = vmatprep.subr.mxu0 0.0
    %4552 = vmatpush1.msra.mxu0 0.0
    %4553 = vmatprep.subr.mxu0 0.0
    %4554 = vmatpush1.msra.mxu0 0.0
    %4555 = vmatprep.subr.mxu0 0.0
    %4556 = vmatpush1.msra.mxu0 0.0
    %4557 = vmatprep.subr.mxu0 0.0
    %4558 = vmatpush1.msra.mxu0 0.0
    %4559 = vmatprep.subr.mxu0 0.0
    %4560 = vmatpush1.msra.mxu0 0.0
    %4561 = vmatprep.subr.mxu0 0.0
    %4562 = vmatpush1.msra.mxu0 0.0
    %4563 = vmatprep.subr.mxu0 0.0
    %4564 = vmatpush1.msra.mxu0 0.0
    %4565 = vmatprep.subr.mxu0 0.0
    %4566 = vmatpush1.msra.mxu0 0.0
    %4567 = vmatprep.subr.mxu0 0.0
    %4568 = vmatpush1.msra.mxu0 0.0
    %4569 = vmatprep.subr.mxu0 0.0
    %4570 = vmatpush1.msra.mxu0 0.0
    %4571 = vmatprep.subr.mxu0 0.0
    %4572 = vmatpush1.msra.mxu0 0.0
    %4573 = vmatprep.subr.mxu0 0.0
    %4574 = vmatpush1.msra.mxu0 0.0
    %4575 = vmatprep.mubr.f32.mxu0 0.0
    %4576 = vmatmul.mubr.f32.gmra.mrb[0].mxu0 %v4423
    %v4577 = vpop.f32.mrb[0].mxu0
    %v4578 = vadd.f32 %v4494, %v4577
    %v4579 = vpop.f32.mrb[0].mxu0
    %v4580 = vadd.f32 %v4498, %v4579
    %4581 = vmatprep.mubr.f32.mxu0 0.0
    %4582 = vmatmul.mubr.f32.gmra.mrb[0].mxu0 %v4424
    %v4583 = vpop.f32.mrb[0].mxu0
    %v4584 = vadd.f32 %v4494, %v4583
    %v4585 = vpop.f32.mrb[0].mxu0
    %v4586 = vadd.f32 %v4498, %v4585
    %4587 = vdwg.mxu0
    %4588 = vmatprep.subr.mxu0 %v4428
    %4589 = vmatpush1.msra.mxu0 %v4427
    %4590 = vmatprep.subr.mxu0 %v4432
    %4591 = vmatpush1.msra.mxu0 %v4431
    %4592 = vmatprep.subr.mxu0 %v4436
    %4593 = vmatpush1.msra.mxu0 %v4435
    %4594 = vmatprep.subr.mxu0 %v4440
    %4595 = vmatpush1.msra.mxu0 %v4439
    %4596 = vmatprep.subr.mxu0 %v4444
    %4597 = vmatpush1.msra.mxu0 %v4443
    %4598 = vmatprep.subr.mxu0 %v4448
    %4599 = vmatpush1.msra.mxu0 %v4447
    %4600 = vmatprep.subr.mxu0 %v4452
    %4601 = vmatpush1.msra.mxu0 %v4451
    %4602 = vmatprep.subr.mxu0 %v4456
    %4603 = vmatpush1.msra.mxu0 %v4455
    %4604 = vmatprep.subr.mxu0 %v4460
    %4605 = vmatpush1.msra.mxu0 %v4459
    %4606 = vmatprep.subr.mxu0 %v4464
    %4607 = vmatpush1.msra.mxu0 %v4463
    %4608 = vmatprep.subr.mxu0 %v4468
    %4609 = vmatpush1.msra.mxu0 %v4467
    %4610 = vmatprep.subr.mxu0 %v4472
    %4611 = vmatpush1.msra.mxu0 %v4471
    %4612 = vmatprep.subr.mxu0 %v4476
    %4613 = vmatpush1.msra.mxu0 %v4475
    %4614 = vmatprep.subr.mxu0 %v4480
    %4615 = vmatpush1.msra.mxu0 %v4479
    %4616 = vmatprep.subr.mxu0 %v4484
    %4617 = vmatpush1.msra.mxu0 %v4483
    %4618 = vmatprep.subr.mxu0 %v4488
    %4619 = vmatpush1.msra.mxu0 %v4487
    %4620 = vmatprep.subr.mxu0 0.0
    %4621 = vmatpush1.msra.mxu0 0.0
    %4622 = vmatprep.subr.mxu0 0.0
    %4623 = vmatpush1.msra.mxu0 0.0
    %4624 = vmatprep.subr.mxu0 0.0
    %4625 = vmatpush1.msra.mxu0 0.0
    %4626 = vmatprep.subr.mxu0 0.0
    %4627 = vmatpush1.msra.mxu0 0.0
    %4628 = vmatprep.subr.mxu0 0.0
    %4629 = vmatpush1.msra.mxu0 0.0
    %4630 = vmatprep.subr.mxu0 0.0
    %4631 = vmatpush1.msra.mxu0 0.0
    %4632 = vmatprep.subr.mxu0 0.0
    %4633 = vmatpush1.msra.mxu0 0.0
    %4634 = vmatprep.subr.mxu0 0.0
    %4635 = vmatpush1.msra.mxu0 0.0
    %4636 = vmatprep.subr.mxu0 0.0
    %4637 = vmatpush1.msra.mxu0 0.0
    %4638 = vmatprep.subr.mxu0 0.0
    %4639 = vmatpush1.msra.mxu0 0.0
    %4640 = vmatprep.subr.mxu0 0.0
    %4641 = vmatpush1.msra.mxu0 0.0
    %4642 = vmatprep.subr.mxu0 0.0
    %4643 = vmatpush1.msra.mxu0 0.0
    %4644 = vmatprep.subr.mxu0 0.0
    %4645 = vmatpush1.msra.mxu0 0.0
    %4646 = vmatprep.subr.mxu0 0.0
    %4647 = vmatpush1.msra.mxu0 0.0
    %4648 = vmatprep.subr.mxu0 0.0
    %4649 = vmatpush1.msra.mxu0 0.0
    %4650 = vmatprep.subr.mxu0 0.0
    %4651 = vmatpush1.msra.mxu0 0.0
    %4652 = vmatprep.mubr.f32.mxu0 0.0
    %4653 = vmatmul.mubr.f32.gmra.mrb[0].mxu0 %v4423
    %v4654 = vpop.f32.mrb[0].mxu0
    %v4655 = vadd.f32 %v4502, %v4654
    %v4656 = vpop.f32.mrb[0].mxu0
    %v4657 = vadd.f32 %v4506, %v4656
    %4658 = vmatprep.mubr.f32.mxu0 0.0
    %4659 = vmatmul.mubr.f32.gmra.mrb[0].mxu0 %v4424
    %v4660 = vpop.f32.mrb[0].mxu0
    %v4661 = vadd.f32 %v4502, %v4660
    %v4662 = vpop.f32.mrb[0].mxu0
    %v4663 = vadd.f32 %v4506, %v4662
    %4664 = vdwg.mxu0
    %v4665 = vld [vmem:[#allocation12] sm:$0xff]
    %v4666 = vld [vmem:[#allocation12 + $0x8] sm:$0xff]
    %v4667 = vld [vmem:[#allocation12 + $0x10] sm:$0xff]
    %v4668 = vld [vmem:[#allocation12 + $0x18] sm:$0xff]
    %v4669 = vld [vmem:[#allocation12 + $0x20] sm:$0xff]
    %v4670 = vld [vmem:[#allocation12 + $0x28] sm:$0xff]
    %v4671 = vld [vmem:[#allocation12 + $0x30] sm:$0xff]
    %v4672 = vld [vmem:[#allocation12 + $0x38] sm:$0xff]
    %v4673 = vld [vmem:[#allocation12 + $0x40] sm:$0xff]
    %v4674 = vld [vmem:[#allocation12 + $0x48] sm:$0xff]
    %v4675 = vld [vmem:[#allocation12 + $0x50] sm:$0xff]
    %v4676 = vld [vmem:[#allocation12 + $0x58] sm:$0xff]
    %v4677 = vld [vmem:[#allocation12 + $0x60] sm:$0xff]
    %v4678 = vld [vmem:[#allocation12 + $0x68] sm:$0xff]
    %v4679 = vld [vmem:[#allocation12 + $0x70] sm:$0xff]
    %v4680 = vld [vmem:[#allocation12 + $0x78] sm:$0xff]
    %v4681 = vld [vmem:[#allocation12 + $0x80] sm:$0xff]
    %v4682 = vld [vmem:[#allocation12 + $0x88] sm:$0xff]
    %v4683 = vld [vmem:[#allocation12 + $0x90] sm:$0xff]
    %v4684 = vld [vmem:[#allocation12 + $0x98] sm:$0xff]
    %v4685 = vld [vmem:[#allocation12 + $0xa0] sm:$0xff]
    %v4686 = vld [vmem:[#allocation12 + $0xa8] sm:$0xff]
    %v4687 = vld [vmem:[#allocation12 + $0xb0] sm:$0xff]
    %v4688 = vld [vmem:[#allocation12 + $0xb8] sm:$0xff]
    %v4689 = vld [vmem:[#allocation12 + $0xc0] sm:$0xff]
    %v4690 = vld [vmem:[#allocation12 + $0xc8] sm:$0xff]
    %v4691 = vld [vmem:[#allocation12 + $0xd0] sm:$0xff]
    %v4692 = vld [vmem:[#allocation12 + $0xd8] sm:$0xff]
    %v4693 = vld [vmem:[#allocation12 + $0xe0] sm:$0xff]
    %v4694 = vld [vmem:[#allocation12 + $0xe8] sm:$0xff]
    %v4695 = vld [vmem:[#allocation12 + $0xf0] sm:$0xff]
    %v4696 = vld [vmem:[#allocation12 + $0xf8] sm:$0xff]
    %v4697 = vld [vmem:[#allocation12 + $0x100] sm:$0xff]
    %v4698 = vld [vmem:[#allocation12 + $0x108] sm:$0xff]
    %v4699 = vld [vmem:[#allocation12 + $0x110] sm:$0xff]
    %v4700 = vld [vmem:[#allocation12 + $0x118] sm:$0xff]
    %v4701 = vld [vmem:[#allocation12 + $0x120] sm:$0xff]
    %v4702 = vld [vmem:[#allocation12 + $0x128] sm:$0xff]
    %v4703 = vld [vmem:[#allocation12 + $0x130] sm:$0xff]
    %v4704 = vld [vmem:[#allocation12 + $0x138] sm:$0xff]
    %v4705 = vld [vmem:[#allocation12 + $0x140] sm:$0xff]
    %v4706 = vld [vmem:[#allocation12 + $0x148] sm:$0xff]
    %v4707 = vld [vmem:[#allocation12 + $0x150] sm:$0xff]
    %v4708 = vld [vmem:[#allocation12 + $0x158] sm:$0xff]
    %v4709 = vld [vmem:[#allocation12 + $0x160] sm:$0xff]
    %v4710 = vld [vmem:[#allocation12 + $0x168] sm:$0xff]
    %v4711 = vld [vmem:[#allocation12 + $0x170] sm:$0xff]
    %v4712 = vld [vmem:[#allocation12 + $0x178] sm:$0xff]
    %v4713 = vld [vmem:[#allocation12 + $0x180] sm:$0xff]
    %v4714 = vld [vmem:[#allocation12 + $0x188] sm:$0xff]
    %v4715 = vld [vmem:[#allocation12 + $0x190] sm:$0xff]
    %v4716 = vld [vmem:[#allocation12 + $0x198] sm:$0xff]
    %v4717 = vld [vmem:[#allocation12 + $0x1a0] sm:$0xff]
    %v4718 = vld [vmem:[#allocation12 + $0x1a8] sm:$0xff]
    %v4719 = vld [vmem:[#allocation12 + $0x1b0] sm:$0xff]
    %v4720 = vld [vmem:[#allocation12 + $0x1b8] sm:$0xff]
    %v4721 = vld [vmem:[#allocation12 + $0x1c0] sm:$0xff]
    %v4722 = vld [vmem:[#allocation12 + $0x1c8] sm:$0xff]
    %v4723 = vld [vmem:[#allocation12 + $0x1d0] sm:$0xff]
    %v4724 = vld [vmem:[#allocation12 + $0x1d8] sm:$0xff]
    %v4725 = vld [vmem:[#allocation12 + $0x1e0] sm:$0xff]
    %v4726 = vld [vmem:[#allocation12 + $0x1e8] sm:$0xff]
    %v4727 = vld [vmem:[#allocation12 + $0x1f0] sm:$0xff]
    %v4728 = vld [vmem:[#allocation12 + $0x1f8] sm:$0xff]
    %s4729 = scalar_lea.vmem %s1, 4
    %v4730 = vld [vmem:[%s4729] sm:$0x3]
    %s4731 = scalar_lea.vmem %s2, 4
    %v4732 = vld [vmem:[%s4731] sm:$0x3]
    %4733 = vmatprep.subr.mxu0 %v4666
    %4734 = vmatpush1.msra.mxu0 %v4665
    %4735 = vmatprep.subr.mxu0 %v4670
    %4736 = vmatpush1.msra.mxu0 %v4669
    %4737 = vmatprep.subr.mxu0 %v4674
    %4738 = vmatpush1.msra.mxu0 %v4673
    %4739 = vmatprep.subr.mxu0 %v4678
    %4740 = vmatpush1.msra.mxu0 %v4677
    %4741 = vmatprep.subr.mxu0 %v4682
    %4742 = vmatpush1.msra.mxu0 %v4681
    %4743 = vmatprep.subr.mxu0 %v4686
    %4744 = vmatpush1.msra.mxu0 %v4685
    %4745 = vmatprep.subr.mxu0 %v4690
    %4746 = vmatpush1.msra.mxu0 %v4689
    %4747 = vmatprep.subr.mxu0 %v4694
    %4748 = vmatpush1.msra.mxu0 %v4693
    %4749 = vmatprep.subr.mxu0 %v4698
    %4750 = vmatpush1.msra.mxu0 %v4697
    %4751 = vmatprep.subr.mxu0 %v4702
    %4752 = vmatpush1.msra.mxu0 %v4701
    %4753 = vmatprep.subr.mxu0 %v4706
    %4754 = vmatpush1.msra.mxu0 %v4705
    %4755 = vmatprep.subr.mxu0 %v4710
    %4756 = vmatpush1.msra.mxu0 %v4709
    %4757 = vmatprep.subr.mxu0 %v4714
    %4758 = vmatpush1.msra.mxu0 %v4713
    %4759 = vmatprep.subr.mxu0 %v4718
    %4760 = vmatpush1.msra.mxu0 %v4717
    %4761 = vmatprep.subr.mxu0 %v4722
    %4762 = vmatpush1.msra.mxu0 %v4721
    %4763 = vmatprep.subr.mxu0 %v4726
    %4764 = vmatpush1.msra.mxu0 %v4725
    %4765 = vmatprep.subr.mxu0 0.0
    %4766 = vmatpush1.msra.mxu0 0.0
    %4767 = vmatprep.subr.mxu0 0.0
    %4768 = vmatpush1.msra.mxu0 0.0
    %4769 = vmatprep.subr.mxu0 0.0
    %4770 = vmatpush1.msra.mxu0 0.0
    %4771 = vmatprep.subr.mxu0 0.0
    %4772 = vmatpush1.msra.mxu0 0.0
    %4773 = vmatprep.subr.mxu0 0.0
    %4774 = vmatpush1.msra.mxu0 0.0
    %4775 = vmatprep.subr.mxu0 0.0
    %4776 = vmatpush1.msra.mxu0 0.0
    %4777 = vmatprep.subr.mxu0 0.0
    %4778 = vmatpush1.msra.mxu0 0.0
    %4779 = vmatprep.subr.mxu0 0.0
    %4780 = vmatpush1.msra.mxu0 0.0
    %4781 = vmatprep.subr.mxu0 0.0
    %4782 = vmatpush1.msra.mxu0 0.0
    %4783 = vmatprep.subr.mxu0 0.0
    %4784 = vmatpush1.msra.mxu0 0.0
    %4785 = vmatprep.subr.mxu0 0.0
    %4786 = vmatpush1.msra.mxu0 0.0
    %4787 = vmatprep.subr.mxu0 0.0
    %4788 = vmatpush1.msra.mxu0 0.0
    %4789 = vmatprep.subr.mxu0 0.0
    %4790 = vmatpush1.msra.mxu0 0.0
    %4791 = vmatprep.subr.mxu0 0.0
    %4792 = vmatpush1.msra.mxu0 0.0
    %4793 = vmatprep.subr.mxu0 0.0
    %4794 = vmatpush1.msra.mxu0 0.0
    %4795 = vmatprep.subr.mxu0 0.0
    %4796 = vmatpush1.msra.mxu0 0.0
    %4797 = vmatprep.mubr.f32.mxu0 0.0
    %4798 = vmatmul.mubr.f32.gmra.mrb[0].mxu0 %v4730
    %v4799 = vpop.f32.mrb[0].mxu0
    %v4800 = vadd.f32 0.0, %v4799
    %v4801 = vpop.f32.mrb[0].mxu0
    %v4802 = vadd.f32 0.0, %v4801
    %4803 = vdwg.mxu0
    %4804 = vmatprep.subr.mxu0 %v4668
    %4805 = vmatpush1.msra.mxu0 %v4667
    %4806 = vmatprep.subr.mxu0 %v4672
    %4807 = vmatpush1.msra.mxu0 %v4671
    %4808 = vmatprep.subr.mxu0 %v4676
    %4809 = vmatpush1.msra.mxu0 %v4675
    %4810 = vmatprep.subr.mxu0 %v4680
    %4811 = vmatpush1.msra.mxu0 %v4679
    %4812 = vmatprep.subr.mxu0 %v4684
    %4813 = vmatpush1.msra.mxu0 %v4683
    %4814 = vmatprep.subr.mxu0 %v4688
    %4815 = vmatpush1.msra.mxu0 %v4687
    %4816 = vmatprep.subr.mxu0 %v4692
    %4817 = vmatpush1.msra.mxu0 %v4691
    %4818 = vmatprep.subr.mxu0 %v4696
    %4819 = vmatpush1.msra.mxu0 %v4695
    %4820 = vmatprep.subr.mxu0 %v4700
    %4821 = vmatpush1.msra.mxu0 %v4699
    %4822 = vmatprep.subr.mxu0 %v4704
    %4823 = vmatpush1.msra.mxu0 %v4703
    %4824 = vmatprep.subr.mxu0 %v4708
    %4825 = vmatpush1.msra.mxu0 %v4707
    %4826 = vmatprep.subr.mxu0 %v4712
    %4827 = vmatpush1.msra.mxu0 %v4711
    %4828 = vmatprep.subr.mxu0 %v4716
    %4829 = vmatpush1.msra.mxu0 %v4715
    %4830 = vmatprep.subr.mxu0 %v4720
    %4831 = vmatpush1.msra.mxu0 %v4719
    %4832 = vmatprep.subr.mxu0 %v4724
    %4833 = vmatpush1.msra.mxu0 %v4723
    %4834 = vmatprep.subr.mxu0 %v4728
    %4835 = vmatpush1.msra.mxu0 %v4727
    %4836 = vmatprep.subr.mxu0 0.0
    %4837 = vmatpush1.msra.mxu0 0.0
    %4838 = vmatprep.subr.mxu0 0.0
    %4839 = vmatpush1.msra.mxu0 0.0
    %4840 = vmatprep.subr.mxu0 0.0
    %4841 = vmatpush1.msra.mxu0 0.0
    %4842 = vmatprep.subr.mxu0 0.0
    %4843 = vmatpush1.msra.mxu0 0.0
    %4844 = vmatprep.subr.mxu0 0.0
    %4845 = vmatpush1.msra.mxu0 0.0
    %4846 = vmatprep.subr.mxu0 0.0
    %4847 = vmatpush1.msra.mxu0 0.0
    %4848 = vmatprep.subr.mxu0 0.0
    %4849 = vmatpush1.msra.mxu0 0.0
    %4850 = vmatprep.subr.mxu0 0.0
    %4851 = vmatpush1.msra.mxu0 0.0
    %4852 = vmatprep.subr.mxu0 0.0
    %4853 = vmatpush1.msra.mxu0 0.0
    %4854 = vmatprep.subr.mxu0 0.0
    %4855 = vmatpush1.msra.mxu0 0.0
    %4856 = vmatprep.subr.mxu0 0.0
    %4857 = vmatpush1.msra.mxu0 0.0
    %4858 = vmatprep.subr.mxu0 0.0
    %4859 = vmatpush1.msra.mxu0 0.0
    %4860 = vmatprep.subr.mxu0 0.0
    %4861 = vmatpush1.msra.mxu0 0.0
    %4862 = vmatprep.subr.mxu0 0.0
    %4863 = vmatpush1.msra.mxu0 0.0
    %4864 = vmatprep.subr.mxu0 0.0
    %4865 = vmatpush1.msra.mxu0 0.0
    %4866 = vmatprep.subr.mxu0 0.0
    %4867 = vmatpush1.msra.mxu0 0.0
    %4868 = vmatprep.mubr.f32.mxu0 0.0
    %4869 = vmatmul.mubr.f32.gmra.mrb[0].mxu0 %v4730
    %v4870 = vpop.f32.mrb[0].mxu0
    %v4871 = vadd.f32 0.0, %v4870
    %v4872 = vpop.f32.mrb[0].mxu0
    %v4873 = vadd.f32 0.0, %v4872
    %4874 = vdwg.mxu0
    %v4879 = vrot.slane %v4800, 1
    %v4880 = vrot.slane %v4802, 1
    %v4881 = vrot.slane %v4871, 1
    %v4882 = vrot.slane %v4873, 1
    %v4891 = vadd.f32 %v4578, %v4800
    %v4892 = vadd.f32 %v4580, %v4802
    %v4893 = vadd.f32 %v4655, %v4871
    %v4894 = vadd.f32 %v4657, %v4873
    %v4895 = vadd.f32 %v4584, %v4879
    %v4896 = vadd.f32 %v4586, %v4880
    %v4897 = vadd.f32 %v4661, %v4881
    %v4898 = vadd.f32 %v4663, %v4882
    %v4899 = vxor.u32 %v4891, 2147483648
    %v4900 = vxor.u32 %v4892, 2147483648
    %v4901 = vxor.u32 %v4894, 2147483648
    %v4902 = vxor.u32 %v4895, 2147483648
    %v4903 = vxor.u32 %v4896, 2147483648
    %v4904 = vxor.u32 %v4898, 2147483648
    %v4905 = vmul.f32 %v4899, 1.442695
    %v4906 = vpow.pop %v4905
    %v4907 = vmul.f32 %v4900, 1.442695
    %v4908 = vpow.pop %v4907
    %v4909 = vmul.f32 %v4901, 1.442695
    %v4910 = vpow.pop %v4909
    %v4911 = vmul.f32 %v4902, 1.442695
    %v4912 = vpow.pop %v4911
    %v4913 = vmul.f32 %v4903, 1.442695
    %v4914 = vpow.pop %v4913
    %v4915 = vmul.f32 %v4904, 1.442695
    %v4916 = vpow.pop %v4915
    %v4917 = vadd.f32 %v4906, 1.0
    %v4918 = vadd.f32 %v4908, 1.0
    %v4919 = vadd.f32 %v4910, 1.0
    %v4920 = vadd.f32 %v4912, 1.0
    %v4921 = vadd.f32 %v4914, 1.0
    %v4922 = vadd.f32 %v4916, 1.0
    %v4923 = vrcp.pop %v4917
    %v4924 = vmul.f32 1.0, %v4923
    %v4925 = vrcp.pop %v4918
    %v4926 = vmul.f32 1.0, %v4925
    %v4927 = vrcp.pop %v4919
    %v4928 = vmul.f32 1.0, %v4927
    %v4929 = vrcp.pop %v4920
    %v4930 = vmul.f32 1.0, %v4929
    %v4931 = vrcp.pop %v4921
    %v4932 = vmul.f32 1.0, %v4931
    %v4933 = vrcp.pop %v4922
    %v4934 = vmul.f32 1.0, %v4933
    %v4935 = vtanh.pop %v4893
    %v4936 = vtanh.pop %v4897
    %v4938 = vrot.slane %v4732, 1
    %v4941 = vmul.f32 %v4926, %v4732
    %v4942 = vmul.f32 %v4932, %v4938
    %v4943 = vmul.f32 %v4924, %v4935
    %v4944 = vmul.f32 %v4930, %v4936
    %v4945 = vadd.f32 %v4941, %v4943
    %v4946 = vadd.f32 %v4942, %v4944
    %v4947 = vtanh.pop %v4945
    %v4948 = vtanh.pop %v4946
    %v4949 = vmul.f32 %v4928, %v4947
    %v4950 = vmul.f32 %v4934, %v4948
    %4951 = vst [vmem:[#allocation2] sm:$0x1] %v4949
    %4952 = vst [vmem:[#allocation2 + $0x8] sm:$0x1] %v4950
    %v4955 = vrot.slane %v4950, 7
    %v4956 = vsel %vm629, %v4955, %v4949
    %4958 = vmatprep.subr.mxu0 %v4666
    %4959 = vmatpush1.msra.mxu0 %v4665
    %4960 = vmatprep.subr.mxu0 %v4670
    %4961 = vmatpush1.msra.mxu0 %v4669
    %4962 = vmatprep.subr.mxu0 %v4674
    %4963 = vmatpush1.msra.mxu0 %v4673
    %4964 = vmatprep.subr.mxu0 %v4678
    %4965 = vmatpush1.msra.mxu0 %v4677
    %4966 = vmatprep.subr.mxu0 %v4682
    %4967 = vmatpush1.msra.mxu0 %v4681
    %4968 = vmatprep.subr.mxu0 %v4686
    %4969 = vmatpush1.msra.mxu0 %v4685
    %4970 = vmatprep.subr.mxu0 %v4690
    %4971 = vmatpush1.msra.mxu0 %v4689
    %4972 = vmatprep.subr.mxu0 %v4694
    %4973 = vmatpush1.msra.mxu0 %v4693
    %4974 = vmatprep.subr.mxu0 %v4698
    %4975 = vmatpush1.msra.mxu0 %v4697
    %4976 = vmatprep.subr.mxu0 %v4702
    %4977 = vmatpush1.msra.mxu0 %v4701
    %4978 = vmatprep.subr.mxu0 %v4706
    %4979 = vmatpush1.msra.mxu0 %v4705
    %4980 = vmatprep.subr.mxu0 %v4710
    %4981 = vmatpush1.msra.mxu0 %v4709
    %4982 = vmatprep.subr.mxu0 %v4714
    %4983 = vmatpush1.msra.mxu0 %v4713
    %4984 = vmatprep.subr.mxu0 %v4718
    %4985 = vmatpush1.msra.mxu0 %v4717
    %4986 = vmatprep.subr.mxu0 %v4722
    %4987 = vmatpush1.msra.mxu0 %v4721
    %4988 = vmatprep.subr.mxu0 %v4726
    %4989 = vmatpush1.msra.mxu0 %v4725
    %4990 = vmatprep.subr.mxu0 0.0
    %4991 = vmatpush1.msra.mxu0 0.0
    %4992 = vmatprep.subr.mxu0 0.0
    %4993 = vmatpush1.msra.mxu0 0.0
    %4994 = vmatprep.subr.mxu0 0.0
    %4995 = vmatpush1.msra.mxu0 0.0
    %4996 = vmatprep.subr.mxu0 0.0
    %4997 = vmatpush1.msra.mxu0 0.0
    %4998 = vmatprep.subr.mxu0 0.0
    %4999 = vmatpush1.msra.mxu0 0.0
    %5000 = vmatprep.subr.mxu0 0.0
    %5001 = vmatpush1.msra.mxu0 0.0
    %5002 = vmatprep.subr.mxu0 0.0
    %5003 = vmatpush1.msra.mxu0 0.0
    %5004 = vmatprep.subr.mxu0 0.0
    %5005 = vmatpush1.msra.mxu0 0.0
    %5006 = vmatprep.subr.mxu0 0.0
    %5007 = vmatpush1.msra.mxu0 0.0
    %5008 = vmatprep.subr.mxu0 0.0
    %5009 = vmatpush1.msra.mxu0 0.0
    %5010 = vmatprep.subr.mxu0 0.0
    %5011 = vmatpush1.msra.mxu0 0.0
    %5012 = vmatprep.subr.mxu0 0.0
    %5013 = vmatpush1.msra.mxu0 0.0
    %5014 = vmatprep.subr.mxu0 0.0
    %5015 = vmatpush1.msra.mxu0 0.0
    %5016 = vmatprep.subr.mxu0 0.0
    %5017 = vmatpush1.msra.mxu0 0.0
    %5018 = vmatprep.subr.mxu0 0.0
    %5019 = vmatpush1.msra.mxu0 0.0
    %5020 = vmatprep.subr.mxu0 0.0
    %5021 = vmatpush1.msra.mxu0 0.0
    %5022 = vmatprep.mubr.f32.mxu0 0.0
    %5023 = vmatmul.mubr.f32.gmra.mrb[0].mxu0 %v4956
    %v5024 = vpop.f32.mrb[0].mxu0
    %v5025 = vadd.f32 0.0, %v5024
    %v5026 = vpop.f32.mrb[0].mxu0
    %v5027 = vadd.f32 0.0, %v5026
    %5028 = vdwg.mxu0
    %5029 = vmatprep.subr.mxu0 %v4668
    %5030 = vmatpush1.msra.mxu0 %v4667
    %5031 = vmatprep.subr.mxu0 %v4672
    %5032 = vmatpush1.msra.mxu0 %v4671
    %5033 = vmatprep.subr.mxu0 %v4676
    %5034 = vmatpush1.msra.mxu0 %v4675
    %5035 = vmatprep.subr.mxu0 %v4680
    %5036 = vmatpush1.msra.mxu0 %v4679
    %5037 = vmatprep.subr.mxu0 %v4684
    %5038 = vmatpush1.msra.mxu0 %v4683
    %5039 = vmatprep.subr.mxu0 %v4688
    %5040 = vmatpush1.msra.mxu0 %v4687
    %5041 = vmatprep.subr.mxu0 %v4692
    %5042 = vmatpush1.msra.mxu0 %v4691
    %5043 = vmatprep.subr.mxu0 %v4696
    %5044 = vmatpush1.msra.mxu0 %v4695
    %5045 = vmatprep.subr.mxu0 %v4700
    %5046 = vmatpush1.msra.mxu0 %v4699
    %5047 = vmatprep.subr.mxu0 %v4704
    %5048 = vmatpush1.msra.mxu0 %v4703
    %5049 = vmatprep.subr.mxu0 %v4708
    %5050 = vmatpush1.msra.mxu0 %v4707
    %5051 = vmatprep.subr.mxu0 %v4712
    %5052 = vmatpush1.msra.mxu0 %v4711
    %5053 = vmatprep.subr.mxu0 %v4716
    %5054 = vmatpush1.msra.mxu0 %v4715
    %5055 = vmatprep.subr.mxu0 %v4720
    %5056 = vmatpush1.msra.mxu0 %v4719
    %5057 = vmatprep.subr.mxu0 %v4724
    %5058 = vmatpush1.msra.mxu0 %v4723
    %5059 = vmatprep.subr.mxu0 %v4728
    %5060 = vmatpush1.msra.mxu0 %v4727
    %5061 = vmatprep.subr.mxu0 0.0
    %5062 = vmatpush1.msra.mxu0 0.0
    %5063 = vmatprep.subr.mxu0 0.0
    %5064 = vmatpush1.msra.mxu0 0.0
    %5065 = vmatprep.subr.mxu0 0.0
    %5066 = vmatpush1.msra.mxu0 0.0
    %5067 = vmatprep.subr.mxu0 0.0
    %5068 = vmatpush1.msra.mxu0 0.0
    %5069 = vmatprep.subr.mxu0 0.0
    %5070 = vmatpush1.msra.mxu0 0.0
    %5071 = vmatprep.subr.mxu0 0.0
    %5072 = vmatpush1.msra.mxu0 0.0
    %5073 = vmatprep.subr.mxu0 0.0
    %5074 = vmatpush1.msra.mxu0 0.0
    %5075 = vmatprep.subr.mxu0 0.0
    %5076 = vmatpush1.msra.mxu0 0.0
    %5077 = vmatprep.subr.mxu0 0.0
    %5078 = vmatpush1.msra.mxu0 0.0
    %5079 = vmatprep.subr.mxu0 0.0
    %5080 = vmatpush1.msra.mxu0 0.0
    %5081 = vmatprep.subr.mxu0 0.0
    %5082 = vmatpush1.msra.mxu0 0.0
    %5083 = vmatprep.subr.mxu0 0.0
    %5084 = vmatpush1.msra.mxu0 0.0
    %5085 = vmatprep.subr.mxu0 0.0
    %5086 = vmatpush1.msra.mxu0 0.0
    %5087 = vmatprep.subr.mxu0 0.0
    %5088 = vmatpush1.msra.mxu0 0.0
    %5089 = vmatprep.subr.mxu0 0.0
    %5090 = vmatpush1.msra.mxu0 0.0
    %5091 = vmatprep.subr.mxu0 0.0
    %5092 = vmatpush1.msra.mxu0 0.0
    %5093 = vmatprep.mubr.f32.mxu0 0.0
    %5094 = vmatmul.mubr.f32.gmra.mrb[0].mxu0 %v4956
    %v5095 = vpop.f32.mrb[0].mxu0
    %v5096 = vadd.f32 0.0, %v5095
    %v5097 = vpop.f32.mrb[0].mxu0
    %v5098 = vadd.f32 0.0, %v5097
    %5099 = vdwg.mxu0
    %v5104 = vrot.slane %v5025, 7
    %v5105 = vrot.slane %v5027, 7
    %v5106 = vrot.slane %v5096, 7
    %v5107 = vrot.slane %v5098, 7
    %v5116 = vadd.f32 %v4578, %v5104
    %v5117 = vadd.f32 %v4580, %v5105
    %v5118 = vadd.f32 %v4655, %v5106
    %v5119 = vadd.f32 %v4657, %v5107
    %v5120 = vadd.f32 %v4584, %v5025
    %v5121 = vadd.f32 %v4586, %v5027
    %v5122 = vadd.f32 %v4661, %v5096
    %v5123 = vadd.f32 %v4663, %v5098
    %v5124 = vxor.u32 %v5116, 2147483648
    %v5125 = vxor.u32 %v5117, 2147483648
    %v5126 = vxor.u32 %v5119, 2147483648
    %v5127 = vxor.u32 %v5120, 2147483648
    %v5128 = vxor.u32 %v5121, 2147483648
    %v5129 = vxor.u32 %v5123, 2147483648
    %v5130 = vmul.f32 %v5124, 1.442695
    %v5131 = vpow.pop %v5130
    %v5132 = vmul.f32 %v5125, 1.442695
    %v5133 = vpow.pop %v5132
    %v5134 = vmul.f32 %v5126, 1.442695
    %v5135 = vpow.pop %v5134
    %v5136 = vmul.f32 %v5127, 1.442695
    %v5137 = vpow.pop %v5136
    %v5138 = vmul.f32 %v5128, 1.442695
    %v5139 = vpow.pop %v5138
    %v5140 = vmul.f32 %v5129, 1.442695
    %v5141 = vpow.pop %v5140
    %v5142 = vadd.f32 %v5131, 1.0
    %v5143 = vadd.f32 %v5133, 1.0
    %v5144 = vadd.f32 %v5135, 1.0
    %v5145 = vadd.f32 %v5137, 1.0
    %v5146 = vadd.f32 %v5139, 1.0
    %v5147 = vadd.f32 %v5141, 1.0
    %v5148 = vrcp.pop %v5142
    %v5149 = vmul.f32 1.0, %v5148
    %v5150 = vrcp.pop %v5143
    %v5151 = vmul.f32 1.0, %v5150
    %v5152 = vrcp.pop %v5144
    %v5153 = vmul.f32 1.0, %v5152
    %v5154 = vrcp.pop %v5145
    %v5155 = vmul.f32 1.0, %v5154
    %v5156 = vrcp.pop %v5146
    %v5157 = vmul.f32 1.0, %v5156
    %v5158 = vrcp.pop %v5147
    %v5159 = vmul.f32 1.0, %v5158
    %v5160 = vtanh.pop %v5118
    %v5161 = vtanh.pop %v5122
    %v5164 = vrot.slane %v4945, 7
    %v5165 = vrot.slane %v4946, 7
    %v5168 = vmul.f32 %v5151, %v5164
    %v5169 = vmul.f32 %v5157, %v5165
    %v5170 = vmul.f32 %v5149, %v5160
    %v5171 = vmul.f32 %v5155, %v5161
    %v5172 = vadd.f32 %v5168, %v5170
    %v5173 = vadd.f32 %v5169, %v5171
    %v5174 = vtanh.pop %v5172
    %v5175 = vtanh.pop %v5173
    %v5176 = vmul.f32 %v5153, %v5174
    %v5177 = vmul.f32 %v5159, %v5175
    %5178 = vst [vmem:[#allocation2] sm:$0x2] %v5176
    %5179 = vst [vmem:[#allocation2 + $0x8] sm:$0x2] %v5177
    %v5182 = vrot.slane %v5176, 1
    %v5183 = vsel %vm629, %v5177, %v5182
    %5185 = vmatprep.subr.mxu0 %v4666
    %5186 = vmatpush1.msra.mxu0 %v4665
    %5187 = vmatprep.subr.mxu0 %v4670
    %5188 = vmatpush1.msra.mxu0 %v4669
    %5189 = vmatprep.subr.mxu0 %v4674
    %5190 = vmatpush1.msra.mxu0 %v4673
    %5191 = vmatprep.subr.mxu0 %v4678
    %5192 = vmatpush1.msra.mxu0 %v4677
    %5193 = vmatprep.subr.mxu0 %v4682
    %5194 = vmatpush1.msra.mxu0 %v4681
    %5195 = vmatprep.subr.mxu0 %v4686
    %5196 = vmatpush1.msra.mxu0 %v4685
    %5197 = vmatprep.subr.mxu0 %v4690
    %5198 = vmatpush1.msra.mxu0 %v4689
    %5199 = vmatprep.subr.mxu0 %v4694
    %5200 = vmatpush1.msra.mxu0 %v4693
    %5201 = vmatprep.subr.mxu0 %v4698
    %5202 = vmatpush1.msra.mxu0 %v4697
    %5203 = vmatprep.subr.mxu0 %v4702
    %5204 = vmatpush1.msra.mxu0 %v4701
    %5205 = vmatprep.subr.mxu0 %v4706
    %5206 = vmatpush1.msra.mxu0 %v4705
    %5207 = vmatprep.subr.mxu0 %v4710
    %5208 = vmatpush1.msra.mxu0 %v4709
    %5209 = vmatprep.subr.mxu0 %v4714
    %5210 = vmatpush1.msra.mxu0 %v4713
    %5211 = vmatprep.subr.mxu0 %v4718
    %5212 = vmatpush1.msra.mxu0 %v4717
    %5213 = vmatprep.subr.mxu0 %v4722
    %5214 = vmatpush1.msra.mxu0 %v4721
    %5215 = vmatprep.subr.mxu0 %v4726
    %5216 = vmatpush1.msra.mxu0 %v4725
    %5217 = vmatprep.subr.mxu0 0.0
    %5218 = vmatpush1.msra.mxu0 0.0
    %5219 = vmatprep.subr.mxu0 0.0
    %5220 = vmatpush1.msra.mxu0 0.0
    %5221 = vmatprep.subr.mxu0 0.0
    %5222 = vmatpush1.msra.mxu0 0.0
    %5223 = vmatprep.subr.mxu0 0.0
    %5224 = vmatpush1.msra.mxu0 0.0
    %5225 = vmatprep.subr.mxu0 0.0
    %5226 = vmatpush1.msra.mxu0 0.0
    %5227 = vmatprep.subr.mxu0 0.0
    %5228 = vmatpush1.msra.mxu0 0.0
    %5229 = vmatprep.subr.mxu0 0.0
    %5230 = vmatpush1.msra.mxu0 0.0
    %5231 = vmatprep.subr.mxu0 0.0
    %5232 = vmatpush1.msra.mxu0 0.0
    %5233 = vmatprep.subr.mxu0 0.0
    %5234 = vmatpush1.msra.mxu0 0.0
    %5235 = vmatprep.subr.mxu0 0.0
    %5236 = vmatpush1.msra.mxu0 0.0
    %5237 = vmatprep.subr.mxu0 0.0
    %5238 = vmatpush1.msra.mxu0 0.0
    %5239 = vmatprep.subr.mxu0 0.0
    %5240 = vmatpush1.msra.mxu0 0.0
    %5241 = vmatprep.subr.mxu0 0.0
    %5242 = vmatpush1.msra.mxu0 0.0
    %5243 = vmatprep.subr.mxu0 0.0
    %5244 = vmatpush1.msra.mxu0 0.0
    %5245 = vmatprep.subr.mxu0 0.0
    %5246 = vmatpush1.msra.mxu0 0.0
    %5247 = vmatprep.subr.mxu0 0.0
    %5248 = vmatpush1.msra.mxu0 0.0
    %5249 = vmatprep.mubr.f32.mxu0 0.0
    %5250 = vmatmul.mubr.f32.gmra.mrb[0].mxu0 %v5183
    %v5251 = vpop.f32.mrb[0].mxu0
    %v5252 = vadd.f32 0.0, %v5251
    %v5253 = vpop.f32.mrb[0].mxu0
    %v5254 = vadd.f32 0.0, %v5253
    %5255 = vdwg.mxu0
    %5256 = vmatprep.subr.mxu0 %v4668
    %5257 = vmatpush1.msra.mxu0 %v4667
    %5258 = vmatprep.subr.mxu0 %v4672
    %5259 = vmatpush1.msra.mxu0 %v4671
    %5260 = vmatprep.subr.mxu0 %v4676
    %5261 = vmatpush1.msra.mxu0 %v4675
    %5262 = vmatprep.subr.mxu0 %v4680
    %5263 = vmatpush1.msra.mxu0 %v4679
    %5264 = vmatprep.subr.mxu0 %v4684
    %5265 = vmatpush1.msra.mxu0 %v4683
    %5266 = vmatprep.subr.mxu0 %v4688
    %5267 = vmatpush1.msra.mxu0 %v4687
    %5268 = vmatprep.subr.mxu0 %v4692
    %5269 = vmatpush1.msra.mxu0 %v4691
    %5270 = vmatprep.subr.mxu0 %v4696
    %5271 = vmatpush1.msra.mxu0 %v4695
    %5272 = vmatprep.subr.mxu0 %v4700
    %5273 = vmatpush1.msra.mxu0 %v4699
    %5274 = vmatprep.subr.mxu0 %v4704
    %5275 = vmatpush1.msra.mxu0 %v4703
    %5276 = vmatprep.subr.mxu0 %v4708
    %5277 = vmatpush1.msra.mxu0 %v4707
    %5278 = vmatprep.subr.mxu0 %v4712
    %5279 = vmatpush1.msra.mxu0 %v4711
    %5280 = vmatprep.subr.mxu0 %v4716
    %5281 = vmatpush1.msra.mxu0 %v4715
    %5282 = vmatprep.subr.mxu0 %v4720
    %5283 = vmatpush1.msra.mxu0 %v4719
    %5284 = vmatprep.subr.mxu0 %v4724
    %5285 = vmatpush1.msra.mxu0 %v4723
    %5286 = vmatprep.subr.mxu0 %v4728
    %5287 = vmatpush1.msra.mxu0 %v4727
    %5288 = vmatprep.subr.mxu0 0.0
    %5289 = vmatpush1.msra.mxu0 0.0
    %5290 = vmatprep.subr.mxu0 0.0
    %5291 = vmatpush1.msra.mxu0 0.0
    %5292 = vmatprep.subr.mxu0 0.0
    %5293 = vmatpush1.msra.mxu0 0.0
    %5294 = vmatprep.subr.mxu0 0.0
    %5295 = vmatpush1.msra.mxu0 0.0
    %5296 = vmatprep.subr.mxu0 0.0
    %5297 = vmatpush1.msra.mxu0 0.0
    %5298 = vmatprep.subr.mxu0 0.0
    %5299 = vmatpush1.msra.mxu0 0.0
    %5300 = vmatprep.subr.mxu0 0.0
    %5301 = vmatpush1.msra.mxu0 0.0
    %5302 = vmatprep.subr.mxu0 0.0
    %5303 = vmatpush1.msra.mxu0 0.0
    %5304 = vmatprep.subr.mxu0 0.0
    %5305 = vmatpush1.msra.mxu0 0.0
    %5306 = vmatprep.subr.mxu0 0.0
    %5307 = vmatpush1.msra.mxu0 0.0
    %5308 = vmatprep.subr.mxu0 0.0
    %5309 = vmatpush1.msra.mxu0 0.0
    %5310 = vmatprep.subr.mxu0 0.0
    %5311 = vmatpush1.msra.mxu0 0.0
    %5312 = vmatprep.subr.mxu0 0.0
    %5313 = vmatpush1.msra.mxu0 0.0
    %5314 = vmatprep.subr.mxu0 0.0
    %5315 = vmatpush1.msra.mxu0 0.0
    %5316 = vmatprep.subr.mxu0 0.0
    %5317 = vmatpush1.msra.mxu0 0.0
    %5318 = vmatprep.subr.mxu0 0.0
    %5319 = vmatpush1.msra.mxu0 0.0
    %5320 = vmatprep.mubr.f32.mxu0 0.0
    %5321 = vmatmul.mubr.f32.gmra.mrb[0].mxu0 %v5183
    %v5322 = vpop.f32.mrb[0].mxu0
    %v5323 = vadd.f32 0.0, %v5322
    %v5324 = vpop.f32.mrb[0].mxu0
    %v5325 = vadd.f32 0.0, %v5324
    %5326 = vdwg.mxu0
    %v5331 = vrot.slane %v5252, 6
    %v5332 = vrot.slane %v5254, 6
    %v5333 = vrot.slane %v5323, 6
    %v5334 = vrot.slane %v5325, 6
    %v5335 = vrot.slane %v5252, 7
    %v5336 = vrot.slane %v5254, 7
    %v5337 = vrot.slane %v5323, 7
    %v5338 = vrot.slane %v5325, 7
    %v5347 = vadd.f32 %v4578, %v5331
    %v5348 = vadd.f32 %v4580, %v5332
    %v5349 = vadd.f32 %v4655, %v5333
    %v5350 = vadd.f32 %v4657, %v5334
    %v5351 = vadd.f32 %v4584, %v5335
    %v5352 = vadd.f32 %v4586, %v5336
    %v5353 = vadd.f32 %v4661, %v5337
    %v5354 = vadd.f32 %v4663, %v5338
    %v5355 = vxor.u32 %v5347, 2147483648
    %v5356 = vxor.u32 %v5348, 2147483648
    %v5357 = vxor.u32 %v5350, 2147483648
    %v5358 = vxor.u32 %v5351, 2147483648
    %v5359 = vxor.u32 %v5352, 2147483648
    %v5360 = vxor.u32 %v5354, 2147483648
    %v5361 = vmul.f32 %v5355, 1.442695
    %v5362 = vpow.pop %v5361
    %v5363 = vmul.f32 %v5356, 1.442695
    %v5364 = vpow.pop %v5363
    %v5365 = vmul.f32 %v5357, 1.442695
    %v5366 = vpow.pop %v5365
    %v5367 = vmul.f32 %v5358, 1.442695
    %v5368 = vpow.pop %v5367
    %v5369 = vmul.f32 %v5359, 1.442695
    %v5370 = vpow.pop %v5369
    %v5371 = vmul.f32 %v5360, 1.442695
    %v5372 = vpow.pop %v5371
    %v5373 = vadd.f32 %v5362, 1.0
    %v5374 = vadd.f32 %v5364, 1.0
    %v5375 = vadd.f32 %v5366, 1.0
    %v5376 = vadd.f32 %v5368, 1.0
    %v5377 = vadd.f32 %v5370, 1.0
    %v5378 = vadd.f32 %v5372, 1.0
    %v5379 = vrcp.pop %v5373
    %v5380 = vmul.f32 1.0, %v5379
    %v5381 = vrcp.pop %v5374
    %v5382 = vmul.f32 1.0, %v5381
    %v5383 = vrcp.pop %v5375
    %v5384 = vmul.f32 1.0, %v5383
    %v5385 = vrcp.pop %v5376
    %v5386 = vmul.f32 1.0, %v5385
    %v5387 = vrcp.pop %v5377
    %v5388 = vmul.f32 1.0, %v5387
    %v5389 = vrcp.pop %v5378
    %v5390 = vmul.f32 1.0, %v5389
    %v5391 = vtanh.pop %v5349
    %v5392 = vtanh.pop %v5353
    %v5395 = vrot.slane %v5172, 7
    %v5396 = vrot.slane %v5173, 7
    %v5399 = vmul.f32 %v5382, %v5395
    %v5400 = vmul.f32 %v5388, %v5396
    %v5401 = vmul.f32 %v5380, %v5391
    %v5402 = vmul.f32 %v5386, %v5392
    %v5403 = vadd.f32 %v5399, %v5401
    %v5404 = vadd.f32 %v5400, %v5402
    %v5405 = vtanh.pop %v5403
    %v5406 = vtanh.pop %v5404
    %v5407 = vmul.f32 %v5384, %v5405
    %v5408 = vmul.f32 %v5390, %v5406
    %5409 = vst [vmem:[#allocation2] sm:$0x4] %v5407
    %5410 = vst [vmem:[#allocation2 + $0x8] sm:$0x4] %v5408
    %v5413 = vrot.slane %v5407, 2
    %v5414 = vrot.slane %v5408, 1
    %v5415 = vsel %vm629, %v5414, %v5413
    %5417 = vmatprep.subr.mxu0 %v4666
    %5418 = vmatpush1.msra.mxu0 %v4665
    %5419 = vmatprep.subr.mxu0 %v4670
    %5420 = vmatpush1.msra.mxu0 %v4669
    %5421 = vmatprep.subr.mxu0 %v4674
    %5422 = vmatpush1.msra.mxu0 %v4673
    %5423 = vmatprep.subr.mxu0 %v4678
    %5424 = vmatpush1.msra.mxu0 %v4677
    %5425 = vmatprep.subr.mxu0 %v4682
    %5426 = vmatpush1.msra.mxu0 %v4681
    %5427 = vmatprep.subr.mxu0 %v4686
    %5428 = vmatpush1.msra.mxu0 %v4685
    %5429 = vmatprep.subr.mxu0 %v4690
    %5430 = vmatpush1.msra.mxu0 %v4689
    %5431 = vmatprep.subr.mxu0 %v4694
    %5432 = vmatpush1.msra.mxu0 %v4693
    %5433 = vmatprep.subr.mxu0 %v4698
    %5434 = vmatpush1.msra.mxu0 %v4697
    %5435 = vmatprep.subr.mxu0 %v4702
    %5436 = vmatpush1.msra.mxu0 %v4701
    %5437 = vmatprep.subr.mxu0 %v4706
    %5438 = vmatpush1.msra.mxu0 %v4705
    %5439 = vmatprep.subr.mxu0 %v4710
    %5440 = vmatpush1.msra.mxu0 %v4709
    %5441 = vmatprep.subr.mxu0 %v4714
    %5442 = vmatpush1.msra.mxu0 %v4713
    %5443 = vmatprep.subr.mxu0 %v4718
    %5444 = vmatpush1.msra.mxu0 %v4717
    %5445 = vmatprep.subr.mxu0 %v4722
    %5446 = vmatpush1.msra.mxu0 %v4721
    %5447 = vmatprep.subr.mxu0 %v4726
    %5448 = vmatpush1.msra.mxu0 %v4725
    %5449 = vmatprep.subr.mxu0 0.0
    %5450 = vmatpush1.msra.mxu0 0.0
    %5451 = vmatprep.subr.mxu0 0.0
    %5452 = vmatpush1.msra.mxu0 0.0
    %5453 = vmatprep.subr.mxu0 0.0
    %5454 = vmatpush1.msra.mxu0 0.0
    %5455 = vmatprep.subr.mxu0 0.0
    %5456 = vmatpush1.msra.mxu0 0.0
    %5457 = vmatprep.subr.mxu0 0.0
    %5458 = vmatpush1.msra.mxu0 0.0
    %5459 = vmatprep.subr.mxu0 0.0
    %5460 = vmatpush1.msra.mxu0 0.0
    %5461 = vmatprep.subr.mxu0 0.0
    %5462 = vmatpush1.msra.mxu0 0.0
    %5463 = vmatprep.subr.mxu0 0.0
    %5464 = vmatpush1.msra.mxu0 0.0
    %5465 = vmatprep.subr.mxu0 0.0
    %5466 = vmatpush1.msra.mxu0 0.0
    %5467 = vmatprep.subr.mxu0 0.0
    %5468 = vmatpush1.msra.mxu0 0.0
    %5469 = vmatprep.subr.mxu0 0.0
    %5470 = vmatpush1.msra.mxu0 0.0
    %5471 = vmatprep.subr.mxu0 0.0
    %5472 = vmatpush1.msra.mxu0 0.0
    %5473 = vmatprep.subr.mxu0 0.0
    %5474 = vmatpush1.msra.mxu0 0.0
    %5475 = vmatprep.subr.mxu0 0.0
    %5476 = vmatpush1.msra.mxu0 0.0
    %5477 = vmatprep.subr.mxu0 0.0
    %5478 = vmatpush1.msra.mxu0 0.0
    %5479 = vmatprep.subr.mxu0 0.0
    %5480 = vmatpush1.msra.mxu0 0.0
    %5481 = vmatprep.mubr.f32.mxu0 0.0
    %5482 = vmatmul.mubr.f32.gmra.mrb[0].mxu0 %v5415
    %v5483 = vpop.f32.mrb[0].mxu0
    %v5484 = vadd.f32 0.0, %v5483
    %v5485 = vpop.f32.mrb[0].mxu0
    %v5486 = vadd.f32 0.0, %v5485
    %5487 = vdwg.mxu0
    %5488 = vmatprep.subr.mxu0 %v4668
    %5489 = vmatpush1.msra.mxu0 %v4667
    %5490 = vmatprep.subr.mxu0 %v4672
    %5491 = vmatpush1.msra.mxu0 %v4671
    %5492 = vmatprep.subr.mxu0 %v4676
    %5493 = vmatpush1.msra.mxu0 %v4675
    %5494 = vmatprep.subr.mxu0 %v4680
    %5495 = vmatpush1.msra.mxu0 %v4679
    %5496 = vmatprep.subr.mxu0 %v4684
    %5497 = vmatpush1.msra.mxu0 %v4683
    %5498 = vmatprep.subr.mxu0 %v4688
    %5499 = vmatpush1.msra.mxu0 %v4687
    %5500 = vmatprep.subr.mxu0 %v4692
    %5501 = vmatpush1.msra.mxu0 %v4691
    %5502 = vmatprep.subr.mxu0 %v4696
    %5503 = vmatpush1.msra.mxu0 %v4695
    %5504 = vmatprep.subr.mxu0 %v4700
    %5505 = vmatpush1.msra.mxu0 %v4699
    %5506 = vmatprep.subr.mxu0 %v4704
    %5507 = vmatpush1.msra.mxu0 %v4703
    %5508 = vmatprep.subr.mxu0 %v4708
    %5509 = vmatpush1.msra.mxu0 %v4707
    %5510 = vmatprep.subr.mxu0 %v4712
    %5511 = vmatpush1.msra.mxu0 %v4711
    %5512 = vmatprep.subr.mxu0 %v4716
    %5513 = vmatpush1.msra.mxu0 %v4715
    %5514 = vmatprep.subr.mxu0 %v4720
    %5515 = vmatpush1.msra.mxu0 %v4719
    %5516 = vmatprep.subr.mxu0 %v4724
    %5517 = vmatpush1.msra.mxu0 %v4723
    %5518 = vmatprep.subr.mxu0 %v4728
    %5519 = vmatpush1.msra.mxu0 %v4727
    %5520 = vmatprep.subr.mxu0 0.0
    %5521 = vmatpush1.msra.mxu0 0.0
    %5522 = vmatprep.subr.mxu0 0.0
    %5523 = vmatpush1.msra.mxu0 0.0
    %5524 = vmatprep.subr.mxu0 0.0
    %5525 = vmatpush1.msra.mxu0 0.0
    %5526 = vmatprep.subr.mxu0 0.0
    %5527 = vmatpush1.msra.mxu0 0.0
    %5528 = vmatprep.subr.mxu0 0.0
    %5529 = vmatpush1.msra.mxu0 0.0
    %5530 = vmatprep.subr.mxu0 0.0
    %5531 = vmatpush1.msra.mxu0 0.0
    %5532 = vmatprep.subr.mxu0 0.0
    %5533 = vmatpush1.msra.mxu0 0.0
    %5534 = vmatprep.subr.mxu0 0.0
    %5535 = vmatpush1.msra.mxu0 0.0
    %5536 = vmatprep.subr.mxu0 0.0
    %5537 = vmatpush1.msra.mxu0 0.0
    %5538 = vmatprep.subr.mxu0 0.0
    %5539 = vmatpush1.msra.mxu0 0.0
    %5540 = vmatprep.subr.mxu0 0.0
    %5541 = vmatpush1.msra.mxu0 0.0
    %5542 = vmatprep.subr.mxu0 0.0
    %5543 = vmatpush1.msra.mxu0 0.0
    %5544 = vmatprep.subr.mxu0 0.0
    %5545 = vmatpush1.msra.mxu0 0.0
    %5546 = vmatprep.subr.mxu0 0.0
    %5547 = vmatpush1.msra.mxu0 0.0
    %5548 = vmatprep.subr.mxu0 0.0
    %5549 = vmatpush1.msra.mxu0 0.0
    %5550 = vmatprep.subr.mxu0 0.0
    %5551 = vmatpush1.msra.mxu0 0.0
    %5552 = vmatprep.mubr.f32.mxu0 0.0
    %5553 = vmatmul.mubr.f32.gmra.mrb[0].mxu0 %v5415
    %v5554 = vpop.f32.mrb[0].mxu0
    %v5555 = vadd.f32 0.0, %v5554
    %v5556 = vpop.f32.mrb[0].mxu0
    %v5557 = vadd.f32 0.0, %v5556
    %5558 = vdwg.mxu0
    %v5563 = vrot.slane %v5484, 5
    %v5564 = vrot.slane %v5486, 5
    %v5565 = vrot.slane %v5555, 5
    %v5566 = vrot.slane %v5557, 5
    %v5567 = vrot.slane %v5484, 6
    %v5568 = vrot.slane %v5486, 6
    %v5569 = vrot.slane %v5555, 6
    %v5570 = vrot.slane %v5557, 6
    %v5579 = vadd.f32 %v4578, %v5563
    %v5580 = vadd.f32 %v4580, %v5564
    %v5581 = vadd.f32 %v4655, %v5565
    %v5582 = vadd.f32 %v4657, %v5566
    %v5583 = vadd.f32 %v4584, %v5567
    %v5584 = vadd.f32 %v4586, %v5568
    %v5585 = vadd.f32 %v4661, %v5569
    %v5586 = vadd.f32 %v4663, %v5570
    %v5587 = vxor.u32 %v5579, 2147483648
    %v5588 = vxor.u32 %v5580, 2147483648
    %v5589 = vxor.u32 %v5582, 2147483648
    %v5590 = vxor.u32 %v5583, 2147483648
    %v5591 = vxor.u32 %v5584, 2147483648
    %v5592 = vxor.u32 %v5586, 2147483648
    %v5593 = vmul.f32 %v5587, 1.442695
    %v5594 = vpow.pop %v5593
    %v5595 = vmul.f32 %v5588, 1.442695
    %v5596 = vpow.pop %v5595
    %v5597 = vmul.f32 %v5589, 1.442695
    %v5598 = vpow.pop %v5597
    %v5599 = vmul.f32 %v5590, 1.442695
    %v5600 = vpow.pop %v5599
    %v5601 = vmul.f32 %v5591, 1.442695
    %v5602 = vpow.pop %v5601
    %v5603 = vmul.f32 %v5592, 1.442695
    %v5604 = vpow.pop %v5603
    %v5605 = vadd.f32 %v5594, 1.0
    %v5606 = vadd.f32 %v5596, 1.0
    %v5607 = vadd.f32 %v5598, 1.0
    %v5608 = vadd.f32 %v5600, 1.0
    %v5609 = vadd.f32 %v5602, 1.0
    %v5610 = vadd.f32 %v5604, 1.0
    %v5611 = vrcp.pop %v5605
    %v5612 = vmul.f32 1.0, %v5611
    %v5613 = vrcp.pop %v5606
    %v5614 = vmul.f32 1.0, %v5613
    %v5615 = vrcp.pop %v5607
    %v5616 = vmul.f32 1.0, %v5615
    %v5617 = vrcp.pop %v5608
    %v5618 = vmul.f32 1.0, %v5617
    %v5619 = vrcp.pop %v5609
    %v5620 = vmul.f32 1.0, %v5619
    %v5621 = vrcp.pop %v5610
    %v5622 = vmul.f32 1.0, %v5621
    %v5623 = vtanh.pop %v5581
    %v5624 = vtanh.pop %v5585
    %v5627 = vrot.slane %v5403, 7
    %v5628 = vrot.slane %v5404, 7
    %v5631 = vmul.f32 %v5614, %v5627
    %v5632 = vmul.f32 %v5620, %v5628
    %v5633 = vmul.f32 %v5612, %v5623
    %v5634 = vmul.f32 %v5618, %v5624
    %v5635 = vadd.f32 %v5631, %v5633
    %v5636 = vadd.f32 %v5632, %v5634
    %v5637 = vtanh.pop %v5635
    %v5638 = vtanh.pop %v5636
    %v5639 = vmul.f32 %v5616, %v5637
    %v5640 = vmul.f32 %v5622, %v5638
    %5641 = vst [vmem:[#allocation2] sm:$0x8] %v5639
    %5642 = vst [vmem:[#allocation2 + $0x8] sm:$0x8] %v5640
    %v5645 = vrot.slane %v5639, 3
    %v5646 = vrot.slane %v5640, 2
    %v5647 = vsel %vm629, %v5646, %v5645
    %5649 = vmatprep.subr.mxu0 %v4666
    %5650 = vmatpush1.msra.mxu0 %v4665
    %5651 = vmatprep.subr.mxu0 %v4670
    %5652 = vmatpush1.msra.mxu0 %v4669
    %5653 = vmatprep.subr.mxu0 %v4674
    %5654 = vmatpush1.msra.mxu0 %v4673
    %5655 = vmatprep.subr.mxu0 %v4678
    %5656 = vmatpush1.msra.mxu0 %v4677
    %5657 = vmatprep.subr.mxu0 %v4682
    %5658 = vmatpush1.msra.mxu0 %v4681
    %5659 = vmatprep.subr.mxu0 %v4686
    %5660 = vmatpush1.msra.mxu0 %v4685
    %5661 = vmatprep.subr.mxu0 %v4690
    %5662 = vmatpush1.msra.mxu0 %v4689
    %5663 = vmatprep.subr.mxu0 %v4694
    %5664 = vmatpush1.msra.mxu0 %v4693
    %5665 = vmatprep.subr.mxu0 %v4698
    %5666 = vmatpush1.msra.mxu0 %v4697
    %5667 = vmatprep.subr.mxu0 %v4702
    %5668 = vmatpush1.msra.mxu0 %v4701
    %5669 = vmatprep.subr.mxu0 %v4706
    %5670 = vmatpush1.msra.mxu0 %v4705
    %5671 = vmatprep.subr.mxu0 %v4710
    %5672 = vmatpush1.msra.mxu0 %v4709
    %5673 = vmatprep.subr.mxu0 %v4714
    %5674 = vmatpush1.msra.mxu0 %v4713
    %5675 = vmatprep.subr.mxu0 %v4718
    %5676 = vmatpush1.msra.mxu0 %v4717
    %5677 = vmatprep.subr.mxu0 %v4722
    %5678 = vmatpush1.msra.mxu0 %v4721
    %5679 = vmatprep.subr.mxu0 %v4726
    %5680 = vmatpush1.msra.mxu0 %v4725
    %5681 = vmatprep.subr.mxu0 0.0
    %5682 = vmatpush1.msra.mxu0 0.0
    %5683 = vmatprep.subr.mxu0 0.0
    %5684 = vmatpush1.msra.mxu0 0.0
    %5685 = vmatprep.subr.mxu0 0.0
    %5686 = vmatpush1.msra.mxu0 0.0
    %5687 = vmatprep.subr.mxu0 0.0
    %5688 = vmatpush1.msra.mxu0 0.0
    %5689 = vmatprep.subr.mxu0 0.0
    %5690 = vmatpush1.msra.mxu0 0.0
    %5691 = vmatprep.subr.mxu0 0.0
    %5692 = vmatpush1.msra.mxu0 0.0
    %5693 = vmatprep.subr.mxu0 0.0
    %5694 = vmatpush1.msra.mxu0 0.0
    %5695 = vmatprep.subr.mxu0 0.0
    %5696 = vmatpush1.msra.mxu0 0.0
    %5697 = vmatprep.subr.mxu0 0.0
    %5698 = vmatpush1.msra.mxu0 0.0
    %5699 = vmatprep.subr.mxu0 0.0
    %5700 = vmatpush1.msra.mxu0 0.0
    %5701 = vmatprep.subr.mxu0 0.0
    %5702 = vmatpush1.msra.mxu0 0.0
    %5703 = vmatprep.subr.mxu0 0.0
    %5704 = vmatpush1.msra.mxu0 0.0
    %5705 = vmatprep.subr.mxu0 0.0
    %5706 = vmatpush1.msra.mxu0 0.0
    %5707 = vmatprep.subr.mxu0 0.0
    %5708 = vmatpush1.msra.mxu0 0.0
    %5709 = vmatprep.subr.mxu0 0.0
    %5710 = vmatpush1.msra.mxu0 0.0
    %5711 = vmatprep.subr.mxu0 0.0
    %5712 = vmatpush1.msra.mxu0 0.0
    %5713 = vmatprep.mubr.f32.mxu0 0.0
    %5714 = vmatmul.mubr.f32.gmra.mrb[0].mxu0 %v5647
    %v5715 = vpop.f32.mrb[0].mxu0
    %v5716 = vadd.f32 0.0, %v5715
    %v5717 = vpop.f32.mrb[0].mxu0
    %v5718 = vadd.f32 0.0, %v5717
    %5719 = vdwg.mxu0
    %5720 = vmatprep.subr.mxu0 %v4668
    %5721 = vmatpush1.msra.mxu0 %v4667
    %5722 = vmatprep.subr.mxu0 %v4672
    %5723 = vmatpush1.msra.mxu0 %v4671
    %5724 = vmatprep.subr.mxu0 %v4676
    %5725 = vmatpush1.msra.mxu0 %v4675
    %5726 = vmatprep.subr.mxu0 %v4680
    %5727 = vmatpush1.msra.mxu0 %v4679
    %5728 = vmatprep.subr.mxu0 %v4684
    %5729 = vmatpush1.msra.mxu0 %v4683
    %5730 = vmatprep.subr.mxu0 %v4688
    %5731 = vmatpush1.msra.mxu0 %v4687
    %5732 = vmatprep.subr.mxu0 %v4692
    %5733 = vmatpush1.msra.mxu0 %v4691
    %5734 = vmatprep.subr.mxu0 %v4696
    %5735 = vmatpush1.msra.mxu0 %v4695
    %5736 = vmatprep.subr.mxu0 %v4700
    %5737 = vmatpush1.msra.mxu0 %v4699
    %5738 = vmatprep.subr.mxu0 %v4704
    %5739 = vmatpush1.msra.mxu0 %v4703
    %5740 = vmatprep.subr.mxu0 %v4708
    %5741 = vmatpush1.msra.mxu0 %v4707
    %5742 = vmatprep.subr.mxu0 %v4712
    %5743 = vmatpush1.msra.mxu0 %v4711
    %5744 = vmatprep.subr.mxu0 %v4716
    %5745 = vmatpush1.msra.mxu0 %v4715
    %5746 = vmatprep.subr.mxu0 %v4720
    %5747 = vmatpush1.msra.mxu0 %v4719
    %5748 = vmatprep.subr.mxu0 %v4724
    %5749 = vmatpush1.msra.mxu0 %v4723
    %5750 = vmatprep.subr.mxu0 %v4728
    %5751 = vmatpush1.msra.mxu0 %v4727
    %5752 = vmatprep.subr.mxu0 0.0
    %5753 = vmatpush1.msra.mxu0 0.0
    %5754 = vmatprep.subr.mxu0 0.0
    %5755 = vmatpush1.msra.mxu0 0.0
    %5756 = vmatprep.subr.mxu0 0.0
    %5757 = vmatpush1.msra.mxu0 0.0
    %5758 = vmatprep.subr.mxu0 0.0
    %5759 = vmatpush1.msra.mxu0 0.0
    %5760 = vmatprep.subr.mxu0 0.0
    %5761 = vmatpush1.msra.mxu0 0.0
    %5762 = vmatprep.subr.mxu0 0.0
    %5763 = vmatpush1.msra.mxu0 0.0
    %5764 = vmatprep.subr.mxu0 0.0
    %5765 = vmatpush1.msra.mxu0 0.0
    %5766 = vmatprep.subr.mxu0 0.0
    %5767 = vmatpush1.msra.mxu0 0.0
    %5768 = vmatprep.subr.mxu0 0.0
    %5769 = vmatpush1.msra.mxu0 0.0
    %5770 = vmatprep.subr.mxu0 0.0
    %5771 = vmatpush1.msra.mxu0 0.0
    %5772 = vmatprep.subr.mxu0 0.0
    %5773 = vmatpush1.msra.mxu0 0.0
    %5774 = vmatprep.subr.mxu0 0.0
    %5775 = vmatpush1.msra.mxu0 0.0
    %5776 = vmatprep.subr.mxu0 0.0
    %5777 = vmatpush1.msra.mxu0 0.0
    %5778 = vmatprep.subr.mxu0 0.0
    %5779 = vmatpush1.msra.mxu0 0.0
    %5780 = vmatprep.subr.mxu0 0.0
    %5781 = vmatpush1.msra.mxu0 0.0
    %5782 = vmatprep.subr.mxu0 0.0
    %5783 = vmatpush1.msra.mxu0 0.0
    %5784 = vmatprep.mubr.f32.mxu0 0.0
    %5785 = vmatmul.mubr.f32.gmra.mrb[0].mxu0 %v5647
    %v5786 = vpop.f32.mrb[0].mxu0
    %v5787 = vadd.f32 0.0, %v5786
    %v5788 = vpop.f32.mrb[0].mxu0
    %v5789 = vadd.f32 0.0, %v5788
    %5790 = vdwg.mxu0
    %v5795 = vrot.slane %v5716, 4
    %v5796 = vrot.slane %v5718, 4
    %v5797 = vrot.slane %v5787, 4
    %v5798 = vrot.slane %v5789, 4
    %v5799 = vrot.slane %v5716, 5
    %v5800 = vrot.slane %v5718, 5
    %v5801 = vrot.slane %v5787, 5
    %v5802 = vrot.slane %v5789, 5
    %v5811 = vadd.f32 %v4578, %v5795
    %v5812 = vadd.f32 %v4580, %v5796
    %v5813 = vadd.f32 %v4655, %v5797
    %v5814 = vadd.f32 %v4657, %v5798
    %v5815 = vadd.f32 %v4584, %v5799
    %v5816 = vadd.f32 %v4586, %v5800
    %v5817 = vadd.f32 %v4661, %v5801
    %v5818 = vadd.f32 %v4663, %v5802
    %v5819 = vxor.u32 %v5811, 2147483648
    %v5820 = vxor.u32 %v5812, 2147483648
    %v5821 = vxor.u32 %v5814, 2147483648
    %v5822 = vxor.u32 %v5815, 2147483648
    %v5823 = vxor.u32 %v5816, 2147483648
    %v5824 = vxor.u32 %v5818, 2147483648
    %v5825 = vmul.f32 %v5819, 1.442695
    %v5826 = vpow.pop %v5825
    %v5827 = vmul.f32 %v5820, 1.442695
    %v5828 = vpow.pop %v5827
    %v5829 = vmul.f32 %v5821, 1.442695
    %v5830 = vpow.pop %v5829
    %v5831 = vmul.f32 %v5822, 1.442695
    %v5832 = vpow.pop %v5831
    %v5833 = vmul.f32 %v5823, 1.442695
    %v5834 = vpow.pop %v5833
    %v5835 = vmul.f32 %v5824, 1.442695
    %v5836 = vpow.pop %v5835
    %v5837 = vadd.f32 %v5826, 1.0
    %v5838 = vadd.f32 %v5828, 1.0
    %v5839 = vadd.f32 %v5830, 1.0
    %v5840 = vadd.f32 %v5832, 1.0
    %v5841 = vadd.f32 %v5834, 1.0
    %v5842 = vadd.f32 %v5836, 1.0
    %v5843 = vrcp.pop %v5837
    %v5844 = vmul.f32 1.0, %v5843
    %v5845 = vrcp.pop %v5838
    %v5846 = vmul.f32 1.0, %v5845
    %v5847 = vrcp.pop %v5839
    %v5848 = vmul.f32 1.0, %v5847
    %v5849 = vrcp.pop %v5840
    %v5850 = vmul.f32 1.0, %v5849
    %v5851 = vrcp.pop %v5841
    %v5852 = vmul.f32 1.0, %v5851
    %v5853 = vrcp.pop %v5842
    %v5854 = vmul.f32 1.0, %v5853
    %v5855 = vtanh.pop %v5813
    %v5856 = vtanh.pop %v5817
    %v5859 = vrot.slane %v5635, 7
    %v5860 = vrot.slane %v5636, 7
    %v5863 = vmul.f32 %v5846, %v5859
    %v5864 = vmul.f32 %v5852, %v5860
    %v5865 = vmul.f32 %v5844, %v5855
    %v5866 = vmul.f32 %v5850, %v5856
    %v5867 = vadd.f32 %v5863, %v5865
    %v5868 = vadd.f32 %v5864, %v5866
    %v5869 = vtanh.pop %v5867
    %v5870 = vtanh.pop %v5868
    %v5871 = vmul.f32 %v5848, %v5869
    %v5872 = vmul.f32 %v5854, %v5870
    %5873 = vst [vmem:[#allocation2] sm:$0x10] %v5871
    %5874 = vst [vmem:[#allocation2 + $0x8] sm:$0x10] %v5872
    %v5877 = vrot.slane %v5871, 4
    %v5878 = vrot.slane %v5872, 3
    %v5879 = vsel %vm629, %v5878, %v5877
    %5881 = vmatprep.subr.mxu0 %v4666
    %5882 = vmatpush1.msra.mxu0 %v4665
    %5883 = vmatprep.subr.mxu0 %v4670
    %5884 = vmatpush1.msra.mxu0 %v4669
    %5885 = vmatprep.subr.mxu0 %v4674
    %5886 = vmatpush1.msra.mxu0 %v4673
    %5887 = vmatprep.subr.mxu0 %v4678
    %5888 = vmatpush1.msra.mxu0 %v4677
    %5889 = vmatprep.subr.mxu0 %v4682
    %5890 = vmatpush1.msra.mxu0 %v4681
    %5891 = vmatprep.subr.mxu0 %v4686
    %5892 = vmatpush1.msra.mxu0 %v4685
    %5893 = vmatprep.subr.mxu0 %v4690
    %5894 = vmatpush1.msra.mxu0 %v4689
    %5895 = vmatprep.subr.mxu0 %v4694
    %5896 = vmatpush1.msra.mxu0 %v4693
    %5897 = vmatprep.subr.mxu0 %v4698
    %5898 = vmatpush1.msra.mxu0 %v4697
    %5899 = vmatprep.subr.mxu0 %v4702
    %5900 = vmatpush1.msra.mxu0 %v4701
    %5901 = vmatprep.subr.mxu0 %v4706
    %5902 = vmatpush1.msra.mxu0 %v4705
    %5903 = vmatprep.subr.mxu0 %v4710
    %5904 = vmatpush1.msra.mxu0 %v4709
    %5905 = vmatprep.subr.mxu0 %v4714
    %5906 = vmatpush1.msra.mxu0 %v4713
    %5907 = vmatprep.subr.mxu0 %v4718
    %5908 = vmatpush1.msra.mxu0 %v4717
    %5909 = vmatprep.subr.mxu0 %v4722
    %5910 = vmatpush1.msra.mxu0 %v4721
    %5911 = vmatprep.subr.mxu0 %v4726
    %5912 = vmatpush1.msra.mxu0 %v4725
    %5913 = vmatprep.subr.mxu0 0.0
    %5914 = vmatpush1.msra.mxu0 0.0
    %5915 = vmatprep.subr.mxu0 0.0
    %5916 = vmatpush1.msra.mxu0 0.0
    %5917 = vmatprep.subr.mxu0 0.0
    %5918 = vmatpush1.msra.mxu0 0.0
    %5919 = vmatprep.subr.mxu0 0.0
    %5920 = vmatpush1.msra.mxu0 0.0
    %5921 = vmatprep.subr.mxu0 0.0
    %5922 = vmatpush1.msra.mxu0 0.0
    %5923 = vmatprep.subr.mxu0 0.0
    %5924 = vmatpush1.msra.mxu0 0.0
    %5925 = vmatprep.subr.mxu0 0.0
    %5926 = vmatpush1.msra.mxu0 0.0
    %5927 = vmatprep.subr.mxu0 0.0
    %5928 = vmatpush1.msra.mxu0 0.0
    %5929 = vmatprep.subr.mxu0 0.0
    %5930 = vmatpush1.msra.mxu0 0.0
    %5931 = vmatprep.subr.mxu0 0.0
    %5932 = vmatpush1.msra.mxu0 0.0
    %5933 = vmatprep.subr.mxu0 0.0
    %5934 = vmatpush1.msra.mxu0 0.0
    %5935 = vmatprep.subr.mxu0 0.0
    %5936 = vmatpush1.msra.mxu0 0.0
    %5937 = vmatprep.subr.mxu0 0.0
    %5938 = vmatpush1.msra.mxu0 0.0
    %5939 = vmatprep.subr.mxu0 0.0
    %5940 = vmatpush1.msra.mxu0 0.0
    %5941 = vmatprep.subr.mxu0 0.0
    %5942 = vmatpush1.msra.mxu0 0.0
    %5943 = vmatprep.subr.mxu0 0.0
    %5944 = vmatpush1.msra.mxu0 0.0
    %5945 = vmatprep.mubr.f32.mxu0 0.0
    %5946 = vmatmul.mubr.f32.gmra.mrb[0].mxu0 %v5879
    %v5947 = vpop.f32.mrb[0].mxu0
    %v5948 = vadd.f32 0.0, %v5947
    %v5949 = vpop.f32.mrb[0].mxu0
    %v5950 = vadd.f32 0.0, %v5949
    %5951 = vdwg.mxu0
    %5952 = vmatprep.subr.mxu0 %v4668
    %5953 = vmatpush1.msra.mxu0 %v4667
    %5954 = vmatprep.subr.mxu0 %v4672
    %5955 = vmatpush1.msra.mxu0 %v4671
    %5956 = vmatprep.subr.mxu0 %v4676
    %5957 = vmatpush1.msra.mxu0 %v4675
    %5958 = vmatprep.subr.mxu0 %v4680
    %5959 = vmatpush1.msra.mxu0 %v4679
    %5960 = vmatprep.subr.mxu0 %v4684
    %5961 = vmatpush1.msra.mxu0 %v4683
    %5962 = vmatprep.subr.mxu0 %v4688
    %5963 = vmatpush1.msra.mxu0 %v4687
    %5964 = vmatprep.subr.mxu0 %v4692
    %5965 = vmatpush1.msra.mxu0 %v4691
    %5966 = vmatprep.subr.mxu0 %v4696
    %5967 = vmatpush1.msra.mxu0 %v4695
    %5968 = vmatprep.subr.mxu0 %v4700
    %5969 = vmatpush1.msra.mxu0 %v4699
    %5970 = vmatprep.subr.mxu0 %v4704
    %5971 = vmatpush1.msra.mxu0 %v4703
    %5972 = vmatprep.subr.mxu0 %v4708
    %5973 = vmatpush1.msra.mxu0 %v4707
    %5974 = vmatprep.subr.mxu0 %v4712
    %5975 = vmatpush1.msra.mxu0 %v4711
    %5976 = vmatprep.subr.mxu0 %v4716
    %5977 = vmatpush1.msra.mxu0 %v4715
    %5978 = vmatprep.subr.mxu0 %v4720
    %5979 = vmatpush1.msra.mxu0 %v4719
    %5980 = vmatprep.subr.mxu0 %v4724
    %5981 = vmatpush1.msra.mxu0 %v4723
    %5982 = vmatprep.subr.mxu0 %v4728
    %5983 = vmatpush1.msra.mxu0 %v4727
    %5984 = vmatprep.subr.mxu0 0.0
    %5985 = vmatpush1.msra.mxu0 0.0
    %5986 = vmatprep.subr.mxu0 0.0
    %5987 = vmatpush1.msra.mxu0 0.0
    %5988 = vmatprep.subr.mxu0 0.0
    %5989 = vmatpush1.msra.mxu0 0.0
    %5990 = vmatprep.subr.mxu0 0.0
    %5991 = vmatpush1.msra.mxu0 0.0
    %5992 = vmatprep.subr.mxu0 0.0
    %5993 = vmatpush1.msra.mxu0 0.0
    %5994 = vmatprep.subr.mxu0 0.0
    %5995 = vmatpush1.msra.mxu0 0.0
    %5996 = vmatprep.subr.mxu0 0.0
    %5997 = vmatpush1.msra.mxu0 0.0
    %5998 = vmatprep.subr.mxu0 0.0
    %5999 = vmatpush1.msra.mxu0 0.0
    %6000 = vmatprep.subr.mxu0 0.0
    %6001 = vmatpush1.msra.mxu0 0.0
    %6002 = vmatprep.subr.mxu0 0.0
    %6003 = vmatpush1.msra.mxu0 0.0
    %6004 = vmatprep.subr.mxu0 0.0
    %6005 = vmatpush1.msra.mxu0 0.0
    %6006 = vmatprep.subr.mxu0 0.0
    %6007 = vmatpush1.msra.mxu0 0.0
    %6008 = vmatprep.subr.mxu0 0.0
    %6009 = vmatpush1.msra.mxu0 0.0
    %6010 = vmatprep.subr.mxu0 0.0
    %6011 = vmatpush1.msra.mxu0 0.0
    %6012 = vmatprep.subr.mxu0 0.0
    %6013 = vmatpush1.msra.mxu0 0.0
    %6014 = vmatprep.subr.mxu0 0.0
    %6015 = vmatpush1.msra.mxu0 0.0
    %6016 = vmatprep.mubr.f32.mxu0 0.0
    %6017 = vmatmul.mubr.f32.gmra.mrb[0].mxu0 %v5879
    %v6018 = vpop.f32.mrb[0].mxu0
    %v6019 = vadd.f32 0.0, %v6018
    %v6020 = vpop.f32.mrb[0].mxu0
    %v6021 = vadd.f32 0.0, %v6020
    %6022 = vdwg.mxu0
    %v6027 = vrot.slane %v5948, 3
    %v6028 = vrot.slane %v5950, 3
    %v6029 = vrot.slane %v6019, 3
    %v6030 = vrot.slane %v6021, 3
    %v6031 = vrot.slane %v5948, 4
    %v6032 = vrot.slane %v5950, 4
    %v6033 = vrot.slane %v6019, 4
    %v6034 = vrot.slane %v6021, 4
    %v6043 = vadd.f32 %v4578, %v6027
    %v6044 = vadd.f32 %v4580, %v6028
    %v6045 = vadd.f32 %v4655, %v6029
    %v6046 = vadd.f32 %v4657, %v6030
    %v6047 = vadd.f32 %v4584, %v6031
    %v6048 = vadd.f32 %v4586, %v6032
    %v6049 = vadd.f32 %v4661, %v6033
    %v6050 = vadd.f32 %v4663, %v6034
    %v6051 = vxor.u32 %v6043, 2147483648
    %v6052 = vxor.u32 %v6044, 2147483648
    %v6053 = vxor.u32 %v6046, 2147483648
    %v6054 = vxor.u32 %v6047, 2147483648
    %v6055 = vxor.u32 %v6048, 2147483648
    %v6056 = vxor.u32 %v6050, 2147483648
    %v6057 = vmul.f32 %v6051, 1.442695
    %v6058 = vpow.pop %v6057
    %v6059 = vmul.f32 %v6052, 1.442695
    %v6060 = vpow.pop %v6059
    %v6061 = vmul.f32 %v6053, 1.442695
    %v6062 = vpow.pop %v6061
    %v6063 = vmul.f32 %v6054, 1.442695
    %v6064 = vpow.pop %v6063
    %v6065 = vmul.f32 %v6055, 1.442695
    %v6066 = vpow.pop %v6065
    %v6067 = vmul.f32 %v6056, 1.442695
    %v6068 = vpow.pop %v6067
    %v6069 = vadd.f32 %v6058, 1.0
    %v6070 = vadd.f32 %v6060, 1.0
    %v6071 = vadd.f32 %v6062, 1.0
    %v6072 = vadd.f32 %v6064, 1.0
    %v6073 = vadd.f32 %v6066, 1.0
    %v6074 = vadd.f32 %v6068, 1.0
    %v6075 = vrcp.pop %v6069
    %v6076 = vmul.f32 1.0, %v6075
    %v6077 = vrcp.pop %v6070
    %v6078 = vmul.f32 1.0, %v6077
    %v6079 = vrcp.pop %v6071
    %v6080 = vmul.f32 1.0, %v6079
    %v6081 = vrcp.pop %v6072
    %v6082 = vmul.f32 1.0, %v6081
    %v6083 = vrcp.pop %v6073
    %v6084 = vmul.f32 1.0, %v6083
    %v6085 = vrcp.pop %v6074
    %v6086 = vmul.f32 1.0, %v6085
    %v6087 = vtanh.pop %v6045
    %v6088 = vtanh.pop %v6049
    %v6091 = vrot.slane %v5867, 7
    %v6092 = vrot.slane %v5868, 7
    %v6095 = vmul.f32 %v6078, %v6091
    %v6096 = vmul.f32 %v6084, %v6092
    %v6097 = vmul.f32 %v6076, %v6087
    %v6098 = vmul.f32 %v6082, %v6088
    %v6099 = vadd.f32 %v6095, %v6097
    %v6100 = vadd.f32 %v6096, %v6098
    %v6101 = vtanh.pop %v6099
    %v6102 = vtanh.pop %v6100
    %v6103 = vmul.f32 %v6080, %v6101
    %v6104 = vmul.f32 %v6086, %v6102
    %6105 = vst [vmem:[#allocation2] sm:$0x20] %v6103
    %6106 = vst [vmem:[#allocation2 + $0x8] sm:$0x20] %v6104
    %v6109 = vrot.slane %v6103, 5
    %v6110 = vrot.slane %v6104, 4
    %v6111 = vsel %vm629, %v6110, %v6109
    %6113 = vmatprep.subr.mxu0 %v4666
    %6114 = vmatpush1.msra.mxu0 %v4665
    %6115 = vmatprep.subr.mxu0 %v4670
    %6116 = vmatpush1.msra.mxu0 %v4669
    %6117 = vmatprep.subr.mxu0 %v4674
    %6118 = vmatpush1.msra.mxu0 %v4673
    %6119 = vmatprep.subr.mxu0 %v4678
    %6120 = vmatpush1.msra.mxu0 %v4677
    %6121 = vmatprep.subr.mxu0 %v4682
    %6122 = vmatpush1.msra.mxu0 %v4681
    %6123 = vmatprep.subr.mxu0 %v4686
    %6124 = vmatpush1.msra.mxu0 %v4685
    %6125 = vmatprep.subr.mxu0 %v4690
    %6126 = vmatpush1.msra.mxu0 %v4689
    %6127 = vmatprep.subr.mxu0 %v4694
    %6128 = vmatpush1.msra.mxu0 %v4693
    %6129 = vmatprep.subr.mxu0 %v4698
    %6130 = vmatpush1.msra.mxu0 %v4697
    %6131 = vmatprep.subr.mxu0 %v4702
    %6132 = vmatpush1.msra.mxu0 %v4701
    %6133 = vmatprep.subr.mxu0 %v4706
    %6134 = vmatpush1.msra.mxu0 %v4705
    %6135 = vmatprep.subr.mxu0 %v4710
    %6136 = vmatpush1.msra.mxu0 %v4709
    %6137 = vmatprep.subr.mxu0 %v4714
    %6138 = vmatpush1.msra.mxu0 %v4713
    %6139 = vmatprep.subr.mxu0 %v4718
    %6140 = vmatpush1.msra.mxu0 %v4717
    %6141 = vmatprep.subr.mxu0 %v4722
    %6142 = vmatpush1.msra.mxu0 %v4721
    %6143 = vmatprep.subr.mxu0 %v4726
    %6144 = vmatpush1.msra.mxu0 %v4725
    %6145 = vmatprep.subr.mxu0 0.0
    %6146 = vmatpush1.msra.mxu0 0.0
    %6147 = vmatprep.subr.mxu0 0.0
    %6148 = vmatpush1.msra.mxu0 0.0
    %6149 = vmatprep.subr.mxu0 0.0
    %6150 = vmatpush1.msra.mxu0 0.0
    %6151 = vmatprep.subr.mxu0 0.0
    %6152 = vmatpush1.msra.mxu0 0.0
    %6153 = vmatprep.subr.mxu0 0.0
    %6154 = vmatpush1.msra.mxu0 0.0
    %6155 = vmatprep.subr.mxu0 0.0
    %6156 = vmatpush1.msra.mxu0 0.0
    %6157 = vmatprep.subr.mxu0 0.0
    %6158 = vmatpush1.msra.mxu0 0.0
    %6159 = vmatprep.subr.mxu0 0.0
    %6160 = vmatpush1.msra.mxu0 0.0
    %6161 = vmatprep.subr.mxu0 0.0
    %6162 = vmatpush1.msra.mxu0 0.0
    %6163 = vmatprep.subr.mxu0 0.0
    %6164 = vmatpush1.msra.mxu0 0.0
    %6165 = vmatprep.subr.mxu0 0.0
    %6166 = vmatpush1.msra.mxu0 0.0
    %6167 = vmatprep.subr.mxu0 0.0
    %6168 = vmatpush1.msra.mxu0 0.0
    %6169 = vmatprep.subr.mxu0 0.0
    %6170 = vmatpush1.msra.mxu0 0.0
    %6171 = vmatprep.subr.mxu0 0.0
    %6172 = vmatpush1.msra.mxu0 0.0
    %6173 = vmatprep.subr.mxu0 0.0
    %6174 = vmatpush1.msra.mxu0 0.0
    %6175 = vmatprep.subr.mxu0 0.0
    %6176 = vmatpush1.msra.mxu0 0.0
    %6177 = vmatprep.mubr.f32.mxu0 0.0
    %6178 = vmatmul.mubr.f32.gmra.mrb[0].mxu0 %v6111
    %v6179 = vpop.f32.mrb[0].mxu0
    %v6180 = vadd.f32 0.0, %v6179
    %v6181 = vpop.f32.mrb[0].mxu0
    %v6182 = vadd.f32 0.0, %v6181
    %6183 = vdwg.mxu0
    %6184 = vmatprep.subr.mxu0 %v4668
    %6185 = vmatpush1.msra.mxu0 %v4667
    %6186 = vmatprep.subr.mxu0 %v4672
    %6187 = vmatpush1.msra.mxu0 %v4671
    %6188 = vmatprep.subr.mxu0 %v4676
    %6189 = vmatpush1.msra.mxu0 %v4675
    %6190 = vmatprep.subr.mxu0 %v4680
    %6191 = vmatpush1.msra.mxu0 %v4679
    %6192 = vmatprep.subr.mxu0 %v4684
    %6193 = vmatpush1.msra.mxu0 %v4683
    %6194 = vmatprep.subr.mxu0 %v4688
    %6195 = vmatpush1.msra.mxu0 %v4687
    %6196 = vmatprep.subr.mxu0 %v4692
    %6197 = vmatpush1.msra.mxu0 %v4691
    %6198 = vmatprep.subr.mxu0 %v4696
    %6199 = vmatpush1.msra.mxu0 %v4695
    %6200 = vmatprep.subr.mxu0 %v4700
    %6201 = vmatpush1.msra.mxu0 %v4699
    %6202 = vmatprep.subr.mxu0 %v4704
    %6203 = vmatpush1.msra.mxu0 %v4703
    %6204 = vmatprep.subr.mxu0 %v4708
    %6205 = vmatpush1.msra.mxu0 %v4707
    %6206 = vmatprep.subr.mxu0 %v4712
    %6207 = vmatpush1.msra.mxu0 %v4711
    %6208 = vmatprep.subr.mxu0 %v4716
    %6209 = vmatpush1.msra.mxu0 %v4715
    %6210 = vmatprep.subr.mxu0 %v4720
    %6211 = vmatpush1.msra.mxu0 %v4719
    %6212 = vmatprep.subr.mxu0 %v4724
    %6213 = vmatpush1.msra.mxu0 %v4723
    %6214 = vmatprep.subr.mxu0 %v4728
    %6215 = vmatpush1.msra.mxu0 %v4727
    %6216 = vmatprep.subr.mxu0 0.0
    %6217 = vmatpush1.msra.mxu0 0.0
    %6218 = vmatprep.subr.mxu0 0.0
    %6219 = vmatpush1.msra.mxu0 0.0
    %6220 = vmatprep.subr.mxu0 0.0
    %6221 = vmatpush1.msra.mxu0 0.0
    %6222 = vmatprep.subr.mxu0 0.0
    %6223 = vmatpush1.msra.mxu0 0.0
    %6224 = vmatprep.subr.mxu0 0.0
    %6225 = vmatpush1.msra.mxu0 0.0
    %6226 = vmatprep.subr.mxu0 0.0
    %6227 = vmatpush1.msra.mxu0 0.0
    %6228 = vmatprep.subr.mxu0 0.0
    %6229 = vmatpush1.msra.mxu0 0.0
    %6230 = vmatprep.subr.mxu0 0.0
    %6231 = vmatpush1.msra.mxu0 0.0
    %6232 = vmatprep.subr.mxu0 0.0
    %6233 = vmatpush1.msra.mxu0 0.0
    %6234 = vmatprep.subr.mxu0 0.0
    %6235 = vmatpush1.msra.mxu0 0.0
    %6236 = vmatprep.subr.mxu0 0.0
    %6237 = vmatpush1.msra.mxu0 0.0
    %6238 = vmatprep.subr.mxu0 0.0
    %6239 = vmatpush1.msra.mxu0 0.0
    %6240 = vmatprep.subr.mxu0 0.0
    %6241 = vmatpush1.msra.mxu0 0.0
    %6242 = vmatprep.subr.mxu0 0.0
    %6243 = vmatpush1.msra.mxu0 0.0
    %6244 = vmatprep.subr.mxu0 0.0
    %6245 = vmatpush1.msra.mxu0 0.0
    %6246 = vmatprep.subr.mxu0 0.0
    %6247 = vmatpush1.msra.mxu0 0.0
    %6248 = vmatprep.mubr.f32.mxu0 0.0
    %6249 = vmatmul.mubr.f32.gmra.mrb[0].mxu0 %v6111
    %v6250 = vpop.f32.mrb[0].mxu0
    %v6251 = vadd.f32 0.0, %v6250
    %v6252 = vpop.f32.mrb[0].mxu0
    %v6253 = vadd.f32 0.0, %v6252
    %6254 = vdwg.mxu0
    %v6259 = vrot.slane %v6180, 2
    %v6260 = vrot.slane %v6182, 2
    %v6261 = vrot.slane %v6251, 2
    %v6262 = vrot.slane %v6253, 2
    %v6263 = vrot.slane %v6180, 3
    %v6264 = vrot.slane %v6182, 3
    %v6265 = vrot.slane %v6251, 3
    %v6266 = vrot.slane %v6253, 3
    %v6275 = vadd.f32 %v4578, %v6259
    %v6276 = vadd.f32 %v4580, %v6260
    %v6277 = vadd.f32 %v4655, %v6261
    %v6278 = vadd.f32 %v4657, %v6262
    %v6279 = vadd.f32 %v4584, %v6263
    %v6280 = vadd.f32 %v4586, %v6264
    %v6281 = vadd.f32 %v4661, %v6265
    %v6282 = vadd.f32 %v4663, %v6266
    %v6283 = vxor.u32 %v6275, 2147483648
    %v6284 = vxor.u32 %v6276, 2147483648
    %v6285 = vxor.u32 %v6278, 2147483648
    %v6286 = vxor.u32 %v6279, 2147483648
    %v6287 = vxor.u32 %v6280, 2147483648
    %v6288 = vxor.u32 %v6282, 2147483648
    %v6289 = vmul.f32 %v6283, 1.442695
    %v6290 = vpow.pop %v6289
    %v6291 = vmul.f32 %v6284, 1.442695
    %v6292 = vpow.pop %v6291
    %v6293 = vmul.f32 %v6285, 1.442695
    %v6294 = vpow.pop %v6293
    %v6295 = vmul.f32 %v6286, 1.442695
    %v6296 = vpow.pop %v6295
    %v6297 = vmul.f32 %v6287, 1.442695
    %v6298 = vpow.pop %v6297
    %v6299 = vmul.f32 %v6288, 1.442695
    %v6300 = vpow.pop %v6299
    %v6301 = vadd.f32 %v6290, 1.0
    %v6302 = vadd.f32 %v6292, 1.0
    %v6303 = vadd.f32 %v6294, 1.0
    %v6304 = vadd.f32 %v6296, 1.0
    %v6305 = vadd.f32 %v6298, 1.0
    %v6306 = vadd.f32 %v6300, 1.0
    %v6307 = vrcp.pop %v6301
    %v6308 = vmul.f32 1.0, %v6307
    %v6309 = vrcp.pop %v6302
    %v6310 = vmul.f32 1.0, %v6309
    %v6311 = vrcp.pop %v6303
    %v6312 = vmul.f32 1.0, %v6311
    %v6313 = vrcp.pop %v6304
    %v6314 = vmul.f32 1.0, %v6313
    %v6315 = vrcp.pop %v6305
    %v6316 = vmul.f32 1.0, %v6315
    %v6317 = vrcp.pop %v6306
    %v6318 = vmul.f32 1.0, %v6317
    %v6319 = vtanh.pop %v6277
    %v6320 = vtanh.pop %v6281
    %v6323 = vrot.slane %v6099, 7
    %v6324 = vrot.slane %v6100, 7
    %v6327 = vmul.f32 %v6310, %v6323
    %v6328 = vmul.f32 %v6316, %v6324
    %v6329 = vmul.f32 %v6308, %v6319
    %v6330 = vmul.f32 %v6314, %v6320
    %v6331 = vadd.f32 %v6327, %v6329
    %v6332 = vadd.f32 %v6328, %v6330
    %v6333 = vtanh.pop %v6331
    %v6334 = vtanh.pop %v6332
    %v6335 = vmul.f32 %v6312, %v6333
    %v6336 = vmul.f32 %v6318, %v6334
    %6337 = vst [vmem:[#allocation2] sm:$0x40] %v6335
    %6338 = vst [vmem:[#allocation2 + $0x8] sm:$0x40] %v6336
    %v6341 = vrot.slane %v6335, 6
    %v6342 = vrot.slane %v6336, 5
    %v6343 = vsel %vm629, %v6342, %v6341
    %6345 = vmatprep.subr.mxu0 %v4666
    %6346 = vmatpush1.msra.mxu0 %v4665
    %6347 = vmatprep.subr.mxu0 %v4670
    %6348 = vmatpush1.msra.mxu0 %v4669
    %6349 = vmatprep.subr.mxu0 %v4674
    %6350 = vmatpush1.msra.mxu0 %v4673
    %6351 = vmatprep.subr.mxu0 %v4678
    %6352 = vmatpush1.msra.mxu0 %v4677
    %6353 = vmatprep.subr.mxu0 %v4682
    %6354 = vmatpush1.msra.mxu0 %v4681
    %6355 = vmatprep.subr.mxu0 %v4686
    %6356 = vmatpush1.msra.mxu0 %v4685
    %6357 = vmatprep.subr.mxu0 %v4690
    %6358 = vmatpush1.msra.mxu0 %v4689
    %6359 = vmatprep.subr.mxu0 %v4694
    %6360 = vmatpush1.msra.mxu0 %v4693
    %6361 = vmatprep.subr.mxu0 %v4698
    %6362 = vmatpush1.msra.mxu0 %v4697
    %6363 = vmatprep.subr.mxu0 %v4702
    %6364 = vmatpush1.msra.mxu0 %v4701
    %6365 = vmatprep.subr.mxu0 %v4706
    %6366 = vmatpush1.msra.mxu0 %v4705
    %6367 = vmatprep.subr.mxu0 %v4710
    %6368 = vmatpush1.msra.mxu0 %v4709
    %6369 = vmatprep.subr.mxu0 %v4714
    %6370 = vmatpush1.msra.mxu0 %v4713
    %6371 = vmatprep.subr.mxu0 %v4718
    %6372 = vmatpush1.msra.mxu0 %v4717
    %6373 = vmatprep.subr.mxu0 %v4722
    %6374 = vmatpush1.msra.mxu0 %v4721
    %6375 = vmatprep.subr.mxu0 %v4726
    %6376 = vmatpush1.msra.mxu0 %v4725
    %6377 = vmatprep.subr.mxu0 0.0
    %6378 = vmatpush1.msra.mxu0 0.0
    %6379 = vmatprep.subr.mxu0 0.0
    %6380 = vmatpush1.msra.mxu0 0.0
    %6381 = vmatprep.subr.mxu0 0.0
    %6382 = vmatpush1.msra.mxu0 0.0
    %6383 = vmatprep.subr.mxu0 0.0
    %6384 = vmatpush1.msra.mxu0 0.0
    %6385 = vmatprep.subr.mxu0 0.0
    %6386 = vmatpush1.msra.mxu0 0.0
    %6387 = vmatprep.subr.mxu0 0.0
    %6388 = vmatpush1.msra.mxu0 0.0
    %6389 = vmatprep.subr.mxu0 0.0
    %6390 = vmatpush1.msra.mxu0 0.0
    %6391 = vmatprep.subr.mxu0 0.0
    %6392 = vmatpush1.msra.mxu0 0.0
    %6393 = vmatprep.subr.mxu0 0.0
    %6394 = vmatpush1.msra.mxu0 0.0
    %6395 = vmatprep.subr.mxu0 0.0
    %6396 = vmatpush1.msra.mxu0 0.0
    %6397 = vmatprep.subr.mxu0 0.0
    %6398 = vmatpush1.msra.mxu0 0.0
    %6399 = vmatprep.subr.mxu0 0.0
    %6400 = vmatpush1.msra.mxu0 0.0
    %6401 = vmatprep.subr.mxu0 0.0
    %6402 = vmatpush1.msra.mxu0 0.0
    %6403 = vmatprep.subr.mxu0 0.0
    %6404 = vmatpush1.msra.mxu0 0.0
    %6405 = vmatprep.subr.mxu0 0.0
    %6406 = vmatpush1.msra.mxu0 0.0
    %6407 = vmatprep.subr.mxu0 0.0
    %6408 = vmatpush1.msra.mxu0 0.0
    %6409 = vmatprep.mubr.f32.mxu0 0.0
    %6410 = vmatmul.mubr.f32.gmra.mrb[0].mxu0 %v6343
    %v6411 = vpop.f32.mrb[0].mxu0
    %v6412 = vadd.f32 0.0, %v6411
    %v6413 = vpop.f32.mrb[0].mxu0
    %v6414 = vadd.f32 0.0, %v6413
    %6415 = vdwg.mxu0
    %6416 = vmatprep.subr.mxu0 %v4668
    %6417 = vmatpush1.msra.mxu0 %v4667
    %6418 = vmatprep.subr.mxu0 %v4672
    %6419 = vmatpush1.msra.mxu0 %v4671
    %6420 = vmatprep.subr.mxu0 %v4676
    %6421 = vmatpush1.msra.mxu0 %v4675
    %6422 = vmatprep.subr.mxu0 %v4680
    %6423 = vmatpush1.msra.mxu0 %v4679
    %6424 = vmatprep.subr.mxu0 %v4684
    %6425 = vmatpush1.msra.mxu0 %v4683
    %6426 = vmatprep.subr.mxu0 %v4688
    %6427 = vmatpush1.msra.mxu0 %v4687
    %6428 = vmatprep.subr.mxu0 %v4692
    %6429 = vmatpush1.msra.mxu0 %v4691
    %6430 = vmatprep.subr.mxu0 %v4696
    %6431 = vmatpush1.msra.mxu0 %v4695
    %6432 = vmatprep.subr.mxu0 %v4700
    %6433 = vmatpush1.msra.mxu0 %v4699
    %6434 = vmatprep.subr.mxu0 %v4704
    %6435 = vmatpush1.msra.mxu0 %v4703
    %6436 = vmatprep.subr.mxu0 %v4708
    %6437 = vmatpush1.msra.mxu0 %v4707
    %6438 = vmatprep.subr.mxu0 %v4712
    %6439 = vmatpush1.msra.mxu0 %v4711
    %6440 = vmatprep.subr.mxu0 %v4716
    %6441 = vmatpush1.msra.mxu0 %v4715
    %6442 = vmatprep.subr.mxu0 %v4720
    %6443 = vmatpush1.msra.mxu0 %v4719
    %6444 = vmatprep.subr.mxu0 %v4724
    %6445 = vmatpush1.msra.mxu0 %v4723
    %6446 = vmatprep.subr.mxu0 %v4728
    %6447 = vmatpush1.msra.mxu0 %v4727
    %6448 = vmatprep.subr.mxu0 0.0
    %6449 = vmatpush1.msra.mxu0 0.0
    %6450 = vmatprep.subr.mxu0 0.0
    %6451 = vmatpush1.msra.mxu0 0.0
    %6452 = vmatprep.subr.mxu0 0.0
    %6453 = vmatpush1.msra.mxu0 0.0
    %6454 = vmatprep.subr.mxu0 0.0
    %6455 = vmatpush1.msra.mxu0 0.0
    %6456 = vmatprep.subr.mxu0 0.0
    %6457 = vmatpush1.msra.mxu0 0.0
    %6458 = vmatprep.subr.mxu0 0.0
    %6459 = vmatpush1.msra.mxu0 0.0
    %6460 = vmatprep.subr.mxu0 0.0
    %6461 = vmatpush1.msra.mxu0 0.0
    %6462 = vmatprep.subr.mxu0 0.0
    %6463 = vmatpush1.msra.mxu0 0.0
    %6464 = vmatprep.subr.mxu0 0.0
    %6465 = vmatpush1.msra.mxu0 0.0
    %6466 = vmatprep.subr.mxu0 0.0
    %6467 = vmatpush1.msra.mxu0 0.0
    %6468 = vmatprep.subr.mxu0 0.0
    %6469 = vmatpush1.msra.mxu0 0.0
    %6470 = vmatprep.subr.mxu0 0.0
    %6471 = vmatpush1.msra.mxu0 0.0
    %6472 = vmatprep.subr.mxu0 0.0
    %6473 = vmatpush1.msra.mxu0 0.0
    %6474 = vmatprep.subr.mxu0 0.0
    %6475 = vmatpush1.msra.mxu0 0.0
    %6476 = vmatprep.subr.mxu0 0.0
    %6477 = vmatpush1.msra.mxu0 0.0
    %6478 = vmatprep.subr.mxu0 0.0
    %6479 = vmatpush1.msra.mxu0 0.0
    %6480 = vmatprep.mubr.f32.mxu0 0.0
    %6481 = vmatmul.mubr.f32.gmra.mrb[0].mxu0 %v6343
    %v6482 = vpop.f32.mrb[0].mxu0
    %v6483 = vadd.f32 0.0, %v6482
    %v6484 = vpop.f32.mrb[0].mxu0
    %v6485 = vadd.f32 0.0, %v6484
    %6486 = vdwg.mxu0
    %v6491 = vrot.slane %v6412, 1
    %v6492 = vrot.slane %v6414, 1
    %v6493 = vrot.slane %v6483, 1
    %v6494 = vrot.slane %v6485, 1
    %v6495 = vrot.slane %v6412, 2
    %v6496 = vrot.slane %v6414, 2
    %v6497 = vrot.slane %v6483, 2
    %v6498 = vrot.slane %v6485, 2
    %v6507 = vadd.f32 %v4578, %v6491
    %v6508 = vadd.f32 %v4580, %v6492
    %v6509 = vadd.f32 %v4655, %v6493
    %v6510 = vadd.f32 %v4657, %v6494
    %v6511 = vadd.f32 %v4584, %v6495
    %v6512 = vadd.f32 %v4586, %v6496
    %v6513 = vadd.f32 %v4661, %v6497
    %v6514 = vadd.f32 %v4663, %v6498
    %v6515 = vxor.u32 %v6507, 2147483648
    %v6516 = vxor.u32 %v6508, 2147483648
    %v6517 = vxor.u32 %v6510, 2147483648
    %v6518 = vxor.u32 %v6511, 2147483648
    %v6519 = vxor.u32 %v6512, 2147483648
    %v6520 = vxor.u32 %v6514, 2147483648
    %v6521 = vmul.f32 %v6515, 1.442695
    %v6522 = vpow.pop %v6521
    %v6523 = vmul.f32 %v6516, 1.442695
    %v6524 = vpow.pop %v6523
    %v6525 = vmul.f32 %v6517, 1.442695
    %v6526 = vpow.pop %v6525
    %v6527 = vmul.f32 %v6518, 1.442695
    %v6528 = vpow.pop %v6527
    %v6529 = vmul.f32 %v6519, 1.442695
    %v6530 = vpow.pop %v6529
    %v6531 = vmul.f32 %v6520, 1.442695
    %v6532 = vpow.pop %v6531
    %v6533 = vadd.f32 %v6522, 1.0
    %v6534 = vadd.f32 %v6524, 1.0
    %v6535 = vadd.f32 %v6526, 1.0
    %v6536 = vadd.f32 %v6528, 1.0
    %v6537 = vadd.f32 %v6530, 1.0
    %v6538 = vadd.f32 %v6532, 1.0
    %v6539 = vrcp.pop %v6533
    %v6540 = vmul.f32 1.0, %v6539
    %v6541 = vrcp.pop %v6534
    %v6542 = vmul.f32 1.0, %v6541
    %v6543 = vrcp.pop %v6535
    %v6544 = vmul.f32 1.0, %v6543
    %v6545 = vrcp.pop %v6536
    %v6546 = vmul.f32 1.0, %v6545
    %v6547 = vrcp.pop %v6537
    %v6548 = vmul.f32 1.0, %v6547
    %v6549 = vrcp.pop %v6538
    %v6550 = vmul.f32 1.0, %v6549
    %v6551 = vtanh.pop %v6509
    %v6552 = vtanh.pop %v6513
    %v6555 = vrot.slane %v6331, 7
    %v6556 = vrot.slane %v6332, 7
    %v6559 = vmul.f32 %v6542, %v6555
    %v6560 = vmul.f32 %v6548, %v6556
    %v6561 = vmul.f32 %v6540, %v6551
    %v6562 = vmul.f32 %v6546, %v6552
    %v6563 = vadd.f32 %v6559, %v6561
    %v6564 = vadd.f32 %v6560, %v6562
    %v6565 = vtanh.pop %v6563
    %v6566 = vtanh.pop %v6564
    %v6567 = vmul.f32 %v6544, %v6565
    %v6568 = vmul.f32 %v6550, %v6566
    %6569 = vst [vmem:[#allocation2] sm:$0x80] %v6567
    %6570 = vst [vmem:[#allocation2 + $0x8] sm:$0x80] %v6568
    %v6573 = vrot.slane %v6568, 7
    %s6576 = scalar_lea.vmem [#allocation16], 4
    %6577 = vst [vmem:[%s6576 - $0x7] sm:$0x80] %v6567
    %6578 = vst [vmem:[%s6576 + $0x1] sm:$0x1] %v6573
    %v6581 = vrot.slane %v6564, 7
    %s6584 = scalar_lea.vmem [#allocation18], 4
    %6585 = vst [vmem:[%s6584 - $0x7] sm:$0x80] %v6563
    %6586 = vst [vmem:[%s6584 + $0x1] sm:$0x1] %v6581
    %v6587 = vld [vmem:[#allocation2] sm:$0xff]
    %v6588 = vld [vmem:[#allocation2 + $0x8] sm:$0xff]
    %v6589 = vld [vmem:[#allocation14] sm:$0xff]
    %v6590 = vld [vmem:[#allocation14 + $0x8] sm:$0xff]
    %v6591 = vld [vmem:[#allocation14 + $0x10] sm:$0xff]
    %v6592 = vld [vmem:[#allocation14 + $0x18] sm:$0xff]
    %v6593 = vld [vmem:[#allocation14 + $0x20] sm:$0xff]
    %v6594 = vld [vmem:[#allocation14 + $0x28] sm:$0xff]
    %v6595 = vld [vmem:[#allocation14 + $0x30] sm:$0xff]
    %v6596 = vld [vmem:[#allocation14 + $0x38] sm:$0xff]
    %v6597 = vld [vmem:[#allocation14 + $0x40] sm:$0xff]
    %v6598 = vld [vmem:[#allocation14 + $0x48] sm:$0xff]
    %v6599 = vld [vmem:[#allocation14 + $0x50] sm:$0xff]
    %v6600 = vld [vmem:[#allocation14 + $0x58] sm:$0xff]
    %v6601 = vld [vmem:[#allocation14 + $0x60] sm:$0xff]
    %v6602 = vld [vmem:[#allocation14 + $0x68] sm:$0xff]
    %v6603 = vld [vmem:[#allocation14 + $0x70] sm:$0xff]
    %v6604 = vld [vmem:[#allocation14 + $0x78] sm:$0xff]
    %v6605 = vld [vmem:[%s13] sm:$0x1]
    %v6607 = vlaneseq
    %v6608 = vshrl.u32 %v6607, 7
    %v6609 = vsub.s32 0, %v6608
    %v6610 = vrot.slane %v6605, %v6609
    %6612 = vmatprep.subr.mxu0 0.0
    %6613 = vmatpush1.msra.mxu0 %v6589
    %6614 = vmatprep.subr.mxu0 0.0
    %6615 = vmatpush1.msra.mxu0 %v6590
    %6616 = vmatprep.subr.mxu0 0.0
    %6617 = vmatpush1.msra.mxu0 %v6591
    %6618 = vmatprep.subr.mxu0 0.0
    %6619 = vmatpush1.msra.mxu0 %v6592
    %6620 = vmatprep.subr.mxu0 0.0
    %6621 = vmatpush1.msra.mxu0 %v6593
    %6622 = vmatprep.subr.mxu0 0.0
    %6623 = vmatpush1.msra.mxu0 %v6594
    %6624 = vmatprep.subr.mxu0 0.0
    %6625 = vmatpush1.msra.mxu0 %v6595
    %6626 = vmatprep.subr.mxu0 0.0
    %6627 = vmatpush1.msra.mxu0 %v6596
    %6628 = vmatprep.subr.mxu0 0.0
    %6629 = vmatpush1.msra.mxu0 %v6597
    %6630 = vmatprep.subr.mxu0 0.0
    %6631 = vmatpush1.msra.mxu0 %v6598
    %6632 = vmatprep.subr.mxu0 0.0
    %6633 = vmatpush1.msra.mxu0 %v6599
    %6634 = vmatprep.subr.mxu0 0.0
    %6635 = vmatpush1.msra.mxu0 %v6600
    %6636 = vmatprep.subr.mxu0 0.0
    %6637 = vmatpush1.msra.mxu0 %v6601
    %6638 = vmatprep.subr.mxu0 0.0
    %6639 = vmatpush1.msra.mxu0 %v6602
    %6640 = vmatprep.subr.mxu0 0.0
    %6641 = vmatpush1.msra.mxu0 %v6603
    %6642 = vmatprep.subr.mxu0 0.0
    %6643 = vmatpush1.msra.mxu0 %v6604
    %6644 = vmatprep.subr.mxu0 0.0
    %6645 = vmatpush1.msra.mxu0 0.0
    %6646 = vmatprep.subr.mxu0 0.0
    %6647 = vmatpush1.msra.mxu0 0.0
    %6648 = vmatprep.subr.mxu0 0.0
    %6649 = vmatpush1.msra.mxu0 0.0
    %6650 = vmatprep.subr.mxu0 0.0
    %6651 = vmatpush1.msra.mxu0 0.0
    %6652 = vmatprep.subr.mxu0 0.0
    %6653 = vmatpush1.msra.mxu0 0.0
    %6654 = vmatprep.subr.mxu0 0.0
    %6655 = vmatpush1.msra.mxu0 0.0
    %6656 = vmatprep.subr.mxu0 0.0
    %6657 = vmatpush1.msra.mxu0 0.0
    %6658 = vmatprep.subr.mxu0 0.0
    %6659 = vmatpush1.msra.mxu0 0.0
    %6660 = vmatprep.subr.mxu0 0.0
    %6661 = vmatpush1.msra.mxu0 0.0
    %6662 = vmatprep.subr.mxu0 0.0
    %6663 = vmatpush1.msra.mxu0 0.0
    %6664 = vmatprep.subr.mxu0 0.0
    %6665 = vmatpush1.msra.mxu0 0.0
    %6666 = vmatprep.subr.mxu0 0.0
    %6667 = vmatpush1.msra.mxu0 0.0
    %6668 = vmatprep.subr.mxu0 0.0
    %6669 = vmatpush1.msra.mxu0 0.0
    %6670 = vmatprep.subr.mxu0 0.0
    %6671 = vmatpush1.msra.mxu0 0.0
    %6672 = vmatprep.subr.mxu0 0.0
    %6673 = vmatpush1.msra.mxu0 0.0
    %6674 = vmatprep.subr.mxu0 0.0
    %6675 = vmatpush1.msra.mxu0 0.0
    %6676 = vmatprep.mubr.f32.mxu0 0.0
    %6677 = vmatmul.mubr.f32.gmra.mrb[0].mxu0 %v6587
    %v6678 = vpop.f32.mrb[0].mxu0
    %v6679 = vadd.f32 %v6610, %v6678
    %v6680 = vpop.f32.mrb[0].mxu0
    %6681 = vmatprep.mubr.f32.mxu0 0.0
    %6682 = vmatmul.mubr.f32.gmra.mrb[0].mxu0 %v6588
    %v6683 = vpop.f32.mrb[0].mxu0
    %v6684 = vadd.f32 %v6610, %v6683
    %v6685 = vpop.f32.mrb[0].mxu0
    %6686 = vdwg.mxu0
    %6687 = vst [vmem:[#allocation15] sm:$0xff] %v6679
    %6688 = vst [vmem:[#allocation15 + $0x8] sm:$0xff] %v6684
    // Predicated region
    $region86: #{char_rnn_forward.1} parent=1 // pred_check
      _
    $region87: #{char_rnn_forward.1} parent=1 // pred_check_branch
      %6690 = sbr.rel (0) target = $region89
    $region88: #{char_rnn_forward.1} parent=1 // pred_region
      %s6692 = ssub.s32 256, 256
      %6693 = vsyncadd [#allocation5], %s6692
      %s6694 = sshll.u32 [#allocation15], 4
      %s6695 = int_to_ptr.vmem [resolvable:$true] %s6694
      %6700 = dma.vmem_to_hbm [thread:$0]  %s6695, 256, %s14, [#allocation5], 128, 128, 8
    $region89: #{char_rnn_forward.1} parent=1 // pred_fallthru
      _
    // Predicated region
    $region90: #{char_rnn_forward.1} parent=1 // pred_check
      _
    $region91: #{char_rnn_forward.1} parent=1 // pred_check_branch
      %6702 = sbr.rel (0) target = $region93
    $region92: #{char_rnn_forward.1} parent=1 // pred_region
      %s6704 = ssub.s32 96, 96
      %6705 = vsyncadd [#allocation17], %s6704
      %s6706 = sshll.u32 [#allocation16], 4
      %s6707 = int_to_ptr.vmem [resolvable:$true] %s6706
      %6712 = dma.vmem_to_hbm [thread:$0]  %s6707, 96, %s15, [#allocation17], 32, 32, 2
    $region93: #{char_rnn_forward.1} parent=1 // pred_fallthru
      _
    // Predicated region
    $region94: #{char_rnn_forward.1} parent=1 // pred_check
      _
    $region95: #{char_rnn_forward.1} parent=1 // pred_check_branch
      %6714 = sbr.rel (0) target = $region97
    $region96: #{char_rnn_forward.1} parent=1 // pred_region
      %s6716 = ssub.s32 96, 96
      %6717 = vsyncadd [#allocation17], %s6716
      %s6718 = sshll.u32 [#allocation18], 4
      %s6719 = int_to_ptr.vmem [resolvable:$true] %s6718
      %6724 = dma.vmem_to_hbm [thread:$0]  %s6719, 96, %s16, [#allocation17], 32, 32, 2
    $region97: #{char_rnn_forward.1} parent=1 // pred_fallthru
      _
    // Predicated region
    $region98: #{char_rnn_forward.1} parent=1 // pred_check
      _
    $region99: #{char_rnn_forward.1} parent=1 // pred_check_branch
      %6726 = sbr.rel (0) target = $region101
    $region100: #{char_rnn_forward.1} parent=1 // pred_region
      %6727 = dma.done [#allocation5], 256
    $region101: #{char_rnn_forward.1} parent=1 // pred_fallthru
      _
    // Predicated region
    $region102: #{char_rnn_forward.1} parent=1 // pred_check
      _
    $region103: #{char_rnn_forward.1} parent=1 // pred_check_branch
      %6729 = sbr.rel (0) target = $region105
    $region104: #{char_rnn_forward.1} parent=1 // pred_region
      %6730 = dma.done [#allocation17], 96
    $region105: #{char_rnn_forward.1} parent=1 // pred_fallthru
      _
    // Predicated region
    $region106: #{char_rnn_forward.1} parent=1 // pred_check
      _
    $region107: #{char_rnn_forward.1} parent=1 // pred_check_branch
      %6732 = sbr.rel (0) target = $region109
    $region108: #{char_rnn_forward.1} parent=1 // pred_region
      %6733 = dma.done [#allocation17], 96
    $region109: #{char_rnn_forward.1} parent=1 // pred_fallthru
      _
    %6734 = vsyncpa [#allocation4], 1
    %6735 = vsyncpa [#allocation7], 1
    %6736 = vsyncpa [#allocation10], 1
    %6737 = vsyncpa [#allocation13], 1
    %6738 = vsyncpa [#allocation5], 1
    %6739 = vsyncpa [#allocation17], 1

</llo_original>
